<compile_context>
chip_gen: v6e
topology: v6e:2x2x1
jax: 0.10.0
libtpu: 0.0.40
codegen_flags: <defaults>
</compile_context>

<pallas_src>
import functools
import math

import jax
import jax.numpy as jnp
from jax.experimental import pallas as pl
from jax.experimental.pallas import tpu as pltpu

VMEM = pltpu.MemorySpace.VMEM
LN_EPS = 1e-5  # torch.nn.LayerNorm default


def _vspec():
    return pl.BlockSpec(memory_space=VMEM)


def _vspecs(n):
    return [_vspec() for _ in range(n)]


# ----------------------------------------------------------------------------
# Pallas kernels
# ----------------------------------------------------------------------------
def _linear_kernel(x_ref, w_ref, b_ref, o_ref, *, act):
    y = jnp.dot(x_ref[...], w_ref[...], preferred_element_type=jnp.float32) + b_ref[...]
    if act == "relu":
        y = jnp.maximum(y, 0.0)
    elif act == "gelu":
        y = jax.nn.gelu(y, approximate=True)
    o_ref[...] = y


def linear(x, w, b, act="none"):
    return pl.pallas_call(
        functools.partial(_linear_kernel, act=act),
        out_shape=jax.ShapeDtypeStruct((x.shape[0], w.shape[1]), jnp.float32),
        in_specs=_vspecs(3),
        out_specs=_vspec(),
    )(x, w, b)


def _mlp2_kernel(x_ref, w1_ref, b1_ref, w2_ref, b2_ref, o_ref, *, act):
    h = jnp.dot(x_ref[...], w1_ref[...], preferred_element_type=jnp.float32) + b1_ref[...]
    if act == "gelu":
        h = jax.nn.gelu(h, approximate=True)
    else:  # relu
        h = jnp.maximum(h, 0.0)
    o_ref[...] = jnp.dot(h, w2_ref[...], preferred_element_type=jnp.float32) + b2_ref[...]


def mlp2(x, w1, b1, w2, b2, act="gelu"):
    """Fused Linear -> activation -> Linear (dropout = identity in eval mode)."""
    return pl.pallas_call(
        functools.partial(_mlp2_kernel, act=act),
        out_shape=jax.ShapeDtypeStruct((x.shape[0], w2.shape[1]), jnp.float32),
        in_specs=_vspecs(5),
        out_specs=_vspec(),
    )(x, w1, b1, w2, b2)


def mlp2_tiled(x, w1, b1, w2, b2, act="relu", row_block=256):
    """Row-tiled Linear -> act -> Linear.

    Weights use a constant block index (stay VMEM-resident across grid steps); the
    independent row axis is marked "parallel" so both TensorCores split it on v7x and
    the double-buffered pipeline overlaps DMA with MXU work everywhere.
    """
    M, Fin = x.shape
    Fout = w2.shape[1]
    rb = max(8, (min(row_block, M) // 8) * 8)
    Mp = ((M + rb - 1) // rb) * rb
    xp = jnp.pad(x, ((0, Mp - M), (0, 0))) if Mp != M else x
    out = pl.pallas_call(
        functools.partial(_mlp2_kernel, act=act),
        grid=(Mp // rb,),
        in_specs=[
            pl.BlockSpec((rb, Fin), lambda i: (i, 0)),
            pl.BlockSpec(w1.shape, lambda i: (0, 0)),
            pl.BlockSpec((1, b1.shape[1]), lambda i: (0, 0)),
            pl.BlockSpec(w2.shape, lambda i: (0, 0)),
            pl.BlockSpec((1, b2.shape[1]), lambda i: (0, 0)),
        ],
        out_specs=pl.BlockSpec((rb, Fout), lambda i: (i, 0)),
        out_shape=jax.ShapeDtypeStruct((Mp, Fout), jnp.float32),
        compiler_params=pltpu.CompilerParams(dimension_semantics=("parallel",)),
    )(xp, w1, b1, w2, b2)
    return out[:M] if Mp != M else out


def _nnconv_kernel(hflat_ref, wmat_ref, o_ref):
    """NNConv message sum as one adjacency-pre-masked GEMV (bf16 weights, f32 acc):
       m_flat[v*d + j] = sum_{u,i} h[u, i] * W[u, v, i, j]."""
    o_ref[...] = jnp.dot(hflat_ref[...].astype(jnp.bfloat16), wmat_ref[...],
                         preferred_element_type=jnp.float32)


def _gru_kernel(m_ref, convb_ref, h_ref, wi_ref, bi_ref, wh_ref, bh_ref, o_ref, *, d):
    """Finish NNConv (bias + ReLU) then a fused-gate GRU cell (PyTorch gate order r|z|n)."""
    x = jnp.maximum(m_ref[...] + convb_ref[...], 0.0)          # F.relu(gnn_layer(...))
    h = h_ref[...]
    gi = jnp.dot(x, wi_ref[...], preferred_element_type=jnp.float32) + bi_ref[...]
    gh = jnp.dot(h, wh_ref[...], preferred_element_type=jnp.float32) + bh_ref[...]
    r = jax.nn.sigmoid(gi[:, :d] + gh[:, :d])
    z = jax.nn.sigmoid(gi[:, d:2 * d] + gh[:, d:2 * d])
    n = jnp.tanh(gi[:, 2 * d:] + r * gh[:, 2 * d:])
    o_ref[...] = (1.0 - z) * n + z * h


def _attn_layer_kernel(x_ref, bias_ref, mask_ref, ln1g_ref, ln1b_ref,
                       wqkvg_ref, bqkvg_ref, wo_ref, bo_ref,
                       o_ref, attn_ref, *, heads, eps):
    """Pre-LN + multi-head self-attention (per-head pair bias, sigmoid gating) + residual."""
    x = x_ref[...]
    L, D = x.shape
    dk = D // heads
    scale = 1.0 / math.sqrt(dk)

    # fused pre-LayerNorm
    mu = jnp.mean(x, axis=-1, keepdims=True)
    var = jnp.mean((x - mu) ** 2, axis=-1, keepdims=True)
    xn = (x - mu) * jax.lax.rsqrt(var + eps) * ln1g_ref[...] + ln1b_ref[...]

    # one lane-dense matmul for Q | K | V | Gate
    y = jnp.dot(xn, wqkvg_ref[...], preferred_element_type=jnp.float32) + bqkvg_ref[...]
    q, k, v = y[:, :D], y[:, D:2 * D], y[:, 2 * D:3 * D]
    g = jax.nn.sigmoid(y[:, 3 * D:])

    # head-batched attention: [H, L, dk] built from static lane slices (no minor-dim reshape)
    qh = jnp.concatenate([q[:, h * dk:(h + 1) * dk][None] for h in range(heads)], axis=0)
    kh = jnp.concatenate([k[:, h * dk:(h + 1) * dk][None] for h in range(heads)], axis=0)
    vh = jnp.concatenate([v[:, h * dk:(h + 1) * dk][None] for h in range(heads)], axis=0)

    s = jnp.einsum("hqd,hkd->hqk", qh, kh, preferred_element_type=jnp.float32) * scale
    s = s + bias_ref[...]
    keymask = mask_ref[...] > 0.0                       # (1, L) -> broadcast over [H, L, L]
    s = jnp.where(keymask[None], s, -1e9)
    s = s - jnp.max(s, axis=-1, keepdims=True)
    p = jnp.exp(s)
    p = p / jnp.sum(p, axis=-1, keepdims=True)
    attn_ref[...] = p                                   # one full [H, L, L] store

    ctx_h = jnp.einsum("hqk,hkd->hqd", p, vh, preferred_element_type=jnp.float32)
    ctx = jnp.concatenate([ctx_h[h] for h in range(heads)], axis=-1)   # [L, D]
    m = jnp.dot(ctx * g, wo_ref[...], preferred_element_type=jnp.float32) + bo_ref[...]
    o_ref[...] = x + m                                  # fused residual add


def _ffn_layer_kernel(x_ref, w1_ref, b1_ref, w2_ref, b2_ref, ln2g_ref, ln2b_ref, o_ref, *, eps):
    """FFN (Linear -> GELU -> Linear) + residual + LayerNorm fused in one kernel."""
    x = x_ref[...]
    h = jnp.dot(x, w1_ref[...], preferred_element_type=jnp.float32) + b1_ref[...]
    h = jax.nn.gelu(h, approximate=True)
    h = jnp.dot(h, w2_ref[...], preferred_element_type=jnp.float32) + b2_ref[...]
    y = x + h
    mu = jnp.mean(y, axis=-1, keepdims=True)
    var = jnp.mean((y - mu) ** 2, axis=-1, keepdims=True)
    o_ref[...] = (y - mu) * jax.lax.rsqrt(var + eps) * ln2g_ref[...] + ln2b_ref[...]


def _pool_bond_kernel(pair_ref, pw1_ref, pb1_ref, pw2_ref, pb2_ref,
                      bw1_ref, bb1_ref, bw2_ref, bb2_ref,
                      rout_ref, feat_ref):
    """Fused pooling head (softmax over 2 logits) + bondnet head, sharing the pair load."""
    x = pair_ref[...]
    h = jax.nn.gelu(jnp.dot(x, pw1_ref[...], preferred_element_type=jnp.float32) + pb1_ref[...],
                    approximate=True)
    logits = jnp.dot(h, pw2_ref[...], preferred_element_type=jnp.float32) + pb2_ref[...]
    lmax = jnp.max(logits, axis=-1, keepdims=True)
    e = jnp.exp(logits - lmax)
    rout_ref[...] = e / jnp.sum(e, axis=-1, keepdims=True)
    h2 = jax.nn.gelu(jnp.dot(x, bw1_ref[...], preferred_element_type=jnp.float32) + bb1_ref[...],
                     approximate=True)
    feat_ref[...] = jnp.dot(h2, bw2_ref[...], preferred_element_type=jnp.float32) + bb2_ref[...]


# ----------------------------------------------------------------------------
# Model stages
# ----------------------------------------------------------------------------
def mpnn(node_feats, edge_feats, adj, p, num_steps):
    """MPNNGNN: project nodes, then (NNConv + GRU) * num_steps."""
    N = node_feats.shape[0]
    d = p["proj_w"].shape[1]
    h = linear(node_feats, p["proj_w"], p["proj_b"], act="relu")            # [N, d]

    # Edge network: per (u, v) pair a d x d message weight (row-tiled Pallas MLP).
    e_flat = edge_feats.reshape(N * N, -1)
    we = mlp2_tiled(e_flat, p["edge_w1"], p["edge_b1"], p["edge_w2"], p["edge_b2"],
                    act="relu")                                             # [N*N, d*d]
    # Pre-mask by adjacency ONCE (non-edges contribute nothing): no kron, no per-step
    # adjacency DMA.  bf16 storage halves the per-step DMA of the model's largest tensor.
    we = we * adj.reshape(N * N, 1)
    wmat = (we.reshape(N, N, d, d).transpose(0, 2, 1, 3)
              .reshape(N * d, N * d).astype(jnp.bfloat16))

    # TODO(synk): keeping wmat resident across all steps in one kernel needs an in-kernel
    # (N, d) <-> (1, N*d) relayout; it is done as XLA glue between the two fused kernels.
    for _ in range(num_steps):
        mflat = pl.pallas_call(
            _nnconv_kernel,
            out_shape=jax.ShapeDtypeStruct((1, N * d), jnp.float32),
            in_specs=_vspecs(2),
            out_specs=_vspec(),
        )(h.reshape(1, N * d), wmat)
        h = pl.pallas_call(
            functools.partial(_gru_kernel, d=d),
            out_shape=jax.ShapeDtypeStruct((N, d), jnp.float32),
            in_specs=_vspecs(7),
            out_specs=_vspec(),
        )(mflat.reshape(N, d), p["conv_b"], h,
          p["gru_wi"], p["gru_bi"], p["gru_wh"], p["gru_bh"])
    return h


def attn_layer(x, bias, mask, lp, heads):
    L, D = x.shape
    wqkvg = jnp.concatenate([lp["wq"], lp["wk"], lp["wv"], lp["wg"]], axis=1)   # [D, 4D]
    bqkvg = jnp.concatenate([lp["bq"], lp["bk"], lp["bv"], lp["bg"]], axis=1)   # [1, 4D]
    return pl.pallas_call(
        functools.partial(_attn_layer_kernel, heads=heads, eps=LN_EPS),
        out_shape=(jax.ShapeDtypeStruct((L, D), jnp.float32),
                   jax.ShapeDtypeStruct((heads, L, L), jnp.float32)),
        in_specs=_vspecs(9),
        out_specs=(_vspec(), _vspec()),
    )(x, bias, mask, lp["ln1_g"], lp["ln1_b"], wqkvg, bqkvg, lp["wo"], lp["bo"])


def ffn_layer(x, lp):
    L, D = x.shape
    return pl.pallas_call(
        functools.partial(_ffn_layer_kernel, eps=LN_EPS),
        out_shape=jax.ShapeDtypeStruct((L, D), jnp.float32),
        in_specs=_vspecs(7),
        out_specs=_vspec(),
    )(x, lp["ff_w1"], lp["ff_b1"], lp["ff_w2"], lp["ff_b2"], lp["ln2_g"], lp["ln2_b"])


def global_reactivity_attention(x, rpm, mask, stack_params, heads, p_k):
    att_scores = {}
    rpm_c = jnp.clip(rpm, 0, p_k - 1)                  # hoisted: layer-invariant
    for n, lp in enumerate(stack_params):
        bias = jnp.transpose(lp["rel"][rpm_c], (2, 0, 1))   # [H, L, L] per-head pair bias
        x, attn = attn_layer(x, bias, mask, lp, heads)      # pre-LN + MHA + residual
        att_scores[n] = attn
        x = ffn_layer(x, lp)                                # FFN + residual + LN
    return x, att_scores


def reactive_pooling(atom_feats, bonds_dict, params):
    idxs_dict, rout_dict, feats_list, bond_list = {}, {}, [], []
    for bond_type in ("virtual", "real"):
        bonds = bonds_dict[bond_type]                                          # [M, 2]
        pair = jnp.concatenate([atom_feats[bonds[:, 0]], atom_feats[bonds[:, 1]]], axis=-1)
        pp = params["pooling"][bond_type]
        bp = params["bondnet"][bond_type]
        M = bonds.shape[0]
        d_out = bp["w2"].shape[1]
        rout, feats = pl.pallas_call(
            _pool_bond_kernel,
            out_shape=(jax.ShapeDtypeStruct((M, 2), jnp.float32),
                       jax.ShapeDtypeStruct((M, d_out), jnp.float32)),
            in_specs=_vspecs(9),
            out_specs=(_vspec(), _vspec()),
        )(pair, pp["w1"], pp["b1"], pp["w2"], pp["b2"],
          bp["w1"], bp["b1"], bp["w2"], bp["b2"])
        # TODO(synk): reference selects a data-dependent top-k of reactive bonds per graph;
        # here every candidate bond is kept so shapes stay static.
        rout_dict[bond_type] = rout
        idxs_dict[bond_type] = jnp.arange(M, dtype=jnp.int32)
        feats_list.append(feats)
        bond_list.append(bonds)
    return idxs_dict, rout_dict, feats_list, bond_list


def pack_bond_feats(feats_list, bond_list):
    feats = jnp.concatenate(feats_list, axis=0)
    bonds = jnp.concatenate(bond_list, axis=0)
    # bcm[i, j] = 1 iff bonds i and j share an atom (positional ids in {0, 1}).
    share = ((bonds[:, None, 0] == bonds[None, :, 0]) |
             (bonds[:, None, 0] == bonds[None, :, 1]) |
             (bonds[:, None, 1] == bonds[None, :, 0]) |
             (bonds[:, None, 1] == bonds[None, :, 1]))
    bcm = share.astype(jnp.int32)
    mask = jnp.ones((1, feats.shape[0]), jnp.float32)
    return feats, mask, bcm


def local_transform_forward(params, node_feats, edge_feats, adj, adms, bonds_v, bonds_r, *, cfg):
    heads, steps = cfg["heads"], cfg["steps"]
    atom_feats = mpnn(node_feats, edge_feats, adj, params, steps)              # [N, d]
    # pack_atom_feats (single graph): sequence of length N, all-ones mask.
    mask_a = jnp.ones((1, atom_feats.shape[0]), jnp.float32)
    atom_feats, atom_attention = global_reactivity_attention(
        atom_feats, adms, mask_a, params["atom_att"], heads, 8)
    bonds_dict = {"virtual": bonds_v, "real": bonds_r}
    idxs_dict, rout_dict, feats_list, bond_list = reactive_pooling(atom_feats, bonds_dict, params)
    bond_feats, mask_b, bcm = pack_bond_feats(feats_list, bond_list)
    bond_feats, bond_attention = global_reactivity_attention(
        bond_feats, bcm, mask_b, params["bond_att"], heads, 2)
    Mv = bonds_v.shape[0]
    feats_v, feats_r = bond_feats[:Mv], bond_feats[Mv:]
    pv, pr = params["output_v"], params["output_r"]
    template_v = mlp2(feats_v, pv["w1"], pv["b1"], pv["w2"], pv["b2"], act="gelu")
    template_r = mlp2(feats_r, pr["w1"], pr["b1"], pr["w2"], pr["b2"], act="gelu")
    return (template_v, template_r,
            rout_dict["virtual"], rout_dict["real"],
            idxs_dict["virtual"], idxs_dict["real"],
            (atom_attention, bond_attention))


# ----------------------------------------------------------------------------
# Deterministic parameter initialization
# ----------------------------------------------------------------------------
def init_linear(key, fin, fout):
    kw, kb = jax.random.split(key)
    s = 1.0 / math.sqrt(fin)
    w = jax.random.uniform(kw, (fin, fout), jnp.float32, -s, s)
    b = jax.random.uniform(kb, (1, fout), jnp.float32, -s, s)
    return w, b


def init_attention_stack(key, d, heads, layers, p_k):
    stack = []
    for _ in range(layers):
        keys = jax.random.split(key, 10)
        key = keys[0]
        lp = {}
        lp["wq"], lp["bq"] = init_linear(keys[1], d, d)
        lp["wk"], lp["bk"] = init_linear(keys[2], d, d)
        lp["wv"], lp["bv"] = init_linear(keys[3], d, d)
        lp["wg"], lp["bg"] = init_linear(keys[4], d, d)
        lp["wo"], lp["bo"] = init_linear(keys[5], d, d)
        lp["rel"] = jax.random.normal(keys[6], (p_k, heads), jnp.float32) * 0.1
        lp["ff_w1"], lp["ff_b1"] = init_linear(keys[7], d, 2 * d)
        lp["ff_w2"], lp["ff_b2"] = init_linear(keys[8], 2 * d, d)
        lp["ln1_g"], lp["ln1_b"] = jnp.ones((1, d)), jnp.zeros((1, d))
        lp["ln2_g"], lp["ln2_b"] = jnp.ones((1, d)), jnp.zeros((1, d))
        stack.append(lp)
    return stack


def init_params(key, cfg):
    node_in, edge_in, d, eh = cfg["node_in"], cfg["edge_in"], cfg["d"], cfg["edge_hidden"]
    heads, layers = cfg["heads"], cfg["layers"]
    Tvn, Trn = cfg["Tvn"], cfg["Trn"]
    keys = iter(jax.random.split(key, 64))
    p = {}
    # MPNNGNN
    p["proj_w"], p["proj_b"] = init_linear(next(keys), node_in, d)
    p["edge_w1"], p["edge_b1"] = init_linear(next(keys), edge_in, eh)
    p["edge_w2"], p["edge_b2"] = init_linear(next(keys), eh, d * d)
    _, p["conv_b"] = init_linear(next(keys), d, d)
    # GRU cell with fused gates (column order r | z | n, matching PyTorch).
    p["gru_wi"], p["gru_bi"] = init_linear(next(keys), d, 3 * d)
    p["gru_wh"], p["gru_bh"] = init_linear(next(keys), d, 3 * d)
    # Attention stacks (atoms: positional_number=8, bonds: positional_number=2)
    p["atom_att"] = init_attention_stack(next(keys), d, heads, layers, 8)
    p["bond_att"] = init_attention_stack(next(keys), d, heads, layers, 2)
    # Pooling / bondnet heads
    p["pooling"], p["bondnet"] = {}, {}
    for bt in ("virtual", "real"):
        w1, b1 = init_linear(next(keys), 2 * d, d)
        w2, b2 = init_linear(next(keys), d, 2)
        p["pooling"][bt] = dict(w1=w1, b1=b1, w2=w2, b2=b2)
        w1, b1 = init_linear(next(keys), 2 * d, d)
        w2, b2 = init_linear(next(keys), d, d)
        p["bondnet"][bt] = dict(w1=w1, b1=b1, w2=w2, b2=b2)
    # Output heads
    w1, b1 = init_linear(next(keys), d, d)
    w2, b2 = init_linear(next(keys), d, Tvn + 1)
    p["output_v"] = dict(w1=w1, b1=b1, w2=w2, b2=b2)
    w1, b1 = init_linear(next(keys), d, d)
    w2, b2 = init_linear(next(keys), d, Trn + 1)
    p["output_r"] = dict(w1=w1, b1=b1, w2=w2, b2=b2)
    return p


# ----------------------------------------------------------------------------
# Demo
# ----------------------------------------------------------------------------
if __name__ == "__main__":
    cfg = dict(node_in=16, edge_in=8, d=32, edge_hidden=32,
               steps=2, heads=4, layers=1, Tvn=6, Trn=10)

    key = jax.random.PRNGKey(0)
    kp, kn, ke = jax.random.split(key, 3)
    params = init_params(kp, cfg)

    N = 8  # atoms in a ring "molecule"
    node_feats = jax.random.normal(kn, (N, cfg["node_in"]), jnp.float32)
    idx = jnp.arange(N)
    adj = jnp.zeros((N, N), jnp.float32)
    adj = adj.at[idx, (idx + 1) % N].set(1.0)
    adj = adj.at[(idx + 1) % N, idx].set(1.0)
    edge_feats = jax.random.normal(ke, (N, N, cfg["edge_in"]), jnp.float32) * adj[:, :, None]
    diff = jnp.abs(idx[:, None] - idx[None, :])
    adms = jnp.minimum(diff, N - diff).astype(jnp.int32)                   # graph distances
    bonds_r = jnp.stack([idx, (idx + 1) % N], axis=1).astype(jnp.int32)    # real bonds
    bonds_v = jnp.stack([idx, (idx + 2) % N], axis=1).astype(jnp.int32)    # virtual bonds

    fwd = jax.jit(functools.partial(local_transform_forward, cfg=cfg))
    out = fwd(params, node_feats, edge_feats, adj, adms, bonds_v, bonds_r)
    jax.block_until_ready(out)

    template_v, template_r = out[0], out[1]
    assert template_v.shape == (bonds_v.shape[0], cfg["Tvn"] + 1)
    assert template_r.shape == (bonds_r.shape[0], cfg["Trn"] + 1)
    print("KERNEL_OK")
</pallas_src>

<mosaic_0001>
module attributes {stable_mosaic.version = 11 : i64} {
  func.func @_mlp2_kernel(%arg0: i32, %arg1: memref<64x8xf32, #tpu.memory_space<vmem>>, %arg2: memref<8x32xf32, #tpu.memory_space<vmem>>, %arg3: memref<1x32xf32, #tpu.memory_space<vmem>>, %arg4: memref<32x1024xf32, #tpu.memory_space<vmem>>, %arg5: memref<1x1024xf32, #tpu.memory_space<vmem>>, %arg6: memref<64x1024xf32, #tpu.memory_space<vmem>>) attributes {dimension_semantics = [#tpu.dimension_semantics<parallel>], iteration_bounds = array<i64: 1>, scalar_prefetch = 0 : i64, scratch_operands = 0 : i64, tpu.core_type = #tpu.core_type<tc>, window_params = [{transform_indices = @transform_0, window_bounds = array<i64: 64, 8>}, {pipeline_mode = #tpu.pipeline_mode<synchronous>, transform_indices = @transform_1, window_bounds = array<i64: 8, 32>}, {pipeline_mode = #tpu.pipeline_mode<synchronous>, transform_indices = @transform_2, window_bounds = array<i64: 1, 32>}, {pipeline_mode = #tpu.pipeline_mode<synchronous>, transform_indices = @transform_3, window_bounds = array<i64: 32, 1024>}, {pipeline_mode = #tpu.pipeline_mode<synchronous>, transform_indices = @transform_4, window_bounds = array<i64: 1, 1024>}, {transform_indices = @transform_5, window_bounds = array<i64: 64, 1024>}]} {
    %c0 = arith.constant 0 : index
    %c0_0 = arith.constant 0 : index
    %0 = vector.load %arg1[%c0, %c0_0] : memref<64x8xf32, #tpu.memory_space<vmem>>, vector<64x8xf32>
    %c0_1 = arith.constant 0 : index
    %c0_2 = arith.constant 0 : index
    %1 = vector.load %arg2[%c0_1, %c0_2] : memref<8x32xf32, #tpu.memory_space<vmem>>, vector<8x32xf32>
    %cst = arith.constant dense<0.000000e+00> : vector<64x32xf32>
    %2 = tpu.matmul %0, %1, %cst {dimension_numbers = #tpu.dot_dimension_numbers<[1], [0], [0], [1], [0, 0, 1, 1], [], []>} : vector<64x8xf32>, vector<8x32xf32>, vector<64x32xf32> -> vector<64x32xf32>
    %c0_3 = arith.constant 0 : index
    %c0_4 = arith.constant 0 : index
    %3 = vector.load %arg3[%c0_3, %c0_4] : memref<1x32xf32, #tpu.memory_space<vmem>>, vector<1x32xf32>
    %4 = vector.broadcast %3 : vector<1x32xf32> to vector<64x32xf32>
    %5 = arith.addf %2, %4 : vector<64x32xf32>
    %cst_5 = arith.constant 0.000000e+00 : f32
    %6 = vector.broadcast %cst_5 : f32 to vector<64x32xf32>
    %7 = arith.maximumf %5, %6 : vector<64x32xf32>
    %c0_6 = arith.constant 0 : index
    %c0_7 = arith.constant 0 : index
    %8 = vector.load %arg4[%c0_6, %c0_7] : memref<32x1024xf32, #tpu.memory_space<vmem>>, vector<32x1024xf32>
    %cst_8 = arith.constant dense<0.000000e+00> : vector<64x1024xf32>
    %9 = tpu.matmul %7, %8, %cst_8 {dimension_numbers = #tpu.dot_dimension_numbers<[1], [0], [0], [1], [0, 0, 1, 1], [], []>} : vector<64x32xf32>, vector<32x1024xf32>, vector<64x1024xf32> -> vector<64x1024xf32>
    %c0_9 = arith.constant 0 : index
    %c0_10 = arith.constant 0 : index
    %10 = vector.load %arg5[%c0_9, %c0_10] : memref<1x1024xf32, #tpu.memory_space<vmem>>, vector<1x1024xf32>
    %11 = vector.broadcast %10 : vector<1x1024xf32> to vector<64x1024xf32>
    %12 = arith.addf %9, %11 : vector<64x1024xf32>
    %c0_11 = arith.constant 0 : index
    %c0_12 = arith.constant 0 : index
    %13 = vector.load %arg6[%c0_11, %c0_12] : memref<64x1024xf32, #tpu.memory_space<vmem>>, vector<64x1024xf32>
    tpu.vector_store %arg6[%c0_11, %c0_12], %12 {strides = array<i32>} : memref<64x1024xf32, #tpu.memory_space<vmem>>, vector<64x1024xf32>,
    return
  }
  func.func @transform_0(%arg0: i32) -> (i32, i32) {
    %c0_i32 = arith.constant 0 : i32
    %c0_i32_0 = arith.constant 0 : i32
    return %arg0, %c0_i32 : i32, i32
  }
  func.func @transform_1(%arg0: i32) -> (i32, i32) {
    %c0_i32 = arith.constant 0 : i32
    %c0_i32_0 = arith.constant 0 : i32
    %c0_i32_1 = arith.constant 0 : i32
    return %c0_i32, %c0_i32_0 : i32, i32
  }
  func.func @transform_2(%arg0: i32) -> (i32, i32) {
    %c0_i32 = arith.constant 0 : i32
    %c0_i32_0 = arith.constant 0 : i32
    %c0_i32_1 = arith.constant 0 : i32
    return %c0_i32, %c0_i32_0 : i32, i32
  }
  func.func @transform_3(%arg0: i32) -> (i32, i32) {
    %c0_i32 = arith.constant 0 : i32
    %c0_i32_0 = arith.constant 0 : i32
    %c0_i32_1 = arith.constant 0 : i32
    return %c0_i32, %c0_i32_0 : i32, i32
  }
  func.func @transform_4(%arg0: i32) -> (i32, i32) {
    %c0_i32 = arith.constant 0 : i32
    %c0_i32_0 = arith.constant 0 : i32
    %c0_i32_1 = arith.constant 0 : i32
    return %c0_i32, %c0_i32_0 : i32, i32
  }
  func.func @transform_5(%arg0: i32) -> (i32, i32) {
    %c0_i32 = arith.constant 0 : i32
    %c0_i32_0 = arith.constant 0 : i32
    return %arg0, %c0_i32 : i32, i32
  }
}

module attributes {stable_mosaic.version = 11 : i64} {
  func.func @_linear_kernel(%arg0: memref<8x16xf32, #tpu.memory_space<vmem>>, %arg1: memref<16x32xf32, #tpu.memory_space<vmem>>, %arg2: memref<1x32xf32, #tpu.memory_space<vmem>>, %arg3: memref<8x32xf32, #tpu.memory_space<vmem>>) attributes {dimension_semantics = [], scalar_prefetch = 0 : i64, scratch_operands = 0 : i64, tpu.core_type = #tpu.core_type<tc>} {
    %c0 = arith.constant 0 : index
    %c0_0 = arith.constant 0 : index
    %0 = vector.load %arg0[%c0, %c0_0] : memref<8x16xf32, #tpu.memory_space<vmem>>, vector<8x16xf32>
    %c0_1 = arith.constant 0 : index
    %c0_2 = arith.constant 0 : index
    %1 = vector.load %arg1[%c0_1, %c0_2] : memref<16x32xf32, #tpu.memory_space<vmem>>, vector<16x32xf32>
    %cst = arith.constant dense<0.000000e+00> : vector<8x32xf32>
    %2 = tpu.matmul %0, %1, %cst {dimension_numbers = #tpu.dot_dimension_numbers<[1], [0], [0], [1], [0, 0, 1, 1], [], []>} : vector<8x16xf32>, vector<16x32xf32>, vector<8x32xf32> -> vector<8x32xf32>
    %c0_3 = arith.constant 0 : index
    %c0_4 = arith.constant 0 : index
    %3 = vector.load %arg2[%c0_3, %c0_4] : memref<1x32xf32, #tpu.memory_space<vmem>>, vector<1x32xf32>
    %4 = vector.broadcast %3 : vector<1x32xf32> to vector<8x32xf32>
    %5 = arith.addf %2, %4 : vector<8x32xf32>
    %cst_5 = arith.constant 0.000000e+00 : f32
    %6 = vector.broadcast %cst_5 : f32 to vector<8x32xf32>
    %7 = arith.maximumf %5, %6 : vector<8x32xf32>
    %c0_6 = arith.constant 0 : index
    %c0_7 = arith.constant 0 : index
    %8 = vector.load %arg3[%c0_6, %c0_7] : memref<8x32xf32, #tpu.memory_space<vmem>>, vector<8x32xf32>
    tpu.vector_store %arg3[%c0_6, %c0_7], %7 {strides = array<i32>} : memref<8x32xf32, #tpu.memory_space<vmem>>, vector<8x32xf32>,
    return
  }
}

module attributes {stable_mosaic.version = 11 : i64} {
  func.func @_nnconv_kernel(%arg0: memref<1x256xf32, #tpu.memory_space<vmem>>, %arg1: memref<256x256xbf16, #tpu.memory_space<vmem>>, %arg2: memref<1x256xf32, #tpu.memory_space<vmem>>) attributes {dimension_semantics = [], scalar_prefetch = 0 : i64, scratch_operands = 0 : i64, tpu.core_type = #tpu.core_type<tc>} {
    %c0 = arith.constant 0 : index
    %c0_0 = arith.constant 0 : index
    %0 = vector.load %arg0[%c0, %c0_0] : memref<1x256xf32, #tpu.memory_space<vmem>>, vector<1x256xf32>
    %1 = arith.truncf %0 : vector<1x256xf32> to vector<1x256xbf16>
    %c0_1 = arith.constant 0 : index
    %c0_2 = arith.constant 0 : index
    %2 = vector.load %arg1[%c0_1, %c0_2] : memref<256x256xbf16, #tpu.memory_space<vmem>>, vector<256x256xbf16>
    %cst = arith.constant dense<0.000000e+00> : vector<1x256xf32>
    %3 = tpu.matmul %1, %2, %cst {dimension_numbers = #tpu.dot_dimension_numbers<[1], [0], [0], [1], [0, 0, 1, 1], [], []>} : vector<1x256xbf16>, vector<256x256xbf16>, vector<1x256xf32> -> vector<1x256xf32>
    %c0_3 = arith.constant 0 : index
    %c0_4 = arith.constant 0 : index
    %4 = vector.load %arg2[%c0_3, %c0_4] : memref<1x256xf32, #tpu.memory_space<vmem>>, vector<1x256xf32>
    tpu.vector_store %arg2[%c0_3, %c0_4], %3 {strides = array<i32>} : memref<1x256xf32, #tpu.memory_space<vmem>>, vector<1x256xf32>,
    return
  }
}

module attributes {stable_mosaic.version = 11 : i64} {
  func.func @_gru_kernel(%arg0: memref<8x32xf32, #tpu.memory_space<vmem>>, %arg1: memref<1x32xf32, #tpu.memory_space<vmem>>, %arg2: memref<8x32xf32, #tpu.memory_space<vmem>>, %arg3: memref<32x96xf32, #tpu.memory_space<vmem>>, %arg4: memref<1x96xf32, #tpu.memory_space<vmem>>, %arg5: memref<32x96xf32, #tpu.memory_space<vmem>>, %arg6: memref<1x96xf32, #tpu.memory_space<vmem>>, %arg7: memref<8x32xf32, #tpu.memory_space<vmem>>) attributes {dimension_semantics = [], scalar_prefetch = 0 : i64, scratch_operands = 0 : i64, tpu.core_type = #tpu.core_type<tc>} {
    %c0 = arith.constant 0 : index
    %c0_0 = arith.constant 0 : index
    %0 = vector.load %arg0[%c0, %c0_0] : memref<8x32xf32, #tpu.memory_space<vmem>>, vector<8x32xf32>
    %c0_1 = arith.constant 0 : index
    %c0_2 = arith.constant 0 : index
    %1 = vector.load %arg1[%c0_1, %c0_2] : memref<1x32xf32, #tpu.memory_space<vmem>>, vector<1x32xf32>
    %2 = vector.broadcast %1 : vector<1x32xf32> to vector<8x32xf32>
    %3 = arith.addf %0, %2 : vector<8x32xf32>
    %cst = arith.constant 0.000000e+00 : f32
    %4 = vector.broadcast %cst : f32 to vector<8x32xf32>
    %5 = arith.maximumf %3, %4 : vector<8x32xf32>
    %c0_3 = arith.constant 0 : index
    %c0_4 = arith.constant 0 : index
    %6 = vector.load %arg2[%c0_3, %c0_4] : memref<8x32xf32, #tpu.memory_space<vmem>>, vector<8x32xf32>
    %c0_5 = arith.constant 0 : index
    %c0_6 = arith.constant 0 : index
    %7 = vector.load %arg3[%c0_5, %c0_6] : memref<32x96xf32, #tpu.memory_space<vmem>>, vector<32x96xf32>
    %cst_7 = arith.constant dense<0.000000e+00> : vector<8x96xf32>
    %8 = tpu.matmul %5, %7, %cst_7 {dimension_numbers = #tpu.dot_dimension_numbers<[1], [0], [0], [1], [0, 0, 1, 1], [], []>} : vector<8x32xf32>, vector<32x96xf32>, vector<8x96xf32> -> vector<8x96xf32>
    %c0_8 = arith.constant 0 : index
    %c0_9 = arith.constant 0 : index
    %9 = vector.load %arg4[%c0_8, %c0_9] : memref<1x96xf32, #tpu.memory_space<vmem>>, vector<1x96xf32>
    %10 = vector.broadcast %9 : vector<1x96xf32> to vector<8x96xf32>
    %11 = arith.addf %8, %10 : vector<8x96xf32>
    %c0_10 = arith.constant 0 : index
    %c0_11 = arith.constant 0 : index
    %12 = vector.load %arg5[%c0_10, %c0_11] : memref<32x96xf32, #tpu.memory_space<vmem>>, vector<32x96xf32>
    %cst_12 = arith.constant dense<0.000000e+00> : vector<8x96xf32>
    %13 = tpu.matmul %6, %12, %cst_12 {dimension_numbers = #tpu.dot_dimension_numbers<[1], [0], [0], [1], [0, 0, 1, 1], [], []>} : vector<8x32xf32>, vector<32x96xf32>, vector<8x96xf32> -> vector<8x96xf32>
    %c0_13 = arith.constant 0 : index
    %c0_14 = arith.constant 0 : index
    %14 = vector.load %arg6[%c0_13, %c0_14] : memref<1x96xf32, #tpu.memory_space<vmem>>, vector<1x96xf32>
    %15 = vector.broadcast %14 : vector<1x96xf32> to vector<8x96xf32>
    %16 = arith.addf %13, %15 : vector<8x96xf32>
    %17 = vector.extract_strided_slice %11 {offsets = [0, 0], sizes = [8, 32], strides = [1, 1]} : vector<8x96xf32> to vector<8x32xf32>
    %18 = vector.extract_strided_slice %16 {offsets = [0, 0], sizes = [8, 32], strides = [1, 1]} : vector<8x96xf32> to vector<8x32xf32>
    %19 = arith.addf %17, %18 : vector<8x32xf32>
    %20 = arith.negf %19 : vector<8x32xf32>
    %21 = math.exp %20 : vector<8x32xf32>
    %cst_15 = arith.constant 1.000000e+00 : f32
    %22 = vector.broadcast %cst_15 : f32 to vector<8x32xf32>
    %23 = arith.addf %22, %21 : vector<8x32xf32>
    %24 = arith.divf %22, %23 : vector<8x32xf32>
    %25 = vector.extract_strided_slice %11 {offsets = [0, 32], sizes = [8, 32], strides = [1, 1]} : vector<8x96xf32> to vector<8x32xf32>
    %26 = vector.extract_strided_slice %16 {offsets = [0, 32], sizes = [8, 32], strides = [1, 1]} : vector<8x96xf32> to vector<8x32xf32>
    %27 = arith.addf %25, %26 : vector<8x32xf32>
    %28 = arith.negf %27 : vector<8x32xf32>
    %29 = math.exp %28 : vector<8x32xf32>
    %cst_16 = arith.constant 1.000000e+00 : f32
    %30 = vector.broadcast %cst_16 : f32 to vector<8x32xf32>
    %31 = arith.addf %30, %29 : vector<8x32xf32>
    %32 = arith.divf %30, %31 : vector<8x32xf32>
    %33 = vector.extract_strided_slice %11 {offsets = [0, 64], sizes = [8, 32], strides = [1, 1]} : vector<8x96xf32> to vector<8x32xf32>
    %34 = vector.extract_strided_slice %16 {offsets = [0, 64], sizes = [8, 32], strides = [1, 1]} : vector<8x96xf32> to vector<8x32xf32>
    %35 = arith.mulf %24, %34 : vector<8x32xf32>
    %36 = arith.addf %33, %35 : vector<8x32xf32>
    %37 = math.tanh %36 : vector<8x32xf32>
    %cst_17 = arith.constant 1.000000e+00 : f32
    %38 = vector.broadcast %cst_17 : f32 to vector<8x32xf32>
    %39 = arith.subf %38, %32 : vector<8x32xf32>
    %40 = arith.mulf %39, %37 : vector<8x32xf32>
    %41 = arith.mulf %32, %6 : vector<8x32xf32>
    %42 = arith.addf %40, %41 : vector<8x32xf32>
    %c0_18 = arith.constant 0 : index
    %c0_19 = arith.constant 0 : index
    %43 = vector.load %arg7[%c0_18, %c0_19] : memref<8x32xf32, #tpu.memory_space<vmem>>, vector<8x32xf32>
    tpu.vector_store %arg7[%c0_18, %c0_19], %42 {strides = array<i32>} : memref<8x32xf32, #tpu.memory_space<vmem>>, vector<8x32xf32>,
    return
  }
}

module attributes {stable_mosaic.version = 11 : i64} {
  func.func @_attn_layer_kernel(%arg0: memref<8x32xf32, #tpu.memory_space<vmem>>, %arg1: memref<4x8x8xf32, #tpu.memory_space<vmem>>, %arg2: memref<1x8xf32, #tpu.memory_space<vmem>>, %arg3: memref<1x32xf32, #tpu.memory_space<vmem>>, %arg4: memref<1x32xf32, #tpu.memory_space<vmem>>, %arg5: memref<32x128xf32, #tpu.memory_space<vmem>>, %arg6: memref<1x128xf32, #tpu.memory_space<vmem>>, %arg7: memref<32x32xf32, #tpu.memory_space<vmem>>, %arg8: memref<1x32xf32, #tpu.memory_space<vmem>>, %arg9: memref<8x32xf32, #tpu.memory_space<vmem>>, %arg10: memref<4x8x8xf32, #tpu.memory_space<vmem>>) attributes {dimension_semantics = [], scalar_prefetch = 0 : i64, scratch_operands = 0 : i64, tpu.core_type = #tpu.core_type<tc>} {
    %c0 = arith.constant 0 : index
    %c0_0 = arith.constant 0 : index
    %0 = vector.load %arg0[%c0, %c0_0] : memref<8x32xf32, #tpu.memory_space<vmem>>, vector<8x32xf32>
    %cst = arith.constant dense<0.000000e+00> : vector<8xf32>
    %1 = vector.multi_reduction <add>, %0, %cst [1] : vector<8x32xf32> to vector<8xf32>
    %2 = vector.shape_cast %1 : vector<8xf32> to vector<8x1xf32>
    %cst_1 = arith.constant 3.200000e+01 : f32
    %3 = vector.broadcast %cst_1 : f32 to vector<8x1xf32>
    %4 = arith.divf %2, %3 : vector<8x1xf32>
    %5 = vector.broadcast %4 : vector<8x1xf32> to vector<8x32xf32>
    %6 = arith.subf %0, %5 : vector<8x32xf32>
    %7 = arith.mulf %6, %6 : vector<8x32xf32>
    %cst_2 = arith.constant dense<0.000000e+00> : vector<8xf32>
    %8 = vector.multi_reduction <add>, %7, %cst_2 [1] : vector<8x32xf32> to vector<8xf32>
    %9 = vector.shape_cast %8 : vector<8xf32> to vector<8x1xf32>
    %cst_3 = arith.constant 3.200000e+01 : f32
    %10 = vector.broadcast %cst_3 : f32 to vector<8x1xf32>
    %11 = arith.divf %9, %10 : vector<8x1xf32>
    %12 = vector.broadcast %4 : vector<8x1xf32> to vector<8x32xf32>
    %13 = arith.subf %0, %12 : vector<8x32xf32>
    %cst_4 = arith.constant 9.99999974E-6 : f32
    %14 = vector.broadcast %cst_4 : f32 to vector<8x1xf32>
    %15 = arith.addf %11, %14 : vector<8x1xf32>
    %16 = math.rsqrt %15 : vector<8x1xf32>
    %17 = vector.broadcast %16 : vector<8x1xf32> to vector<8x32xf32>
    %18 = arith.mulf %13, %17 : vector<8x32xf32>
    %c0_5 = arith.constant 0 : index
    %c0_6 = arith.constant 0 : index
    %19 = vector.load %arg3[%c0_5, %c0_6] : memref<1x32xf32, #tpu.memory_space<vmem>>, vector<1x32xf32>
    %20 = vector.broadcast %19 : vector<1x32xf32> to vector<8x32xf32>
    %21 = arith.mulf %18, %20 : vector<8x32xf32>
    %c0_7 = arith.constant 0 : index
    %c0_8 = arith.constant 0 : index
    %22 = vector.load %arg4[%c0_7, %c0_8] : memref<1x32xf32, #tpu.memory_space<vmem>>, vector<1x32xf32>
    %23 = vector.broadcast %22 : vector<1x32xf32> to vector<8x32xf32>
    %24 = arith.addf %21, %23 : vector<8x32xf32>
    %c0_9 = arith.constant 0 : index
    %c0_10 = arith.constant 0 : index
    %25 = vector.load %arg5[%c0_9, %c0_10] : memref<32x128xf32, #tpu.memory_space<vmem>>, vector<32x128xf32>
    %cst_11 = arith.constant dense<0.000000e+00> : vector<8x128xf32>
    %26 = tpu.matmul %24, %25, %cst_11 {dimension_numbers = #tpu.dot_dimension_numbers<[1], [0], [0], [1], [0, 0, 1, 1], [], []>} : vector<8x32xf32>, vector<32x128xf32>, vector<8x128xf32> -> vector<8x128xf32>
    %c0_12 = arith.constant 0 : index
    %c0_13 = arith.constant 0 : index
    %27 = vector.load %arg6[%c0_12, %c0_13] : memref<1x128xf32, #tpu.memory_space<vmem>>, vector<1x128xf32>
    %28 = vector.broadcast %27 : vector<1x128xf32> to vector<8x128xf32>
    %29 = arith.addf %26, %28 : vector<8x128xf32>
    %30 = vector.extract_strided_slice %29 {offsets = [0, 0], sizes = [8, 32], strides = [1, 1]} : vector<8x128xf32> to vector<8x32xf32>
    %31 = vector.extract_strided_slice %29 {offsets = [0, 32], sizes = [8, 32], strides = [1, 1]} : vector<8x128xf32> to vector<8x32xf32>
    %32 = vector.extract_strided_slice %29 {offsets = [0, 64], sizes = [8, 32], strides = [1, 1]} : vector<8x128xf32> to vector<8x32xf32>
    %33 = vector.extract_strided_slice %29 {offsets = [0, 96], sizes = [8, 32], strides = [1, 1]} : vector<8x128xf32> to vector<8x32xf32>
    %34 = arith.negf %33 : vector<8x32xf32>
    %35 = math.exp %34 : vector<8x32xf32>
    %cst_14 = arith.constant 1.000000e+00 : f32
    %36 = vector.broadcast %cst_14 : f32 to vector<8x32xf32>
    %37 = arith.addf %36, %35 : vector<8x32xf32>
    %38 = arith.divf %36, %37 : vector<8x32xf32>
    %39 = vector.extract_strided_slice %30 {offsets = [0, 0], sizes = [8, 8], strides = [1, 1]} : vector<8x32xf32> to vector<8x8xf32>
    %40 = vector.shape_cast %39 : vector<8x8xf32> to vector<1x8x8xf32>
    %41 = vector.extract_strided_slice %30 {offsets = [0, 8], sizes = [8, 8], strides = [1, 1]} : vector<8x32xf32> to vector<8x8xf32>
    %42 = vector.shape_cast %41 : vector<8x8xf32> to vector<1x8x8xf32>
    %43 = vector.extract_strided_slice %30 {offsets = [0, 16], sizes = [8, 8], strides = [1, 1]} : vector<8x32xf32> to vector<8x8xf32>
    %44 = vector.shape_cast %43 : vector<8x8xf32> to vector<1x8x8xf32>
    %45 = vector.extract_strided_slice %30 {offsets = [0, 24], sizes = [8, 8], strides = [1, 1]} : vector<8x32xf32> to vector<8x8xf32>
    %46 = vector.shape_cast %45 : vector<8x8xf32> to vector<1x8x8xf32>
    %47 = tpu.concatenate %40, %42, %44, %46 in 0 : vector<1x8x8xf32>, vector<1x8x8xf32>, vector<1x8x8xf32>, vector<1x8x8xf32> -> vector<4x8x8xf32>
    %48 = vector.extract_strided_slice %31 {offsets = [0, 0], sizes = [8, 8], strides = [1, 1]} : vector<8x32xf32> to vector<8x8xf32>
    %49 = vector.shape_cast %48 : vector<8x8xf32> to vector<1x8x8xf32>
    %50 = vector.extract_strided_slice %31 {offsets = [0, 8], sizes = [8, 8], strides = [1, 1]} : vector<8x32xf32> to vector<8x8xf32>
    %51 = vector.shape_cast %50 : vector<8x8xf32> to vector<1x8x8xf32>
    %52 = vector.extract_strided_slice %31 {offsets = [0, 16], sizes = [8, 8], strides = [1, 1]} : vector<8x32xf32> to vector<8x8xf32>
    %53 = vector.shape_cast %52 : vector<8x8xf32> to vector<1x8x8xf32>
    %54 = vector.extract_strided_slice %31 {offsets = [0, 24], sizes = [8, 8], strides = [1, 1]} : vector<8x32xf32> to vector<8x8xf32>
    %55 = vector.shape_cast %54 : vector<8x8xf32> to vector<1x8x8xf32>
    %56 = tpu.concatenate %49, %51, %53, %55 in 0 : vector<1x8x8xf32>, vector<1x8x8xf32>, vector<1x8x8xf32>, vector<1x8x8xf32> -> vector<4x8x8xf32>
    %57 = vector.extract_strided_slice %32 {offsets = [0, 0], sizes = [8, 8], strides = [1, 1]} : vector<8x32xf32> to vector<8x8xf32>
    %58 = vector.shape_cast %57 : vector<8x8xf32> to vector<1x8x8xf32>
    %59 = vector.extract_strided_slice %32 {offsets = [0, 8], sizes = [8, 8], strides = [1, 1]} : vector<8x32xf32> to vector<8x8xf32>
    %60 = vector.shape_cast %59 : vector<8x8xf32> to vector<1x8x8xf32>
    %61 = vector.extract_strided_slice %32 {offsets = [0, 16], sizes = [8, 8], strides = [1, 1]} : vector<8x32xf32> to vector<8x8xf32>
    %62 = vector.shape_cast %61 : vector<8x8xf32> to vector<1x8x8xf32>
    %63 = vector.extract_strided_slice %32 {offsets = [0, 24], sizes = [8, 8], strides = [1, 1]} : vector<8x32xf32> to vector<8x8xf32>
    %64 = vector.shape_cast %63 : vector<8x8xf32> to vector<1x8x8xf32>
    %65 = tpu.concatenate %58, %60, %62, %64 in 0 : vector<1x8x8xf32>, vector<1x8x8xf32>, vector<1x8x8xf32>, vector<1x8x8xf32> -> vector<4x8x8xf32>
    "tpu.trace_start"() <{level = 10 : i32, message = "hqd,hkd->hqk"}> : () -> ()
    %cst_15 = arith.constant dense<0.000000e+00> : vector<4x8x8xf32>
    %66 = tpu.matmul %47, %56, %cst_15 {dimension_numbers = #tpu.dot_dimension_numbers<[2], [2], [1], [1], [0, 0, 0, 1, 1, 1], [0], [0]>} : vector<4x8x8xf32>, vector<4x8x8xf32>, vector<4x8x8xf32> -> vector<4x8x8xf32>
    "tpu.trace_stop"() : () -> ()
    %cst_16 = arith.constant 0.353553385 : f32
    %67 = vector.broadcast %cst_16 : f32 to vector<4x8x8xf32>
    %68 = arith.mulf %66, %67 : vector<4x8x8xf32>
    %c0_17 = arith.constant 0 : index
    %c0_18 = arith.constant 0 : index
    %c0_19 = arith.constant 0 : index
    %69 = vector.load %arg1[%c0_17, %c0_18, %c0_19] : memref<4x8x8xf32, #tpu.memory_space<vmem>>, vector<4x8x8xf32>
    %70 = arith.addf %68, %69 : vector<4x8x8xf32>
    %c0_20 = arith.constant 0 : index
    %c0_21 = arith.constant 0 : index
    %71 = vector.load %arg2[%c0_20, %c0_21] : memref<1x8xf32, #tpu.memory_space<vmem>>, vector<1x8xf32>
    %cst_22 = arith.constant 0.000000e+00 : f32
    %72 = vector.broadcast %cst_22 : f32 to vector<1x8xf32>
    %73 = arith.cmpf ogt, %71, %72 : vector<1x8xf32>
    %74 = vector.shape_cast %73 : vector<1x8xi1> to vector<1x1x8xi1>
    %cst_23 = arith.constant -1.000000e+09 : f32
    %75 = vector.shape_cast %74 : vector<1x1x8xi1> to vector<1x1x8xi1>
    %76 = vector.broadcast %75 : vector<1x1x8xi1> to vector<4x8x8xi1>
    %77 = vector.broadcast %cst_23 : f32 to vector<4x8x8xf32>
    %78 = arith.select %76, %70, %77 : vector<4x8x8xi1>, vector<4x8x8xf32>
    %cst_24 = arith.constant dense<0xFF800000> : vector<4x8xf32>
    %79 = vector.multi_reduction <maximumf>, %78, %cst_24 [2] : vector<4x8x8xf32> to vector<4x8xf32>
    %80 = vector.shape_cast %79 : vector<4x8xf32> to vector<4x8x1xf32>
    %81 = vector.broadcast %80 : vector<4x8x1xf32> to vector<4x8x8xf32>
    %82 = arith.subf %78, %81 : vector<4x8x8xf32>
    %83 = math.exp %82 : vector<4x8x8xf32>
    %cst_25 = arith.constant dense<0.000000e+00> : vector<4x8xf32>
    %84 = vector.multi_reduction <add>, %83, %cst_25 [2] : vector<4x8x8xf32> to vector<4x8xf32>
    %85 = vector.shape_cast %84 : vector<4x8xf32> to vector<4x8x1xf32>
    %86 = vector.broadcast %85 : vector<4x8x1xf32> to vector<4x8x8xf32>
    %87 = arith.divf %83, %86 : vector<4x8x8xf32>
    %c0_26 = arith.constant 0 : index
    %c0_27 = arith.constant 0 : index
    %c0_28 = arith.constant 0 : index
    %88 = vector.load %arg10[%c0_26, %c0_27, %c0_28] : memref<4x8x8xf32, #tpu.memory_space<vmem>>, vector<4x8x8xf32>
    tpu.vector_store %arg10[%c0_26, %c0_27, %c0_28], %87 {strides = array<i32>} : memref<4x8x8xf32, #tpu.memory_space<vmem>>, vector<4x8x8xf32>,
    "tpu.trace_start"() <{level = 10 : i32, message = "hqk,hkd->hqd"}> : () -> ()
    %cst_29 = arith.constant dense<0.000000e+00> : vector<4x8x8xf32>
    %89 = tpu.matmul %87, %65, %cst_29 {dimension_numbers = #tpu.dot_dimension_numbers<[2], [1], [1], [2], [0, 0, 0, 1, 1, 2], [0], [0]>} : vector<4x8x8xf32>, vector<4x8x8xf32>, vector<4x8x8xf32> -> vector<4x8x8xf32>
    "tpu.trace_stop"() : () -> ()
    %90 = vector.extract_strided_slice %89 {offsets = [0, 0, 0], sizes = [1, 8, 8], strides = [1, 1, 1]} : vector<4x8x8xf32> to vector<1x8x8xf32>
    %91 = vector.shape_cast %90 : vector<1x8x8xf32> to vector<8x8xf32>
    %92 = vector.extract_strided_slice %89 {offsets = [1, 0, 0], sizes = [1, 8, 8], strides = [1, 1, 1]} : vector<4x8x8xf32> to vector<1x8x8xf32>
    %93 = vector.shape_cast %92 : vector<1x8x8xf32> to vector<8x8xf32>
    %94 = vector.extract_strided_slice %89 {offsets = [2, 0, 0], sizes = [1, 8, 8], strides = [1, 1, 1]} : vector<4x8x8xf32> to vector<1x8x8xf32>
    %95 = vector.shape_cast %94 : vector<1x8x8xf32> to vector<8x8xf32>
    %96 = vector.extract_strided_slice %89 {offsets = [3, 0, 0], sizes = [1, 8, 8], strides = [1, 1, 1]} : vector<4x8x8xf32> to vector<1x8x8xf32>
    %97 = vector.shape_cast %96 : vector<1x8x8xf32> to vector<8x8xf32>
    %98 = tpu.concatenate %91, %93, %95, %97 in 1 : vector<8x8xf32>, vector<8x8xf32>, vector<8x8xf32>, vector<8x8xf32> -> vector<8x32xf32>
    %99 = arith.mulf %98, %38 : vector<8x32xf32>
    %c0_30 = arith.constant 0 : index
    %c0_31 = arith.constant 0 : index
    %100 = vector.load %arg7[%c0_30, %c0_31] : memref<32x32xf32, #tpu.memory_space<vmem>>, vector<32x32xf32>
    %cst_32 = arith.constant dense<0.000000e+00> : vector<8x32xf32>
    %101 = tpu.matmul %99, %100, %cst_32 {dimension_numbers = #tpu.dot_dimension_numbers<[1], [0], [0], [1], [0, 0, 1, 1], [], []>} : vector<8x32xf32>, vector<32x32xf32>, vector<8x32xf32> -> vector<8x32xf32>
    %c0_33 = arith.constant 0 : index
    %c0_34 = arith.constant 0 : index
    %102 = vector.load %arg8[%c0_33, %c0_34] : memref<1x32xf32, #tpu.memory_space<vmem>>, vector<1x32xf32>
    %103 = vector.broadcast %102 : vector<1x32xf32> to vector<8x32xf32>
    %104 = arith.addf %101, %103 : vector<8x32xf32>
    %105 = arith.addf %0, %104 : vector<8x32xf32>
    %c0_35 = arith.constant 0 : index
    %c0_36 = arith.constant 0 : index
    %106 = vector.load %arg9[%c0_35, %c0_36] : memref<8x32xf32, #tpu.memory_space<vmem>>, vector<8x32xf32>
    tpu.vector_store %arg9[%c0_35, %c0_36], %105 {strides = array<i32>} : memref<8x32xf32, #tpu.memory_space<vmem>>, vector<8x32xf32>,
    return
  }
}

module attributes {stable_mosaic.version = 11 : i64} {
  func.func @_pool_bond_kernel(%arg0: memref<8x64xf32, #tpu.memory_space<vmem>>, %arg1: memref<64x32xf32, #tpu.memory_space<vmem>>, %arg2: memref<1x32xf32, #tpu.memory_space<vmem>>, %arg3: memref<32x2xf32, #tpu.memory_space<vmem>>, %arg4: memref<1x2xf32, #tpu.memory_space<vmem>>, %arg5: memref<64x32xf32, #tpu.memory_space<vmem>>, %arg6: memref<1x32xf32, #tpu.memory_space<vmem>>, %arg7: memref<32x32xf32, #tpu.memory_space<vmem>>, %arg8: memref<1x32xf32, #tpu.memory_space<vmem>>, %arg9: memref<8x2xf32, #tpu.memory_space<vmem>>, %arg10: memref<8x32xf32, #tpu.memory_space<vmem>>) attributes {dimension_semantics = [], scalar_prefetch = 0 : i64, scratch_operands = 0 : i64, tpu.core_type = #tpu.core_type<tc>} {
    %c0 = arith.constant 0 : index
    %c0_0 = arith.constant 0 : index
    %0 = vector.load %arg0[%c0, %c0_0] : memref<8x64xf32, #tpu.memory_space<vmem>>, vector<8x64xf32>
    %c0_1 = arith.constant 0 : index
    %c0_2 = arith.constant 0 : index
    %1 = vector.load %arg1[%c0_1, %c0_2] : memref<64x32xf32, #tpu.memory_space<vmem>>, vector<64x32xf32>
    %cst = arith.constant dense<0.000000e+00> : vector<8x32xf32>
    %2 = tpu.matmul %0, %1, %cst {dimension_numbers = #tpu.dot_dimension_numbers<[1], [0], [0], [1], [0, 0, 1, 1], [], []>} : vector<8x64xf32>, vector<64x32xf32>, vector<8x32xf32> -> vector<8x32xf32>
    %c0_3 = arith.constant 0 : index
    %c0_4 = arith.constant 0 : index
    %3 = vector.load %arg2[%c0_3, %c0_4] : memref<1x32xf32, #tpu.memory_space<vmem>>, vector<1x32xf32>
    %4 = vector.broadcast %3 : vector<1x32xf32> to vector<8x32xf32>
    %5 = arith.addf %2, %4 : vector<8x32xf32>
    %6 = arith.mulf %5, %5 : vector<8x32xf32>
    %7 = arith.mulf %5, %6 : vector<8x32xf32>
    %cst_5 = arith.constant 4.471500e-02 : f32
    %8 = vector.broadcast %cst_5 : f32 to vector<8x32xf32>
    %9 = arith.mulf %8, %7 : vector<8x32xf32>
    %10 = arith.addf %5, %9 : vector<8x32xf32>
    %cst_6 = arith.constant 0.797884583 : f32
    %11 = vector.broadcast %cst_6 : f32 to vector<8x32xf32>
    %12 = arith.mulf %11, %10 : vector<8x32xf32>
    %13 = math.tanh %12 : vector<8x32xf32>
    %cst_7 = arith.constant 1.000000e+00 : f32
    %14 = vector.broadcast %cst_7 : f32 to vector<8x32xf32>
    %15 = arith.addf %14, %13 : vector<8x32xf32>
    %cst_8 = arith.constant 5.000000e-01 : f32
    %16 = vector.broadcast %cst_8 : f32 to vector<8x32xf32>
    %17 = arith.mulf %16, %15 : vector<8x32xf32>
    %18 = arith.mulf %5, %17 : vector<8x32xf32>
    %c0_9 = arith.constant 0 : index
    %c0_10 = arith.constant 0 : index
    %19 = vector.load %arg3[%c0_9, %c0_10] : memref<32x2xf32, #tpu.memory_space<vmem>>, vector<32x2xf32>
    %cst_11 = arith.constant dense<0.000000e+00> : vector<8x2xf32>
    %20 = tpu.matmul %18, %19, %cst_11 {dimension_numbers = #tpu.dot_dimension_numbers<[1], [0], [0], [1], [0, 0, 1, 1], [], []>} : vector<8x32xf32>, vector<32x2xf32>, vector<8x2xf32> -> vector<8x2xf32>
    %c0_12 = arith.constant 0 : index
    %c0_13 = arith.constant 0 : index
    %21 = vector.load %arg4[%c0_12, %c0_13] : memref<1x2xf32, #tpu.memory_space<vmem>>, vector<1x2xf32>
    %22 = vector.broadcast %21 : vector<1x2xf32> to vector<8x2xf32>
    %23 = arith.addf %20, %22 : vector<8x2xf32>
    %cst_14 = arith.constant dense<0xFF800000> : vector<8xf32>
    %24 = vector.multi_reduction <maximumf>, %23, %cst_14 [1] : vector<8x2xf32> to vector<8xf32>
    %25 = vector.shape_cast %24 : vector<8xf32> to vector<8x1xf32>
    %26 = vector.broadcast %25 : vector<8x1xf32> to vector<8x2xf32>
    %27 = arith.subf %23, %26 : vector<8x2xf32>
    %28 = math.exp %27 : vector<8x2xf32>
    %cst_15 = arith.constant dense<0.000000e+00> : vector<8xf32>
    %29 = vector.multi_reduction <add>, %28, %cst_15 [1] : vector<8x2xf32> to vector<8xf32>
    %30 = vector.shape_cast %29 : vector<8xf32> to vector<8x1xf32>
    %31 = vector.broadcast %30 : vector<8x1xf32> to vector<8x2xf32>
    %32 = arith.divf %28, %31 : vector<8x2xf32>
    %c0_16 = arith.constant 0 : index
    %c0_17 = arith.constant 0 : index
    %33 = vector.load %arg9[%c0_16, %c0_17] : memref<8x2xf32, #tpu.memory_space<vmem>>, vector<8x2xf32>
    tpu.vector_store %arg9[%c0_16, %c0_17], %32 {strides = array<i32>} : memref<8x2xf32, #tpu.memory_space<vmem>>, vector<8x2xf32>,
    %c0_18 = arith.constant 0 : index
    %c0_19 = arith.constant 0 : index
    %34 = vector.load %arg5[%c0_18, %c0_19] : memref<64x32xf32, #tpu.memory_space<vmem>>, vector<64x32xf32>
    %cst_20 = arith.constant dense<0.000000e+00> : vector<8x32xf32>
    %35 = tpu.matmul %0, %34, %cst_20 {dimension_numbers = #tpu.dot_dimension_numbers<[1], [0], [0], [1], [0, 0, 1, 1], [], []>} : vector<8x64xf32>, vector<64x32xf32>, vector<8x32xf32> -> vector<8x32xf32>
    %c0_21 = arith.constant 0 : index
    %c0_22 = arith.constant 0 : index
    %36 = vector.load %arg6[%c0_21, %c0_22] : memref<1x32xf32, #tpu.memory_space<vmem>>, vector<1x32xf32>
    %37 = vector.broadcast %36 : vector<1x32xf32> to vector<8x32xf32>
    %38 = arith.addf %35, %37 : vector<8x32xf32>
    %39 = arith.mulf %38, %38 : vector<8x32xf32>
    %40 = arith.mulf %38, %39 : vector<8x32xf32>
    %cst_23 = arith.constant 4.471500e-02 : f32
    %41 = vector.broadcast %cst_23 : f32 to vector<8x32xf32>
    %42 = arith.mulf %41, %40 : vector<8x32xf32>
    %43 = arith.addf %38, %42 : vector<8x32xf32>
    %cst_24 = arith.constant 0.797884583 : f32
    %44 = vector.broadcast %cst_24 : f32 to vector<8x32xf32>
    %45 = arith.mulf %44, %43 : vector<8x32xf32>
    %46 = math.tanh %45 : vector<8x32xf32>
    %cst_25 = arith.constant 1.000000e+00 : f32
    %47 = vector.broadcast %cst_25 : f32 to vector<8x32xf32>
    %48 = arith.addf %47, %46 : vector<8x32xf32>
    %cst_26 = arith.constant 5.000000e-01 : f32
    %49 = vector.broadcast %cst_26 : f32 to vector<8x32xf32>
    %50 = arith.mulf %49, %48 : vector<8x32xf32>
    %51 = arith.mulf %38, %50 : vector<8x32xf32>
    %c0_27 = arith.constant 0 : index
    %c0_28 = arith.constant 0 : index
    %52 = vector.load %arg7[%c0_27, %c0_28] : memref<32x32xf32, #tpu.memory_space<vmem>>, vector<32x32xf32>
    %cst_29 = arith.constant dense<0.000000e+00> : vector<8x32xf32>
    %53 = tpu.matmul %51, %52, %cst_29 {dimension_numbers = #tpu.dot_dimension_numbers<[1], [0], [0], [1], [0, 0, 1, 1], [], []>} : vector<8x32xf32>, vector<32x32xf32>, vector<8x32xf32> -> vector<8x32xf32>
    %c0_30 = arith.constant 0 : index
    %c0_31 = arith.constant 0 : index
    %54 = vector.load %arg8[%c0_30, %c0_31] : memref<1x32xf32, #tpu.memory_space<vmem>>, vector<1x32xf32>
    %55 = vector.broadcast %54 : vector<1x32xf32> to vector<8x32xf32>
    %56 = arith.addf %53, %55 : vector<8x32xf32>
    %c0_32 = arith.constant 0 : index
    %c0_33 = arith.constant 0 : index
    %57 = vector.load %arg10[%c0_32, %c0_33] : memref<8x32xf32, #tpu.memory_space<vmem>>, vector<8x32xf32>
    tpu.vector_store %arg10[%c0_32, %c0_33], %56 {strides = array<i32>} : memref<8x32xf32, #tpu.memory_space<vmem>>, vector<8x32xf32>,
    return
  }
}

module attributes {stable_mosaic.version = 11 : i64} {
  func.func @_ffn_layer_kernel(%arg0: memref<8x32xf32, #tpu.memory_space<vmem>>, %arg1: memref<32x64xf32, #tpu.memory_space<vmem>>, %arg2: memref<1x64xf32, #tpu.memory_space<vmem>>, %arg3: memref<64x32xf32, #tpu.memory_space<vmem>>, %arg4: memref<1x32xf32, #tpu.memory_space<vmem>>, %arg5: memref<1x32xf32, #tpu.memory_space<vmem>>, %arg6: memref<1x32xf32, #tpu.memory_space<vmem>>, %arg7: memref<8x32xf32, #tpu.memory_space<vmem>>) attributes {dimension_semantics = [], scalar_prefetch = 0 : i64, scratch_operands = 0 : i64, tpu.core_type = #tpu.core_type<tc>} {
    %c0 = arith.constant 0 : index
    %c0_0 = arith.constant 0 : index
    %0 = vector.load %arg0[%c0, %c0_0] : memref<8x32xf32, #tpu.memory_space<vmem>>, vector<8x32xf32>
    %c0_1 = arith.constant 0 : index
    %c0_2 = arith.constant 0 : index
    %1 = vector.load %arg1[%c0_1, %c0_2] : memref<32x64xf32, #tpu.memory_space<vmem>>, vector<32x64xf32>
    %cst = arith.constant dense<0.000000e+00> : vector<8x64xf32>
    %2 = tpu.matmul %0, %1, %cst {dimension_numbers = #tpu.dot_dimension_numbers<[1], [0], [0], [1], [0, 0, 1, 1], [], []>} : vector<8x32xf32>, vector<32x64xf32>, vector<8x64xf32> -> vector<8x64xf32>
    %c0_3 = arith.constant 0 : index
    %c0_4 = arith.constant 0 : index
    %3 = vector.load %arg2[%c0_3, %c0_4] : memref<1x64xf32, #tpu.memory_space<vmem>>, vector<1x64xf32>
    %4 = vector.broadcast %3 : vector<1x64xf32> to vector<8x64xf32>
    %5 = arith.addf %2, %4 : vector<8x64xf32>
    %6 = arith.mulf %5, %5 : vector<8x64xf32>
    %7 = arith.mulf %5, %6 : vector<8x64xf32>
    %cst_5 = arith.constant 4.471500e-02 : f32
    %8 = vector.broadcast %cst_5 : f32 to vector<8x64xf32>
    %9 = arith.mulf %8, %7 : vector<8x64xf32>
    %10 = arith.addf %5, %9 : vector<8x64xf32>
    %cst_6 = arith.constant 0.797884583 : f32
    %11 = vector.broadcast %cst_6 : f32 to vector<8x64xf32>
    %12 = arith.mulf %11, %10 : vector<8x64xf32>
    %13 = math.tanh %12 : vector<8x64xf32>
    %cst_7 = arith.constant 1.000000e+00 : f32
    %14 = vector.broadcast %cst_7 : f32 to vector<8x64xf32>
    %15 = arith.addf %14, %13 : vector<8x64xf32>
    %cst_8 = arith.constant 5.000000e-01 : f32
    %16 = vector.broadcast %cst_8 : f32 to vector<8x64xf32>
    %17 = arith.mulf %16, %15 : vector<8x64xf32>
    %18 = arith.mulf %5, %17 : vector<8x64xf32>
    %c0_9 = arith.constant 0 : index
    %c0_10 = arith.constant 0 : index
    %19 = vector.load %arg3[%c0_9, %c0_10] : memref<64x32xf32, #tpu.memory_space<vmem>>, vector<64x32xf32>
    %cst_11 = arith.constant dense<0.000000e+00> : vector<8x32xf32>
    %20 = tpu.matmul %18, %19, %cst_11 {dimension_numbers = #tpu.dot_dimension_numbers<[1], [0], [0], [1], [0, 0, 1, 1], [], []>} : vector<8x64xf32>, vector<64x32xf32>, vector<8x32xf32> -> vector<8x32xf32>
    %c0_12 = arith.constant 0 : index
    %c0_13 = arith.constant 0 : index
    %21 = vector.load %arg4[%c0_12, %c0_13] : memref<1x32xf32, #tpu.memory_space<vmem>>, vector<1x32xf32>
    %22 = vector.broadcast %21 : vector<1x32xf32> to vector<8x32xf32>
    %23 = arith.addf %20, %22 : vector<8x32xf32>
    %24 = arith.addf %0, %23 : vector<8x32xf32>
    %cst_14 = arith.constant dense<0.000000e+00> : vector<8xf32>
    %25 = vector.multi_reduction <add>, %24, %cst_14 [1] : vector<8x32xf32> to vector<8xf32>
    %26 = vector.shape_cast %25 : vector<8xf32> to vector<8x1xf32>
    %cst_15 = arith.constant 3.200000e+01 : f32
    %27 = vector.broadcast %cst_15 : f32 to vector<8x1xf32>
    %28 = arith.divf %26, %27 : vector<8x1xf32>
    %29 = vector.broadcast %28 : vector<8x1xf32> to vector<8x32xf32>
    %30 = arith.subf %24, %29 : vector<8x32xf32>
    %31 = arith.mulf %30, %30 : vector<8x32xf32>
    %cst_16 = arith.constant dense<0.000000e+00> : vector<8xf32>
    %32 = vector.multi_reduction <add>, %31, %cst_16 [1] : vector<8x32xf32> to vector<8xf32>
    %33 = vector.shape_cast %32 : vector<8xf32> to vector<8x1xf32>
    %cst_17 = arith.constant 3.200000e+01 : f32
    %34 = vector.broadcast %cst_17 : f32 to vector<8x1xf32>
    %35 = arith.divf %33, %34 : vector<8x1xf32>
    %36 = vector.broadcast %28 : vector<8x1xf32> to vector<8x32xf32>
    %37 = arith.subf %24, %36 : vector<8x32xf32>
    %cst_18 = arith.constant 9.99999974E-6 : f32
    %38 = vector.broadcast %cst_18 : f32 to vector<8x1xf32>
    %39 = arith.addf %35, %38 : vector<8x1xf32>
    %40 = math.rsqrt %39 : vector<8x1xf32>
    %41 = vector.broadcast %40 : vector<8x1xf32> to vector<8x32xf32>
    %42 = arith.mulf %37, %41 : vector<8x32xf32>
    %c0_19 = arith.constant 0 : index
    %c0_20 = arith.constant 0 : index
    %43 = vector.load %arg5[%c0_19, %c0_20] : memref<1x32xf32, #tpu.memory_space<vmem>>, vector<1x32xf32>
    %44 = vector.broadcast %43 : vector<1x32xf32> to vector<8x32xf32>
    %45 = arith.mulf %42, %44 : vector<8x32xf32>
    %c0_21 = arith.constant 0 : index
    %c0_22 = arith.constant 0 : index
    %46 = vector.load %arg6[%c0_21, %c0_22] : memref<1x32xf32, #tpu.memory_space<vmem>>, vector<1x32xf32>
    %47 = vector.broadcast %46 : vector<1x32xf32> to vector<8x32xf32>
    %48 = arith.addf %45, %47 : vector<8x32xf32>
    %c0_23 = arith.constant 0 : index
    %c0_24 = arith.constant 0 : index
    %49 = vector.load %arg7[%c0_23, %c0_24] : memref<8x32xf32, #tpu.memory_space<vmem>>, vector<8x32xf32>
    tpu.vector_store %arg7[%c0_23, %c0_24], %48 {strides = array<i32>} : memref<8x32xf32, #tpu.memory_space<vmem>>, vector<8x32xf32>,
    return
  }
}

module attributes {stable_mosaic.version = 11 : i64} {
  func.func @_ffn_layer_kernel(%arg0: memref<16x32xf32, #tpu.memory_space<vmem>>, %arg1: memref<32x64xf32, #tpu.memory_space<vmem>>, %arg2: memref<1x64xf32, #tpu.memory_space<vmem>>, %arg3: memref<64x32xf32, #tpu.memory_space<vmem>>, %arg4: memref<1x32xf32, #tpu.memory_space<vmem>>, %arg5: memref<1x32xf32, #tpu.memory_space<vmem>>, %arg6: memref<1x32xf32, #tpu.memory_space<vmem>>, %arg7: memref<16x32xf32, #tpu.memory_space<vmem>>) attributes {dimension_semantics = [], scalar_prefetch = 0 : i64, scratch_operands = 0 : i64, tpu.core_type = #tpu.core_type<tc>} {
    %c0 = arith.constant 0 : index
    %c0_0 = arith.constant 0 : index
    %0 = vector.load %arg0[%c0, %c0_0] : memref<16x32xf32, #tpu.memory_space<vmem>>, vector<16x32xf32>
    %c0_1 = arith.constant 0 : index
    %c0_2 = arith.constant 0 : index
    %1 = vector.load %arg1[%c0_1, %c0_2] : memref<32x64xf32, #tpu.memory_space<vmem>>, vector<32x64xf32>
    %cst = arith.constant dense<0.000000e+00> : vector<16x64xf32>
    %2 = tpu.matmul %0, %1, %cst {dimension_numbers = #tpu.dot_dimension_numbers<[1], [0], [0], [1], [0, 0, 1, 1], [], []>} : vector<16x32xf32>, vector<32x64xf32>, vector<16x64xf32> -> vector<16x64xf32>
    %c0_3 = arith.constant 0 : index
    %c0_4 = arith.constant 0 : index
    %3 = vector.load %arg2[%c0_3, %c0_4] : memref<1x64xf32, #tpu.memory_space<vmem>>, vector<1x64xf32>
    %4 = vector.broadcast %3 : vector<1x64xf32> to vector<16x64xf32>
    %5 = arith.addf %2, %4 : vector<16x64xf32>
    %6 = arith.mulf %5, %5 : vector<16x64xf32>
    %7 = arith.mulf %5, %6 : vector<16x64xf32>
    %cst_5 = arith.constant 4.471500e-02 : f32
    %8 = vector.broadcast %cst_5 : f32 to vector<16x64xf32>
    %9 = arith.mulf %8, %7 : vector<16x64xf32>
    %10 = arith.addf %5, %9 : vector<16x64xf32>
    %cst_6 = arith.constant 0.797884583 : f32
    %11 = vector.broadcast %cst_6 : f32 to vector<16x64xf32>
    %12 = arith.mulf %11, %10 : vector<16x64xf32>
    %13 = math.tanh %12 : vector<16x64xf32>
    %cst_7 = arith.constant 1.000000e+00 : f32
    %14 = vector.broadcast %cst_7 : f32 to vector<16x64xf32>
    %15 = arith.addf %14, %13 : vector<16x64xf32>
    %cst_8 = arith.constant 5.000000e-01 : f32
    %16 = vector.broadcast %cst_8 : f32 to vector<16x64xf32>
    %17 = arith.mulf %16, %15 : vector<16x64xf32>
    %18 = arith.mulf %5, %17 : vector<16x64xf32>
    %c0_9 = arith.constant 0 : index
    %c0_10 = arith.constant 0 : index
    %19 = vector.load %arg3[%c0_9, %c0_10] : memref<64x32xf32, #tpu.memory_space<vmem>>, vector<64x32xf32>
    %cst_11 = arith.constant dense<0.000000e+00> : vector<16x32xf32>
    %20 = tpu.matmul %18, %19, %cst_11 {dimension_numbers = #tpu.dot_dimension_numbers<[1], [0], [0], [1], [0, 0, 1, 1], [], []>} : vector<16x64xf32>, vector<64x32xf32>, vector<16x32xf32> -> vector<16x32xf32>
    %c0_12 = arith.constant 0 : index
    %c0_13 = arith.constant 0 : index
    %21 = vector.load %arg4[%c0_12, %c0_13] : memref<1x32xf32, #tpu.memory_space<vmem>>, vector<1x32xf32>
    %22 = vector.broadcast %21 : vector<1x32xf32> to vector<16x32xf32>
    %23 = arith.addf %20, %22 : vector<16x32xf32>
    %24 = arith.addf %0, %23 : vector<16x32xf32>
    %cst_14 = arith.constant dense<0.000000e+00> : vector<16xf32>
    %25 = vector.multi_reduction <add>, %24, %cst_14 [1] : vector<16x32xf32> to vector<16xf32>
    %26 = vector.shape_cast %25 : vector<16xf32> to vector<16x1xf32>
    %cst_15 = arith.constant 3.200000e+01 : f32
    %27 = vector.broadcast %cst_15 : f32 to vector<16x1xf32>
    %28 = arith.divf %26, %27 : vector<16x1xf32>
    %29 = vector.broadcast %28 : vector<16x1xf32> to vector<16x32xf32>
    %30 = arith.subf %24, %29 : vector<16x32xf32>
    %31 = arith.mulf %30, %30 : vector<16x32xf32>
    %cst_16 = arith.constant dense<0.000000e+00> : vector<16xf32>
    %32 = vector.multi_reduction <add>, %31, %cst_16 [1] : vector<16x32xf32> to vector<16xf32>
    %33 = vector.shape_cast %32 : vector<16xf32> to vector<16x1xf32>
    %cst_17 = arith.constant 3.200000e+01 : f32
    %34 = vector.broadcast %cst_17 : f32 to vector<16x1xf32>
    %35 = arith.divf %33, %34 : vector<16x1xf32>
    %36 = vector.broadcast %28 : vector<16x1xf32> to vector<16x32xf32>
    %37 = arith.subf %24, %36 : vector<16x32xf32>
    %cst_18 = arith.constant 9.99999974E-6 : f32
    %38 = vector.broadcast %cst_18 : f32 to vector<16x1xf32>
    %39 = arith.addf %35, %38 : vector<16x1xf32>
    %40 = math.rsqrt %39 : vector<16x1xf32>
    %41 = vector.broadcast %40 : vector<16x1xf32> to vector<16x32xf32>
    %42 = arith.mulf %37, %41 : vector<16x32xf32>
    %c0_19 = arith.constant 0 : index
    %c0_20 = arith.constant 0 : index
    %43 = vector.load %arg5[%c0_19, %c0_20] : memref<1x32xf32, #tpu.memory_space<vmem>>, vector<1x32xf32>
    %44 = vector.broadcast %43 : vector<1x32xf32> to vector<16x32xf32>
    %45 = arith.mulf %42, %44 : vector<16x32xf32>
    %c0_21 = arith.constant 0 : index
    %c0_22 = arith.constant 0 : index
    %46 = vector.load %arg6[%c0_21, %c0_22] : memref<1x32xf32, #tpu.memory_space<vmem>>, vector<1x32xf32>
    %47 = vector.broadcast %46 : vector<1x32xf32> to vector<16x32xf32>
    %48 = arith.addf %45, %47 : vector<16x32xf32>
    %c0_23 = arith.constant 0 : index
    %c0_24 = arith.constant 0 : index
    %49 = vector.load %arg7[%c0_23, %c0_24] : memref<16x32xf32, #tpu.memory_space<vmem>>, vector<16x32xf32>
    tpu.vector_store %arg7[%c0_23, %c0_24], %48 {strides = array<i32>} : memref<16x32xf32, #tpu.memory_space<vmem>>, vector<16x32xf32>,
    return
  }
}

module attributes {stable_mosaic.version = 11 : i64} {
  func.func @_attn_layer_kernel(%arg0: memref<16x32xf32, #tpu.memory_space<vmem>>, %arg1: memref<4x16x16xf32, #tpu.memory_space<vmem>>, %arg2: memref<1x16xf32, #tpu.memory_space<vmem>>, %arg3: memref<1x32xf32, #tpu.memory_space<vmem>>, %arg4: memref<1x32xf32, #tpu.memory_space<vmem>>, %arg5: memref<32x128xf32, #tpu.memory_space<vmem>>, %arg6: memref<1x128xf32, #tpu.memory_space<vmem>>, %arg7: memref<32x32xf32, #tpu.memory_space<vmem>>, %arg8: memref<1x32xf32, #tpu.memory_space<vmem>>, %arg9: memref<16x32xf32, #tpu.memory_space<vmem>>, %arg10: memref<4x16x16xf32, #tpu.memory_space<vmem>>) attributes {dimension_semantics = [], scalar_prefetch = 0 : i64, scratch_operands = 0 : i64, tpu.core_type = #tpu.core_type<tc>} {
    %c0 = arith.constant 0 : index
    %c0_0 = arith.constant 0 : index
    %0 = vector.load %arg0[%c0, %c0_0] : memref<16x32xf32, #tpu.memory_space<vmem>>, vector<16x32xf32>
    %cst = arith.constant dense<0.000000e+00> : vector<16xf32>
    %1 = vector.multi_reduction <add>, %0, %cst [1] : vector<16x32xf32> to vector<16xf32>
    %2 = vector.shape_cast %1 : vector<16xf32> to vector<16x1xf32>
    %cst_1 = arith.constant 3.200000e+01 : f32
    %3 = vector.broadcast %cst_1 : f32 to vector<16x1xf32>
    %4 = arith.divf %2, %3 : vector<16x1xf32>
    %5 = vector.broadcast %4 : vector<16x1xf32> to vector<16x32xf32>
    %6 = arith.subf %0, %5 : vector<16x32xf32>
    %7 = arith.mulf %6, %6 : vector<16x32xf32>
    %cst_2 = arith.constant dense<0.000000e+00> : vector<16xf32>
    %8 = vector.multi_reduction <add>, %7, %cst_2 [1] : vector<16x32xf32> to vector<16xf32>
    %9 = vector.shape_cast %8 : vector<16xf32> to vector<16x1xf32>
    %cst_3 = arith.constant 3.200000e+01 : f32
    %10 = vector.broadcast %cst_3 : f32 to vector<16x1xf32>
    %11 = arith.divf %9, %10 : vector<16x1xf32>
    %12 = vector.broadcast %4 : vector<16x1xf32> to vector<16x32xf32>
    %13 = arith.subf %0, %12 : vector<16x32xf32>
    %cst_4 = arith.constant 9.99999974E-6 : f32
    %14 = vector.broadcast %cst_4 : f32 to vector<16x1xf32>
    %15 = arith.addf %11, %14 : vector<16x1xf32>
    %16 = math.rsqrt %15 : vector<16x1xf32>
    %17 = vector.broadcast %16 : vector<16x1xf32> to vector<16x32xf32>
    %18 = arith.mulf %13, %17 : vector<16x32xf32>
    %c0_5 = arith.constant 0 : index
    %c0_6 = arith.constant 0 : index
    %19 = vector.load %arg3[%c0_5, %c0_6] : memref<1x32xf32, #tpu.memory_space<vmem>>, vector<1x32xf32>
    %20 = vector.broadcast %19 : vector<1x32xf32> to vector<16x32xf32>
    %21 = arith.mulf %18, %20 : vector<16x32xf32>
    %c0_7 = arith.constant 0 : index
    %c0_8 = arith.constant 0 : index
    %22 = vector.load %arg4[%c0_7, %c0_8] : memref<1x32xf32, #tpu.memory_space<vmem>>, vector<1x32xf32>
    %23 = vector.broadcast %22 : vector<1x32xf32> to vector<16x32xf32>
    %24 = arith.addf %21, %23 : vector<16x32xf32>
    %c0_9 = arith.constant 0 : index
    %c0_10 = arith.constant 0 : index
    %25 = vector.load %arg5[%c0_9, %c0_10] : memref<32x128xf32, #tpu.memory_space<vmem>>, vector<32x128xf32>
    %cst_11 = arith.constant dense<0.000000e+00> : vector<16x128xf32>
    %26 = tpu.matmul %24, %25, %cst_11 {dimension_numbers = #tpu.dot_dimension_numbers<[1], [0], [0], [1], [0, 0, 1, 1], [], []>} : vector<16x32xf32>, vector<32x128xf32>, vector<16x128xf32> -> vector<16x128xf32>
    %c0_12 = arith.constant 0 : index
    %c0_13 = arith.constant 0 : index
    %27 = vector.load %arg6[%c0_12, %c0_13] : memref<1x128xf32, #tpu.memory_space<vmem>>, vector<1x128xf32>
    %28 = vector.broadcast %27 : vector<1x128xf32> to vector<16x128xf32>
    %29 = arith.addf %26, %28 : vector<16x128xf32>
    %30 = vector.extract_strided_slice %29 {offsets = [0, 0], sizes = [16, 32], strides = [1, 1]} : vector<16x128xf32> to vector<16x32xf32>
    %31 = vector.extract_strided_slice %29 {offsets = [0, 32], sizes = [16, 32], strides = [1, 1]} : vector<16x128xf32> to vector<16x32xf32>
    %32 = vector.extract_strided_slice %29 {offsets = [0, 64], sizes = [16, 32], strides = [1, 1]} : vector<16x128xf32> to vector<16x32xf32>
    %33 = vector.extract_strided_slice %29 {offsets = [0, 96], sizes = [16, 32], strides = [1, 1]} : vector<16x128xf32> to vector<16x32xf32>
    %34 = arith.negf %33 : vector<16x32xf32>
    %35 = math.exp %34 : vector<16x32xf32>
    %cst_14 = arith.constant 1.000000e+00 : f32
    %36 = vector.broadcast %cst_14 : f32 to vector<16x32xf32>
    %37 = arith.addf %36, %35 : vector<16x32xf32>
    %38 = arith.divf %36, %37 : vector<16x32xf32>
    %39 = vector.extract_strided_slice %30 {offsets = [0, 0], sizes = [16, 8], strides = [1, 1]} : vector<16x32xf32> to vector<16x8xf32>
    %40 = vector.shape_cast %39 : vector<16x8xf32> to vector<1x16x8xf32>
    %41 = vector.extract_strided_slice %30 {offsets = [0, 8], sizes = [16, 8], strides = [1, 1]} : vector<16x32xf32> to vector<16x8xf32>
    %42 = vector.shape_cast %41 : vector<16x8xf32> to vector<1x16x8xf32>
    %43 = vector.extract_strided_slice %30 {offsets = [0, 16], sizes = [16, 8], strides = [1, 1]} : vector<16x32xf32> to vector<16x8xf32>
    %44 = vector.shape_cast %43 : vector<16x8xf32> to vector<1x16x8xf32>
    %45 = vector.extract_strided_slice %30 {offsets = [0, 24], sizes = [16, 8], strides = [1, 1]} : vector<16x32xf32> to vector<16x8xf32>
    %46 = vector.shape_cast %45 : vector<16x8xf32> to vector<1x16x8xf32>
    %47 = tpu.concatenate %40, %42, %44, %46 in 0 : vector<1x16x8xf32>, vector<1x16x8xf32>, vector<1x16x8xf32>, vector<1x16x8xf32> -> vector<4x16x8xf32>
    %48 = vector.extract_strided_slice %31 {offsets = [0, 0], sizes = [16, 8], strides = [1, 1]} : vector<16x32xf32> to vector<16x8xf32>
    %49 = vector.shape_cast %48 : vector<16x8xf32> to vector<1x16x8xf32>
    %50 = vector.extract_strided_slice %31 {offsets = [0, 8], sizes = [16, 8], strides = [1, 1]} : vector<16x32xf32> to vector<16x8xf32>
    %51 = vector.shape_cast %50 : vector<16x8xf32> to vector<1x16x8xf32>
    %52 = vector.extract_strided_slice %31 {offsets = [0, 16], sizes = [16, 8], strides = [1, 1]} : vector<16x32xf32> to vector<16x8xf32>
    %53 = vector.shape_cast %52 : vector<16x8xf32> to vector<1x16x8xf32>
    %54 = vector.extract_strided_slice %31 {offsets = [0, 24], sizes = [16, 8], strides = [1, 1]} : vector<16x32xf32> to vector<16x8xf32>
    %55 = vector.shape_cast %54 : vector<16x8xf32> to vector<1x16x8xf32>
    %56 = tpu.concatenate %49, %51, %53, %55 in 0 : vector<1x16x8xf32>, vector<1x16x8xf32>, vector<1x16x8xf32>, vector<1x16x8xf32> -> vector<4x16x8xf32>
    %57 = vector.extract_strided_slice %32 {offsets = [0, 0], sizes = [16, 8], strides = [1, 1]} : vector<16x32xf32> to vector<16x8xf32>
    %58 = vector.shape_cast %57 : vector<16x8xf32> to vector<1x16x8xf32>
    %59 = vector.extract_strided_slice %32 {offsets = [0, 8], sizes = [16, 8], strides = [1, 1]} : vector<16x32xf32> to vector<16x8xf32>
    %60 = vector.shape_cast %59 : vector<16x8xf32> to vector<1x16x8xf32>
    %61 = vector.extract_strided_slice %32 {offsets = [0, 16], sizes = [16, 8], strides = [1, 1]} : vector<16x32xf32> to vector<16x8xf32>
    %62 = vector.shape_cast %61 : vector<16x8xf32> to vector<1x16x8xf32>
    %63 = vector.extract_strided_slice %32 {offsets = [0, 24], sizes = [16, 8], strides = [1, 1]} : vector<16x32xf32> to vector<16x8xf32>
    %64 = vector.shape_cast %63 : vector<16x8xf32> to vector<1x16x8xf32>
    %65 = tpu.concatenate %58, %60, %62, %64 in 0 : vector<1x16x8xf32>, vector<1x16x8xf32>, vector<1x16x8xf32>, vector<1x16x8xf32> -> vector<4x16x8xf32>
    "tpu.trace_start"() <{level = 10 : i32, message = "hqd,hkd->hqk"}> : () -> ()
    %cst_15 = arith.constant dense<0.000000e+00> : vector<4x16x16xf32>
    %66 = tpu.matmul %47, %56, %cst_15 {dimension_numbers = #tpu.dot_dimension_numbers<[2], [2], [1], [1], [0, 0, 0, 1, 1, 1], [0], [0]>} : vector<4x16x8xf32>, vector<4x16x8xf32>, vector<4x16x16xf32> -> vector<4x16x16xf32>
    "tpu.trace_stop"() : () -> ()
    %cst_16 = arith.constant 0.353553385 : f32
    %67 = vector.broadcast %cst_16 : f32 to vector<4x16x16xf32>
    %68 = arith.mulf %66, %67 : vector<4x16x16xf32>
    %c0_17 = arith.constant 0 : index
    %c0_18 = arith.constant 0 : index
    %c0_19 = arith.constant 0 : index
    %69 = vector.load %arg1[%c0_17, %c0_18, %c0_19] : memref<4x16x16xf32, #tpu.memory_space<vmem>>, vector<4x16x16xf32>
    %70 = arith.addf %68, %69 : vector<4x16x16xf32>
    %c0_20 = arith.constant 0 : index
    %c0_21 = arith.constant 0 : index
    %71 = vector.load %arg2[%c0_20, %c0_21] : memref<1x16xf32, #tpu.memory_space<vmem>>, vector<1x16xf32>
    %cst_22 = arith.constant 0.000000e+00 : f32
    %72 = vector.broadcast %cst_22 : f32 to vector<1x16xf32>
    %73 = arith.cmpf ogt, %71, %72 : vector<1x16xf32>
    %74 = vector.shape_cast %73 : vector<1x16xi1> to vector<1x1x16xi1>
    %cst_23 = arith.constant -1.000000e+09 : f32
    %75 = vector.shape_cast %74 : vector<1x1x16xi1> to vector<1x1x16xi1>
    %76 = vector.broadcast %75 : vector<1x1x16xi1> to vector<4x16x16xi1>
    %77 = vector.broadcast %cst_23 : f32 to vector<4x16x16xf32>
    %78 = arith.select %76, %70, %77 : vector<4x16x16xi1>, vector<4x16x16xf32>
    %cst_24 = arith.constant dense<0xFF800000> : vector<4x16xf32>
    %79 = vector.multi_reduction <maximumf>, %78, %cst_24 [2] : vector<4x16x16xf32> to vector<4x16xf32>
    %80 = vector.shape_cast %79 : vector<4x16xf32> to vector<4x16x1xf32>
    %81 = vector.broadcast %80 : vector<4x16x1xf32> to vector<4x16x16xf32>
    %82 = arith.subf %78, %81 : vector<4x16x16xf32>
    %83 = math.exp %82 : vector<4x16x16xf32>
    %cst_25 = arith.constant dense<0.000000e+00> : vector<4x16xf32>
    %84 = vector.multi_reduction <add>, %83, %cst_25 [2] : vector<4x16x16xf32> to vector<4x16xf32>
    %85 = vector.shape_cast %84 : vector<4x16xf32> to vector<4x16x1xf32>
    %86 = vector.broadcast %85 : vector<4x16x1xf32> to vector<4x16x16xf32>
    %87 = arith.divf %83, %86 : vector<4x16x16xf32>
    %c0_26 = arith.constant 0 : index
    %c0_27 = arith.constant 0 : index
    %c0_28 = arith.constant 0 : index
    %88 = vector.load %arg10[%c0_26, %c0_27, %c0_28] : memref<4x16x16xf32, #tpu.memory_space<vmem>>, vector<4x16x16xf32>
    tpu.vector_store %arg10[%c0_26, %c0_27, %c0_28], %87 {strides = array<i32>} : memref<4x16x16xf32, #tpu.memory_space<vmem>>, vector<4x16x16xf32>,
    "tpu.trace_start"() <{level = 10 : i32, message = "hqk,hkd->hqd"}> : () -> ()
    %cst_29 = arith.constant dense<0.000000e+00> : vector<4x16x8xf32>
    %89 = tpu.matmul %87, %65, %cst_29 {dimension_numbers = #tpu.dot_dimension_numbers<[2], [1], [1], [2], [0, 0, 0, 1, 1, 2], [0], [0]>} : vector<4x16x16xf32>, vector<4x16x8xf32>, vector<4x16x8xf32> -> vector<4x16x8xf32>
    "tpu.trace_stop"() : () -> ()
    %90 = vector.extract_strided_slice %89 {offsets = [0, 0, 0], sizes = [1, 16, 8], strides = [1, 1, 1]} : vector<4x16x8xf32> to vector<1x16x8xf32>
    %91 = vector.shape_cast %90 : vector<1x16x8xf32> to vector<16x8xf32>
    %92 = vector.extract_strided_slice %89 {offsets = [1, 0, 0], sizes = [1, 16, 8], strides = [1, 1, 1]} : vector<4x16x8xf32> to vector<1x16x8xf32>
    %93 = vector.shape_cast %92 : vector<1x16x8xf32> to vector<16x8xf32>
    %94 = vector.extract_strided_slice %89 {offsets = [2, 0, 0], sizes = [1, 16, 8], strides = [1, 1, 1]} : vector<4x16x8xf32> to vector<1x16x8xf32>
    %95 = vector.shape_cast %94 : vector<1x16x8xf32> to vector<16x8xf32>
    %96 = vector.extract_strided_slice %89 {offsets = [3, 0, 0], sizes = [1, 16, 8], strides = [1, 1, 1]} : vector<4x16x8xf32> to vector<1x16x8xf32>
    %97 = vector.shape_cast %96 : vector<1x16x8xf32> to vector<16x8xf32>
    %98 = tpu.concatenate %91, %93, %95, %97 in 1 : vector<16x8xf32>, vector<16x8xf32>, vector<16x8xf32>, vector<16x8xf32> -> vector<16x32xf32>
    %99 = arith.mulf %98, %38 : vector<16x32xf32>
    %c0_30 = arith.constant 0 : index
    %c0_31 = arith.constant 0 : index
    %100 = vector.load %arg7[%c0_30, %c0_31] : memref<32x32xf32, #tpu.memory_space<vmem>>, vector<32x32xf32>
    %cst_32 = arith.constant dense<0.000000e+00> : vector<16x32xf32>
    %101 = tpu.matmul %99, %100, %cst_32 {dimension_numbers = #tpu.dot_dimension_numbers<[1], [0], [0], [1], [0, 0, 1, 1], [], []>} : vector<16x32xf32>, vector<32x32xf32>, vector<16x32xf32> -> vector<16x32xf32>
    %c0_33 = arith.constant 0 : index
    %c0_34 = arith.constant 0 : index
    %102 = vector.load %arg8[%c0_33, %c0_34] : memref<1x32xf32, #tpu.memory_space<vmem>>, vector<1x32xf32>
    %103 = vector.broadcast %102 : vector<1x32xf32> to vector<16x32xf32>
    %104 = arith.addf %101, %103 : vector<16x32xf32>
    %105 = arith.addf %0, %104 : vector<16x32xf32>
    %c0_35 = arith.constant 0 : index
    %c0_36 = arith.constant 0 : index
    %106 = vector.load %arg9[%c0_35, %c0_36] : memref<16x32xf32, #tpu.memory_space<vmem>>, vector<16x32xf32>
    tpu.vector_store %arg9[%c0_35, %c0_36], %105 {strides = array<i32>} : memref<16x32xf32, #tpu.memory_space<vmem>>, vector<16x32xf32>,
    return
  }
}

module attributes {stable_mosaic.version = 11 : i64} {
  func.func @_mlp2_kernel(%arg0: memref<8x32xf32, #tpu.memory_space<vmem>>, %arg1: memref<32x32xf32, #tpu.memory_space<vmem>>, %arg2: memref<1x32xf32, #tpu.memory_space<vmem>>, %arg3: memref<32x7xf32, #tpu.memory_space<vmem>>, %arg4: memref<1x7xf32, #tpu.memory_space<vmem>>, %arg5: memref<8x7xf32, #tpu.memory_space<vmem>>) attributes {dimension_semantics = [], scalar_prefetch = 0 : i64, scratch_operands = 0 : i64, tpu.core_type = #tpu.core_type<tc>} {
    %c0 = arith.constant 0 : index
    %c0_0 = arith.constant 0 : index
    %0 = vector.load %arg0[%c0, %c0_0] : memref<8x32xf32, #tpu.memory_space<vmem>>, vector<8x32xf32>
    %c0_1 = arith.constant 0 : index
    %c0_2 = arith.constant 0 : index
    %1 = vector.load %arg1[%c0_1, %c0_2] : memref<32x32xf32, #tpu.memory_space<vmem>>, vector<32x32xf32>
    %cst = arith.constant dense<0.000000e+00> : vector<8x32xf32>
    %2 = tpu.matmul %0, %1, %cst {dimension_numbers = #tpu.dot_dimension_numbers<[1], [0], [0], [1], [0, 0, 1, 1], [], []>} : vector<8x32xf32>, vector<32x32xf32>, vector<8x32xf32> -> vector<8x32xf32>
    %c0_3 = arith.constant 0 : index
    %c0_4 = arith.constant 0 : index
    %3 = vector.load %arg2[%c0_3, %c0_4] : memref<1x32xf32, #tpu.memory_space<vmem>>, vector<1x32xf32>
    %4 = vector.broadcast %3 : vector<1x32xf32> to vector<8x32xf32>
    %5 = arith.addf %2, %4 : vector<8x32xf32>
    %6 = arith.mulf %5, %5 : vector<8x32xf32>
    %7 = arith.mulf %5, %6 : vector<8x32xf32>
    %cst_5 = arith.constant 4.471500e-02 : f32
    %8 = vector.broadcast %cst_5 : f32 to vector<8x32xf32>
    %9 = arith.mulf %8, %7 : vector<8x32xf32>
    %10 = arith.addf %5, %9 : vector<8x32xf32>
    %cst_6 = arith.constant 0.797884583 : f32
    %11 = vector.broadcast %cst_6 : f32 to vector<8x32xf32>
    %12 = arith.mulf %11, %10 : vector<8x32xf32>
    %13 = math.tanh %12 : vector<8x32xf32>
    %cst_7 = arith.constant 1.000000e+00 : f32
    %14 = vector.broadcast %cst_7 : f32 to vector<8x32xf32>
    %15 = arith.addf %14, %13 : vector<8x32xf32>
    %cst_8 = arith.constant 5.000000e-01 : f32
    %16 = vector.broadcast %cst_8 : f32 to vector<8x32xf32>
    %17 = arith.mulf %16, %15 : vector<8x32xf32>
    %18 = arith.mulf %5, %17 : vector<8x32xf32>
    %c0_9 = arith.constant 0 : index
    %c0_10 = arith.constant 0 : index
    %19 = vector.load %arg3[%c0_9, %c0_10] : memref<32x7xf32, #tpu.memory_space<vmem>>, vector<32x7xf32>
    %cst_11 = arith.constant dense<0.000000e+00> : vector<8x7xf32>
    %20 = tpu.matmul %18, %19, %cst_11 {dimension_numbers = #tpu.dot_dimension_numbers<[1], [0], [0], [1], [0, 0, 1, 1], [], []>} : vector<8x32xf32>, vector<32x7xf32>, vector<8x7xf32> -> vector<8x7xf32>
    %c0_12 = arith.constant 0 : index
    %c0_13 = arith.constant 0 : index
    %21 = vector.load %arg4[%c0_12, %c0_13] : memref<1x7xf32, #tpu.memory_space<vmem>>, vector<1x7xf32>
    %22 = vector.broadcast %21 : vector<1x7xf32> to vector<8x7xf32>
    %23 = arith.addf %20, %22 : vector<8x7xf32>
    %c0_14 = arith.constant 0 : index
    %c0_15 = arith.constant 0 : index
    %24 = vector.load %arg5[%c0_14, %c0_15] : memref<8x7xf32, #tpu.memory_space<vmem>>, vector<8x7xf32>
    tpu.vector_store %arg5[%c0_14, %c0_15], %23 {strides = array<i32>} : memref<8x7xf32, #tpu.memory_space<vmem>>, vector<8x7xf32>,
    return
  }
}

module attributes {stable_mosaic.version = 11 : i64} {
  func.func @_mlp2_kernel(%arg0: memref<8x32xf32, #tpu.memory_space<vmem>>, %arg1: memref<32x32xf32, #tpu.memory_space<vmem>>, %arg2: memref<1x32xf32, #tpu.memory_space<vmem>>, %arg3: memref<32x11xf32, #tpu.memory_space<vmem>>, %arg4: memref<1x11xf32, #tpu.memory_space<vmem>>, %arg5: memref<8x11xf32, #tpu.memory_space<vmem>>) attributes {dimension_semantics = [], scalar_prefetch = 0 : i64, scratch_operands = 0 : i64, tpu.core_type = #tpu.core_type<tc>} {
    %c0 = arith.constant 0 : index
    %c0_0 = arith.constant 0 : index
    %0 = vector.load %arg0[%c0, %c0_0] : memref<8x32xf32, #tpu.memory_space<vmem>>, vector<8x32xf32>
    %c0_1 = arith.constant 0 : index
    %c0_2 = arith.constant 0 : index
    %1 = vector.load %arg1[%c0_1, %c0_2] : memref<32x32xf32, #tpu.memory_space<vmem>>, vector<32x32xf32>
    %cst = arith.constant dense<0.000000e+00> : vector<8x32xf32>
    %2 = tpu.matmul %0, %1, %cst {dimension_numbers = #tpu.dot_dimension_numbers<[1], [0], [0], [1], [0, 0, 1, 1], [], []>} : vector<8x32xf32>, vector<32x32xf32>, vector<8x32xf32> -> vector<8x32xf32>
    %c0_3 = arith.constant 0 : index
    %c0_4 = arith.constant 0 : index
    %3 = vector.load %arg2[%c0_3, %c0_4] : memref<1x32xf32, #tpu.memory_space<vmem>>, vector<1x32xf32>
    %4 = vector.broadcast %3 : vector<1x32xf32> to vector<8x32xf32>
    %5 = arith.addf %2, %4 : vector<8x32xf32>
    %6 = arith.mulf %5, %5 : vector<8x32xf32>
    %7 = arith.mulf %5, %6 : vector<8x32xf32>
    %cst_5 = arith.constant 4.471500e-02 : f32
    %8 = vector.broadcast %cst_5 : f32 to vector<8x32xf32>
    %9 = arith.mulf %8, %7 : vector<8x32xf32>
    %10 = arith.addf %5, %9 : vector<8x32xf32>
    %cst_6 = arith.constant 0.797884583 : f32
    %11 = vector.broadcast %cst_6 : f32 to vector<8x32xf32>
    %12 = arith.mulf %11, %10 : vector<8x32xf32>
    %13 = math.tanh %12 : vector<8x32xf32>
    %cst_7 = arith.constant 1.000000e+00 : f32
    %14 = vector.broadcast %cst_7 : f32 to vector<8x32xf32>
    %15 = arith.addf %14, %13 : vector<8x32xf32>
    %cst_8 = arith.constant 5.000000e-01 : f32
    %16 = vector.broadcast %cst_8 : f32 to vector<8x32xf32>
    %17 = arith.mulf %16, %15 : vector<8x32xf32>
    %18 = arith.mulf %5, %17 : vector<8x32xf32>
    %c0_9 = arith.constant 0 : index
    %c0_10 = arith.constant 0 : index
    %19 = vector.load %arg3[%c0_9, %c0_10] : memref<32x11xf32, #tpu.memory_space<vmem>>, vector<32x11xf32>
    %cst_11 = arith.constant dense<0.000000e+00> : vector<8x11xf32>
    %20 = tpu.matmul %18, %19, %cst_11 {dimension_numbers = #tpu.dot_dimension_numbers<[1], [0], [0], [1], [0, 0, 1, 1], [], []>} : vector<8x32xf32>, vector<32x11xf32>, vector<8x11xf32> -> vector<8x11xf32>
    %c0_12 = arith.constant 0 : index
    %c0_13 = arith.constant 0 : index
    %21 = vector.load %arg4[%c0_12, %c0_13] : memref<1x11xf32, #tpu.memory_space<vmem>>, vector<1x11xf32>
    %22 = vector.broadcast %21 : vector<1x11xf32> to vector<8x11xf32>
    %23 = arith.addf %20, %22 : vector<8x11xf32>
    %c0_14 = arith.constant 0 : index
    %c0_15 = arith.constant 0 : index
    %24 = vector.load %arg5[%c0_14, %c0_15] : memref<8x11xf32, #tpu.memory_space<vmem>>, vector<8x11xf32>
    tpu.vector_store %arg5[%c0_14, %c0_15], %23 {strides = array<i32>} : memref<8x11xf32, #tpu.memory_space<vmem>>, vector<8x11xf32>,
    return
  }
}

</mosaic_0001>

<llo_original>
// kernel: mul.5
$region0: #{mul.5}
  %s0 = inlined_call_operand.vmem [shape: f32[8,8], index: 0, kind: input, shape index: {}]
  %s1 = inlined_call_operand.vmem [shape: f32[64], index: 1, kind: output, shape index: {}]
  $region1: #{mul.5} parent=0
    #allocation0 [shape = 'u8[4096]{0}', space=vmem, size = 0x1000, scoped, tag = 'scoped mem for output reshape']
    %v2 = vld [vmem:[%s0] sm:$0x1]
    %vm3 = vcmask 64512
    %4 = vst.msk [vmem:[#allocation0] sm:$0x1] %vm3, %v2
    %s5 = scalar_lea.vmem %s0, 7
    %v6 = vld [vmem:[%s5] sm:$0x1]
    %7 = vrot.lane.b32.xlu0 %v6, 56
    %v8 = vpop.permute.xlu0 %7
    %vm9 = vcmask 523712
    %10 = vst.msk [vmem:[#allocation0] sm:$0x1] %vm9, %v8
    %s11 = scalar_lea.vmem %s0, 6
    %v12 = vld [vmem:[%s11] sm:$0x1]
    %13 = vrot.lane.b32.xlu0 %v12, 48
    %v14 = vpop.permute.xlu0 %13
    %vm15 = vcmask 458112
    %16 = vst.msk [vmem:[#allocation0] sm:$0x1] %vm15, %v14
    %s17 = scalar_lea.vmem %s0, 5
    %v18 = vld [vmem:[%s17] sm:$0x1]
    %19 = vrot.lane.b32.xlu0 %v18, 40
    %v20 = vpop.permute.xlu0 %19
    %vm21 = vcmask 392512
    %22 = vst.msk [vmem:[#allocation0] sm:$0x1] %vm21, %v20
    %s23 = scalar_lea.vmem %s0, 4
    %v24 = vld [vmem:[%s23] sm:$0x1]
    %25 = vrot.lane.b32.xlu0 %v24, 32
    %v26 = vpop.permute.xlu0 %25
    %vm27 = vcmask 326912
    %28 = vst.msk [vmem:[#allocation0] sm:$0x1] %vm27, %v26
    %s29 = scalar_lea.vmem %s0, 3
    %v30 = vld [vmem:[%s29] sm:$0x1]
    %31 = vrot.lane.b32.xlu0 %v30, 24
    %v32 = vpop.permute.xlu0 %31
    %vm33 = vcmask 261312
    %34 = vst.msk [vmem:[#allocation0] sm:$0x1] %vm33, %v32
    %s35 = scalar_lea.vmem %s0, 2
    %v36 = vld [vmem:[%s35] sm:$0x1]
    %37 = vrot.lane.b32.xlu0 %v36, 16
    %v38 = vpop.permute.xlu0 %37
    %vm39 = vcmask 195712
    %40 = vst.msk [vmem:[#allocation0] sm:$0x1] %vm39, %v38
    %s41 = scalar_lea.vmem %s0, 1
    %v42 = vld [vmem:[%s41] sm:$0x1]
    %43 = vrot.lane.b32.xlu0 %v42, 8
    %v44 = vpop.permute.xlu0 %43
    %vm45 = vcmask 130112
    %46 = vst.msk [vmem:[#allocation0] sm:$0x1] %vm45, %v44
    %s48 = sshll.u32 1, 1
    %s49 = ssub.s32 %s48, 1
    %v51 = vld [vmem:[#allocation0] sm:%s49]
    %s52 = sshll.u32 1, 1
    %s53 = ssub.s32 %s52, 1
    %54 = vst [vmem:[%s1] sm:%s53] %v51

// kernel: local_transform_forward.15
$region0: #{local_transform_forward.15}
  #allocation0 [shape = 'u32[]', space=smem, size = 0x4, offset = 0x4, fixed_abs, tag = 'smem constant byte address 0x4 - core index']
  #allocation1 [shape = 'u32[144,128]{1,0:T(1,128)}', space=vmem, size = 0x12000, scoped, tag = 'internal scratch']
  %s0 = inlined_call_operand.vmem [shape: f32[64,8], index: 0, kind: input, shape index: {}]
  %s1 = inlined_call_operand.vmem [shape: f32[8,32], index: 1, kind: input, shape index: {}]
  %s2 = inlined_call_operand.vmem [shape: f32[1,32], index: 2, kind: input, shape index: {}]
  %s3 = inlined_call_operand.hbm [shape: f32[32,1024], index: 3, kind: input, shape index: {}]
  %s4 = inlined_call_operand.vmem [shape: f32[1,1024], index: 4, kind: input, shape index: {}]
  %s5 = inlined_call_operand.vmem [shape: f32[64,1024], index: 5, kind: output, shape index: {}]
  %s6 = sld [smem:[#allocation0]]
  $region34: #{local_transform_forward.15} parent=0
    _
  %s8 = ssub.s32 1, %s6
  %s9 = scalar_select 0, %s8, %s6
  $region1: #{local_transform_forward.15} parent=0
    #allocation2 [shape = 'u8[131072]{0}', space=vmem, size = 0x20000, scoped, tag = 'input window, operand 3, single buffered']
    #allocation3 [shape = 's32[1]{0}', space=sflag, size = 0x4, scoped, tag = 'scoped memory for local_transform_forward.15']
    %10 = vsyncpa [#allocation3], 0
    // Predicated region
    $region2: #{local_transform_forward.15} parent=1 // pred_check
      _
    $region3: #{local_transform_forward.15} parent=1 // pred_check_branch
      %12 = sbr.rel (0) target = $region5
    $region4: #{local_transform_forward.15} parent=1 // pred_region
      _
    $region5: #{local_transform_forward.15} parent=1 // pred_fallthru
      _
    // Predicated region
    $region6: #{local_transform_forward.15} parent=1 // pred_check
      _
    $region7: #{local_transform_forward.15} parent=1 // pred_check_branch
      %14 = sbr.rel (0) target = $region9
    $region8: #{local_transform_forward.15} parent=1 // pred_region
      _
    $region9: #{local_transform_forward.15} parent=1 // pred_fallthru
      _
    // Predicated region
    $region10: #{local_transform_forward.15} parent=1 // pred_check
      _
    $region11: #{local_transform_forward.15} parent=1 // pred_check_branch
      %16 = sbr.rel (0) target = $region13
    $region12: #{local_transform_forward.15} parent=1 // pred_region
      _
    $region13: #{local_transform_forward.15} parent=1 // pred_fallthru
      _
    // Predicated region
    $region14: #{local_transform_forward.15} parent=1 // pred_check
      _
    $region15: #{local_transform_forward.15} parent=1 // pred_check_branch
      %18 = sbr.rel (0) target = $region17
    $region16: #{local_transform_forward.15} parent=1 // pred_region
      %s20 = ssub.s32 4096, 4096
      %21 = vsyncadd [#allocation3], %s20
      %s22 = sshll.u32 [#allocation2], 4
      %s23 = int_to_ptr.vmem [resolvable:$true] %s22
      %28 = dma.hbm_to_vmem [thread:$0]  %s3, 4096, %s23, [#allocation3], 1024, 1024, 64
    $region17: #{local_transform_forward.15} parent=1 // pred_fallthru
      _
    // Predicated region
    $region18: #{local_transform_forward.15} parent=1 // pred_check
      _
    $region19: #{local_transform_forward.15} parent=1 // pred_check_branch
      %30 = sbr.rel (0) target = $region21
    $region20: #{local_transform_forward.15} parent=1 // pred_region
      _
    $region21: #{local_transform_forward.15} parent=1 // pred_fallthru
      _
    // Predicated region
    $region22: #{local_transform_forward.15} parent=1 // pred_check
      _
    $region23: #{local_transform_forward.15} parent=1 // pred_check_branch
      %32 = sbr.rel (0) target = $region25
    $region24: #{local_transform_forward.15} parent=1 // pred_region
      %33 = dma.done [#allocation3], 4096
    $region25: #{local_transform_forward.15} parent=1 // pred_fallthru
      _
    %v34 = vld [vmem:[%s0] sm:$0xff]
    %v35 = vld [vmem:[%s0 + $0x8] sm:$0xff]
    %v36 = vld [vmem:[%s0 + $0x10] sm:$0xff]
    %v37 = vld [vmem:[%s0 + $0x18] sm:$0xff]
    %v38 = vld [vmem:[%s0 + $0x20] sm:$0xff]
    %v39 = vld [vmem:[%s0 + $0x28] sm:$0xff]
    %v40 = vld [vmem:[%s0 + $0x30] sm:$0xff]
    %v41 = vld [vmem:[%s0 + $0x38] sm:$0xff]
    %v42 = vld [vmem:[%s1] sm:$0xff]
    %v43 = vld [vmem:[%s2] sm:$0x1]
    %v45 = vlaneseq
    %v46 = vshrl.u32 %v45, 7
    %v47 = vsub.s32 0, %v46
    %v48 = vrot.slane %v43, %v47
    %vm50 = vcmask 64512
    %v52 = vsel %vm50, %v34, 0
    %v55 = vsel %vm50, %v35, 0
    %v58 = vsel %vm50, %v36, 0
    %v61 = vsel %vm50, %v37, 0
    %v64 = vsel %vm50, %v38, 0
    %v67 = vsel %vm50, %v39, 0
    %v70 = vsel %vm50, %v40, 0
    %v73 = vsel %vm50, %v41, 0
    %75 = vmatprep.subr.mxu0 0.0
    %76 = vmatpush1.msra.mxu0 0.0
    %77 = vmatprep.subr.mxu0 0.0
    %78 = vmatpush1.msra.mxu0 0.0
    %79 = vmatprep.subr.mxu0 0.0
    %80 = vmatpush1.msra.mxu0 0.0
    %81 = vmatprep.subr.mxu0 0.0
    %82 = vmatpush1.msra.mxu0 0.0
    %83 = vmatprep.subr.mxu0 0.0
    %84 = vmatpush1.msra.mxu0 0.0
    %85 = vmatprep.subr.mxu0 0.0
    %86 = vmatpush1.msra.mxu0 0.0
    %87 = vmatprep.subr.mxu0 0.0
    %88 = vmatpush1.msra.mxu0 0.0
    %89 = vmatprep.subr.mxu0 0.0
    %90 = vmatpush1.msra.mxu0 0.0
    %91 = vmatprep.subr.mxu0 0.0
    %92 = vmatpush1.msra.mxu0 0.0
    %93 = vmatprep.subr.mxu0 0.0
    %94 = vmatpush1.msra.mxu0 0.0
    %95 = vmatprep.subr.mxu0 0.0
    %96 = vmatpush1.msra.mxu0 0.0
    %97 = vmatprep.subr.mxu0 0.0
    %98 = vmatpush1.msra.mxu0 0.0
    %99 = vmatprep.subr.mxu0 0.0
    %100 = vmatpush1.msra.mxu0 0.0
    %101 = vmatprep.subr.mxu0 0.0
    %102 = vmatpush1.msra.mxu0 0.0
    %103 = vmatprep.subr.mxu0 0.0
    %104 = vmatpush1.msra.mxu0 0.0
    %105 = vmatprep.subr.mxu0 0.0
    %106 = vmatpush1.msra.mxu0 %v42
    %107 = vmatprep.subr.mxu0 0.0
    %108 = vmatpush2.msra.mxu0 0.0
    %109 = vmatprep.subr.mxu0 0.0
    %110 = vmatpush2.msra.mxu0 0.0
    %111 = vmatprep.subr.mxu0 0.0
    %112 = vmatpush2.msra.mxu0 0.0
    %113 = vmatprep.subr.mxu0 0.0
    %114 = vmatpush2.msra.mxu0 0.0
    %115 = vmatprep.subr.mxu0 0.0
    %116 = vmatpush2.msra.mxu0 0.0
    %117 = vmatprep.subr.mxu0 0.0
    %118 = vmatpush2.msra.mxu0 0.0
    %119 = vmatprep.subr.mxu0 0.0
    %120 = vmatpush2.msra.mxu0 0.0
    %121 = vmatprep.subr.mxu0 0.0
    %122 = vmatpush2.msra.mxu0 0.0
    %123 = vmatprep.subr.mxu0 0.0
    %124 = vmatpush2.msra.mxu0 0.0
    %125 = vmatprep.subr.mxu0 0.0
    %126 = vmatpush2.msra.mxu0 0.0
    %127 = vmatprep.subr.mxu0 0.0
    %128 = vmatpush2.msra.mxu0 0.0
    %129 = vmatprep.subr.mxu0 0.0
    %130 = vmatpush2.msra.mxu0 0.0
    %131 = vmatprep.subr.mxu0 0.0
    %132 = vmatpush2.msra.mxu0 0.0
    %133 = vmatprep.subr.mxu0 0.0
    %134 = vmatpush2.msra.mxu0 0.0
    %135 = vmatprep.subr.mxu0 0.0
    %136 = vmatpush2.msra.mxu0 0.0
    %137 = vmatprep.subr.mxu0 0.0
    %138 = vmatpush2.msra.mxu0 0.0
    %139 = vmatprep.mubr.f32.mxu0 0.0
    %140 = vmatmul.mubr.f32.gmra.mxu0 %v52
    %v141 = vpop.f32.mrf.mxu0
    %v142 = vadd.f32 %v48, %v141
    %v143 = vpop.f32.mrf.mxu0
    %144 = vmatprep.mubr.f32.mxu0 0.0
    %145 = vmatmul.mubr.f32.gmra.mxu0 %v55
    %v146 = vpop.f32.mrf.mxu0
    %v147 = vadd.f32 %v48, %v146
    %v148 = vpop.f32.mrf.mxu0
    %149 = vmatprep.mubr.f32.mxu0 0.0
    %150 = vmatmul.mubr.f32.gmra.mxu0 %v58
    %v151 = vpop.f32.mrf.mxu0
    %v152 = vadd.f32 %v48, %v151
    %v153 = vpop.f32.mrf.mxu0
    %154 = vmatprep.mubr.f32.mxu0 0.0
    %155 = vmatmul.mubr.f32.gmra.mxu0 %v61
    %v156 = vpop.f32.mrf.mxu0
    %v157 = vadd.f32 %v48, %v156
    %v158 = vpop.f32.mrf.mxu0
    %159 = vmatprep.mubr.f32.mxu0 0.0
    %160 = vmatmul.mubr.f32.gmra.mxu0 %v64
    %v161 = vpop.f32.mrf.mxu0
    %v162 = vadd.f32 %v48, %v161
    %v163 = vpop.f32.mrf.mxu0
    %164 = vmatprep.mubr.f32.mxu0 0.0
    %165 = vmatmul.mubr.f32.gmra.mxu0 %v67
    %v166 = vpop.f32.mrf.mxu0
    %v167 = vadd.f32 %v48, %v166
    %v168 = vpop.f32.mrf.mxu0
    %169 = vmatprep.mubr.f32.mxu0 0.0
    %170 = vmatmul.mubr.f32.gmra.mxu0 %v70
    %v171 = vpop.f32.mrf.mxu0
    %v172 = vadd.f32 %v48, %v171
    %v173 = vpop.f32.mrf.mxu0
    %174 = vmatprep.mubr.f32.mxu0 0.0
    %175 = vmatmul.mubr.f32.gmra.mxu0 %v73
    %v176 = vpop.f32.mrf.mxu0
    %v177 = vadd.f32 %v48, %v176
    %v178 = vpop.f32.mrf.mxu0
    %179 = vdwg.mxu0
    %v180 = vmax.f32 %v142, 0.0
    %v181 = vmax.f32 %v147, 0.0
    %v182 = vmax.f32 %v152, 0.0
    %v183 = vmax.f32 %v157, 0.0
    %v184 = vmax.f32 %v162, 0.0
    %v185 = vmax.f32 %v167, 0.0
    %v186 = vmax.f32 %v172, 0.0
    %v187 = vmax.f32 %v177, 0.0
    %v188 = vld [vmem:[#allocation2] sm:$0xff]
    %v189 = vld [vmem:[#allocation2 + $0x8] sm:$0xff]
    %v190 = vld [vmem:[#allocation2 + $0x10] sm:$0xff]
    %v191 = vld [vmem:[#allocation2 + $0x18] sm:$0xff]
    %v192 = vld [vmem:[#allocation2 + $0x20] sm:$0xff]
    %v193 = vld [vmem:[#allocation2 + $0x28] sm:$0xff]
    %v194 = vld [vmem:[#allocation2 + $0x30] sm:$0xff]
    %v195 = vld [vmem:[#allocation2 + $0x38] sm:$0xff]
    %v196 = vld [vmem:[#allocation2 + $0x40] sm:$0xff]
    %v197 = vld [vmem:[#allocation2 + $0x48] sm:$0xff]
    %v198 = vld [vmem:[#allocation2 + $0x50] sm:$0xff]
    %v199 = vld [vmem:[#allocation2 + $0x58] sm:$0xff]
    %v200 = vld [vmem:[#allocation2 + $0x60] sm:$0xff]
    %v201 = vld [vmem:[#allocation2 + $0x68] sm:$0xff]
    %v202 = vld [vmem:[#allocation2 + $0x70] sm:$0xff]
    %v203 = vld [vmem:[#allocation2 + $0x78] sm:$0xff]
    %v204 = vld [vmem:[#allocation2 + $0x80] sm:$0xff]
    %v205 = vld [vmem:[#allocation2 + $0x88] sm:$0xff]
    %v206 = vld [vmem:[#allocation2 + $0x90] sm:$0xff]
    %v207 = vld [vmem:[#allocation2 + $0x98] sm:$0xff]
    %v208 = vld [vmem:[#allocation2 + $0xa0] sm:$0xff]
    %v209 = vld [vmem:[#allocation2 + $0xa8] sm:$0xff]
    %v210 = vld [vmem:[#allocation2 + $0xb0] sm:$0xff]
    %v211 = vld [vmem:[#allocation2 + $0xb8] sm:$0xff]
    %v212 = vld [vmem:[#allocation2 + $0xc0] sm:$0xff]
    %v213 = vld [vmem:[#allocation2 + $0xc8] sm:$0xff]
    %v214 = vld [vmem:[#allocation2 + $0xd0] sm:$0xff]
    %v215 = vld [vmem:[#allocation2 + $0xd8] sm:$0xff]
    %v216 = vld [vmem:[#allocation2 + $0xe0] sm:$0xff]
    %v217 = vld [vmem:[#allocation2 + $0xe8] sm:$0xff]
    %v218 = vld [vmem:[#allocation2 + $0xf0] sm:$0xff]
    %v219 = vld [vmem:[#allocation2 + $0xf8] sm:$0xff]
    %v220 = vld [vmem:[%s4] sm:$0xff]
    %v222 = vlaneseq
    %v223 = vshrl.u32 %v222, 7
    %v224 = vsub.s32 0, %v223
    %v225 = vrot.slane %v220, %v224
    %v226 = vlaneseq
    %v227 = vshrl.u32 %v226, 7
    %v228 = vsub.s32 1, %v227
    %v229 = vrot.slane %v220, %v228
    %v230 = vlaneseq
    %v231 = vshrl.u32 %v230, 7
    %v232 = vsub.s32 2, %v231
    %v233 = vrot.slane %v220, %v232
    %v234 = vlaneseq
    %v235 = vshrl.u32 %v234, 7
    %v236 = vsub.s32 3, %v235
    %v237 = vrot.slane %v220, %v236
    %v238 = vlaneseq
    %v239 = vshrl.u32 %v238, 7
    %v240 = vsub.s32 4, %v239
    %v241 = vrot.slane %v220, %v240
    %v242 = vlaneseq
    %v243 = vshrl.u32 %v242, 7
    %v244 = vsub.s32 5, %v243
    %v245 = vrot.slane %v220, %v244
    %v246 = vlaneseq
    %v247 = vshrl.u32 %v246, 7
    %v248 = vsub.s32 6, %v247
    %v249 = vrot.slane %v220, %v248
    %v250 = vlaneseq
    %v251 = vshrl.u32 %v250, 7
    %v252 = vsub.s32 7, %v251
    %v253 = vrot.slane %v220, %v252
    %vm262 = vcmask 261120
    %v264 = vsel %vm262, %v180, 0
    %v267 = vsel %vm262, %v181, 0
    %v270 = vsel %vm262, %v182, 0
    %v273 = vsel %vm262, %v183, 0
    %v276 = vsel %vm262, %v184, 0
    %v279 = vsel %vm262, %v185, 0
    %v282 = vsel %vm262, %v186, 0
    %v285 = vsel %vm262, %v187, 0
    %287 = vmatprep.subr.mxu0 0.0
    %288 = vmatpush1.msra.mxu0 0.0
    %289 = vmatprep.subr.mxu0 0.0
    %290 = vmatpush1.msra.mxu0 0.0
    %291 = vmatprep.subr.mxu0 0.0
    %292 = vmatpush1.msra.mxu0 0.0
    %293 = vmatprep.subr.mxu0 0.0
    %294 = vmatpush1.msra.mxu0 0.0
    %295 = vmatprep.subr.mxu0 0.0
    %296 = vmatpush1.msra.mxu0 0.0
    %297 = vmatprep.subr.mxu0 0.0
    %298 = vmatpush1.msra.mxu0 0.0
    %299 = vmatprep.subr.mxu0 0.0
    %300 = vmatpush1.msra.mxu0 0.0
    %301 = vmatprep.subr.mxu0 0.0
    %302 = vmatpush1.msra.mxu0 0.0
    %303 = vmatprep.subr.mxu0 0.0
    %304 = vmatpush1.msra.mxu0 0.0
    %305 = vmatprep.subr.mxu0 0.0
    %306 = vmatpush1.msra.mxu0 0.0
    %307 = vmatprep.subr.mxu0 0.0
    %308 = vmatpush1.msra.mxu0 0.0
    %309 = vmatprep.subr.mxu0 0.0
    %310 = vmatpush1.msra.mxu0 0.0
    %311 = vmatprep.subr.mxu0 %v213
    %312 = vmatpush1.msra.mxu0 %v212
    %313 = vmatprep.subr.mxu0 %v205
    %314 = vmatpush1.msra.mxu0 %v204
    %315 = vmatprep.subr.mxu0 %v197
    %316 = vmatpush1.msra.mxu0 %v196
    %317 = vmatprep.subr.mxu0 %v189
    %318 = vmatpush1.msra.mxu0 %v188
    %319 = vmatprep.subr.mxu0 0.0
    %320 = vmatpush2.msra.mxu0 0.0
    %321 = vmatprep.subr.mxu0 0.0
    %322 = vmatpush2.msra.mxu0 0.0
    %323 = vmatprep.subr.mxu0 0.0
    %324 = vmatpush2.msra.mxu0 0.0
    %325 = vmatprep.subr.mxu0 0.0
    %326 = vmatpush2.msra.mxu0 0.0
    %327 = vmatprep.subr.mxu0 0.0
    %328 = vmatpush2.msra.mxu0 0.0
    %329 = vmatprep.subr.mxu0 0.0
    %330 = vmatpush2.msra.mxu0 0.0
    %331 = vmatprep.subr.mxu0 0.0
    %332 = vmatpush2.msra.mxu0 0.0
    %333 = vmatprep.subr.mxu0 0.0
    %334 = vmatpush2.msra.mxu0 0.0
    %335 = vmatprep.subr.mxu0 0.0
    %336 = vmatpush2.msra.mxu0 0.0
    %337 = vmatprep.subr.mxu0 0.0
    %338 = vmatpush2.msra.mxu0 0.0
    %339 = vmatprep.subr.mxu0 0.0
    %340 = vmatpush2.msra.mxu0 0.0
    %341 = vmatprep.subr.mxu0 0.0
    %342 = vmatpush2.msra.mxu0 0.0
    %343 = vmatprep.subr.mxu0 0.0
    %344 = vmatpush2.msra.mxu0 0.0
    %345 = vmatprep.subr.mxu0 0.0
    %346 = vmatpush2.msra.mxu0 0.0
    %347 = vmatprep.subr.mxu0 0.0
    %348 = vmatpush2.msra.mxu0 0.0
    %349 = vmatprep.subr.mxu0 0.0
    %350 = vmatpush2.msra.mxu0 0.0
    %351 = vmatprep.mubr.f32.mxu0 0.0
    %352 = vmatmul.mubr.f32.gmra.mxu0 %v264
    %v353 = vpop.f32.mrf.mxu0
    %v354 = vadd.f32 %v225, %v353
    %v355 = vpop.f32.mrf.mxu0
    %v356 = vadd.f32 %v229, %v355
    %357 = vmatprep.mubr.f32.mxu0 0.0
    %358 = vmatmul.mubr.f32.gmra.mxu0 %v267
    %v359 = vpop.f32.mrf.mxu0
    %v360 = vadd.f32 %v225, %v359
    %v361 = vpop.f32.mrf.mxu0
    %v362 = vadd.f32 %v229, %v361
    %363 = vmatprep.mubr.f32.mxu0 0.0
    %364 = vmatmul.mubr.f32.gmra.mxu0 %v270
    %v365 = vpop.f32.mrf.mxu0
    %v366 = vadd.f32 %v225, %v365
    %v367 = vpop.f32.mrf.mxu0
    %v368 = vadd.f32 %v229, %v367
    %369 = vmatprep.mubr.f32.mxu0 0.0
    %370 = vmatmul.mubr.f32.gmra.mxu0 %v273
    %v371 = vpop.f32.mrf.mxu0
    %v372 = vadd.f32 %v225, %v371
    %v373 = vpop.f32.mrf.mxu0
    %v374 = vadd.f32 %v229, %v373
    %375 = vmatprep.mubr.f32.mxu0 0.0
    %376 = vmatmul.mubr.f32.gmra.mxu0 %v276
    %v377 = vpop.f32.mrf.mxu0
    %v378 = vadd.f32 %v225, %v377
    %v379 = vpop.f32.mrf.mxu0
    %v380 = vadd.f32 %v229, %v379
    %381 = vmatprep.mubr.f32.mxu0 0.0
    %382 = vmatmul.mubr.f32.gmra.mxu0 %v279
    %v383 = vpop.f32.mrf.mxu0
    %v384 = vadd.f32 %v225, %v383
    %v385 = vpop.f32.mrf.mxu0
    %v386 = vadd.f32 %v229, %v385
    %387 = vmatprep.mubr.f32.mxu0 0.0
    %388 = vmatmul.mubr.f32.gmra.mxu0 %v282
    %v389 = vpop.f32.mrf.mxu0
    %v390 = vadd.f32 %v225, %v389
    %v391 = vpop.f32.mrf.mxu0
    %v392 = vadd.f32 %v229, %v391
    %393 = vmatprep.mubr.f32.mxu0 0.0
    %394 = vmatmul.mubr.f32.gmra.mxu0 %v285
    %v395 = vpop.f32.mrf.mxu0
    %v396 = vadd.f32 %v225, %v395
    %v397 = vpop.f32.mrf.mxu0
    %v398 = vadd.f32 %v229, %v397
    %399 = vdwg.mxu0
    %400 = vmatprep.subr.mxu0 0.0
    %401 = vmatpush1.msra.mxu0 0.0
    %402 = vmatprep.subr.mxu0 0.0
    %403 = vmatpush1.msra.mxu0 0.0
    %404 = vmatprep.subr.mxu0 0.0
    %405 = vmatpush1.msra.mxu0 0.0
    %406 = vmatprep.subr.mxu0 0.0
    %407 = vmatpush1.msra.mxu0 0.0
    %408 = vmatprep.subr.mxu0 0.0
    %409 = vmatpush1.msra.mxu0 0.0
    %410 = vmatprep.subr.mxu0 0.0
    %411 = vmatpush1.msra.mxu0 0.0
    %412 = vmatprep.subr.mxu0 0.0
    %413 = vmatpush1.msra.mxu0 0.0
    %414 = vmatprep.subr.mxu0 0.0
    %415 = vmatpush1.msra.mxu0 0.0
    %416 = vmatprep.subr.mxu0 0.0
    %417 = vmatpush1.msra.mxu0 0.0
    %418 = vmatprep.subr.mxu0 0.0
    %419 = vmatpush1.msra.mxu0 0.0
    %420 = vmatprep.subr.mxu0 0.0
    %421 = vmatpush1.msra.mxu0 0.0
    %422 = vmatprep.subr.mxu0 0.0
    %423 = vmatpush1.msra.mxu0 0.0
    %424 = vmatprep.subr.mxu0 %v215
    %425 = vmatpush1.msra.mxu0 %v214
    %426 = vmatprep.subr.mxu0 %v207
    %427 = vmatpush1.msra.mxu0 %v206
    %428 = vmatprep.subr.mxu0 %v199
    %429 = vmatpush1.msra.mxu0 %v198
    %430 = vmatprep.subr.mxu0 %v191
    %431 = vmatpush1.msra.mxu0 %v190
    %432 = vmatprep.subr.mxu0 0.0
    %433 = vmatpush2.msra.mxu0 0.0
    %434 = vmatprep.subr.mxu0 0.0
    %435 = vmatpush2.msra.mxu0 0.0
    %436 = vmatprep.subr.mxu0 0.0
    %437 = vmatpush2.msra.mxu0 0.0
    %438 = vmatprep.subr.mxu0 0.0
    %439 = vmatpush2.msra.mxu0 0.0
    %440 = vmatprep.subr.mxu0 0.0
    %441 = vmatpush2.msra.mxu0 0.0
    %442 = vmatprep.subr.mxu0 0.0
    %443 = vmatpush2.msra.mxu0 0.0
    %444 = vmatprep.subr.mxu0 0.0
    %445 = vmatpush2.msra.mxu0 0.0
    %446 = vmatprep.subr.mxu0 0.0
    %447 = vmatpush2.msra.mxu0 0.0
    %448 = vmatprep.subr.mxu0 0.0
    %449 = vmatpush2.msra.mxu0 0.0
    %450 = vmatprep.subr.mxu0 0.0
    %451 = vmatpush2.msra.mxu0 0.0
    %452 = vmatprep.subr.mxu0 0.0
    %453 = vmatpush2.msra.mxu0 0.0
    %454 = vmatprep.subr.mxu0 0.0
    %455 = vmatpush2.msra.mxu0 0.0
    %456 = vmatprep.subr.mxu0 0.0
    %457 = vmatpush2.msra.mxu0 0.0
    %458 = vmatprep.subr.mxu0 0.0
    %459 = vmatpush2.msra.mxu0 0.0
    %460 = vmatprep.subr.mxu0 0.0
    %461 = vmatpush2.msra.mxu0 0.0
    %462 = vmatprep.subr.mxu0 0.0
    %463 = vmatpush2.msra.mxu0 0.0
    %464 = vmatprep.mubr.f32.mxu0 0.0
    %465 = vmatmul.mubr.f32.gmra.mxu0 %v264
    %v466 = vpop.f32.mrf.mxu0
    %v467 = vadd.f32 %v233, %v466
    %v468 = vpop.f32.mrf.mxu0
    %v469 = vadd.f32 %v237, %v468
    %470 = vmatprep.mubr.f32.mxu0 0.0
    %471 = vmatmul.mubr.f32.gmra.mxu0 %v267
    %v472 = vpop.f32.mrf.mxu0
    %v473 = vadd.f32 %v233, %v472
    %v474 = vpop.f32.mrf.mxu0
    %v475 = vadd.f32 %v237, %v474
    %476 = vmatprep.mubr.f32.mxu0 0.0
    %477 = vmatmul.mubr.f32.gmra.mxu0 %v270
    %v478 = vpop.f32.mrf.mxu0
    %v479 = vadd.f32 %v233, %v478
    %v480 = vpop.f32.mrf.mxu0
    %v481 = vadd.f32 %v237, %v480
    %482 = vmatprep.mubr.f32.mxu0 0.0
    %483 = vmatmul.mubr.f32.gmra.mxu0 %v273
    %v484 = vpop.f32.mrf.mxu0
    %v485 = vadd.f32 %v233, %v484
    %v486 = vpop.f32.mrf.mxu0
    %v487 = vadd.f32 %v237, %v486
    %488 = vmatprep.mubr.f32.mxu0 0.0
    %489 = vmatmul.mubr.f32.gmra.mxu0 %v276
    %v490 = vpop.f32.mrf.mxu0
    %v491 = vadd.f32 %v233, %v490
    %v492 = vpop.f32.mrf.mxu0
    %v493 = vadd.f32 %v237, %v492
    %494 = vmatprep.mubr.f32.mxu0 0.0
    %495 = vmatmul.mubr.f32.gmra.mxu0 %v279
    %v496 = vpop.f32.mrf.mxu0
    %v497 = vadd.f32 %v233, %v496
    %v498 = vpop.f32.mrf.mxu0
    %v499 = vadd.f32 %v237, %v498
    %500 = vmatprep.mubr.f32.mxu0 0.0
    %501 = vmatmul.mubr.f32.gmra.mxu0 %v282
    %v502 = vpop.f32.mrf.mxu0
    %v503 = vadd.f32 %v233, %v502
    %v504 = vpop.f32.mrf.mxu0
    %v505 = vadd.f32 %v237, %v504
    %506 = vmatprep.mubr.f32.mxu0 0.0
    %507 = vmatmul.mubr.f32.gmra.mxu0 %v285
    %v508 = vpop.f32.mrf.mxu0
    %v509 = vadd.f32 %v233, %v508
    %v510 = vpop.f32.mrf.mxu0
    %v511 = vadd.f32 %v237, %v510
    %512 = vdwg.mxu0
    %513 = vmatprep.subr.mxu0 0.0
    %514 = vmatpush1.msra.mxu0 0.0
    %515 = vmatprep.subr.mxu0 0.0
    %516 = vmatpush1.msra.mxu0 0.0
    %517 = vmatprep.subr.mxu0 0.0
    %518 = vmatpush1.msra.mxu0 0.0
    %519 = vmatprep.subr.mxu0 0.0
    %520 = vmatpush1.msra.mxu0 0.0
    %521 = vmatprep.subr.mxu0 0.0
    %522 = vmatpush1.msra.mxu0 0.0
    %523 = vmatprep.subr.mxu0 0.0
    %524 = vmatpush1.msra.mxu0 0.0
    %525 = vmatprep.subr.mxu0 0.0
    %526 = vmatpush1.msra.mxu0 0.0
    %527 = vmatprep.subr.mxu0 0.0
    %528 = vmatpush1.msra.mxu0 0.0
    %529 = vmatprep.subr.mxu0 0.0
    %530 = vmatpush1.msra.mxu0 0.0
    %531 = vmatprep.subr.mxu0 0.0
    %532 = vmatpush1.msra.mxu0 0.0
    %533 = vmatprep.subr.mxu0 0.0
    %534 = vmatpush1.msra.mxu0 0.0
    %535 = vmatprep.subr.mxu0 0.0
    %536 = vmatpush1.msra.mxu0 0.0
    %537 = vmatprep.subr.mxu0 %v217
    %538 = vmatpush1.msra.mxu0 %v216
    %539 = vmatprep.subr.mxu0 %v209
    %540 = vmatpush1.msra.mxu0 %v208
    %541 = vmatprep.subr.mxu0 %v201
    %542 = vmatpush1.msra.mxu0 %v200
    %543 = vmatprep.subr.mxu0 %v193
    %544 = vmatpush1.msra.mxu0 %v192
    %545 = vmatprep.subr.mxu0 0.0
    %546 = vmatpush2.msra.mxu0 0.0
    %547 = vmatprep.subr.mxu0 0.0
    %548 = vmatpush2.msra.mxu0 0.0
    %549 = vmatprep.subr.mxu0 0.0
    %550 = vmatpush2.msra.mxu0 0.0
    %551 = vmatprep.subr.mxu0 0.0
    %552 = vmatpush2.msra.mxu0 0.0
    %553 = vmatprep.subr.mxu0 0.0
    %554 = vmatpush2.msra.mxu0 0.0
    %555 = vmatprep.subr.mxu0 0.0
    %556 = vmatpush2.msra.mxu0 0.0
    %557 = vmatprep.subr.mxu0 0.0
    %558 = vmatpush2.msra.mxu0 0.0
    %559 = vmatprep.subr.mxu0 0.0
    %560 = vmatpush2.msra.mxu0 0.0
    %561 = vmatprep.subr.mxu0 0.0
    %562 = vmatpush2.msra.mxu0 0.0
    %563 = vmatprep.subr.mxu0 0.0
    %564 = vmatpush2.msra.mxu0 0.0
    %565 = vmatprep.subr.mxu0 0.0
    %566 = vmatpush2.msra.mxu0 0.0
    %567 = vmatprep.subr.mxu0 0.0
    %568 = vmatpush2.msra.mxu0 0.0
    %569 = vmatprep.subr.mxu0 0.0
    %570 = vmatpush2.msra.mxu0 0.0
    %571 = vmatprep.subr.mxu0 0.0
    %572 = vmatpush2.msra.mxu0 0.0
    %573 = vmatprep.subr.mxu0 0.0
    %574 = vmatpush2.msra.mxu0 0.0
    %575 = vmatprep.subr.mxu0 0.0
    %576 = vmatpush2.msra.mxu0 0.0
    %577 = vmatprep.mubr.f32.mxu0 0.0
    %578 = vmatmul.mubr.f32.gmra.mxu0 %v264
    %v579 = vpop.f32.mrf.mxu0
    %v580 = vadd.f32 %v241, %v579
    %v581 = vpop.f32.mrf.mxu0
    %v582 = vadd.f32 %v245, %v581
    %583 = vmatprep.mubr.f32.mxu0 0.0
    %584 = vmatmul.mubr.f32.gmra.mxu0 %v267
    %v585 = vpop.f32.mrf.mxu0
    %v586 = vadd.f32 %v241, %v585
    %v587 = vpop.f32.mrf.mxu0
    %v588 = vadd.f32 %v245, %v587
    %589 = vmatprep.mubr.f32.mxu0 0.0
    %590 = vmatmul.mubr.f32.gmra.mxu0 %v270
    %v591 = vpop.f32.mrf.mxu0
    %v592 = vadd.f32 %v241, %v591
    %v593 = vpop.f32.mrf.mxu0
    %v594 = vadd.f32 %v245, %v593
    %595 = vmatprep.mubr.f32.mxu0 0.0
    %596 = vmatmul.mubr.f32.gmra.mxu0 %v273
    %v597 = vpop.f32.mrf.mxu0
    %v598 = vadd.f32 %v241, %v597
    %v599 = vpop.f32.mrf.mxu0
    %v600 = vadd.f32 %v245, %v599
    %601 = vmatprep.mubr.f32.mxu0 0.0
    %602 = vmatmul.mubr.f32.gmra.mxu0 %v276
    %v603 = vpop.f32.mrf.mxu0
    %v604 = vadd.f32 %v241, %v603
    %v605 = vpop.f32.mrf.mxu0
    %v606 = vadd.f32 %v245, %v605
    %607 = vmatprep.mubr.f32.mxu0 0.0
    %608 = vmatmul.mubr.f32.gmra.mxu0 %v279
    %v609 = vpop.f32.mrf.mxu0
    %v610 = vadd.f32 %v241, %v609
    %v611 = vpop.f32.mrf.mxu0
    %v612 = vadd.f32 %v245, %v611
    %613 = vmatprep.mubr.f32.mxu0 0.0
    %614 = vmatmul.mubr.f32.gmra.mxu0 %v282
    %v615 = vpop.f32.mrf.mxu0
    %v616 = vadd.f32 %v241, %v615
    %v617 = vpop.f32.mrf.mxu0
    %v618 = vadd.f32 %v245, %v617
    %619 = vmatprep.mubr.f32.mxu0 0.0
    %620 = vmatmul.mubr.f32.gmra.mxu0 %v285
    %v621 = vpop.f32.mrf.mxu0
    %v622 = vadd.f32 %v241, %v621
    %v623 = vpop.f32.mrf.mxu0
    %v624 = vadd.f32 %v245, %v623
    %625 = vdwg.mxu0
    %626 = vmatprep.subr.mxu0 0.0
    %627 = vmatpush1.msra.mxu0 0.0
    %628 = vmatprep.subr.mxu0 0.0
    %629 = vmatpush1.msra.mxu0 0.0
    %630 = vmatprep.subr.mxu0 0.0
    %631 = vmatpush1.msra.mxu0 0.0
    %632 = vmatprep.subr.mxu0 0.0
    %633 = vmatpush1.msra.mxu0 0.0
    %634 = vmatprep.subr.mxu0 0.0
    %635 = vmatpush1.msra.mxu0 0.0
    %636 = vmatprep.subr.mxu0 0.0
    %637 = vmatpush1.msra.mxu0 0.0
    %638 = vmatprep.subr.mxu0 0.0
    %639 = vmatpush1.msra.mxu0 0.0
    %640 = vmatprep.subr.mxu0 0.0
    %641 = vmatpush1.msra.mxu0 0.0
    %642 = vmatprep.subr.mxu0 0.0
    %643 = vmatpush1.msra.mxu0 0.0
    %644 = vmatprep.subr.mxu0 0.0
    %645 = vmatpush1.msra.mxu0 0.0
    %646 = vmatprep.subr.mxu0 0.0
    %647 = vmatpush1.msra.mxu0 0.0
    %648 = vmatprep.subr.mxu0 0.0
    %649 = vmatpush1.msra.mxu0 0.0
    %650 = vmatprep.subr.mxu0 %v219
    %651 = vmatpush1.msra.mxu0 %v218
    %652 = vmatprep.subr.mxu0 %v211
    %653 = vmatpush1.msra.mxu0 %v210
    %654 = vmatprep.subr.mxu0 %v203
    %655 = vmatpush1.msra.mxu0 %v202
    %656 = vmatprep.subr.mxu0 %v195
    %657 = vmatpush1.msra.mxu0 %v194
    %658 = vmatprep.subr.mxu0 0.0
    %659 = vmatpush2.msra.mxu0 0.0
    %660 = vmatprep.subr.mxu0 0.0
    %661 = vmatpush2.msra.mxu0 0.0
    %662 = vmatprep.subr.mxu0 0.0
    %663 = vmatpush2.msra.mxu0 0.0
    %664 = vmatprep.subr.mxu0 0.0
    %665 = vmatpush2.msra.mxu0 0.0
    %666 = vmatprep.subr.mxu0 0.0
    %667 = vmatpush2.msra.mxu0 0.0
    %668 = vmatprep.subr.mxu0 0.0
    %669 = vmatpush2.msra.mxu0 0.0
    %670 = vmatprep.subr.mxu0 0.0
    %671 = vmatpush2.msra.mxu0 0.0
    %672 = vmatprep.subr.mxu0 0.0
    %673 = vmatpush2.msra.mxu0 0.0
    %674 = vmatprep.subr.mxu0 0.0
    %675 = vmatpush2.msra.mxu0 0.0
    %676 = vmatprep.subr.mxu0 0.0
    %677 = vmatpush2.msra.mxu0 0.0
    %678 = vmatprep.subr.mxu0 0.0
    %679 = vmatpush2.msra.mxu0 0.0
    %680 = vmatprep.subr.mxu0 0.0
    %681 = vmatpush2.msra.mxu0 0.0
    %682 = vmatprep.subr.mxu0 0.0
    %683 = vmatpush2.msra.mxu0 0.0
    %684 = vmatprep.subr.mxu0 0.0
    %685 = vmatpush2.msra.mxu0 0.0
    %686 = vmatprep.subr.mxu0 0.0
    %687 = vmatpush2.msra.mxu0 0.0
    %688 = vmatprep.subr.mxu0 0.0
    %689 = vmatpush2.msra.mxu0 0.0
    %690 = vmatprep.mubr.f32.mxu0 0.0
    %691 = vmatmul.mubr.f32.gmra.mxu0 %v264
    %v692 = vpop.f32.mrf.mxu0
    %v693 = vadd.f32 %v249, %v692
    %v694 = vpop.f32.mrf.mxu0
    %v695 = vadd.f32 %v253, %v694
    %696 = vmatprep.mubr.f32.mxu0 0.0
    %697 = vmatmul.mubr.f32.gmra.mxu0 %v267
    %v698 = vpop.f32.mrf.mxu0
    %v699 = vadd.f32 %v249, %v698
    %v700 = vpop.f32.mrf.mxu0
    %v701 = vadd.f32 %v253, %v700
    %702 = vmatprep.mubr.f32.mxu0 0.0
    %703 = vmatmul.mubr.f32.gmra.mxu0 %v270
    %v704 = vpop.f32.mrf.mxu0
    %v705 = vadd.f32 %v249, %v704
    %v706 = vpop.f32.mrf.mxu0
    %v707 = vadd.f32 %v253, %v706
    %708 = vmatprep.mubr.f32.mxu0 0.0
    %709 = vmatmul.mubr.f32.gmra.mxu0 %v273
    %v710 = vpop.f32.mrf.mxu0
    %v711 = vadd.f32 %v249, %v710
    %v712 = vpop.f32.mrf.mxu0
    %v713 = vadd.f32 %v253, %v712
    %714 = vmatprep.mubr.f32.mxu0 0.0
    %715 = vmatmul.mubr.f32.gmra.mxu0 %v276
    %v716 = vpop.f32.mrf.mxu0
    %v717 = vadd.f32 %v249, %v716
    %v718 = vpop.f32.mrf.mxu0
    %v719 = vadd.f32 %v253, %v718
    %720 = vmatprep.mubr.f32.mxu0 0.0
    %721 = vmatmul.mubr.f32.gmra.mxu0 %v279
    %v722 = vpop.f32.mrf.mxu0
    %v723 = vadd.f32 %v249, %v722
    %v724 = vpop.f32.mrf.mxu0
    %v725 = vadd.f32 %v253, %v724
    %726 = vmatprep.mubr.f32.mxu0 0.0
    %727 = vmatmul.mubr.f32.gmra.mxu0 %v282
    %v728 = vpop.f32.mrf.mxu0
    %v729 = vadd.f32 %v249, %v728
    %v730 = vpop.f32.mrf.mxu0
    %v731 = vadd.f32 %v253, %v730
    %732 = vmatprep.mubr.f32.mxu0 0.0
    %733 = vmatmul.mubr.f32.gmra.mxu0 %v285
    %v734 = vpop.f32.mrf.mxu0
    %v735 = vadd.f32 %v249, %v734
    %v736 = vpop.f32.mrf.mxu0
    %v737 = vadd.f32 %v253, %v736
    %738 = vdwg.mxu0
    %739 = vst [vmem:[%s5] sm:$0xff] %v354
    %740 = vst [vmem:[%s5 + $0x8] sm:$0xff] %v356
    %741 = vst [vmem:[%s5 + $0x10] sm:$0xff] %v467
    %742 = vst [vmem:[%s5 + $0x18] sm:$0xff] %v469
    %743 = vst [vmem:[%s5 + $0x20] sm:$0xff] %v580
    %744 = vst [vmem:[%s5 + $0x28] sm:$0xff] %v582
    %745 = vst [vmem:[%s5 + $0x30] sm:$0xff] %v693
    %746 = vst [vmem:[%s5 + $0x38] sm:$0xff] %v695
    %747 = vst [vmem:[%s5 + $0x40] sm:$0xff] %v360
    %748 = vst [vmem:[%s5 + $0x48] sm:$0xff] %v362
    %749 = vst [vmem:[%s5 + $0x50] sm:$0xff] %v473
    %750 = vst [vmem:[%s5 + $0x58] sm:$0xff] %v475
    %751 = vst [vmem:[%s5 + $0x60] sm:$0xff] %v586
    %752 = vst [vmem:[%s5 + $0x68] sm:$0xff] %v588
    %753 = vst [vmem:[%s5 + $0x70] sm:$0xff] %v699
    %754 = vst [vmem:[%s5 + $0x78] sm:$0xff] %v701
    %755 = vst [vmem:[%s5 + $0x80] sm:$0xff] %v366
    %756 = vst [vmem:[%s5 + $0x88] sm:$0xff] %v368
    %757 = vst [vmem:[%s5 + $0x90] sm:$0xff] %v479
    %758 = vst [vmem:[%s5 + $0x98] sm:$0xff] %v481
    %759 = vst [vmem:[%s5 + $0xa0] sm:$0xff] %v592
    %760 = vst [vmem:[%s5 + $0xa8] sm:$0xff] %v594
    %761 = vst [vmem:[%s5 + $0xb0] sm:$0xff] %v705
    %762 = vst [vmem:[%s5 + $0xb8] sm:$0xff] %v707
    %763 = vst [vmem:[%s5 + $0xc0] sm:$0xff] %v372
    %764 = vst [vmem:[%s5 + $0xc8] sm:$0xff] %v374
    %765 = vst [vmem:[%s5 + $0xd0] sm:$0xff] %v485
    %766 = vst [vmem:[%s5 + $0xd8] sm:$0xff] %v487
    %767 = vst [vmem:[%s5 + $0xe0] sm:$0xff] %v598
    %768 = vst [vmem:[%s5 + $0xe8] sm:$0xff] %v600
    %769 = vst [vmem:[%s5 + $0xf0] sm:$0xff] %v711
    %770 = vst [vmem:[%s5 + $0xf8] sm:$0xff] %v713
    %771 = vst [vmem:[%s5 + $0x100] sm:$0xff] %v378
    %772 = vst [vmem:[%s5 + $0x108] sm:$0xff] %v380
    %773 = vst [vmem:[%s5 + $0x110] sm:$0xff] %v491
    %774 = vst [vmem:[%s5 + $0x118] sm:$0xff] %v493
    %775 = vst [vmem:[%s5 + $0x120] sm:$0xff] %v604
    %776 = vst [vmem:[%s5 + $0x128] sm:$0xff] %v606
    %777 = vst [vmem:[%s5 + $0x130] sm:$0xff] %v717
    %778 = vst [vmem:[%s5 + $0x138] sm:$0xff] %v719
    %779 = vst [vmem:[%s5 + $0x140] sm:$0xff] %v384
    %780 = vst [vmem:[%s5 + $0x148] sm:$0xff] %v386
    %781 = vst [vmem:[%s5 + $0x150] sm:$0xff] %v497
    %782 = vst [vmem:[%s5 + $0x158] sm:$0xff] %v499
    %783 = vst [vmem:[%s5 + $0x160] sm:$0xff] %v610
    %784 = vst [vmem:[%s5 + $0x168] sm:$0xff] %v612
    %785 = vst [vmem:[%s5 + $0x170] sm:$0xff] %v723
    %786 = vst [vmem:[%s5 + $0x178] sm:$0xff] %v725
    %787 = vst [vmem:[%s5 + $0x180] sm:$0xff] %v390
    %788 = vst [vmem:[%s5 + $0x188] sm:$0xff] %v392
    %789 = vst [vmem:[%s5 + $0x190] sm:$0xff] %v503
    %790 = vst [vmem:[%s5 + $0x198] sm:$0xff] %v505
    %791 = vst [vmem:[%s5 + $0x1a0] sm:$0xff] %v616
    %792 = vst [vmem:[%s5 + $0x1a8] sm:$0xff] %v618
    %793 = vst [vmem:[%s5 + $0x1b0] sm:$0xff] %v729
    %794 = vst [vmem:[%s5 + $0x1b8] sm:$0xff] %v731
    %795 = vst [vmem:[%s5 + $0x1c0] sm:$0xff] %v396
    %796 = vst [vmem:[%s5 + $0x1c8] sm:$0xff] %v398
    %797 = vst [vmem:[%s5 + $0x1d0] sm:$0xff] %v509
    %798 = vst [vmem:[%s5 + $0x1d8] sm:$0xff] %v511
    %799 = vst [vmem:[%s5 + $0x1e0] sm:$0xff] %v622
    %800 = vst [vmem:[%s5 + $0x1e8] sm:$0xff] %v624
    %801 = vst [vmem:[%s5 + $0x1f0] sm:$0xff] %v735
    %802 = vst [vmem:[%s5 + $0x1f8] sm:$0xff] %v737
    // Predicated region
    $region26: #{local_transform_forward.15} parent=1 // pred_check
      _
    $region27: #{local_transform_forward.15} parent=1 // pred_check_branch
      %804 = sbr.rel (0) target = $region29
    $region28: #{local_transform_forward.15} parent=1 // pred_region
      _
    $region29: #{local_transform_forward.15} parent=1 // pred_fallthru
      _
    // Predicated region
    $region30: #{local_transform_forward.15} parent=1 // pred_check
      _
    $region31: #{local_transform_forward.15} parent=1 // pred_check_branch
      %806 = sbr.rel (0) target = $region33
    $region32: #{local_transform_forward.15} parent=1 // pred_region
      _
    $region33: #{local_transform_forward.15} parent=1 // pred_fallthru
      _
    %807 = vsyncpa [#allocation3], 1

// kernel: local_transform_forward.14
$region0: #{local_transform_forward.14}
  #allocation0 [shape = 'u32[]', space=smem, size = 0x4, offset = 0x4, fixed_abs, tag = 'smem constant byte address 0x4 - core index']
  #allocation1 [shape = 'u32[144,128]{1,0:T(1,128)}', space=vmem, size = 0x12000, scoped, tag = 'internal scratch']
  %s0 = inlined_call_operand.vmem [shape: f32[8,16], index: 0, kind: input, shape index: {}]
  %s1 = inlined_call_operand.vmem [shape: f32[16,32], index: 1, kind: input, shape index: {}]
  %s2 = inlined_call_operand.vmem [shape: f32[1,32], index: 2, kind: input, shape index: {}]
  %s3 = inlined_call_operand.vmem [shape: f32[8,32], index: 3, kind: output, shape index: {}]
  %s4 = sld [smem:[#allocation0]]
  $region22: #{local_transform_forward.14} parent=0
    _
  %s6 = ssub.s32 1, %s4
  %s7 = scalar_select 0, %s6, %s4
  // Predicated region
  $region2: #{local_transform_forward.14} parent=0 // pred_check
    _
  $region3: #{local_transform_forward.14} parent=0 // pred_check_branch
    %9 = sbr.rel (0) target = $region5
  $region4: #{local_transform_forward.14} parent=0 // pred_region
    _
  $region5: #{local_transform_forward.14} parent=0 // pred_fallthru
    _
  // Predicated region
  $region6: #{local_transform_forward.14} parent=0 // pred_check
    _
  $region7: #{local_transform_forward.14} parent=0 // pred_check_branch
    %11 = sbr.rel (0) target = $region9
  $region8: #{local_transform_forward.14} parent=0 // pred_region
    _
  $region9: #{local_transform_forward.14} parent=0 // pred_fallthru
    _
  // Predicated region
  $region10: #{local_transform_forward.14} parent=0 // pred_check
    _
  $region11: #{local_transform_forward.14} parent=0 // pred_check_branch
    %13 = sbr.rel (0) target = $region13
  $region12: #{local_transform_forward.14} parent=0 // pred_region
    _
  $region13: #{local_transform_forward.14} parent=0 // pred_fallthru
    _
  %v14 = vld [vmem:[%s0] sm:$0xff]
  %v15 = vld [vmem:[%s1] sm:$0xff]
  %v16 = vld [vmem:[%s1 + $0x8] sm:$0xff]
  %v17 = vld [vmem:[%s2] sm:$0x1]
  %v19 = vlaneseq
  %v20 = vshrl.u32 %v19, 7
  %v21 = vsub.s32 0, %v20
  %v22 = vrot.slane %v17, %v21
  %vm24 = vcmask 130048
  %v26 = vsel %vm24, %v14, 0
  %28 = vmatprep.subr.mxu0 0.0
  %29 = vmatpush1.msra.mxu0 0.0
  %30 = vmatprep.subr.mxu0 0.0
  %31 = vmatpush1.msra.mxu0 0.0
  %32 = vmatprep.subr.mxu0 0.0
  %33 = vmatpush1.msra.mxu0 0.0
  %34 = vmatprep.subr.mxu0 0.0
  %35 = vmatpush1.msra.mxu0 0.0
  %36 = vmatprep.subr.mxu0 0.0
  %37 = vmatpush1.msra.mxu0 0.0
  %38 = vmatprep.subr.mxu0 0.0
  %39 = vmatpush1.msra.mxu0 0.0
  %40 = vmatprep.subr.mxu0 0.0
  %41 = vmatpush1.msra.mxu0 0.0
  %42 = vmatprep.subr.mxu0 0.0
  %43 = vmatpush1.msra.mxu0 0.0
  %44 = vmatprep.subr.mxu0 0.0
  %45 = vmatpush1.msra.mxu0 0.0
  %46 = vmatprep.subr.mxu0 0.0
  %47 = vmatpush1.msra.mxu0 0.0
  %48 = vmatprep.subr.mxu0 0.0
  %49 = vmatpush1.msra.mxu0 0.0
  %50 = vmatprep.subr.mxu0 0.0
  %51 = vmatpush1.msra.mxu0 0.0
  %52 = vmatprep.subr.mxu0 0.0
  %53 = vmatpush1.msra.mxu0 0.0
  %54 = vmatprep.subr.mxu0 0.0
  %55 = vmatpush1.msra.mxu0 0.0
  %56 = vmatprep.subr.mxu0 0.0
  %57 = vmatpush1.msra.mxu0 %v16
  %58 = vmatprep.subr.mxu0 0.0
  %59 = vmatpush1.msra.mxu0 %v15
  %60 = vmatprep.subr.mxu0 0.0
  %61 = vmatpush2.msra.mxu0 0.0
  %62 = vmatprep.subr.mxu0 0.0
  %63 = vmatpush2.msra.mxu0 0.0
  %64 = vmatprep.subr.mxu0 0.0
  %65 = vmatpush2.msra.mxu0 0.0
  %66 = vmatprep.subr.mxu0 0.0
  %67 = vmatpush2.msra.mxu0 0.0
  %68 = vmatprep.subr.mxu0 0.0
  %69 = vmatpush2.msra.mxu0 0.0
  %70 = vmatprep.subr.mxu0 0.0
  %71 = vmatpush2.msra.mxu0 0.0
  %72 = vmatprep.subr.mxu0 0.0
  %73 = vmatpush2.msra.mxu0 0.0
  %74 = vmatprep.subr.mxu0 0.0
  %75 = vmatpush2.msra.mxu0 0.0
  %76 = vmatprep.subr.mxu0 0.0
  %77 = vmatpush2.msra.mxu0 0.0
  %78 = vmatprep.subr.mxu0 0.0
  %79 = vmatpush2.msra.mxu0 0.0
  %80 = vmatprep.subr.mxu0 0.0
  %81 = vmatpush2.msra.mxu0 0.0
  %82 = vmatprep.subr.mxu0 0.0
  %83 = vmatpush2.msra.mxu0 0.0
  %84 = vmatprep.subr.mxu0 0.0
  %85 = vmatpush2.msra.mxu0 0.0
  %86 = vmatprep.subr.mxu0 0.0
  %87 = vmatpush2.msra.mxu0 0.0
  %88 = vmatprep.subr.mxu0 0.0
  %89 = vmatpush2.msra.mxu0 0.0
  %90 = vmatprep.subr.mxu0 0.0
  %91 = vmatpush2.msra.mxu0 0.0
  %92 = vmatprep.mubr.f32.mxu0 0.0
  %93 = vmatmul.mubr.f32.gmra.mxu0 %v26
  %v94 = vpop.f32.mrf.mxu0
  %v95 = vadd.f32 %v22, %v94
  %v96 = vpop.f32.mrf.mxu0
  %97 = vdwg.mxu0
  %v98 = vmax.f32 %v95, 0.0
  %vm99 = vcmask 261120
  %100 = vst.msk [vmem:[%s3] sm:$0xff] %vm99, %v98
  // Predicated region
  $region14: #{local_transform_forward.14} parent=0 // pred_check
    _
  $region15: #{local_transform_forward.14} parent=0 // pred_check_branch
    %102 = sbr.rel (0) target = $region17
  $region16: #{local_transform_forward.14} parent=0 // pred_region
    _
  $region17: #{local_transform_forward.14} parent=0 // pred_fallthru
    _
  // Predicated region
  $region18: #{local_transform_forward.14} parent=0 // pred_check
    _
  $region19: #{local_transform_forward.14} parent=0 // pred_check_branch
    %104 = sbr.rel (0) target = $region21
  $region20: #{local_transform_forward.14} parent=0 // pred_region
    _
  $region21: #{local_transform_forward.14} parent=0 // pred_fallthru
    _

// kernel: local_transform_forward.16
$region0: #{local_transform_forward.16}
  #allocation0 [shape = 'u32[]', space=smem, size = 0x4, offset = 0x4, fixed_abs, tag = 'smem constant byte address 0x4 - core index']
  #allocation1 [shape = 'u32[144,128]{1,0:T(1,128)}', space=vmem, size = 0x12000, scoped, tag = 'internal scratch']
  %s0 = inlined_call_operand.vmem [shape: f32[1,256], index: 0, kind: input, shape index: {}]
  %s1 = inlined_call_operand.vmem [shape: bf16[256,256], index: 1, kind: input, shape index: {}]
  %s2 = inlined_call_operand.vmem [shape: f32[1,256], index: 2, kind: output, shape index: {}]
  %s3 = sld [smem:[#allocation0]]
  $region18: #{local_transform_forward.16} parent=0
    _
  %s5 = ssub.s32 1, %s3
  %s6 = scalar_select 0, %s5, %s3
  // Predicated region
  $region2: #{local_transform_forward.16} parent=0 // pred_check
    _
  $region3: #{local_transform_forward.16} parent=0 // pred_check_branch
    %8 = sbr.rel (0) target = $region5
  $region4: #{local_transform_forward.16} parent=0 // pred_region
    _
  $region5: #{local_transform_forward.16} parent=0 // pred_fallthru
    _
  // Predicated region
  $region6: #{local_transform_forward.16} parent=0 // pred_check
    _
  $region7: #{local_transform_forward.16} parent=0 // pred_check_branch
    %10 = sbr.rel (0) target = $region9
  $region8: #{local_transform_forward.16} parent=0 // pred_region
    _
  $region9: #{local_transform_forward.16} parent=0 // pred_fallthru
    _
  %v11 = vld [vmem:[%s0] sm:$0x3]
  %v13 = vlaneseq
  %v14 = vshrl.u32 %v13, 7
  %v15 = vsub.s32 0, %v14
  %v16 = vrot.slane %v11, %v15
  %v17 = vlaneseq
  %v18 = vshrl.u32 %v17, 7
  %v19 = vsub.s32 1, %v18
  %v20 = vrot.slane %v11, %v19
  %v23 = vpack.c.bf16 %v16, %v16
  %v24 = vpack.c.bf16 %v20, %v20
  %v25 = vld [vmem:[%s1] sm:$0xff]
  %v26 = vld [vmem:[%s1 + $0x8] sm:$0xff]
  %v27 = vld [vmem:[%s1 + $0x10] sm:$0xff]
  %v28 = vld [vmem:[%s1 + $0x18] sm:$0xff]
  %v29 = vld [vmem:[%s1 + $0x20] sm:$0xff]
  %v30 = vld [vmem:[%s1 + $0x28] sm:$0xff]
  %v31 = vld [vmem:[%s1 + $0x30] sm:$0xff]
  %v32 = vld [vmem:[%s1 + $0x38] sm:$0xff]
  %v33 = vld [vmem:[%s1 + $0x40] sm:$0xff]
  %v34 = vld [vmem:[%s1 + $0x48] sm:$0xff]
  %v35 = vld [vmem:[%s1 + $0x50] sm:$0xff]
  %v36 = vld [vmem:[%s1 + $0x58] sm:$0xff]
  %v37 = vld [vmem:[%s1 + $0x60] sm:$0xff]
  %v38 = vld [vmem:[%s1 + $0x68] sm:$0xff]
  %v39 = vld [vmem:[%s1 + $0x70] sm:$0xff]
  %v40 = vld [vmem:[%s1 + $0x78] sm:$0xff]
  %v41 = vld [vmem:[%s1 + $0x80] sm:$0xff]
  %v42 = vld [vmem:[%s1 + $0x88] sm:$0xff]
  %v43 = vld [vmem:[%s1 + $0x90] sm:$0xff]
  %v44 = vld [vmem:[%s1 + $0x98] sm:$0xff]
  %v45 = vld [vmem:[%s1 + $0xa0] sm:$0xff]
  %v46 = vld [vmem:[%s1 + $0xa8] sm:$0xff]
  %v47 = vld [vmem:[%s1 + $0xb0] sm:$0xff]
  %v48 = vld [vmem:[%s1 + $0xb8] sm:$0xff]
  %v49 = vld [vmem:[%s1 + $0xc0] sm:$0xff]
  %v50 = vld [vmem:[%s1 + $0xc8] sm:$0xff]
  %v51 = vld [vmem:[%s1 + $0xd0] sm:$0xff]
  %v52 = vld [vmem:[%s1 + $0xd8] sm:$0xff]
  %v53 = vld [vmem:[%s1 + $0xe0] sm:$0xff]
  %v54 = vld [vmem:[%s1 + $0xe8] sm:$0xff]
  %v55 = vld [vmem:[%s1 + $0xf0] sm:$0xff]
  %v56 = vld [vmem:[%s1 + $0xf8] sm:$0xff]
  %v89 = vunpack.c.l.b16 %v25
  %v90 = vunpack.c.h.b16 %v25
  %v91 = vunpack.c.l.b16 %v26
  %v92 = vunpack.c.h.b16 %v26
  %v93 = vunpack.c.l.b16 %v27
  %v94 = vunpack.c.h.b16 %v27
  %v95 = vunpack.c.l.b16 %v28
  %v96 = vunpack.c.h.b16 %v28
  %v97 = vunpack.c.l.b16 %v29
  %v98 = vunpack.c.h.b16 %v29
  %v99 = vunpack.c.l.b16 %v30
  %v100 = vunpack.c.h.b16 %v30
  %v101 = vunpack.c.l.b16 %v31
  %v102 = vunpack.c.h.b16 %v31
  %v103 = vunpack.c.l.b16 %v32
  %v104 = vunpack.c.h.b16 %v32
  %v105 = vunpack.c.l.b16 %v33
  %v106 = vunpack.c.h.b16 %v33
  %v107 = vunpack.c.l.b16 %v34
  %v108 = vunpack.c.h.b16 %v34
  %v109 = vunpack.c.l.b16 %v35
  %v110 = vunpack.c.h.b16 %v35
  %v111 = vunpack.c.l.b16 %v36
  %v112 = vunpack.c.h.b16 %v36
  %v113 = vunpack.c.l.b16 %v37
  %v114 = vunpack.c.h.b16 %v37
  %v115 = vunpack.c.l.b16 %v38
  %v116 = vunpack.c.h.b16 %v38
  %v117 = vunpack.c.l.b16 %v39
  %v118 = vunpack.c.h.b16 %v39
  %v119 = vunpack.c.l.b16 %v40
  %v120 = vunpack.c.h.b16 %v40
  %v121 = vunpack.c.l.b16 %v41
  %v122 = vunpack.c.h.b16 %v41
  %v123 = vunpack.c.l.b16 %v42
  %v124 = vunpack.c.h.b16 %v42
  %v125 = vunpack.c.l.b16 %v43
  %v126 = vunpack.c.h.b16 %v43
  %v127 = vunpack.c.l.b16 %v44
  %v128 = vunpack.c.h.b16 %v44
  %v129 = vunpack.c.l.b16 %v45
  %v130 = vunpack.c.h.b16 %v45
  %v131 = vunpack.c.l.b16 %v46
  %v132 = vunpack.c.h.b16 %v46
  %v133 = vunpack.c.l.b16 %v47
  %v134 = vunpack.c.h.b16 %v47
  %v135 = vunpack.c.l.b16 %v48
  %v136 = vunpack.c.h.b16 %v48
  %v137 = vunpack.c.l.b16 %v49
  %v138 = vunpack.c.h.b16 %v49
  %v139 = vunpack.c.l.b16 %v50
  %v140 = vunpack.c.h.b16 %v50
  %v141 = vunpack.c.l.b16 %v51
  %v142 = vunpack.c.h.b16 %v51
  %v143 = vunpack.c.l.b16 %v52
  %v144 = vunpack.c.h.b16 %v52
  %v145 = vunpack.c.l.b16 %v53
  %v146 = vunpack.c.h.b16 %v53
  %v147 = vunpack.c.l.b16 %v54
  %v148 = vunpack.c.h.b16 %v54
  %v149 = vunpack.c.l.b16 %v55
  %v150 = vunpack.c.h.b16 %v55
  %v151 = vunpack.c.l.b16 %v56
  %v152 = vunpack.c.h.b16 %v56
  %v153 = vpack.c.b16 %v91, %v89
  %v154 = vpack.c.b16 %v92, %v90
  %v155 = vpack.c.b16 %v95, %v93
  %v156 = vpack.c.b16 %v96, %v94
  %v157 = vpack.c.b16 %v99, %v97
  %v158 = vpack.c.b16 %v100, %v98
  %v159 = vpack.c.b16 %v103, %v101
  %v160 = vpack.c.b16 %v104, %v102
  %v161 = vpack.c.b16 %v107, %v105
  %v162 = vpack.c.b16 %v108, %v106
  %v163 = vpack.c.b16 %v111, %v109
  %v164 = vpack.c.b16 %v112, %v110
  %v165 = vpack.c.b16 %v115, %v113
  %v166 = vpack.c.b16 %v116, %v114
  %v167 = vpack.c.b16 %v119, %v117
  %v168 = vpack.c.b16 %v120, %v118
  %v169 = vpack.c.b16 %v123, %v121
  %v170 = vpack.c.b16 %v124, %v122
  %v171 = vpack.c.b16 %v127, %v125
  %v172 = vpack.c.b16 %v128, %v126
  %v173 = vpack.c.b16 %v131, %v129
  %v174 = vpack.c.b16 %v132, %v130
  %v175 = vpack.c.b16 %v135, %v133
  %v176 = vpack.c.b16 %v136, %v134
  %v177 = vpack.c.b16 %v139, %v137
  %v178 = vpack.c.b16 %v140, %v138
  %v179 = vpack.c.b16 %v143, %v141
  %v180 = vpack.c.b16 %v144, %v142
  %v181 = vpack.c.b16 %v147, %v145
  %v182 = vpack.c.b16 %v148, %v146
  %v183 = vpack.c.b16 %v151, %v149
  %v184 = vpack.c.b16 %v152, %v150
  %217 = vmatprep.subr.bf16.mxu0 %v168
  %218 = vmatpush1.bf16.msra.mxu0 %v167
  %219 = vmatprep.subr.bf16.mxu0 %v166
  %220 = vmatpush1.bf16.msra.mxu0 %v165
  %221 = vmatprep.subr.bf16.mxu0 %v164
  %222 = vmatpush1.bf16.msra.mxu0 %v163
  %223 = vmatprep.subr.bf16.mxu0 %v162
  %224 = vmatpush1.bf16.msra.mxu0 %v161
  %225 = vmatprep.subr.bf16.mxu0 %v160
  %226 = vmatpush1.bf16.msra.mxu0 %v159
  %227 = vmatprep.subr.bf16.mxu0 %v158
  %228 = vmatpush1.bf16.msra.mxu0 %v157
  %229 = vmatprep.subr.bf16.mxu0 %v156
  %230 = vmatpush1.bf16.msra.mxu0 %v155
  %231 = vmatprep.subr.bf16.mxu0 %v154
  %232 = vmatpush1.bf16.msra.mxu0 %v153
  %233 = vmatprep.subr.bf16.mxu0 %v184
  %234 = vmatpush2.bf16.msra.mxu0 %v183
  %235 = vmatprep.subr.bf16.mxu0 %v182
  %236 = vmatpush2.bf16.msra.mxu0 %v181
  %237 = vmatprep.subr.bf16.mxu0 %v180
  %238 = vmatpush2.bf16.msra.mxu0 %v179
  %239 = vmatprep.subr.bf16.mxu0 %v178
  %240 = vmatpush2.bf16.msra.mxu0 %v177
  %241 = vmatprep.subr.bf16.mxu0 %v176
  %242 = vmatpush2.bf16.msra.mxu0 %v175
  %243 = vmatprep.subr.bf16.mxu0 %v174
  %244 = vmatpush2.bf16.msra.mxu0 %v173
  %245 = vmatprep.subr.bf16.mxu0 %v172
  %246 = vmatpush2.bf16.msra.mxu0 %v171
  %247 = vmatprep.subr.bf16.mxu0 %v170
  %248 = vmatpush2.bf16.msra.mxu0 %v169
  %249 = vmatprep.mubr.bf16.mxu0 %v24
  %250 = vmatmul.mubr.bf16.gmra.mxu0 %v23
  %v251 = vpop.f32.mrf.mxu0
  %v252 = vadd.f32 0.0, %v251
  %v253 = vpop.f32.mrf.mxu0
  %v254 = vadd.f32 0.0, %v253
  %v255 = vpop.f32.mrf.mxu0
  %v256 = vpop.f32.mrf.mxu0
  %257 = vdwg.mxu0
  %v260 = vcombine.low %v252, %v254
  %v262 = vunpack.c.l.s4 1966171168
  %v263 = vunpack.c.0.s8 %v262
  %v264 = vlaneseq
  %v265 = vshrl.u32 %v264, 7
  %v266 = vsub.s32 %v263, %v265
  %v267 = vrot.slane %v260, %v266
  %v269 = vunpack.c.l.s4 1966171168
  %v270 = vunpack.c.0.s8 %v269
  %v271 = vlaneseq
  %v272 = vshrl.u32 %v271, 7
  %v273 = vsub.s32 %v270, %v272
  %v274 = vrot.slane %v267, %v273
  %v276 = vlaneseq
  %vm277 = vcmp.ge.s32.totalorder %v276, 0
  %vm278 = vcmp.lt.s32.totalorder %v276, 256
  %vm279 = vmand %vm277, %vm278
  %280 = vst.msk [vmem:[%s2] sm:$0x3] %vm279, %v274
  // Predicated region
  $region10: #{local_transform_forward.16} parent=0 // pred_check
    _
  $region11: #{local_transform_forward.16} parent=0 // pred_check_branch
    %282 = sbr.rel (0) target = $region13
  $region12: #{local_transform_forward.16} parent=0 // pred_region
    _
  $region13: #{local_transform_forward.16} parent=0 // pred_fallthru
    _
  // Predicated region
  $region14: #{local_transform_forward.16} parent=0 // pred_check
    _
  $region15: #{local_transform_forward.16} parent=0 // pred_check_branch
    %284 = sbr.rel (0) target = $region17
  $region16: #{local_transform_forward.16} parent=0 // pred_region
    _
  $region17: #{local_transform_forward.16} parent=0 // pred_fallthru
    _

// kernel: local_transform_forward.17
$region0: #{local_transform_forward.17}
  #allocation0 [shape = 'u32[]', space=smem, size = 0x4, offset = 0x4, fixed_abs, tag = 'smem constant byte address 0x4 - core index']
  #allocation1 [shape = 'u32[144,128]{1,0:T(1,128)}', space=vmem, size = 0x12000, scoped, tag = 'internal scratch']
  %s0 = inlined_call_operand.vmem [shape: f32[8,32], index: 0, kind: input, shape index: {}]
  %s1 = inlined_call_operand.vmem [shape: f32[1,32], index: 1, kind: input, shape index: {}]
  %s2 = inlined_call_operand.vmem [shape: f32[8,32], index: 2, kind: input, shape index: {}]
  %s3 = inlined_call_operand.vmem [shape: f32[32,96], index: 3, kind: input, shape index: {}]
  %s4 = inlined_call_operand.vmem [shape: f32[1,96], index: 4, kind: input, shape index: {}]
  %s5 = inlined_call_operand.vmem [shape: f32[32,96], index: 5, kind: input, shape index: {}]
  %s6 = inlined_call_operand.vmem [shape: f32[1,96], index: 6, kind: input, shape index: {}]
  %s7 = inlined_call_operand.vmem [shape: f32[8,32], index: 7, kind: output, shape index: {}]
  %s8 = sld [smem:[#allocation0]]
  $region38: #{local_transform_forward.17} parent=0
    _
  %s10 = ssub.s32 1, %s8
  %s11 = scalar_select 0, %s10, %s8
  // Predicated region
  $region2: #{local_transform_forward.17} parent=0 // pred_check
    _
  $region3: #{local_transform_forward.17} parent=0 // pred_check_branch
    %13 = sbr.rel (0) target = $region5
  $region4: #{local_transform_forward.17} parent=0 // pred_region
    _
  $region5: #{local_transform_forward.17} parent=0 // pred_fallthru
    _
  // Predicated region
  $region6: #{local_transform_forward.17} parent=0 // pred_check
    _
  $region7: #{local_transform_forward.17} parent=0 // pred_check_branch
    %15 = sbr.rel (0) target = $region9
  $region8: #{local_transform_forward.17} parent=0 // pred_region
    _
  $region9: #{local_transform_forward.17} parent=0 // pred_fallthru
    _
  // Predicated region
  $region10: #{local_transform_forward.17} parent=0 // pred_check
    _
  $region11: #{local_transform_forward.17} parent=0 // pred_check_branch
    %17 = sbr.rel (0) target = $region13
  $region12: #{local_transform_forward.17} parent=0 // pred_region
    _
  $region13: #{local_transform_forward.17} parent=0 // pred_fallthru
    _
  // Predicated region
  $region14: #{local_transform_forward.17} parent=0 // pred_check
    _
  $region15: #{local_transform_forward.17} parent=0 // pred_check_branch
    %19 = sbr.rel (0) target = $region17
  $region16: #{local_transform_forward.17} parent=0 // pred_region
    _
  $region17: #{local_transform_forward.17} parent=0 // pred_fallthru
    _
  // Predicated region
  $region18: #{local_transform_forward.17} parent=0 // pred_check
    _
  $region19: #{local_transform_forward.17} parent=0 // pred_check_branch
    %21 = sbr.rel (0) target = $region21
  $region20: #{local_transform_forward.17} parent=0 // pred_region
    _
  $region21: #{local_transform_forward.17} parent=0 // pred_fallthru
    _
  // Predicated region
  $region22: #{local_transform_forward.17} parent=0 // pred_check
    _
  $region23: #{local_transform_forward.17} parent=0 // pred_check_branch
    %23 = sbr.rel (0) target = $region25
  $region24: #{local_transform_forward.17} parent=0 // pred_region
    _
  $region25: #{local_transform_forward.17} parent=0 // pred_fallthru
    _
  // Predicated region
  $region26: #{local_transform_forward.17} parent=0 // pred_check
    _
  $region27: #{local_transform_forward.17} parent=0 // pred_check_branch
    %25 = sbr.rel (0) target = $region29
  $region28: #{local_transform_forward.17} parent=0 // pred_region
    _
  $region29: #{local_transform_forward.17} parent=0 // pred_fallthru
    _
  %v26 = vld [vmem:[%s0] sm:$0xff]
  %v27 = vld [vmem:[%s1] sm:$0x1]
  %v29 = vlaneseq
  %v30 = vshrl.u32 %v29, 7
  %v31 = vsub.s32 0, %v30
  %v32 = vrot.slane %v27, %v31
  %v34 = vadd.f32 %v26, %v32
  %v35 = vmax.f32 %v34, 0.0
  %v36 = vld [vmem:[%s2] sm:$0xff]
  %v37 = vld [vmem:[%s3] sm:$0xff]
  %v38 = vld [vmem:[%s3 + $0x8] sm:$0xff]
  %v39 = vld [vmem:[%s3 + $0x10] sm:$0xff]
  %v40 = vld [vmem:[%s3 + $0x18] sm:$0xff]
  %v41 = vld [vmem:[%s4] sm:$0x1]
  %v43 = vlaneseq
  %v44 = vshrl.u32 %v43, 7
  %v45 = vsub.s32 0, %v44
  %v46 = vrot.slane %v41, %v45
  %vm48 = vcmask 261120
  %v50 = vsel %vm48, %v35, 0
  %52 = vmatprep.subr.mxu0 0.0
  %53 = vmatpush1.msra.mxu0 0.0
  %54 = vmatprep.subr.mxu0 0.0
  %55 = vmatpush1.msra.mxu0 0.0
  %56 = vmatprep.subr.mxu0 0.0
  %57 = vmatpush1.msra.mxu0 0.0
  %58 = vmatprep.subr.mxu0 0.0
  %59 = vmatpush1.msra.mxu0 0.0
  %60 = vmatprep.subr.mxu0 0.0
  %61 = vmatpush1.msra.mxu0 0.0
  %62 = vmatprep.subr.mxu0 0.0
  %63 = vmatpush1.msra.mxu0 0.0
  %64 = vmatprep.subr.mxu0 0.0
  %65 = vmatpush1.msra.mxu0 0.0
  %66 = vmatprep.subr.mxu0 0.0
  %67 = vmatpush1.msra.mxu0 0.0
  %68 = vmatprep.subr.mxu0 0.0
  %69 = vmatpush1.msra.mxu0 0.0
  %70 = vmatprep.subr.mxu0 0.0
  %71 = vmatpush1.msra.mxu0 0.0
  %72 = vmatprep.subr.mxu0 0.0
  %73 = vmatpush1.msra.mxu0 0.0
  %74 = vmatprep.subr.mxu0 0.0
  %75 = vmatpush1.msra.mxu0 0.0
  %76 = vmatprep.subr.mxu0 0.0
  %77 = vmatpush1.msra.mxu0 %v40
  %78 = vmatprep.subr.mxu0 0.0
  %79 = vmatpush1.msra.mxu0 %v39
  %80 = vmatprep.subr.mxu0 0.0
  %81 = vmatpush1.msra.mxu0 %v38
  %82 = vmatprep.subr.mxu0 0.0
  %83 = vmatpush1.msra.mxu0 %v37
  %84 = vmatprep.subr.mxu0 0.0
  %85 = vmatpush2.msra.mxu0 0.0
  %86 = vmatprep.subr.mxu0 0.0
  %87 = vmatpush2.msra.mxu0 0.0
  %88 = vmatprep.subr.mxu0 0.0
  %89 = vmatpush2.msra.mxu0 0.0
  %90 = vmatprep.subr.mxu0 0.0
  %91 = vmatpush2.msra.mxu0 0.0
  %92 = vmatprep.subr.mxu0 0.0
  %93 = vmatpush2.msra.mxu0 0.0
  %94 = vmatprep.subr.mxu0 0.0
  %95 = vmatpush2.msra.mxu0 0.0
  %96 = vmatprep.subr.mxu0 0.0
  %97 = vmatpush2.msra.mxu0 0.0
  %98 = vmatprep.subr.mxu0 0.0
  %99 = vmatpush2.msra.mxu0 0.0
  %100 = vmatprep.subr.mxu0 0.0
  %101 = vmatpush2.msra.mxu0 0.0
  %102 = vmatprep.subr.mxu0 0.0
  %103 = vmatpush2.msra.mxu0 0.0
  %104 = vmatprep.subr.mxu0 0.0
  %105 = vmatpush2.msra.mxu0 0.0
  %106 = vmatprep.subr.mxu0 0.0
  %107 = vmatpush2.msra.mxu0 0.0
  %108 = vmatprep.subr.mxu0 0.0
  %109 = vmatpush2.msra.mxu0 0.0
  %110 = vmatprep.subr.mxu0 0.0
  %111 = vmatpush2.msra.mxu0 0.0
  %112 = vmatprep.subr.mxu0 0.0
  %113 = vmatpush2.msra.mxu0 0.0
  %114 = vmatprep.subr.mxu0 0.0
  %115 = vmatpush2.msra.mxu0 0.0
  %116 = vmatprep.mubr.f32.mxu0 0.0
  %117 = vmatmul.mubr.f32.gmra.mxu0 %v50
  %v118 = vpop.f32.mrf.mxu0
  %v119 = vadd.f32 %v46, %v118
  %v120 = vpop.f32.mrf.mxu0
  %121 = vdwg.mxu0
  %v122 = vld [vmem:[%s5] sm:$0xff]
  %v123 = vld [vmem:[%s5 + $0x8] sm:$0xff]
  %v124 = vld [vmem:[%s5 + $0x10] sm:$0xff]
  %v125 = vld [vmem:[%s5 + $0x18] sm:$0xff]
  %v126 = vld [vmem:[%s6] sm:$0x1]
  %v128 = vlaneseq
  %v129 = vshrl.u32 %v128, 7
  %v130 = vsub.s32 0, %v129
  %v131 = vrot.slane %v126, %v130
  %v134 = vsel %vm48, %v36, 0
  %136 = vmatprep.subr.mxu0 0.0
  %137 = vmatpush1.msra.mxu0 0.0
  %138 = vmatprep.subr.mxu0 0.0
  %139 = vmatpush1.msra.mxu0 0.0
  %140 = vmatprep.subr.mxu0 0.0
  %141 = vmatpush1.msra.mxu0 0.0
  %142 = vmatprep.subr.mxu0 0.0
  %143 = vmatpush1.msra.mxu0 0.0
  %144 = vmatprep.subr.mxu0 0.0
  %145 = vmatpush1.msra.mxu0 0.0
  %146 = vmatprep.subr.mxu0 0.0
  %147 = vmatpush1.msra.mxu0 0.0
  %148 = vmatprep.subr.mxu0 0.0
  %149 = vmatpush1.msra.mxu0 0.0
  %150 = vmatprep.subr.mxu0 0.0
  %151 = vmatpush1.msra.mxu0 0.0
  %152 = vmatprep.subr.mxu0 0.0
  %153 = vmatpush1.msra.mxu0 0.0
  %154 = vmatprep.subr.mxu0 0.0
  %155 = vmatpush1.msra.mxu0 0.0
  %156 = vmatprep.subr.mxu0 0.0
  %157 = vmatpush1.msra.mxu0 0.0
  %158 = vmatprep.subr.mxu0 0.0
  %159 = vmatpush1.msra.mxu0 0.0
  %160 = vmatprep.subr.mxu0 0.0
  %161 = vmatpush1.msra.mxu0 %v125
  %162 = vmatprep.subr.mxu0 0.0
  %163 = vmatpush1.msra.mxu0 %v124
  %164 = vmatprep.subr.mxu0 0.0
  %165 = vmatpush1.msra.mxu0 %v123
  %166 = vmatprep.subr.mxu0 0.0
  %167 = vmatpush1.msra.mxu0 %v122
  %168 = vmatprep.subr.mxu0 0.0
  %169 = vmatpush2.msra.mxu0 0.0
  %170 = vmatprep.subr.mxu0 0.0
  %171 = vmatpush2.msra.mxu0 0.0
  %172 = vmatprep.subr.mxu0 0.0
  %173 = vmatpush2.msra.mxu0 0.0
  %174 = vmatprep.subr.mxu0 0.0
  %175 = vmatpush2.msra.mxu0 0.0
  %176 = vmatprep.subr.mxu0 0.0
  %177 = vmatpush2.msra.mxu0 0.0
  %178 = vmatprep.subr.mxu0 0.0
  %179 = vmatpush2.msra.mxu0 0.0
  %180 = vmatprep.subr.mxu0 0.0
  %181 = vmatpush2.msra.mxu0 0.0
  %182 = vmatprep.subr.mxu0 0.0
  %183 = vmatpush2.msra.mxu0 0.0
  %184 = vmatprep.subr.mxu0 0.0
  %185 = vmatpush2.msra.mxu0 0.0
  %186 = vmatprep.subr.mxu0 0.0
  %187 = vmatpush2.msra.mxu0 0.0
  %188 = vmatprep.subr.mxu0 0.0
  %189 = vmatpush2.msra.mxu0 0.0
  %190 = vmatprep.subr.mxu0 0.0
  %191 = vmatpush2.msra.mxu0 0.0
  %192 = vmatprep.subr.mxu0 0.0
  %193 = vmatpush2.msra.mxu0 0.0
  %194 = vmatprep.subr.mxu0 0.0
  %195 = vmatpush2.msra.mxu0 0.0
  %196 = vmatprep.subr.mxu0 0.0
  %197 = vmatpush2.msra.mxu0 0.0
  %198 = vmatprep.subr.mxu0 0.0
  %199 = vmatpush2.msra.mxu0 0.0
  %200 = vmatprep.mubr.f32.mxu0 0.0
  %201 = vmatmul.mubr.f32.gmra.mxu0 %v134
  %v202 = vpop.f32.mrf.mxu0
  %v203 = vadd.f32 %v131, %v202
  %v204 = vpop.f32.mrf.mxu0
  %205 = vdwg.mxu0
  %v206 = vadd.f32 %v119, %v203
  %v207 = vxor.u32 %v206, 2147483648
  %v208 = vmul.f32 %v207, 1.442695
  %v209 = vpow.pop %v208
  %v210 = vadd.f32 %v209, 1.0
  %v211 = vrcp.pop %v210
  %v212 = vmul.f32 1.0, %v211
  %214 = vrot.lane.b32.xlu0 %v203, 64
  %v215 = vpop.permute.xlu0 %214
  %v217 = vmul.f32 %v212, %v215
  %219 = vrot.lane.b32.xlu0 %v217, 64
  %v220 = vpop.permute.xlu0 %219
  %v222 = vadd.f32 %v119, %v220
  %v223 = vtanh.pop %v222
  %v224 = vsub.f32 1.0, %v212
  %226 = vrot.lane.b32.xlu0 %v223, 96
  %v227 = vpop.permute.xlu0 %226
  %v229 = vmul.f32 %v224, %v227
  %230 = vrot.lane.b32.xlu0 %v36, 32
  %v231 = vpop.permute.xlu0 %230
  %v233 = vmul.f32 %v212, %v231
  %v234 = vadd.f32 %v229, %v233
  %236 = vrot.lane.b32.xlu0 %v234, 96
  %v237 = vpop.permute.xlu0 %236
  %239 = vst.msk [vmem:[%s7] sm:$0xff] %vm48, %v237
  // Predicated region
  $region30: #{local_transform_forward.17} parent=0 // pred_check
    _
  $region31: #{local_transform_forward.17} parent=0 // pred_check_branch
    %241 = sbr.rel (0) target = $region33
  $region32: #{local_transform_forward.17} parent=0 // pred_region
    _
  $region33: #{local_transform_forward.17} parent=0 // pred_fallthru
    _
  // Predicated region
  $region34: #{local_transform_forward.17} parent=0 // pred_check
    _
  $region35: #{local_transform_forward.17} parent=0 // pred_check_branch
    %243 = sbr.rel (0) target = $region37
  $region36: #{local_transform_forward.17} parent=0 // pred_region
    _
  $region37: #{local_transform_forward.17} parent=0 // pred_fallthru
    _

// kernel: local_transform_forward.22
$region0: #{local_transform_forward.22}
  #allocation0 [shape = 'u32[]', space=smem, size = 0x4, offset = 0x4, fixed_abs, tag = 'smem constant byte address 0x4 - core index']
  #allocation1 [shape = 'u32[144,128]{1,0:T(1,128)}', space=vmem, size = 0x12000, scoped, tag = 'internal scratch']
  %s0 = inlined_call_operand.vmem [shape: f32[8,64], index: 0, kind: input, shape index: {}]
  %s1 = inlined_call_operand.vmem [shape: f32[64,32], index: 1, kind: input, shape index: {}]
  %s2 = inlined_call_operand.vmem [shape: f32[1,32], index: 2, kind: input, shape index: {}]
  %s3 = inlined_call_operand.vmem [shape: f32[32,2], index: 3, kind: input, shape index: {}]
  %s4 = inlined_call_operand.vmem [shape: f32[1,2], index: 4, kind: input, shape index: {}]
  %s5 = inlined_call_operand.vmem [shape: f32[64,32], index: 5, kind: input, shape index: {}]
  %s6 = inlined_call_operand.vmem [shape: f32[1,32], index: 6, kind: input, shape index: {}]
  %s7 = inlined_call_operand.vmem [shape: f32[32,32], index: 7, kind: input, shape index: {}]
  %s8 = inlined_call_operand.vmem [shape: f32[1,32], index: 8, kind: input, shape index: {}]
  %s9 = inlined_call_operand.vmem [shape: f32[8,2], index: 9, kind: output, shape index: {0}]
  %s10 = inlined_call_operand.vmem [shape: f32[8,32], index: 10, kind: output, shape index: {1}]
  %11 = xla_tuple %s9, %s10
  %s12 = sld [smem:[#allocation0]]
  $region54: #{local_transform_forward.22} parent=0
    _
  %s14 = ssub.s32 1, %s12
  %s15 = scalar_select 0, %s14, %s12
  // Predicated region
  $region2: #{local_transform_forward.22} parent=0 // pred_check
    _
  $region3: #{local_transform_forward.22} parent=0 // pred_check_branch
    %17 = sbr.rel (0) target = $region5
  $region4: #{local_transform_forward.22} parent=0 // pred_region
    _
  $region5: #{local_transform_forward.22} parent=0 // pred_fallthru
    _
  // Predicated region
  $region6: #{local_transform_forward.22} parent=0 // pred_check
    _
  $region7: #{local_transform_forward.22} parent=0 // pred_check_branch
    %19 = sbr.rel (0) target = $region9
  $region8: #{local_transform_forward.22} parent=0 // pred_region
    _
  $region9: #{local_transform_forward.22} parent=0 // pred_fallthru
    _
  // Predicated region
  $region10: #{local_transform_forward.22} parent=0 // pred_check
    _
  $region11: #{local_transform_forward.22} parent=0 // pred_check_branch
    %21 = sbr.rel (0) target = $region13
  $region12: #{local_transform_forward.22} parent=0 // pred_region
    _
  $region13: #{local_transform_forward.22} parent=0 // pred_fallthru
    _
  // Predicated region
  $region14: #{local_transform_forward.22} parent=0 // pred_check
    _
  $region15: #{local_transform_forward.22} parent=0 // pred_check_branch
    %23 = sbr.rel (0) target = $region17
  $region16: #{local_transform_forward.22} parent=0 // pred_region
    _
  $region17: #{local_transform_forward.22} parent=0 // pred_fallthru
    _
  // Predicated region
  $region18: #{local_transform_forward.22} parent=0 // pred_check
    _
  $region19: #{local_transform_forward.22} parent=0 // pred_check_branch
    %25 = sbr.rel (0) target = $region21
  $region20: #{local_transform_forward.22} parent=0 // pred_region
    _
  $region21: #{local_transform_forward.22} parent=0 // pred_fallthru
    _
  // Predicated region
  $region22: #{local_transform_forward.22} parent=0 // pred_check
    _
  $region23: #{local_transform_forward.22} parent=0 // pred_check_branch
    %27 = sbr.rel (0) target = $region25
  $region24: #{local_transform_forward.22} parent=0 // pred_region
    _
  $region25: #{local_transform_forward.22} parent=0 // pred_fallthru
    _
  // Predicated region
  $region26: #{local_transform_forward.22} parent=0 // pred_check
    _
  $region27: #{local_transform_forward.22} parent=0 // pred_check_branch
    %29 = sbr.rel (0) target = $region29
  $region28: #{local_transform_forward.22} parent=0 // pred_region
    _
  $region29: #{local_transform_forward.22} parent=0 // pred_fallthru
    _
  // Predicated region
  $region30: #{local_transform_forward.22} parent=0 // pred_check
    _
  $region31: #{local_transform_forward.22} parent=0 // pred_check_branch
    %31 = sbr.rel (0) target = $region33
  $region32: #{local_transform_forward.22} parent=0 // pred_region
    _
  $region33: #{local_transform_forward.22} parent=0 // pred_fallthru
    _
  // Predicated region
  $region34: #{local_transform_forward.22} parent=0 // pred_check
    _
  $region35: #{local_transform_forward.22} parent=0 // pred_check_branch
    %33 = sbr.rel (0) target = $region37
  $region36: #{local_transform_forward.22} parent=0 // pred_region
    _
  $region37: #{local_transform_forward.22} parent=0 // pred_fallthru
    _
  %v34 = vld [vmem:[%s0] sm:$0xff]
  %v35 = vld [vmem:[%s1] sm:$0xff]
  %v36 = vld [vmem:[%s1 + $0x8] sm:$0xff]
  %v37 = vld [vmem:[%s1 + $0x10] sm:$0xff]
  %v38 = vld [vmem:[%s1 + $0x18] sm:$0xff]
  %v39 = vld [vmem:[%s1 + $0x20] sm:$0xff]
  %v40 = vld [vmem:[%s1 + $0x28] sm:$0xff]
  %v41 = vld [vmem:[%s1 + $0x30] sm:$0xff]
  %v42 = vld [vmem:[%s1 + $0x38] sm:$0xff]
  %v43 = vld [vmem:[%s2] sm:$0x1]
  %v45 = vlaneseq
  %v46 = vshrl.u32 %v45, 7
  %v47 = vsub.s32 0, %v46
  %v48 = vrot.slane %v43, %v47
  %vm50 = vcmask 523264
  %v52 = vsel %vm50, %v34, 0
  %54 = vmatprep.subr.mxu0 0.0
  %55 = vmatpush1.msra.mxu0 0.0
  %56 = vmatprep.subr.mxu0 0.0
  %57 = vmatpush1.msra.mxu0 0.0
  %58 = vmatprep.subr.mxu0 0.0
  %59 = vmatpush1.msra.mxu0 0.0
  %60 = vmatprep.subr.mxu0 0.0
  %61 = vmatpush1.msra.mxu0 0.0
  %62 = vmatprep.subr.mxu0 0.0
  %63 = vmatpush1.msra.mxu0 0.0
  %64 = vmatprep.subr.mxu0 0.0
  %65 = vmatpush1.msra.mxu0 0.0
  %66 = vmatprep.subr.mxu0 0.0
  %67 = vmatpush1.msra.mxu0 0.0
  %68 = vmatprep.subr.mxu0 0.0
  %69 = vmatpush1.msra.mxu0 0.0
  %70 = vmatprep.subr.mxu0 0.0
  %71 = vmatpush1.msra.mxu0 %v42
  %72 = vmatprep.subr.mxu0 0.0
  %73 = vmatpush1.msra.mxu0 %v41
  %74 = vmatprep.subr.mxu0 0.0
  %75 = vmatpush1.msra.mxu0 %v40
  %76 = vmatprep.subr.mxu0 0.0
  %77 = vmatpush1.msra.mxu0 %v39
  %78 = vmatprep.subr.mxu0 0.0
  %79 = vmatpush1.msra.mxu0 %v38
  %80 = vmatprep.subr.mxu0 0.0
  %81 = vmatpush1.msra.mxu0 %v37
  %82 = vmatprep.subr.mxu0 0.0
  %83 = vmatpush1.msra.mxu0 %v36
  %84 = vmatprep.subr.mxu0 0.0
  %85 = vmatpush1.msra.mxu0 %v35
  %86 = vmatprep.subr.mxu0 0.0
  %87 = vmatpush2.msra.mxu0 0.0
  %88 = vmatprep.subr.mxu0 0.0
  %89 = vmatpush2.msra.mxu0 0.0
  %90 = vmatprep.subr.mxu0 0.0
  %91 = vmatpush2.msra.mxu0 0.0
  %92 = vmatprep.subr.mxu0 0.0
  %93 = vmatpush2.msra.mxu0 0.0
  %94 = vmatprep.subr.mxu0 0.0
  %95 = vmatpush2.msra.mxu0 0.0
  %96 = vmatprep.subr.mxu0 0.0
  %97 = vmatpush2.msra.mxu0 0.0
  %98 = vmatprep.subr.mxu0 0.0
  %99 = vmatpush2.msra.mxu0 0.0
  %100 = vmatprep.subr.mxu0 0.0
  %101 = vmatpush2.msra.mxu0 0.0
  %102 = vmatprep.subr.mxu0 0.0
  %103 = vmatpush2.msra.mxu0 0.0
  %104 = vmatprep.subr.mxu0 0.0
  %105 = vmatpush2.msra.mxu0 0.0
  %106 = vmatprep.subr.mxu0 0.0
  %107 = vmatpush2.msra.mxu0 0.0
  %108 = vmatprep.subr.mxu0 0.0
  %109 = vmatpush2.msra.mxu0 0.0
  %110 = vmatprep.subr.mxu0 0.0
  %111 = vmatpush2.msra.mxu0 0.0
  %112 = vmatprep.subr.mxu0 0.0
  %113 = vmatpush2.msra.mxu0 0.0
  %114 = vmatprep.subr.mxu0 0.0
  %115 = vmatpush2.msra.mxu0 0.0
  %116 = vmatprep.subr.mxu0 0.0
  %117 = vmatpush2.msra.mxu0 0.0
  %118 = vmatprep.mubr.f32.mxu0 0.0
  %119 = vmatmul.mubr.f32.gmra.mxu0 %v52
  %v120 = vpop.f32.mrf.mxu0
  %v121 = vadd.f32 %v48, %v120
  %v122 = vpop.f32.mrf.mxu0
  %123 = vdwg.mxu0
  %v124 = vmul.f32 %v121, %v121
  %v125 = vmul.f32 %v121, %v124
  %v126 = vmul.f32 %v125, 0.044715
  %v127 = vadd.f32 %v121, %v126
  %v128 = vmul.f32 %v127, 0.7978846
  %v129 = vtanh.pop %v128
  %v130 = vadd.f32 %v129, 1.0
  %v131 = vmul.f32 %v130, 0.5
  %v132 = vmul.f32 %v121, %v131
  %v133 = vld [vmem:[%s3] sm:$0xff]
  %v134 = vld [vmem:[%s3 + $0x8] sm:$0xff]
  %v135 = vld [vmem:[%s3 + $0x10] sm:$0xff]
  %v136 = vld [vmem:[%s3 + $0x18] sm:$0xff]
  %v137 = vld [vmem:[%s4] sm:$0x1]
  %v139 = vlaneseq
  %v140 = vshrl.u32 %v139, 7
  %v141 = vsub.s32 0, %v140
  %v142 = vrot.slane %v137, %v141
  %vm144 = vcmask 261120
  %v146 = vsel %vm144, %v132, 0
  %148 = vmatprep.subr.mxu0 0.0
  %149 = vmatpush1.msra.mxu0 0.0
  %150 = vmatprep.subr.mxu0 0.0
  %151 = vmatpush1.msra.mxu0 0.0
  %152 = vmatprep.subr.mxu0 0.0
  %153 = vmatpush1.msra.mxu0 0.0
  %154 = vmatprep.subr.mxu0 0.0
  %155 = vmatpush1.msra.mxu0 0.0
  %156 = vmatprep.subr.mxu0 0.0
  %157 = vmatpush1.msra.mxu0 0.0
  %158 = vmatprep.subr.mxu0 0.0
  %159 = vmatpush1.msra.mxu0 0.0
  %160 = vmatprep.subr.mxu0 0.0
  %161 = vmatpush1.msra.mxu0 0.0
  %162 = vmatprep.subr.mxu0 0.0
  %163 = vmatpush1.msra.mxu0 0.0
  %164 = vmatprep.subr.mxu0 0.0
  %165 = vmatpush1.msra.mxu0 0.0
  %166 = vmatprep.subr.mxu0 0.0
  %167 = vmatpush1.msra.mxu0 0.0
  %168 = vmatprep.subr.mxu0 0.0
  %169 = vmatpush1.msra.mxu0 0.0
  %170 = vmatprep.subr.mxu0 0.0
  %171 = vmatpush1.msra.mxu0 0.0
  %172 = vmatprep.subr.mxu0 0.0
  %173 = vmatpush1.msra.mxu0 %v136
  %174 = vmatprep.subr.mxu0 0.0
  %175 = vmatpush1.msra.mxu0 %v135
  %176 = vmatprep.subr.mxu0 0.0
  %177 = vmatpush1.msra.mxu0 %v134
  %178 = vmatprep.subr.mxu0 0.0
  %179 = vmatpush1.msra.mxu0 %v133
  %180 = vmatprep.subr.mxu0 0.0
  %181 = vmatpush2.msra.mxu0 0.0
  %182 = vmatprep.subr.mxu0 0.0
  %183 = vmatpush2.msra.mxu0 0.0
  %184 = vmatprep.subr.mxu0 0.0
  %185 = vmatpush2.msra.mxu0 0.0
  %186 = vmatprep.subr.mxu0 0.0
  %187 = vmatpush2.msra.mxu0 0.0
  %188 = vmatprep.subr.mxu0 0.0
  %189 = vmatpush2.msra.mxu0 0.0
  %190 = vmatprep.subr.mxu0 0.0
  %191 = vmatpush2.msra.mxu0 0.0
  %192 = vmatprep.subr.mxu0 0.0
  %193 = vmatpush2.msra.mxu0 0.0
  %194 = vmatprep.subr.mxu0 0.0
  %195 = vmatpush2.msra.mxu0 0.0
  %196 = vmatprep.subr.mxu0 0.0
  %197 = vmatpush2.msra.mxu0 0.0
  %198 = vmatprep.subr.mxu0 0.0
  %199 = vmatpush2.msra.mxu0 0.0
  %200 = vmatprep.subr.mxu0 0.0
  %201 = vmatpush2.msra.mxu0 0.0
  %202 = vmatprep.subr.mxu0 0.0
  %203 = vmatpush2.msra.mxu0 0.0
  %204 = vmatprep.subr.mxu0 0.0
  %205 = vmatpush2.msra.mxu0 0.0
  %206 = vmatprep.subr.mxu0 0.0
  %207 = vmatpush2.msra.mxu0 0.0
  %208 = vmatprep.subr.mxu0 0.0
  %209 = vmatpush2.msra.mxu0 0.0
  %210 = vmatprep.subr.mxu0 0.0
  %211 = vmatpush2.msra.mxu0 0.0
  %212 = vmatprep.mubr.f32.mxu0 0.0
  %213 = vmatmul.mubr.f32.gmra.mxu0 %v146
  %v214 = vpop.f32.mrf.mxu0
  %v215 = vadd.f32 %v142, %v214
  %v216 = vpop.f32.mrf.mxu0
  %217 = vdwg.mxu0
  %vm218 = vcmask 15360
  %v219 = vsel %vm218, %v215, -inf
  %220 = vmax.xlane.f32.xlu0 %v219
  %v221 = vpop.xlane.xlu0 %220
  %v222 = vsub.f32 %v215, %v221
  %v223 = vmul.f32 %v222, 1.442695
  %v224 = vpow.pop %v223
  %v225 = vsel %vm218, %v224, 0.0
  %226 = vadd.xlane.f32.xlu0 %v225
  %v227 = vpop.xlane.xlu0 %226
  %v228 = vrcp.pop %v227
  %v229 = vmul.f32 %v224, %v228
  %230 = vst.msk [vmem:[%s9] sm:$0xff] %vm218, %v229
  %v231 = vld [vmem:[%s5] sm:$0xff]
  %v232 = vld [vmem:[%s5 + $0x8] sm:$0xff]
  %v233 = vld [vmem:[%s5 + $0x10] sm:$0xff]
  %v234 = vld [vmem:[%s5 + $0x18] sm:$0xff]
  %v235 = vld [vmem:[%s5 + $0x20] sm:$0xff]
  %v236 = vld [vmem:[%s5 + $0x28] sm:$0xff]
  %v237 = vld [vmem:[%s5 + $0x30] sm:$0xff]
  %v238 = vld [vmem:[%s5 + $0x38] sm:$0xff]
  %v239 = vld [vmem:[%s6] sm:$0x1]
  %v241 = vlaneseq
  %v242 = vshrl.u32 %v241, 7
  %v243 = vsub.s32 0, %v242
  %v244 = vrot.slane %v239, %v243
  %246 = vmatprep.subr.mxu0 0.0
  %247 = vmatpush1.msra.mxu0 0.0
  %248 = vmatprep.subr.mxu0 0.0
  %249 = vmatpush1.msra.mxu0 0.0
  %250 = vmatprep.subr.mxu0 0.0
  %251 = vmatpush1.msra.mxu0 0.0
  %252 = vmatprep.subr.mxu0 0.0
  %253 = vmatpush1.msra.mxu0 0.0
  %254 = vmatprep.subr.mxu0 0.0
  %255 = vmatpush1.msra.mxu0 0.0
  %256 = vmatprep.subr.mxu0 0.0
  %257 = vmatpush1.msra.mxu0 0.0
  %258 = vmatprep.subr.mxu0 0.0
  %259 = vmatpush1.msra.mxu0 0.0
  %260 = vmatprep.subr.mxu0 0.0
  %261 = vmatpush1.msra.mxu0 0.0
  %262 = vmatprep.subr.mxu0 0.0
  %263 = vmatpush1.msra.mxu0 %v238
  %264 = vmatprep.subr.mxu0 0.0
  %265 = vmatpush1.msra.mxu0 %v237
  %266 = vmatprep.subr.mxu0 0.0
  %267 = vmatpush1.msra.mxu0 %v236
  %268 = vmatprep.subr.mxu0 0.0
  %269 = vmatpush1.msra.mxu0 %v235
  %270 = vmatprep.subr.mxu0 0.0
  %271 = vmatpush1.msra.mxu0 %v234
  %272 = vmatprep.subr.mxu0 0.0
  %273 = vmatpush1.msra.mxu0 %v233
  %274 = vmatprep.subr.mxu0 0.0
  %275 = vmatpush1.msra.mxu0 %v232
  %276 = vmatprep.subr.mxu0 0.0
  %277 = vmatpush1.msra.mxu0 %v231
  %278 = vmatprep.subr.mxu0 0.0
  %279 = vmatpush2.msra.mxu0 0.0
  %280 = vmatprep.subr.mxu0 0.0
  %281 = vmatpush2.msra.mxu0 0.0
  %282 = vmatprep.subr.mxu0 0.0
  %283 = vmatpush2.msra.mxu0 0.0
  %284 = vmatprep.subr.mxu0 0.0
  %285 = vmatpush2.msra.mxu0 0.0
  %286 = vmatprep.subr.mxu0 0.0
  %287 = vmatpush2.msra.mxu0 0.0
  %288 = vmatprep.subr.mxu0 0.0
  %289 = vmatpush2.msra.mxu0 0.0
  %290 = vmatprep.subr.mxu0 0.0
  %291 = vmatpush2.msra.mxu0 0.0
  %292 = vmatprep.subr.mxu0 0.0
  %293 = vmatpush2.msra.mxu0 0.0
  %294 = vmatprep.subr.mxu0 0.0
  %295 = vmatpush2.msra.mxu0 0.0
  %296 = vmatprep.subr.mxu0 0.0
  %297 = vmatpush2.msra.mxu0 0.0
  %298 = vmatprep.subr.mxu0 0.0
  %299 = vmatpush2.msra.mxu0 0.0
  %300 = vmatprep.subr.mxu0 0.0
  %301 = vmatpush2.msra.mxu0 0.0
  %302 = vmatprep.subr.mxu0 0.0
  %303 = vmatpush2.msra.mxu0 0.0
  %304 = vmatprep.subr.mxu0 0.0
  %305 = vmatpush2.msra.mxu0 0.0
  %306 = vmatprep.subr.mxu0 0.0
  %307 = vmatpush2.msra.mxu0 0.0
  %308 = vmatprep.subr.mxu0 0.0
  %309 = vmatpush2.msra.mxu0 0.0
  %310 = vmatprep.mubr.f32.mxu0 0.0
  %311 = vmatmul.mubr.f32.gmra.mxu0 %v52
  %v312 = vpop.f32.mrf.mxu0
  %v313 = vadd.f32 %v244, %v312
  %v314 = vpop.f32.mrf.mxu0
  %315 = vdwg.mxu0
  %v316 = vmul.f32 %v313, %v313
  %v317 = vmul.f32 %v313, %v316
  %v318 = vmul.f32 %v317, 0.044715
  %v319 = vadd.f32 %v313, %v318
  %v320 = vmul.f32 %v319, 0.7978846
  %v321 = vtanh.pop %v320
  %v322 = vadd.f32 %v321, 1.0
  %v323 = vmul.f32 %v322, 0.5
  %v324 = vmul.f32 %v313, %v323
  %v325 = vld [vmem:[%s7] sm:$0xff]
  %v326 = vld [vmem:[%s7 + $0x8] sm:$0xff]
  %v327 = vld [vmem:[%s7 + $0x10] sm:$0xff]
  %v328 = vld [vmem:[%s7 + $0x18] sm:$0xff]
  %v329 = vld [vmem:[%s8] sm:$0x1]
  %v331 = vlaneseq
  %v332 = vshrl.u32 %v331, 7
  %v333 = vsub.s32 0, %v332
  %v334 = vrot.slane %v329, %v333
  %v337 = vsel %vm144, %v324, 0
  %339 = vmatprep.subr.mxu0 0.0
  %340 = vmatpush1.msra.mxu0 0.0
  %341 = vmatprep.subr.mxu0 0.0
  %342 = vmatpush1.msra.mxu0 0.0
  %343 = vmatprep.subr.mxu0 0.0
  %344 = vmatpush1.msra.mxu0 0.0
  %345 = vmatprep.subr.mxu0 0.0
  %346 = vmatpush1.msra.mxu0 0.0
  %347 = vmatprep.subr.mxu0 0.0
  %348 = vmatpush1.msra.mxu0 0.0
  %349 = vmatprep.subr.mxu0 0.0
  %350 = vmatpush1.msra.mxu0 0.0
  %351 = vmatprep.subr.mxu0 0.0
  %352 = vmatpush1.msra.mxu0 0.0
  %353 = vmatprep.subr.mxu0 0.0
  %354 = vmatpush1.msra.mxu0 0.0
  %355 = vmatprep.subr.mxu0 0.0
  %356 = vmatpush1.msra.mxu0 0.0
  %357 = vmatprep.subr.mxu0 0.0
  %358 = vmatpush1.msra.mxu0 0.0
  %359 = vmatprep.subr.mxu0 0.0
  %360 = vmatpush1.msra.mxu0 0.0
  %361 = vmatprep.subr.mxu0 0.0
  %362 = vmatpush1.msra.mxu0 0.0
  %363 = vmatprep.subr.mxu0 0.0
  %364 = vmatpush1.msra.mxu0 %v328
  %365 = vmatprep.subr.mxu0 0.0
  %366 = vmatpush1.msra.mxu0 %v327
  %367 = vmatprep.subr.mxu0 0.0
  %368 = vmatpush1.msra.mxu0 %v326
  %369 = vmatprep.subr.mxu0 0.0
  %370 = vmatpush1.msra.mxu0 %v325
  %371 = vmatprep.subr.mxu0 0.0
  %372 = vmatpush2.msra.mxu0 0.0
  %373 = vmatprep.subr.mxu0 0.0
  %374 = vmatpush2.msra.mxu0 0.0
  %375 = vmatprep.subr.mxu0 0.0
  %376 = vmatpush2.msra.mxu0 0.0
  %377 = vmatprep.subr.mxu0 0.0
  %378 = vmatpush2.msra.mxu0 0.0
  %379 = vmatprep.subr.mxu0 0.0
  %380 = vmatpush2.msra.mxu0 0.0
  %381 = vmatprep.subr.mxu0 0.0
  %382 = vmatpush2.msra.mxu0 0.0
  %383 = vmatprep.subr.mxu0 0.0
  %384 = vmatpush2.msra.mxu0 0.0
  %385 = vmatprep.subr.mxu0 0.0
  %386 = vmatpush2.msra.mxu0 0.0
  %387 = vmatprep.subr.mxu0 0.0
  %388 = vmatpush2.msra.mxu0 0.0
  %389 = vmatprep.subr.mxu0 0.0
  %390 = vmatpush2.msra.mxu0 0.0
  %391 = vmatprep.subr.mxu0 0.0
  %392 = vmatpush2.msra.mxu0 0.0
  %393 = vmatprep.subr.mxu0 0.0
  %394 = vmatpush2.msra.mxu0 0.0
  %395 = vmatprep.subr.mxu0 0.0
  %396 = vmatpush2.msra.mxu0 0.0
  %397 = vmatprep.subr.mxu0 0.0
  %398 = vmatpush2.msra.mxu0 0.0
  %399 = vmatprep.subr.mxu0 0.0
  %400 = vmatpush2.msra.mxu0 0.0
  %401 = vmatprep.subr.mxu0 0.0
  %402 = vmatpush2.msra.mxu0 0.0
  %403 = vmatprep.mubr.f32.mxu0 0.0
  %404 = vmatmul.mubr.f32.gmra.mxu0 %v337
  %v405 = vpop.f32.mrf.mxu0
  %v406 = vadd.f32 %v334, %v405
  %v407 = vpop.f32.mrf.mxu0
  %408 = vdwg.mxu0
  %409 = vst.msk [vmem:[%s10] sm:$0xff] %vm144, %v406
  // Predicated region
  $region38: #{local_transform_forward.22} parent=0 // pred_check
    _
  $region39: #{local_transform_forward.22} parent=0 // pred_check_branch
    %411 = sbr.rel (0) target = $region41
  $region40: #{local_transform_forward.22} parent=0 // pred_region
    _
  $region41: #{local_transform_forward.22} parent=0 // pred_fallthru
    _
  // Predicated region
  $region42: #{local_transform_forward.22} parent=0 // pred_check
    _
  $region43: #{local_transform_forward.22} parent=0 // pred_check_branch
    %413 = sbr.rel (0) target = $region45
  $region44: #{local_transform_forward.22} parent=0 // pred_region
    _
  $region45: #{local_transform_forward.22} parent=0 // pred_fallthru
    _
  // Predicated region
  $region46: #{local_transform_forward.22} parent=0 // pred_check
    _
  $region47: #{local_transform_forward.22} parent=0 // pred_check_branch
    %415 = sbr.rel (0) target = $region49
  $region48: #{local_transform_forward.22} parent=0 // pred_region
    _
  $region49: #{local_transform_forward.22} parent=0 // pred_fallthru
    _
  // Predicated region
  $region50: #{local_transform_forward.22} parent=0 // pred_check
    _
  $region51: #{local_transform_forward.22} parent=0 // pred_check_branch
    %417 = sbr.rel (0) target = $region53
  $region52: #{local_transform_forward.22} parent=0 // pred_region
    _
  $region53: #{local_transform_forward.22} parent=0 // pred_fallthru
    _

// kernel: local_transform_forward.21
$region0: #{local_transform_forward.21}
  #allocation0 [shape = 'u32[]', space=smem, size = 0x4, offset = 0x4, fixed_abs, tag = 'smem constant byte address 0x4 - core index']
  #allocation1 [shape = 'u32[144,128]{1,0:T(1,128)}', space=vmem, size = 0x12000, scoped, tag = 'internal scratch']
  %s0 = inlined_call_operand.vmem [shape: f32[8,32], index: 0, kind: input, shape index: {}]
  %s1 = inlined_call_operand.vmem [shape: f32[32,64], index: 1, kind: input, shape index: {}]
  %s2 = inlined_call_operand.vmem [shape: f32[1,64], index: 2, kind: input, shape index: {}]
  %s3 = inlined_call_operand.vmem [shape: f32[64,32], index: 3, kind: input, shape index: {}]
  %s4 = inlined_call_operand.vmem [shape: f32[1,32], index: 4, kind: input, shape index: {}]
  %s5 = inlined_call_operand.vmem [shape: f32[1,32], index: 5, kind: input, shape index: {}]
  %s6 = inlined_call_operand.vmem [shape: f32[1,32], index: 6, kind: input, shape index: {}]
  %s7 = inlined_call_operand.vmem [shape: f32[8,32], index: 7, kind: output, shape index: {}]
  %s8 = sld [smem:[#allocation0]]
  $region38: #{local_transform_forward.21} parent=0
    _
  %s10 = ssub.s32 1, %s8
  %s11 = scalar_select 0, %s10, %s8
  // Predicated region
  $region2: #{local_transform_forward.21} parent=0 // pred_check
    _
  $region3: #{local_transform_forward.21} parent=0 // pred_check_branch
    %13 = sbr.rel (0) target = $region5
  $region4: #{local_transform_forward.21} parent=0 // pred_region
    _
  $region5: #{local_transform_forward.21} parent=0 // pred_fallthru
    _
  // Predicated region
  $region6: #{local_transform_forward.21} parent=0 // pred_check
    _
  $region7: #{local_transform_forward.21} parent=0 // pred_check_branch
    %15 = sbr.rel (0) target = $region9
  $region8: #{local_transform_forward.21} parent=0 // pred_region
    _
  $region9: #{local_transform_forward.21} parent=0 // pred_fallthru
    _
  // Predicated region
  $region10: #{local_transform_forward.21} parent=0 // pred_check
    _
  $region11: #{local_transform_forward.21} parent=0 // pred_check_branch
    %17 = sbr.rel (0) target = $region13
  $region12: #{local_transform_forward.21} parent=0 // pred_region
    _
  $region13: #{local_transform_forward.21} parent=0 // pred_fallthru
    _
  // Predicated region
  $region14: #{local_transform_forward.21} parent=0 // pred_check
    _
  $region15: #{local_transform_forward.21} parent=0 // pred_check_branch
    %19 = sbr.rel (0) target = $region17
  $region16: #{local_transform_forward.21} parent=0 // pred_region
    _
  $region17: #{local_transform_forward.21} parent=0 // pred_fallthru
    _
  // Predicated region
  $region18: #{local_transform_forward.21} parent=0 // pred_check
    _
  $region19: #{local_transform_forward.21} parent=0 // pred_check_branch
    %21 = sbr.rel (0) target = $region21
  $region20: #{local_transform_forward.21} parent=0 // pred_region
    _
  $region21: #{local_transform_forward.21} parent=0 // pred_fallthru
    _
  // Predicated region
  $region22: #{local_transform_forward.21} parent=0 // pred_check
    _
  $region23: #{local_transform_forward.21} parent=0 // pred_check_branch
    %23 = sbr.rel (0) target = $region25
  $region24: #{local_transform_forward.21} parent=0 // pred_region
    _
  $region25: #{local_transform_forward.21} parent=0 // pred_fallthru
    _
  // Predicated region
  $region26: #{local_transform_forward.21} parent=0 // pred_check
    _
  $region27: #{local_transform_forward.21} parent=0 // pred_check_branch
    %25 = sbr.rel (0) target = $region29
  $region28: #{local_transform_forward.21} parent=0 // pred_region
    _
  $region29: #{local_transform_forward.21} parent=0 // pred_fallthru
    _
  %v26 = vld [vmem:[%s0] sm:$0xff]
  %v27 = vld [vmem:[%s1] sm:$0xff]
  %v28 = vld [vmem:[%s1 + $0x8] sm:$0xff]
  %v29 = vld [vmem:[%s1 + $0x10] sm:$0xff]
  %v30 = vld [vmem:[%s1 + $0x18] sm:$0xff]
  %v31 = vld [vmem:[%s2] sm:$0x1]
  %v33 = vlaneseq
  %v34 = vshrl.u32 %v33, 7
  %v35 = vsub.s32 0, %v34
  %v36 = vrot.slane %v31, %v35
  %vm38 = vcmask 261120
  %v40 = vsel %vm38, %v26, 0
  %42 = vmatprep.subr.mxu0 0.0
  %43 = vmatpush1.msra.mxu0 0.0
  %44 = vmatprep.subr.mxu0 0.0
  %45 = vmatpush1.msra.mxu0 0.0
  %46 = vmatprep.subr.mxu0 0.0
  %47 = vmatpush1.msra.mxu0 0.0
  %48 = vmatprep.subr.mxu0 0.0
  %49 = vmatpush1.msra.mxu0 0.0
  %50 = vmatprep.subr.mxu0 0.0
  %51 = vmatpush1.msra.mxu0 0.0
  %52 = vmatprep.subr.mxu0 0.0
  %53 = vmatpush1.msra.mxu0 0.0
  %54 = vmatprep.subr.mxu0 0.0
  %55 = vmatpush1.msra.mxu0 0.0
  %56 = vmatprep.subr.mxu0 0.0
  %57 = vmatpush1.msra.mxu0 0.0
  %58 = vmatprep.subr.mxu0 0.0
  %59 = vmatpush1.msra.mxu0 0.0
  %60 = vmatprep.subr.mxu0 0.0
  %61 = vmatpush1.msra.mxu0 0.0
  %62 = vmatprep.subr.mxu0 0.0
  %63 = vmatpush1.msra.mxu0 0.0
  %64 = vmatprep.subr.mxu0 0.0
  %65 = vmatpush1.msra.mxu0 0.0
  %66 = vmatprep.subr.mxu0 0.0
  %67 = vmatpush1.msra.mxu0 %v30
  %68 = vmatprep.subr.mxu0 0.0
  %69 = vmatpush1.msra.mxu0 %v29
  %70 = vmatprep.subr.mxu0 0.0
  %71 = vmatpush1.msra.mxu0 %v28
  %72 = vmatprep.subr.mxu0 0.0
  %73 = vmatpush1.msra.mxu0 %v27
  %74 = vmatprep.subr.mxu0 0.0
  %75 = vmatpush2.msra.mxu0 0.0
  %76 = vmatprep.subr.mxu0 0.0
  %77 = vmatpush2.msra.mxu0 0.0
  %78 = vmatprep.subr.mxu0 0.0
  %79 = vmatpush2.msra.mxu0 0.0
  %80 = vmatprep.subr.mxu0 0.0
  %81 = vmatpush2.msra.mxu0 0.0
  %82 = vmatprep.subr.mxu0 0.0
  %83 = vmatpush2.msra.mxu0 0.0
  %84 = vmatprep.subr.mxu0 0.0
  %85 = vmatpush2.msra.mxu0 0.0
  %86 = vmatprep.subr.mxu0 0.0
  %87 = vmatpush2.msra.mxu0 0.0
  %88 = vmatprep.subr.mxu0 0.0
  %89 = vmatpush2.msra.mxu0 0.0
  %90 = vmatprep.subr.mxu0 0.0
  %91 = vmatpush2.msra.mxu0 0.0
  %92 = vmatprep.subr.mxu0 0.0
  %93 = vmatpush2.msra.mxu0 0.0
  %94 = vmatprep.subr.mxu0 0.0
  %95 = vmatpush2.msra.mxu0 0.0
  %96 = vmatprep.subr.mxu0 0.0
  %97 = vmatpush2.msra.mxu0 0.0
  %98 = vmatprep.subr.mxu0 0.0
  %99 = vmatpush2.msra.mxu0 0.0
  %100 = vmatprep.subr.mxu0 0.0
  %101 = vmatpush2.msra.mxu0 0.0
  %102 = vmatprep.subr.mxu0 0.0
  %103 = vmatpush2.msra.mxu0 0.0
  %104 = vmatprep.subr.mxu0 0.0
  %105 = vmatpush2.msra.mxu0 0.0
  %106 = vmatprep.mubr.f32.mxu0 0.0
  %107 = vmatmul.mubr.f32.gmra.mxu0 %v40
  %v108 = vpop.f32.mrf.mxu0
  %v109 = vadd.f32 %v36, %v108
  %v110 = vpop.f32.mrf.mxu0
  %111 = vdwg.mxu0
  %v112 = vmul.f32 %v109, %v109
  %v113 = vmul.f32 %v109, %v112
  %v114 = vmul.f32 %v113, 0.044715
  %v115 = vadd.f32 %v109, %v114
  %v116 = vmul.f32 %v115, 0.7978846
  %v117 = vtanh.pop %v116
  %v118 = vadd.f32 %v117, 1.0
  %v119 = vmul.f32 %v118, 0.5
  %v120 = vmul.f32 %v109, %v119
  %v121 = vld [vmem:[%s3] sm:$0xff]
  %v122 = vld [vmem:[%s3 + $0x8] sm:$0xff]
  %v123 = vld [vmem:[%s3 + $0x10] sm:$0xff]
  %v124 = vld [vmem:[%s3 + $0x18] sm:$0xff]
  %v125 = vld [vmem:[%s3 + $0x20] sm:$0xff]
  %v126 = vld [vmem:[%s3 + $0x28] sm:$0xff]
  %v127 = vld [vmem:[%s3 + $0x30] sm:$0xff]
  %v128 = vld [vmem:[%s3 + $0x38] sm:$0xff]
  %v129 = vld [vmem:[%s4] sm:$0x1]
  %v131 = vlaneseq
  %v132 = vshrl.u32 %v131, 7
  %v133 = vsub.s32 0, %v132
  %v134 = vrot.slane %v129, %v133
  %vm136 = vcmask 523264
  %v138 = vsel %vm136, %v120, 0
  %140 = vmatprep.subr.mxu0 0.0
  %141 = vmatpush1.msra.mxu0 0.0
  %142 = vmatprep.subr.mxu0 0.0
  %143 = vmatpush1.msra.mxu0 0.0
  %144 = vmatprep.subr.mxu0 0.0
  %145 = vmatpush1.msra.mxu0 0.0
  %146 = vmatprep.subr.mxu0 0.0
  %147 = vmatpush1.msra.mxu0 0.0
  %148 = vmatprep.subr.mxu0 0.0
  %149 = vmatpush1.msra.mxu0 0.0
  %150 = vmatprep.subr.mxu0 0.0
  %151 = vmatpush1.msra.mxu0 0.0
  %152 = vmatprep.subr.mxu0 0.0
  %153 = vmatpush1.msra.mxu0 0.0
  %154 = vmatprep.subr.mxu0 0.0
  %155 = vmatpush1.msra.mxu0 0.0
  %156 = vmatprep.subr.mxu0 0.0
  %157 = vmatpush1.msra.mxu0 %v128
  %158 = vmatprep.subr.mxu0 0.0
  %159 = vmatpush1.msra.mxu0 %v127
  %160 = vmatprep.subr.mxu0 0.0
  %161 = vmatpush1.msra.mxu0 %v126
  %162 = vmatprep.subr.mxu0 0.0
  %163 = vmatpush1.msra.mxu0 %v125
  %164 = vmatprep.subr.mxu0 0.0
  %165 = vmatpush1.msra.mxu0 %v124
  %166 = vmatprep.subr.mxu0 0.0
  %167 = vmatpush1.msra.mxu0 %v123
  %168 = vmatprep.subr.mxu0 0.0
  %169 = vmatpush1.msra.mxu0 %v122
  %170 = vmatprep.subr.mxu0 0.0
  %171 = vmatpush1.msra.mxu0 %v121
  %172 = vmatprep.subr.mxu0 0.0
  %173 = vmatpush2.msra.mxu0 0.0
  %174 = vmatprep.subr.mxu0 0.0
  %175 = vmatpush2.msra.mxu0 0.0
  %176 = vmatprep.subr.mxu0 0.0
  %177 = vmatpush2.msra.mxu0 0.0
  %178 = vmatprep.subr.mxu0 0.0
  %179 = vmatpush2.msra.mxu0 0.0
  %180 = vmatprep.subr.mxu0 0.0
  %181 = vmatpush2.msra.mxu0 0.0
  %182 = vmatprep.subr.mxu0 0.0
  %183 = vmatpush2.msra.mxu0 0.0
  %184 = vmatprep.subr.mxu0 0.0
  %185 = vmatpush2.msra.mxu0 0.0
  %186 = vmatprep.subr.mxu0 0.0
  %187 = vmatpush2.msra.mxu0 0.0
  %188 = vmatprep.subr.mxu0 0.0
  %189 = vmatpush2.msra.mxu0 0.0
  %190 = vmatprep.subr.mxu0 0.0
  %191 = vmatpush2.msra.mxu0 0.0
  %192 = vmatprep.subr.mxu0 0.0
  %193 = vmatpush2.msra.mxu0 0.0
  %194 = vmatprep.subr.mxu0 0.0
  %195 = vmatpush2.msra.mxu0 0.0
  %196 = vmatprep.subr.mxu0 0.0
  %197 = vmatpush2.msra.mxu0 0.0
  %198 = vmatprep.subr.mxu0 0.0
  %199 = vmatpush2.msra.mxu0 0.0
  %200 = vmatprep.subr.mxu0 0.0
  %201 = vmatpush2.msra.mxu0 0.0
  %202 = vmatprep.subr.mxu0 0.0
  %203 = vmatpush2.msra.mxu0 0.0
  %204 = vmatprep.mubr.f32.mxu0 0.0
  %205 = vmatmul.mubr.f32.gmra.mxu0 %v138
  %v206 = vpop.f32.mrf.mxu0
  %v207 = vadd.f32 %v134, %v206
  %v208 = vpop.f32.mrf.mxu0
  %209 = vdwg.mxu0
  %v210 = vadd.f32 %v26, %v207
  %v211 = vsel %vm38, %v210, 0.0
  %212 = vadd.xlane.f32.xlu0 %v211
  %v213 = vpop.xlane.xlu0 %212
  %v214 = vrcp.pop 32.0
  %v215 = vmul.f32 %v213, %v214
  %v216 = vsub.f32 %v210, %v215
  %v217 = vmul.f32 %v216, %v216
  %v218 = vsel %vm38, %v217, 0.0
  %219 = vadd.xlane.f32.xlu0 %v218
  %v220 = vpop.xlane.xlu0 %219
  %v221 = vmul.f32 %v220, %v214
  %v222 = vadd.f32 %v221, 1e-05
  %v223 = vrsqrt.pop %v222
  %v224 = vmul.f32 %v216, %v223
  %v225 = vld [vmem:[%s5] sm:$0x1]
  %v227 = vlaneseq
  %v228 = vshrl.u32 %v227, 7
  %v229 = vsub.s32 0, %v228
  %v230 = vrot.slane %v225, %v229
  %v232 = vmul.f32 %v224, %v230
  %v233 = vld [vmem:[%s6] sm:$0x1]
  %v235 = vlaneseq
  %v236 = vshrl.u32 %v235, 7
  %v237 = vsub.s32 0, %v236
  %v238 = vrot.slane %v233, %v237
  %v240 = vadd.f32 %v232, %v238
  %241 = vst.msk [vmem:[%s7] sm:$0xff] %vm38, %v240
  // Predicated region
  $region30: #{local_transform_forward.21} parent=0 // pred_check
    _
  $region31: #{local_transform_forward.21} parent=0 // pred_check_branch
    %243 = sbr.rel (0) target = $region33
  $region32: #{local_transform_forward.21} parent=0 // pred_region
    _
  $region33: #{local_transform_forward.21} parent=0 // pred_fallthru
    _
  // Predicated region
  $region34: #{local_transform_forward.21} parent=0 // pred_check
    _
  $region35: #{local_transform_forward.21} parent=0 // pred_check_branch
    %245 = sbr.rel (0) target = $region37
  $region36: #{local_transform_forward.21} parent=0 // pred_region
    _
  $region37: #{local_transform_forward.21} parent=0 // pred_fallthru
    _

// kernel: local_transform_forward.20
$region0: #{local_transform_forward.20}
  #allocation0 [shape = 'u32[]', space=smem, size = 0x4, offset = 0x4, fixed_abs, tag = 'smem constant byte address 0x4 - core index']
  #allocation1 [shape = 'u32[144,128]{1,0:T(1,128)}', space=vmem, size = 0x12000, scoped, tag = 'internal scratch']
  %s0 = inlined_call_operand.vmem [shape: f32[8,32], index: 0, kind: input, shape index: {}]
  %s1 = inlined_call_operand.vmem [shape: f32[4,8,8], index: 1, kind: input, shape index: {}]
  %s2 = inlined_call_operand.vmem [shape: f32[1,8], index: 2, kind: input, shape index: {}]
  %s3 = inlined_call_operand.vmem [shape: f32[1,32], index: 3, kind: input, shape index: {}]
  %s4 = inlined_call_operand.vmem [shape: f32[1,32], index: 4, kind: input, shape index: {}]
  %s5 = inlined_call_operand.vmem [shape: f32[32,128], index: 5, kind: input, shape index: {}]
  %s6 = inlined_call_operand.vmem [shape: f32[1,128], index: 6, kind: input, shape index: {}]
  %s7 = inlined_call_operand.vmem [shape: f32[32,32], index: 7, kind: input, shape index: {}]
  %s8 = inlined_call_operand.vmem [shape: f32[1,32], index: 8, kind: input, shape index: {}]
  %s9 = inlined_call_operand.vmem [shape: f32[8,32], index: 9, kind: output, shape index: {0}]
  %s10 = inlined_call_operand.hbm [shape: f32[4,8,8], index: 10, kind: output, shape index: {1}]
  %11 = xla_tuple %s9, %s10
  %s12 = sld [smem:[#allocation0]]
  $region54: #{local_transform_forward.20} parent=0
    _
  %s14 = ssub.s32 1, %s12
  %s15 = scalar_select 0, %s14, %s12
  $region1: #{local_transform_forward.20} parent=0
    #allocation2 [shape = 'u8[16384]{0}', space=vmem, size = 0x4000, scoped, tag = 'output window, operand 1, single buffered']
    #allocation3 [shape = 's32[1]{0}', space=sflag, size = 0x4, scoped, tag = 'scoped memory for local_transform_forward.20']
    %16 = vsyncpa [#allocation3], 0
    // Predicated region
    $region2: #{local_transform_forward.20} parent=1 // pred_check
      _
    $region3: #{local_transform_forward.20} parent=1 // pred_check_branch
      %18 = sbr.rel (0) target = $region5
    $region4: #{local_transform_forward.20} parent=1 // pred_region
      _
    $region5: #{local_transform_forward.20} parent=1 // pred_fallthru
      _
    // Predicated region
    $region6: #{local_transform_forward.20} parent=1 // pred_check
      _
    $region7: #{local_transform_forward.20} parent=1 // pred_check_branch
      %20 = sbr.rel (0) target = $region9
    $region8: #{local_transform_forward.20} parent=1 // pred_region
      _
    $region9: #{local_transform_forward.20} parent=1 // pred_fallthru
      _
    // Predicated region
    $region10: #{local_transform_forward.20} parent=1 // pred_check
      _
    $region11: #{local_transform_forward.20} parent=1 // pred_check_branch
      %22 = sbr.rel (0) target = $region13
    $region12: #{local_transform_forward.20} parent=1 // pred_region
      _
    $region13: #{local_transform_forward.20} parent=1 // pred_fallthru
      _
    // Predicated region
    $region14: #{local_transform_forward.20} parent=1 // pred_check
      _
    $region15: #{local_transform_forward.20} parent=1 // pred_check_branch
      %24 = sbr.rel (0) target = $region17
    $region16: #{local_transform_forward.20} parent=1 // pred_region
      _
    $region17: #{local_transform_forward.20} parent=1 // pred_fallthru
      _
    // Predicated region
    $region18: #{local_transform_forward.20} parent=1 // pred_check
      _
    $region19: #{local_transform_forward.20} parent=1 // pred_check_branch
      %26 = sbr.rel (0) target = $region21
    $region20: #{local_transform_forward.20} parent=1 // pred_region
      _
    $region21: #{local_transform_forward.20} parent=1 // pred_fallthru
      _
    // Predicated region
    $region22: #{local_transform_forward.20} parent=1 // pred_check
      _
    $region23: #{local_transform_forward.20} parent=1 // pred_check_branch
      %28 = sbr.rel (0) target = $region25
    $region24: #{local_transform_forward.20} parent=1 // pred_region
      _
    $region25: #{local_transform_forward.20} parent=1 // pred_fallthru
      _
    // Predicated region
    $region26: #{local_transform_forward.20} parent=1 // pred_check
      _
    $region27: #{local_transform_forward.20} parent=1 // pred_check_branch
      %30 = sbr.rel (0) target = $region29
    $region28: #{local_transform_forward.20} parent=1 // pred_region
      _
    $region29: #{local_transform_forward.20} parent=1 // pred_fallthru
      _
    // Predicated region
    $region30: #{local_transform_forward.20} parent=1 // pred_check
      _
    $region31: #{local_transform_forward.20} parent=1 // pred_check_branch
      %32 = sbr.rel (0) target = $region33
    $region32: #{local_transform_forward.20} parent=1 // pred_region
      _
    $region33: #{local_transform_forward.20} parent=1 // pred_fallthru
      _
    // Predicated region
    $region34: #{local_transform_forward.20} parent=1 // pred_check
      _
    $region35: #{local_transform_forward.20} parent=1 // pred_check_branch
      %34 = sbr.rel (0) target = $region37
    $region36: #{local_transform_forward.20} parent=1 // pred_region
      _
    $region37: #{local_transform_forward.20} parent=1 // pred_fallthru
      _
    %v35 = vld [vmem:[%s0] sm:$0xff]
    %vm36 = vcmask 261120
    %v37 = vsel %vm36, %v35, 0.0
    %38 = vadd.xlane.f32.xlu0 %v37
    %v39 = vpop.xlane.xlu0 %38
    %v40 = vrcp.pop 32.0
    %v41 = vmul.f32 %v39, %v40
    %v42 = vsub.f32 %v35, %v41
    %v43 = vmul.f32 %v42, %v42
    %v44 = vsel %vm36, %v43, 0.0
    %45 = vadd.xlane.f32.xlu0 %v44
    %v46 = vpop.xlane.xlu0 %45
    %v47 = vmul.f32 %v46, %v40
    %v48 = vadd.f32 %v47, 1e-05
    %v49 = vrsqrt.pop %v48
    %v50 = vmul.f32 %v42, %v49
    %v51 = vld [vmem:[%s3] sm:$0x1]
    %v53 = vlaneseq
    %v54 = vshrl.u32 %v53, 7
    %v55 = vsub.s32 0, %v54
    %v56 = vrot.slane %v51, %v55
    %v58 = vmul.f32 %v50, %v56
    %v59 = vld [vmem:[%s4] sm:$0x1]
    %v61 = vlaneseq
    %v62 = vshrl.u32 %v61, 7
    %v63 = vsub.s32 0, %v62
    %v64 = vrot.slane %v59, %v63
    %v66 = vadd.f32 %v58, %v64
    %v67 = vld [vmem:[%s5] sm:$0xff]
    %v68 = vld [vmem:[%s5 + $0x8] sm:$0xff]
    %v69 = vld [vmem:[%s5 + $0x10] sm:$0xff]
    %v70 = vld [vmem:[%s5 + $0x18] sm:$0xff]
    %v71 = vld [vmem:[%s6] sm:$0x1]
    %v73 = vlaneseq
    %v74 = vshrl.u32 %v73, 7
    %v75 = vsub.s32 0, %v74
    %v76 = vrot.slane %v71, %v75
    %v79 = vsel %vm36, %v66, 0
    %81 = vmatprep.subr.mxu0 0.0
    %82 = vmatpush1.msra.mxu0 0.0
    %83 = vmatprep.subr.mxu0 0.0
    %84 = vmatpush1.msra.mxu0 0.0
    %85 = vmatprep.subr.mxu0 0.0
    %86 = vmatpush1.msra.mxu0 0.0
    %87 = vmatprep.subr.mxu0 0.0
    %88 = vmatpush1.msra.mxu0 0.0
    %89 = vmatprep.subr.mxu0 0.0
    %90 = vmatpush1.msra.mxu0 0.0
    %91 = vmatprep.subr.mxu0 0.0
    %92 = vmatpush1.msra.mxu0 0.0
    %93 = vmatprep.subr.mxu0 0.0
    %94 = vmatpush1.msra.mxu0 0.0
    %95 = vmatprep.subr.mxu0 0.0
    %96 = vmatpush1.msra.mxu0 0.0
    %97 = vmatprep.subr.mxu0 0.0
    %98 = vmatpush1.msra.mxu0 0.0
    %99 = vmatprep.subr.mxu0 0.0
    %100 = vmatpush1.msra.mxu0 0.0
    %101 = vmatprep.subr.mxu0 0.0
    %102 = vmatpush1.msra.mxu0 0.0
    %103 = vmatprep.subr.mxu0 0.0
    %104 = vmatpush1.msra.mxu0 0.0
    %105 = vmatprep.subr.mxu0 0.0
    %106 = vmatpush1.msra.mxu0 %v70
    %107 = vmatprep.subr.mxu0 0.0
    %108 = vmatpush1.msra.mxu0 %v69
    %109 = vmatprep.subr.mxu0 0.0
    %110 = vmatpush1.msra.mxu0 %v68
    %111 = vmatprep.subr.mxu0 0.0
    %112 = vmatpush1.msra.mxu0 %v67
    %113 = vmatprep.subr.mxu0 0.0
    %114 = vmatpush2.msra.mxu0 0.0
    %115 = vmatprep.subr.mxu0 0.0
    %116 = vmatpush2.msra.mxu0 0.0
    %117 = vmatprep.subr.mxu0 0.0
    %118 = vmatpush2.msra.mxu0 0.0
    %119 = vmatprep.subr.mxu0 0.0
    %120 = vmatpush2.msra.mxu0 0.0
    %121 = vmatprep.subr.mxu0 0.0
    %122 = vmatpush2.msra.mxu0 0.0
    %123 = vmatprep.subr.mxu0 0.0
    %124 = vmatpush2.msra.mxu0 0.0
    %125 = vmatprep.subr.mxu0 0.0
    %126 = vmatpush2.msra.mxu0 0.0
    %127 = vmatprep.subr.mxu0 0.0
    %128 = vmatpush2.msra.mxu0 0.0
    %129 = vmatprep.subr.mxu0 0.0
    %130 = vmatpush2.msra.mxu0 0.0
    %131 = vmatprep.subr.mxu0 0.0
    %132 = vmatpush2.msra.mxu0 0.0
    %133 = vmatprep.subr.mxu0 0.0
    %134 = vmatpush2.msra.mxu0 0.0
    %135 = vmatprep.subr.mxu0 0.0
    %136 = vmatpush2.msra.mxu0 0.0
    %137 = vmatprep.subr.mxu0 0.0
    %138 = vmatpush2.msra.mxu0 0.0
    %139 = vmatprep.subr.mxu0 0.0
    %140 = vmatpush2.msra.mxu0 0.0
    %141 = vmatprep.subr.mxu0 0.0
    %142 = vmatpush2.msra.mxu0 0.0
    %143 = vmatprep.subr.mxu0 0.0
    %144 = vmatpush2.msra.mxu0 0.0
    %145 = vmatprep.mubr.f32.mxu0 0.0
    %146 = vmatmul.mubr.f32.gmra.mxu0 %v79
    %v147 = vpop.f32.mrf.mxu0
    %v148 = vadd.f32 %v76, %v147
    %v149 = vpop.f32.mrf.mxu0
    %150 = vdwg.mxu0
    %v151 = vxor.u32 %v148, 2147483648
    %v152 = vmul.f32 %v151, 1.442695
    %v153 = vpow.pop %v152
    %v154 = vadd.f32 %v153, 1.0
    %v155 = vrcp.pop %v154
    %v156 = vmul.f32 1.0, %v155
    %158 = vrot.lane.b32.xlu0 %v148, 120
    %v159 = vpop.permute.xlu0 %158
    %160 = vrot.lane.b32.xlu0 %v148, 112
    %v161 = vpop.permute.xlu0 %160
    %162 = vrot.lane.b32.xlu0 %v148, 104
    %v163 = vpop.permute.xlu0 %162
    %164 = vrot.lane.b32.xlu0 %v148, 96
    %v165 = vpop.permute.xlu0 %164
    %vm166 = vcmask 64512
    %v167 = vsel %vm166, %v148, 0
    %v169 = vsel %vm166, %v165, 0
    %171 = vmatprep.subr.mxu0 0.0
    %172 = vmatpush1.xpose.msra.mxu0 0.0
    %173 = vmatprep.subr.mxu0 0.0
    %174 = vmatpush1.xpose.msra.mxu0 0.0
    %175 = vmatprep.subr.mxu0 0.0
    %176 = vmatpush1.xpose.msra.mxu0 0.0
    %177 = vmatprep.subr.mxu0 0.0
    %178 = vmatpush1.xpose.msra.mxu0 0.0
    %179 = vmatprep.subr.mxu0 0.0
    %180 = vmatpush1.xpose.msra.mxu0 0.0
    %181 = vmatprep.subr.mxu0 0.0
    %182 = vmatpush1.xpose.msra.mxu0 0.0
    %183 = vmatprep.subr.mxu0 0.0
    %184 = vmatpush1.xpose.msra.mxu0 0.0
    %185 = vmatprep.subr.mxu0 0.0
    %186 = vmatpush1.xpose.msra.mxu0 0.0
    %187 = vmatprep.subr.mxu0 0.0
    %188 = vmatpush1.xpose.msra.mxu0 0.0
    %189 = vmatprep.subr.mxu0 0.0
    %190 = vmatpush1.xpose.msra.mxu0 0.0
    %191 = vmatprep.subr.mxu0 0.0
    %192 = vmatpush1.xpose.msra.mxu0 0.0
    %193 = vmatprep.subr.mxu0 0.0
    %194 = vmatpush1.xpose.msra.mxu0 0.0
    %195 = vmatprep.subr.mxu0 0.0
    %196 = vmatpush1.xpose.msra.mxu0 0.0
    %197 = vmatprep.subr.mxu0 0.0
    %198 = vmatpush1.xpose.msra.mxu0 0.0
    %199 = vmatprep.subr.mxu0 0.0
    %200 = vmatpush1.xpose.msra.mxu0 0.0
    %201 = vmatprep.subr.mxu0 0.0
    %202 = vmatpush1.xpose.msra.mxu0 %v169
    %203 = vmatprep.subr.mxu0 0.0
    %204 = vmatpush2.xpose.msra.mxu0 0.0
    %205 = vmatprep.subr.mxu0 0.0
    %206 = vmatpush2.xpose.msra.mxu0 0.0
    %207 = vmatprep.subr.mxu0 0.0
    %208 = vmatpush2.xpose.msra.mxu0 0.0
    %209 = vmatprep.subr.mxu0 0.0
    %210 = vmatpush2.xpose.msra.mxu0 0.0
    %211 = vmatprep.subr.mxu0 0.0
    %212 = vmatpush2.xpose.msra.mxu0 0.0
    %213 = vmatprep.subr.mxu0 0.0
    %214 = vmatpush2.xpose.msra.mxu0 0.0
    %215 = vmatprep.subr.mxu0 0.0
    %216 = vmatpush2.xpose.msra.mxu0 0.0
    %217 = vmatprep.subr.mxu0 0.0
    %218 = vmatpush2.xpose.msra.mxu0 0.0
    %219 = vmatprep.subr.mxu0 0.0
    %220 = vmatpush2.xpose.msra.mxu0 0.0
    %221 = vmatprep.subr.mxu0 0.0
    %222 = vmatpush2.xpose.msra.mxu0 0.0
    %223 = vmatprep.subr.mxu0 0.0
    %224 = vmatpush2.xpose.msra.mxu0 0.0
    %225 = vmatprep.subr.mxu0 0.0
    %226 = vmatpush2.xpose.msra.mxu0 0.0
    %227 = vmatprep.subr.mxu0 0.0
    %228 = vmatpush2.xpose.msra.mxu0 0.0
    %229 = vmatprep.subr.mxu0 0.0
    %230 = vmatpush2.xpose.msra.mxu0 0.0
    %231 = vmatprep.subr.mxu0 0.0
    %232 = vmatpush2.xpose.msra.mxu0 0.0
    %233 = vmatprep.subr.mxu0 0.0
    %234 = vmatpush2.xpose.msra.mxu0 0.0
    %235 = vmatprep.mubr.f32.mxu0 0.0
    %236 = vmatmul.mubr.f32.gmra.mxu0 %v167
    %v237 = vpop.f32.mrf.mxu0
    %v238 = vadd.f32 0.0, %v237
    %v239 = vpop.f32.mrf.mxu0
    %240 = vdwg.mxu0
    %241 = vrot.lane.b32.xlu0 %v159, 96
    %v242 = vpop.permute.xlu0 %241
    %v243 = vsel %vm166, %v159, 0
    %v245 = vsel %vm166, %v242, 0
    %247 = vmatprep.subr.mxu0 0.0
    %248 = vmatpush1.xpose.msra.mxu0 0.0
    %249 = vmatprep.subr.mxu0 0.0
    %250 = vmatpush1.xpose.msra.mxu0 0.0
    %251 = vmatprep.subr.mxu0 0.0
    %252 = vmatpush1.xpose.msra.mxu0 0.0
    %253 = vmatprep.subr.mxu0 0.0
    %254 = vmatpush1.xpose.msra.mxu0 0.0
    %255 = vmatprep.subr.mxu0 0.0
    %256 = vmatpush1.xpose.msra.mxu0 0.0
    %257 = vmatprep.subr.mxu0 0.0
    %258 = vmatpush1.xpose.msra.mxu0 0.0
    %259 = vmatprep.subr.mxu0 0.0
    %260 = vmatpush1.xpose.msra.mxu0 0.0
    %261 = vmatprep.subr.mxu0 0.0
    %262 = vmatpush1.xpose.msra.mxu0 0.0
    %263 = vmatprep.subr.mxu0 0.0
    %264 = vmatpush1.xpose.msra.mxu0 0.0
    %265 = vmatprep.subr.mxu0 0.0
    %266 = vmatpush1.xpose.msra.mxu0 0.0
    %267 = vmatprep.subr.mxu0 0.0
    %268 = vmatpush1.xpose.msra.mxu0 0.0
    %269 = vmatprep.subr.mxu0 0.0
    %270 = vmatpush1.xpose.msra.mxu0 0.0
    %271 = vmatprep.subr.mxu0 0.0
    %272 = vmatpush1.xpose.msra.mxu0 0.0
    %273 = vmatprep.subr.mxu0 0.0
    %274 = vmatpush1.xpose.msra.mxu0 0.0
    %275 = vmatprep.subr.mxu0 0.0
    %276 = vmatpush1.xpose.msra.mxu0 0.0
    %277 = vmatprep.subr.mxu0 0.0
    %278 = vmatpush1.xpose.msra.mxu0 %v245
    %279 = vmatprep.subr.mxu0 0.0
    %280 = vmatpush2.xpose.msra.mxu0 0.0
    %281 = vmatprep.subr.mxu0 0.0
    %282 = vmatpush2.xpose.msra.mxu0 0.0
    %283 = vmatprep.subr.mxu0 0.0
    %284 = vmatpush2.xpose.msra.mxu0 0.0
    %285 = vmatprep.subr.mxu0 0.0
    %286 = vmatpush2.xpose.msra.mxu0 0.0
    %287 = vmatprep.subr.mxu0 0.0
    %288 = vmatpush2.xpose.msra.mxu0 0.0
    %289 = vmatprep.subr.mxu0 0.0
    %290 = vmatpush2.xpose.msra.mxu0 0.0
    %291 = vmatprep.subr.mxu0 0.0
    %292 = vmatpush2.xpose.msra.mxu0 0.0
    %293 = vmatprep.subr.mxu0 0.0
    %294 = vmatpush2.xpose.msra.mxu0 0.0
    %295 = vmatprep.subr.mxu0 0.0
    %296 = vmatpush2.xpose.msra.mxu0 0.0
    %297 = vmatprep.subr.mxu0 0.0
    %298 = vmatpush2.xpose.msra.mxu0 0.0
    %299 = vmatprep.subr.mxu0 0.0
    %300 = vmatpush2.xpose.msra.mxu0 0.0
    %301 = vmatprep.subr.mxu0 0.0
    %302 = vmatpush2.xpose.msra.mxu0 0.0
    %303 = vmatprep.subr.mxu0 0.0
    %304 = vmatpush2.xpose.msra.mxu0 0.0
    %305 = vmatprep.subr.mxu0 0.0
    %306 = vmatpush2.xpose.msra.mxu0 0.0
    %307 = vmatprep.subr.mxu0 0.0
    %308 = vmatpush2.xpose.msra.mxu0 0.0
    %309 = vmatprep.subr.mxu0 0.0
    %310 = vmatpush2.xpose.msra.mxu0 0.0
    %311 = vmatprep.mubr.f32.mxu0 0.0
    %312 = vmatmul.mubr.f32.gmra.mxu0 %v243
    %v313 = vpop.f32.mrf.mxu0
    %v314 = vadd.f32 0.0, %v313
    %v315 = vpop.f32.mrf.mxu0
    %316 = vdwg.mxu0
    %317 = vrot.lane.b32.xlu0 %v161, 96
    %v318 = vpop.permute.xlu0 %317
    %v319 = vsel %vm166, %v161, 0
    %v321 = vsel %vm166, %v318, 0
    %323 = vmatprep.subr.mxu0 0.0
    %324 = vmatpush1.xpose.msra.mxu0 0.0
    %325 = vmatprep.subr.mxu0 0.0
    %326 = vmatpush1.xpose.msra.mxu0 0.0
    %327 = vmatprep.subr.mxu0 0.0
    %328 = vmatpush1.xpose.msra.mxu0 0.0
    %329 = vmatprep.subr.mxu0 0.0
    %330 = vmatpush1.xpose.msra.mxu0 0.0
    %331 = vmatprep.subr.mxu0 0.0
    %332 = vmatpush1.xpose.msra.mxu0 0.0
    %333 = vmatprep.subr.mxu0 0.0
    %334 = vmatpush1.xpose.msra.mxu0 0.0
    %335 = vmatprep.subr.mxu0 0.0
    %336 = vmatpush1.xpose.msra.mxu0 0.0
    %337 = vmatprep.subr.mxu0 0.0
    %338 = vmatpush1.xpose.msra.mxu0 0.0
    %339 = vmatprep.subr.mxu0 0.0
    %340 = vmatpush1.xpose.msra.mxu0 0.0
    %341 = vmatprep.subr.mxu0 0.0
    %342 = vmatpush1.xpose.msra.mxu0 0.0
    %343 = vmatprep.subr.mxu0 0.0
    %344 = vmatpush1.xpose.msra.mxu0 0.0
    %345 = vmatprep.subr.mxu0 0.0
    %346 = vmatpush1.xpose.msra.mxu0 0.0
    %347 = vmatprep.subr.mxu0 0.0
    %348 = vmatpush1.xpose.msra.mxu0 0.0
    %349 = vmatprep.subr.mxu0 0.0
    %350 = vmatpush1.xpose.msra.mxu0 0.0
    %351 = vmatprep.subr.mxu0 0.0
    %352 = vmatpush1.xpose.msra.mxu0 0.0
    %353 = vmatprep.subr.mxu0 0.0
    %354 = vmatpush1.xpose.msra.mxu0 %v321
    %355 = vmatprep.subr.mxu0 0.0
    %356 = vmatpush2.xpose.msra.mxu0 0.0
    %357 = vmatprep.subr.mxu0 0.0
    %358 = vmatpush2.xpose.msra.mxu0 0.0
    %359 = vmatprep.subr.mxu0 0.0
    %360 = vmatpush2.xpose.msra.mxu0 0.0
    %361 = vmatprep.subr.mxu0 0.0
    %362 = vmatpush2.xpose.msra.mxu0 0.0
    %363 = vmatprep.subr.mxu0 0.0
    %364 = vmatpush2.xpose.msra.mxu0 0.0
    %365 = vmatprep.subr.mxu0 0.0
    %366 = vmatpush2.xpose.msra.mxu0 0.0
    %367 = vmatprep.subr.mxu0 0.0
    %368 = vmatpush2.xpose.msra.mxu0 0.0
    %369 = vmatprep.subr.mxu0 0.0
    %370 = vmatpush2.xpose.msra.mxu0 0.0
    %371 = vmatprep.subr.mxu0 0.0
    %372 = vmatpush2.xpose.msra.mxu0 0.0
    %373 = vmatprep.subr.mxu0 0.0
    %374 = vmatpush2.xpose.msra.mxu0 0.0
    %375 = vmatprep.subr.mxu0 0.0
    %376 = vmatpush2.xpose.msra.mxu0 0.0
    %377 = vmatprep.subr.mxu0 0.0
    %378 = vmatpush2.xpose.msra.mxu0 0.0
    %379 = vmatprep.subr.mxu0 0.0
    %380 = vmatpush2.xpose.msra.mxu0 0.0
    %381 = vmatprep.subr.mxu0 0.0
    %382 = vmatpush2.xpose.msra.mxu0 0.0
    %383 = vmatprep.subr.mxu0 0.0
    %384 = vmatpush2.xpose.msra.mxu0 0.0
    %385 = vmatprep.subr.mxu0 0.0
    %386 = vmatpush2.xpose.msra.mxu0 0.0
    %387 = vmatprep.mubr.f32.mxu0 0.0
    %388 = vmatmul.mubr.f32.gmra.mxu0 %v319
    %v389 = vpop.f32.mrf.mxu0
    %v390 = vadd.f32 0.0, %v389
    %v391 = vpop.f32.mrf.mxu0
    %392 = vdwg.mxu0
    %393 = vrot.lane.b32.xlu0 %v163, 96
    %v394 = vpop.permute.xlu0 %393
    %v395 = vsel %vm166, %v163, 0
    %v397 = vsel %vm166, %v394, 0
    %399 = vmatprep.subr.mxu0 0.0
    %400 = vmatpush1.xpose.msra.mxu0 0.0
    %401 = vmatprep.subr.mxu0 0.0
    %402 = vmatpush1.xpose.msra.mxu0 0.0
    %403 = vmatprep.subr.mxu0 0.0
    %404 = vmatpush1.xpose.msra.mxu0 0.0
    %405 = vmatprep.subr.mxu0 0.0
    %406 = vmatpush1.xpose.msra.mxu0 0.0
    %407 = vmatprep.subr.mxu0 0.0
    %408 = vmatpush1.xpose.msra.mxu0 0.0
    %409 = vmatprep.subr.mxu0 0.0
    %410 = vmatpush1.xpose.msra.mxu0 0.0
    %411 = vmatprep.subr.mxu0 0.0
    %412 = vmatpush1.xpose.msra.mxu0 0.0
    %413 = vmatprep.subr.mxu0 0.0
    %414 = vmatpush1.xpose.msra.mxu0 0.0
    %415 = vmatprep.subr.mxu0 0.0
    %416 = vmatpush1.xpose.msra.mxu0 0.0
    %417 = vmatprep.subr.mxu0 0.0
    %418 = vmatpush1.xpose.msra.mxu0 0.0
    %419 = vmatprep.subr.mxu0 0.0
    %420 = vmatpush1.xpose.msra.mxu0 0.0
    %421 = vmatprep.subr.mxu0 0.0
    %422 = vmatpush1.xpose.msra.mxu0 0.0
    %423 = vmatprep.subr.mxu0 0.0
    %424 = vmatpush1.xpose.msra.mxu0 0.0
    %425 = vmatprep.subr.mxu0 0.0
    %426 = vmatpush1.xpose.msra.mxu0 0.0
    %427 = vmatprep.subr.mxu0 0.0
    %428 = vmatpush1.xpose.msra.mxu0 0.0
    %429 = vmatprep.subr.mxu0 0.0
    %430 = vmatpush1.xpose.msra.mxu0 %v397
    %431 = vmatprep.subr.mxu0 0.0
    %432 = vmatpush2.xpose.msra.mxu0 0.0
    %433 = vmatprep.subr.mxu0 0.0
    %434 = vmatpush2.xpose.msra.mxu0 0.0
    %435 = vmatprep.subr.mxu0 0.0
    %436 = vmatpush2.xpose.msra.mxu0 0.0
    %437 = vmatprep.subr.mxu0 0.0
    %438 = vmatpush2.xpose.msra.mxu0 0.0
    %439 = vmatprep.subr.mxu0 0.0
    %440 = vmatpush2.xpose.msra.mxu0 0.0
    %441 = vmatprep.subr.mxu0 0.0
    %442 = vmatpush2.xpose.msra.mxu0 0.0
    %443 = vmatprep.subr.mxu0 0.0
    %444 = vmatpush2.xpose.msra.mxu0 0.0
    %445 = vmatprep.subr.mxu0 0.0
    %446 = vmatpush2.xpose.msra.mxu0 0.0
    %447 = vmatprep.subr.mxu0 0.0
    %448 = vmatpush2.xpose.msra.mxu0 0.0
    %449 = vmatprep.subr.mxu0 0.0
    %450 = vmatpush2.xpose.msra.mxu0 0.0
    %451 = vmatprep.subr.mxu0 0.0
    %452 = vmatpush2.xpose.msra.mxu0 0.0
    %453 = vmatprep.subr.mxu0 0.0
    %454 = vmatpush2.xpose.msra.mxu0 0.0
    %455 = vmatprep.subr.mxu0 0.0
    %456 = vmatpush2.xpose.msra.mxu0 0.0
    %457 = vmatprep.subr.mxu0 0.0
    %458 = vmatpush2.xpose.msra.mxu0 0.0
    %459 = vmatprep.subr.mxu0 0.0
    %460 = vmatpush2.xpose.msra.mxu0 0.0
    %461 = vmatprep.subr.mxu0 0.0
    %462 = vmatpush2.xpose.msra.mxu0 0.0
    %463 = vmatprep.mubr.f32.mxu0 0.0
    %464 = vmatmul.mubr.f32.gmra.mxu0 %v395
    %v465 = vpop.f32.mrf.mxu0
    %v466 = vadd.f32 0.0, %v465
    %v467 = vpop.f32.mrf.mxu0
    %468 = vdwg.mxu0
    %v469 = vmul.f32 %v238, 0.35355338
    %v470 = vmul.f32 %v314, 0.35355338
    %v471 = vmul.f32 %v390, 0.35355338
    %v472 = vmul.f32 %v466, 0.35355338
    %v473 = vld [vmem:[%s1] sm:$0xff]
    %v474 = vld [vmem:[%s1 + $0x8] sm:$0xff]
    %v475 = vld [vmem:[%s1 + $0x10] sm:$0xff]
    %v476 = vld [vmem:[%s1 + $0x18] sm:$0xff]
    %v477 = vadd.f32 %v469, %v473
    %v478 = vadd.f32 %v470, %v474
    %v479 = vadd.f32 %v471, %v475
    %v480 = vadd.f32 %v472, %v476
    %v481 = vld [vmem:[%s2] sm:$0x1]
    %vm482 = vcmp.gt.f32.partialorder %v481, 0.0
    %v483 = vsel %vm482, 1, 0
    %v484 = vlaneseq
    %v485 = vshrl.u32 %v484, 7
    %v486 = vsub.s32 0, %v485
    %v487 = vrot.slane %v483, %v486
    %vm488 = vcmp.eq.s32.totalorder %v487, 1
    %v489 = vsel %vm488, %v477, -1e+09
    %v490 = vsel %vm488, %v478, -1e+09
    %v491 = vsel %vm488, %v479, -1e+09
    %v492 = vsel %vm488, %v480, -1e+09
    %v493 = vsel %vm166, %v489, -inf
    %494 = vmax.xlane.f32.xlu0 %v493
    %v495 = vpop.xlane.xlu0 %494
    %v496 = vsel %vm166, %v490, -inf
    %497 = vmax.xlane.f32.xlu0 %v496
    %v498 = vpop.xlane.xlu0 %497
    %v499 = vsel %vm166, %v491, -inf
    %500 = vmax.xlane.f32.xlu0 %v499
    %v501 = vpop.xlane.xlu0 %500
    %v502 = vsel %vm166, %v492, -inf
    %503 = vmax.xlane.f32.xlu0 %v502
    %v504 = vpop.xlane.xlu0 %503
    %v505 = vsub.f32 %v489, %v495
    %v506 = vsub.f32 %v490, %v498
    %v507 = vsub.f32 %v491, %v501
    %v508 = vsub.f32 %v492, %v504
    %v509 = vmul.f32 %v505, 1.442695
    %v510 = vpow.pop %v509
    %v511 = vmul.f32 %v506, 1.442695
    %v512 = vpow.pop %v511
    %v513 = vmul.f32 %v507, 1.442695
    %v514 = vpow.pop %v513
    %v515 = vmul.f32 %v508, 1.442695
    %v516 = vpow.pop %v515
    %v517 = vsel %vm166, %v510, 0.0
    %518 = vadd.xlane.f32.xlu0 %v517
    %v519 = vpop.xlane.xlu0 %518
    %v520 = vsel %vm166, %v512, 0.0
    %521 = vadd.xlane.f32.xlu0 %v520
    %v522 = vpop.xlane.xlu0 %521
    %v523 = vsel %vm166, %v514, 0.0
    %524 = vadd.xlane.f32.xlu0 %v523
    %v525 = vpop.xlane.xlu0 %524
    %v526 = vsel %vm166, %v516, 0.0
    %527 = vadd.xlane.f32.xlu0 %v526
    %v528 = vpop.xlane.xlu0 %527
    %v529 = vrcp.pop %v519
    %v530 = vmul.f32 %v510, %v529
    %v531 = vrcp.pop %v522
    %v532 = vmul.f32 %v512, %v531
    %v533 = vrcp.pop %v525
    %v534 = vmul.f32 %v514, %v533
    %v535 = vrcp.pop %v528
    %v536 = vmul.f32 %v516, %v535
    %537 = vst.msk [vmem:[#allocation2] sm:$0xff] %vm166, %v530
    %538 = vst.msk [vmem:[#allocation2 + $0x8] sm:$0xff] %vm166, %v532
    %539 = vst.msk [vmem:[#allocation2 + $0x10] sm:$0xff] %vm166, %v534
    %540 = vst.msk [vmem:[#allocation2 + $0x18] sm:$0xff] %vm166, %v536
    %541 = vrot.lane.b32.xlu0 %v148, 64
    %v542 = vpop.permute.xlu0 %541
    %v545 = vsel %vm166, %v530, 0
    %547 = vmatprep.subr.mxu0 0.0
    %548 = vmatpush1.msra.mxu0 0.0
    %549 = vmatprep.subr.mxu0 0.0
    %550 = vmatpush1.msra.mxu0 0.0
    %551 = vmatprep.subr.mxu0 0.0
    %552 = vmatpush1.msra.mxu0 0.0
    %553 = vmatprep.subr.mxu0 0.0
    %554 = vmatpush1.msra.mxu0 0.0
    %555 = vmatprep.subr.mxu0 0.0
    %556 = vmatpush1.msra.mxu0 0.0
    %557 = vmatprep.subr.mxu0 0.0
    %558 = vmatpush1.msra.mxu0 0.0
    %559 = vmatprep.subr.mxu0 0.0
    %560 = vmatpush1.msra.mxu0 0.0
    %561 = vmatprep.subr.mxu0 0.0
    %562 = vmatpush1.msra.mxu0 0.0
    %563 = vmatprep.subr.mxu0 0.0
    %564 = vmatpush1.msra.mxu0 0.0
    %565 = vmatprep.subr.mxu0 0.0
    %566 = vmatpush1.msra.mxu0 0.0
    %567 = vmatprep.subr.mxu0 0.0
    %568 = vmatpush1.msra.mxu0 0.0
    %569 = vmatprep.subr.mxu0 0.0
    %570 = vmatpush1.msra.mxu0 0.0
    %571 = vmatprep.subr.mxu0 0.0
    %572 = vmatpush1.msra.mxu0 0.0
    %573 = vmatprep.subr.mxu0 0.0
    %574 = vmatpush1.msra.mxu0 0.0
    %575 = vmatprep.subr.mxu0 0.0
    %576 = vmatpush1.msra.mxu0 0.0
    %577 = vmatprep.subr.mxu0 0.0
    %578 = vmatpush1.msra.mxu0 %v542
    %579 = vmatprep.subr.mxu0 0.0
    %580 = vmatpush2.msra.mxu0 0.0
    %581 = vmatprep.subr.mxu0 0.0
    %582 = vmatpush2.msra.mxu0 0.0
    %583 = vmatprep.subr.mxu0 0.0
    %584 = vmatpush2.msra.mxu0 0.0
    %585 = vmatprep.subr.mxu0 0.0
    %586 = vmatpush2.msra.mxu0 0.0
    %587 = vmatprep.subr.mxu0 0.0
    %588 = vmatpush2.msra.mxu0 0.0
    %589 = vmatprep.subr.mxu0 0.0
    %590 = vmatpush2.msra.mxu0 0.0
    %591 = vmatprep.subr.mxu0 0.0
    %592 = vmatpush2.msra.mxu0 0.0
    %593 = vmatprep.subr.mxu0 0.0
    %594 = vmatpush2.msra.mxu0 0.0
    %595 = vmatprep.subr.mxu0 0.0
    %596 = vmatpush2.msra.mxu0 0.0
    %597 = vmatprep.subr.mxu0 0.0
    %598 = vmatpush2.msra.mxu0 0.0
    %599 = vmatprep.subr.mxu0 0.0
    %600 = vmatpush2.msra.mxu0 0.0
    %601 = vmatprep.subr.mxu0 0.0
    %602 = vmatpush2.msra.mxu0 0.0
    %603 = vmatprep.subr.mxu0 0.0
    %604 = vmatpush2.msra.mxu0 0.0
    %605 = vmatprep.subr.mxu0 0.0
    %606 = vmatpush2.msra.mxu0 0.0
    %607 = vmatprep.subr.mxu0 0.0
    %608 = vmatpush2.msra.mxu0 0.0
    %609 = vmatprep.subr.mxu0 0.0
    %610 = vmatpush2.msra.mxu0 0.0
    %611 = vmatprep.mubr.f32.mxu0 0.0
    %612 = vmatmul.mubr.f32.gmra.mxu0 %v545
    %v613 = vpop.f32.mrf.mxu0
    %v614 = vadd.f32 0.0, %v613
    %v615 = vpop.f32.mrf.mxu0
    %616 = vdwg.mxu0
    %617 = vrot.lane.b32.xlu0 %v159, 64
    %v618 = vpop.permute.xlu0 %617
    %v621 = vsel %vm166, %v532, 0
    %623 = vmatprep.subr.mxu0 0.0
    %624 = vmatpush1.msra.mxu0 0.0
    %625 = vmatprep.subr.mxu0 0.0
    %626 = vmatpush1.msra.mxu0 0.0
    %627 = vmatprep.subr.mxu0 0.0
    %628 = vmatpush1.msra.mxu0 0.0
    %629 = vmatprep.subr.mxu0 0.0
    %630 = vmatpush1.msra.mxu0 0.0
    %631 = vmatprep.subr.mxu0 0.0
    %632 = vmatpush1.msra.mxu0 0.0
    %633 = vmatprep.subr.mxu0 0.0
    %634 = vmatpush1.msra.mxu0 0.0
    %635 = vmatprep.subr.mxu0 0.0
    %636 = vmatpush1.msra.mxu0 0.0
    %637 = vmatprep.subr.mxu0 0.0
    %638 = vmatpush1.msra.mxu0 0.0
    %639 = vmatprep.subr.mxu0 0.0
    %640 = vmatpush1.msra.mxu0 0.0
    %641 = vmatprep.subr.mxu0 0.0
    %642 = vmatpush1.msra.mxu0 0.0
    %643 = vmatprep.subr.mxu0 0.0
    %644 = vmatpush1.msra.mxu0 0.0
    %645 = vmatprep.subr.mxu0 0.0
    %646 = vmatpush1.msra.mxu0 0.0
    %647 = vmatprep.subr.mxu0 0.0
    %648 = vmatpush1.msra.mxu0 0.0
    %649 = vmatprep.subr.mxu0 0.0
    %650 = vmatpush1.msra.mxu0 0.0
    %651 = vmatprep.subr.mxu0 0.0
    %652 = vmatpush1.msra.mxu0 0.0
    %653 = vmatprep.subr.mxu0 0.0
    %654 = vmatpush1.msra.mxu0 %v618
    %655 = vmatprep.subr.mxu0 0.0
    %656 = vmatpush2.msra.mxu0 0.0
    %657 = vmatprep.subr.mxu0 0.0
    %658 = vmatpush2.msra.mxu0 0.0
    %659 = vmatprep.subr.mxu0 0.0
    %660 = vmatpush2.msra.mxu0 0.0
    %661 = vmatprep.subr.mxu0 0.0
    %662 = vmatpush2.msra.mxu0 0.0
    %663 = vmatprep.subr.mxu0 0.0
    %664 = vmatpush2.msra.mxu0 0.0
    %665 = vmatprep.subr.mxu0 0.0
    %666 = vmatpush2.msra.mxu0 0.0
    %667 = vmatprep.subr.mxu0 0.0
    %668 = vmatpush2.msra.mxu0 0.0
    %669 = vmatprep.subr.mxu0 0.0
    %670 = vmatpush2.msra.mxu0 0.0
    %671 = vmatprep.subr.mxu0 0.0
    %672 = vmatpush2.msra.mxu0 0.0
    %673 = vmatprep.subr.mxu0 0.0
    %674 = vmatpush2.msra.mxu0 0.0
    %675 = vmatprep.subr.mxu0 0.0
    %676 = vmatpush2.msra.mxu0 0.0
    %677 = vmatprep.subr.mxu0 0.0
    %678 = vmatpush2.msra.mxu0 0.0
    %679 = vmatprep.subr.mxu0 0.0
    %680 = vmatpush2.msra.mxu0 0.0
    %681 = vmatprep.subr.mxu0 0.0
    %682 = vmatpush2.msra.mxu0 0.0
    %683 = vmatprep.subr.mxu0 0.0
    %684 = vmatpush2.msra.mxu0 0.0
    %685 = vmatprep.subr.mxu0 0.0
    %686 = vmatpush2.msra.mxu0 0.0
    %687 = vmatprep.mubr.f32.mxu0 0.0
    %688 = vmatmul.mubr.f32.gmra.mxu0 %v621
    %v689 = vpop.f32.mrf.mxu0
    %v690 = vadd.f32 0.0, %v689
    %v691 = vpop.f32.mrf.mxu0
    %692 = vdwg.mxu0
    %693 = vrot.lane.b32.xlu0 %v161, 64
    %v694 = vpop.permute.xlu0 %693
    %v697 = vsel %vm166, %v534, 0
    %699 = vmatprep.subr.mxu0 0.0
    %700 = vmatpush1.msra.mxu0 0.0
    %701 = vmatprep.subr.mxu0 0.0
    %702 = vmatpush1.msra.mxu0 0.0
    %703 = vmatprep.subr.mxu0 0.0
    %704 = vmatpush1.msra.mxu0 0.0
    %705 = vmatprep.subr.mxu0 0.0
    %706 = vmatpush1.msra.mxu0 0.0
    %707 = vmatprep.subr.mxu0 0.0
    %708 = vmatpush1.msra.mxu0 0.0
    %709 = vmatprep.subr.mxu0 0.0
    %710 = vmatpush1.msra.mxu0 0.0
    %711 = vmatprep.subr.mxu0 0.0
    %712 = vmatpush1.msra.mxu0 0.0
    %713 = vmatprep.subr.mxu0 0.0
    %714 = vmatpush1.msra.mxu0 0.0
    %715 = vmatprep.subr.mxu0 0.0
    %716 = vmatpush1.msra.mxu0 0.0
    %717 = vmatprep.subr.mxu0 0.0
    %718 = vmatpush1.msra.mxu0 0.0
    %719 = vmatprep.subr.mxu0 0.0
    %720 = vmatpush1.msra.mxu0 0.0
    %721 = vmatprep.subr.mxu0 0.0
    %722 = vmatpush1.msra.mxu0 0.0
    %723 = vmatprep.subr.mxu0 0.0
    %724 = vmatpush1.msra.mxu0 0.0
    %725 = vmatprep.subr.mxu0 0.0
    %726 = vmatpush1.msra.mxu0 0.0
    %727 = vmatprep.subr.mxu0 0.0
    %728 = vmatpush1.msra.mxu0 0.0
    %729 = vmatprep.subr.mxu0 0.0
    %730 = vmatpush1.msra.mxu0 %v694
    %731 = vmatprep.subr.mxu0 0.0
    %732 = vmatpush2.msra.mxu0 0.0
    %733 = vmatprep.subr.mxu0 0.0
    %734 = vmatpush2.msra.mxu0 0.0
    %735 = vmatprep.subr.mxu0 0.0
    %736 = vmatpush2.msra.mxu0 0.0
    %737 = vmatprep.subr.mxu0 0.0
    %738 = vmatpush2.msra.mxu0 0.0
    %739 = vmatprep.subr.mxu0 0.0
    %740 = vmatpush2.msra.mxu0 0.0
    %741 = vmatprep.subr.mxu0 0.0
    %742 = vmatpush2.msra.mxu0 0.0
    %743 = vmatprep.subr.mxu0 0.0
    %744 = vmatpush2.msra.mxu0 0.0
    %745 = vmatprep.subr.mxu0 0.0
    %746 = vmatpush2.msra.mxu0 0.0
    %747 = vmatprep.subr.mxu0 0.0
    %748 = vmatpush2.msra.mxu0 0.0
    %749 = vmatprep.subr.mxu0 0.0
    %750 = vmatpush2.msra.mxu0 0.0
    %751 = vmatprep.subr.mxu0 0.0
    %752 = vmatpush2.msra.mxu0 0.0
    %753 = vmatprep.subr.mxu0 0.0
    %754 = vmatpush2.msra.mxu0 0.0
    %755 = vmatprep.subr.mxu0 0.0
    %756 = vmatpush2.msra.mxu0 0.0
    %757 = vmatprep.subr.mxu0 0.0
    %758 = vmatpush2.msra.mxu0 0.0
    %759 = vmatprep.subr.mxu0 0.0
    %760 = vmatpush2.msra.mxu0 0.0
    %761 = vmatprep.subr.mxu0 0.0
    %762 = vmatpush2.msra.mxu0 0.0
    %763 = vmatprep.mubr.f32.mxu0 0.0
    %764 = vmatmul.mubr.f32.gmra.mxu0 %v697
    %v765 = vpop.f32.mrf.mxu0
    %v766 = vadd.f32 0.0, %v765
    %v767 = vpop.f32.mrf.mxu0
    %768 = vdwg.mxu0
    %769 = vrot.lane.b32.xlu0 %v163, 64
    %v770 = vpop.permute.xlu0 %769
    %v773 = vsel %vm166, %v536, 0
    %775 = vmatprep.subr.mxu0 0.0
    %776 = vmatpush1.msra.mxu0 0.0
    %777 = vmatprep.subr.mxu0 0.0
    %778 = vmatpush1.msra.mxu0 0.0
    %779 = vmatprep.subr.mxu0 0.0
    %780 = vmatpush1.msra.mxu0 0.0
    %781 = vmatprep.subr.mxu0 0.0
    %782 = vmatpush1.msra.mxu0 0.0
    %783 = vmatprep.subr.mxu0 0.0
    %784 = vmatpush1.msra.mxu0 0.0
    %785 = vmatprep.subr.mxu0 0.0
    %786 = vmatpush1.msra.mxu0 0.0
    %787 = vmatprep.subr.mxu0 0.0
    %788 = vmatpush1.msra.mxu0 0.0
    %789 = vmatprep.subr.mxu0 0.0
    %790 = vmatpush1.msra.mxu0 0.0
    %791 = vmatprep.subr.mxu0 0.0
    %792 = vmatpush1.msra.mxu0 0.0
    %793 = vmatprep.subr.mxu0 0.0
    %794 = vmatpush1.msra.mxu0 0.0
    %795 = vmatprep.subr.mxu0 0.0
    %796 = vmatpush1.msra.mxu0 0.0
    %797 = vmatprep.subr.mxu0 0.0
    %798 = vmatpush1.msra.mxu0 0.0
    %799 = vmatprep.subr.mxu0 0.0
    %800 = vmatpush1.msra.mxu0 0.0
    %801 = vmatprep.subr.mxu0 0.0
    %802 = vmatpush1.msra.mxu0 0.0
    %803 = vmatprep.subr.mxu0 0.0
    %804 = vmatpush1.msra.mxu0 0.0
    %805 = vmatprep.subr.mxu0 0.0
    %806 = vmatpush1.msra.mxu0 %v770
    %807 = vmatprep.subr.mxu0 0.0
    %808 = vmatpush2.msra.mxu0 0.0
    %809 = vmatprep.subr.mxu0 0.0
    %810 = vmatpush2.msra.mxu0 0.0
    %811 = vmatprep.subr.mxu0 0.0
    %812 = vmatpush2.msra.mxu0 0.0
    %813 = vmatprep.subr.mxu0 0.0
    %814 = vmatpush2.msra.mxu0 0.0
    %815 = vmatprep.subr.mxu0 0.0
    %816 = vmatpush2.msra.mxu0 0.0
    %817 = vmatprep.subr.mxu0 0.0
    %818 = vmatpush2.msra.mxu0 0.0
    %819 = vmatprep.subr.mxu0 0.0
    %820 = vmatpush2.msra.mxu0 0.0
    %821 = vmatprep.subr.mxu0 0.0
    %822 = vmatpush2.msra.mxu0 0.0
    %823 = vmatprep.subr.mxu0 0.0
    %824 = vmatpush2.msra.mxu0 0.0
    %825 = vmatprep.subr.mxu0 0.0
    %826 = vmatpush2.msra.mxu0 0.0
    %827 = vmatprep.subr.mxu0 0.0
    %828 = vmatpush2.msra.mxu0 0.0
    %829 = vmatprep.subr.mxu0 0.0
    %830 = vmatpush2.msra.mxu0 0.0
    %831 = vmatprep.subr.mxu0 0.0
    %832 = vmatpush2.msra.mxu0 0.0
    %833 = vmatprep.subr.mxu0 0.0
    %834 = vmatpush2.msra.mxu0 0.0
    %835 = vmatprep.subr.mxu0 0.0
    %836 = vmatpush2.msra.mxu0 0.0
    %837 = vmatprep.subr.mxu0 0.0
    %838 = vmatpush2.msra.mxu0 0.0
    %839 = vmatprep.mubr.f32.mxu0 0.0
    %840 = vmatmul.mubr.f32.gmra.mxu0 %v773
    %v841 = vpop.f32.mrf.mxu0
    %v842 = vadd.f32 0.0, %v841
    %v843 = vpop.f32.mrf.mxu0
    %844 = vdwg.mxu0
    %846 = vrot.lane.b32.xlu0 %v690, 8
    %v847 = vpop.permute.xlu0 %846
    %850 = vrot.lane.b32.xlu0 %v766, 16
    %v851 = vpop.permute.xlu0 %850
    %854 = vrot.lane.b32.xlu0 %v842, 24
    %v855 = vpop.permute.xlu0 %854
    %v857 = vsel %vm166, %v614, %v847
    %vm858 = vcmask 130048
    %v859 = vsel %vm858, %v857, %v851
    %vm860 = vcmask 195584
    %v861 = vsel %vm860, %v859, %v855
    %863 = vrot.lane.b32.xlu0 %v156, 32
    %v864 = vpop.permute.xlu0 %863
    %v866 = vmul.f32 %v861, %v864
    %v867 = vld [vmem:[%s7] sm:$0xff]
    %v868 = vld [vmem:[%s7 + $0x8] sm:$0xff]
    %v869 = vld [vmem:[%s7 + $0x10] sm:$0xff]
    %v870 = vld [vmem:[%s7 + $0x18] sm:$0xff]
    %v871 = vld [vmem:[%s8] sm:$0x1]
    %v873 = vlaneseq
    %v874 = vshrl.u32 %v873, 7
    %v875 = vsub.s32 0, %v874
    %v876 = vrot.slane %v871, %v875
    %v879 = vsel %vm36, %v866, 0
    %881 = vmatprep.subr.mxu0 0.0
    %882 = vmatpush1.msra.mxu0 0.0
    %883 = vmatprep.subr.mxu0 0.0
    %884 = vmatpush1.msra.mxu0 0.0
    %885 = vmatprep.subr.mxu0 0.0
    %886 = vmatpush1.msra.mxu0 0.0
    %887 = vmatprep.subr.mxu0 0.0
    %888 = vmatpush1.msra.mxu0 0.0
    %889 = vmatprep.subr.mxu0 0.0
    %890 = vmatpush1.msra.mxu0 0.0
    %891 = vmatprep.subr.mxu0 0.0
    %892 = vmatpush1.msra.mxu0 0.0
    %893 = vmatprep.subr.mxu0 0.0
    %894 = vmatpush1.msra.mxu0 0.0
    %895 = vmatprep.subr.mxu0 0.0
    %896 = vmatpush1.msra.mxu0 0.0
    %897 = vmatprep.subr.mxu0 0.0
    %898 = vmatpush1.msra.mxu0 0.0
    %899 = vmatprep.subr.mxu0 0.0
    %900 = vmatpush1.msra.mxu0 0.0
    %901 = vmatprep.subr.mxu0 0.0
    %902 = vmatpush1.msra.mxu0 0.0
    %903 = vmatprep.subr.mxu0 0.0
    %904 = vmatpush1.msra.mxu0 0.0
    %905 = vmatprep.subr.mxu0 0.0
    %906 = vmatpush1.msra.mxu0 %v870
    %907 = vmatprep.subr.mxu0 0.0
    %908 = vmatpush1.msra.mxu0 %v869
    %909 = vmatprep.subr.mxu0 0.0
    %910 = vmatpush1.msra.mxu0 %v868
    %911 = vmatprep.subr.mxu0 0.0
    %912 = vmatpush1.msra.mxu0 %v867
    %913 = vmatprep.subr.mxu0 0.0
    %914 = vmatpush2.msra.mxu0 0.0
    %915 = vmatprep.subr.mxu0 0.0
    %916 = vmatpush2.msra.mxu0 0.0
    %917 = vmatprep.subr.mxu0 0.0
    %918 = vmatpush2.msra.mxu0 0.0
    %919 = vmatprep.subr.mxu0 0.0
    %920 = vmatpush2.msra.mxu0 0.0
    %921 = vmatprep.subr.mxu0 0.0
    %922 = vmatpush2.msra.mxu0 0.0
    %923 = vmatprep.subr.mxu0 0.0
    %924 = vmatpush2.msra.mxu0 0.0
    %925 = vmatprep.subr.mxu0 0.0
    %926 = vmatpush2.msra.mxu0 0.0
    %927 = vmatprep.subr.mxu0 0.0
    %928 = vmatpush2.msra.mxu0 0.0
    %929 = vmatprep.subr.mxu0 0.0
    %930 = vmatpush2.msra.mxu0 0.0
    %931 = vmatprep.subr.mxu0 0.0
    %932 = vmatpush2.msra.mxu0 0.0
    %933 = vmatprep.subr.mxu0 0.0
    %934 = vmatpush2.msra.mxu0 0.0
    %935 = vmatprep.subr.mxu0 0.0
    %936 = vmatpush2.msra.mxu0 0.0
    %937 = vmatprep.subr.mxu0 0.0
    %938 = vmatpush2.msra.mxu0 0.0
    %939 = vmatprep.subr.mxu0 0.0
    %940 = vmatpush2.msra.mxu0 0.0
    %941 = vmatprep.subr.mxu0 0.0
    %942 = vmatpush2.msra.mxu0 0.0
    %943 = vmatprep.subr.mxu0 0.0
    %944 = vmatpush2.msra.mxu0 0.0
    %945 = vmatprep.mubr.f32.mxu0 0.0
    %946 = vmatmul.mubr.f32.gmra.mxu0 %v879
    %v947 = vpop.f32.mrf.mxu0
    %v948 = vadd.f32 %v876, %v947
    %v949 = vpop.f32.mrf.mxu0
    %950 = vdwg.mxu0
    %v951 = vadd.f32 %v35, %v948
    %952 = vst.msk [vmem:[%s9] sm:$0xff] %vm36, %v951
    // Predicated region
    $region38: #{local_transform_forward.20} parent=1 // pred_check
      _
    $region39: #{local_transform_forward.20} parent=1 // pred_check_branch
      %954 = sbr.rel (0) target = $region41
    $region40: #{local_transform_forward.20} parent=1 // pred_region
      _
    $region41: #{local_transform_forward.20} parent=1 // pred_fallthru
      _
    // Predicated region
    $region42: #{local_transform_forward.20} parent=1 // pred_check
      _
    $region43: #{local_transform_forward.20} parent=1 // pred_check_branch
      %956 = sbr.rel (0) target = $region45
    $region44: #{local_transform_forward.20} parent=1 // pred_region
      %s958 = ssub.s32 512, 512
      %959 = vsyncadd [#allocation3], %s958
      %s960 = sshll.u32 [#allocation2], 4
      %s961 = int_to_ptr.vmem [resolvable:$true] %s960
      %966 = dma.vmem_to_hbm [thread:$0]  %s961, 512, %s10, [#allocation3], 128, 128, 8
    $region45: #{local_transform_forward.20} parent=1 // pred_fallthru
      _
    // Predicated region
    $region46: #{local_transform_forward.20} parent=1 // pred_check
      _
    $region47: #{local_transform_forward.20} parent=1 // pred_check_branch
      %968 = sbr.rel (0) target = $region49
    $region48: #{local_transform_forward.20} parent=1 // pred_region
      _
    $region49: #{local_transform_forward.20} parent=1 // pred_fallthru
      _
    // Predicated region
    $region50: #{local_transform_forward.20} parent=1 // pred_check
      _
    $region51: #{local_transform_forward.20} parent=1 // pred_check_branch
      %970 = sbr.rel (0) target = $region53
    $region52: #{local_transform_forward.20} parent=1 // pred_region
      %971 = dma.done [#allocation3], 512
    $region53: #{local_transform_forward.20} parent=1 // pred_fallthru
      _
    %972 = vsyncpa [#allocation3], 1

// kernel: local_transform_forward.25
$region0: #{local_transform_forward.25}
  #allocation0 [shape = 'u32[]', space=smem, size = 0x4, offset = 0x4, fixed_abs, tag = 'smem constant byte address 0x4 - core index']
  #allocation1 [shape = 'u32[144,128]{1,0:T(1,128)}', space=vmem, size = 0x12000, scoped, tag = 'internal scratch']
  %s0 = inlined_call_operand.vmem [shape: f32[16,32], index: 0, kind: input, shape index: {}]
  %s1 = inlined_call_operand.vmem [shape: f32[32,64], index: 1, kind: input, shape index: {}]
  %s2 = inlined_call_operand.vmem [shape: f32[1,64], index: 2, kind: input, shape index: {}]
  %s3 = inlined_call_operand.vmem [shape: f32[64,32], index: 3, kind: input, shape index: {}]
  %s4 = inlined_call_operand.vmem [shape: f32[1,32], index: 4, kind: input, shape index: {}]
  %s5 = inlined_call_operand.vmem [shape: f32[1,32], index: 5, kind: input, shape index: {}]
  %s6 = inlined_call_operand.vmem [shape: f32[1,32], index: 6, kind: input, shape index: {}]
  %s7 = inlined_call_operand.vmem [shape: f32[16,32], index: 7, kind: output, shape index: {}]
  %s8 = sld [smem:[#allocation0]]
  $region38: #{local_transform_forward.25} parent=0
    _
  %s10 = ssub.s32 1, %s8
  %s11 = scalar_select 0, %s10, %s8
  // Predicated region
  $region2: #{local_transform_forward.25} parent=0 // pred_check
    _
  $region3: #{local_transform_forward.25} parent=0 // pred_check_branch
    %13 = sbr.rel (0) target = $region5
  $region4: #{local_transform_forward.25} parent=0 // pred_region
    _
  $region5: #{local_transform_forward.25} parent=0 // pred_fallthru
    _
  // Predicated region
  $region6: #{local_transform_forward.25} parent=0 // pred_check
    _
  $region7: #{local_transform_forward.25} parent=0 // pred_check_branch
    %15 = sbr.rel (0) target = $region9
  $region8: #{local_transform_forward.25} parent=0 // pred_region
    _
  $region9: #{local_transform_forward.25} parent=0 // pred_fallthru
    _
  // Predicated region
  $region10: #{local_transform_forward.25} parent=0 // pred_check
    _
  $region11: #{local_transform_forward.25} parent=0 // pred_check_branch
    %17 = sbr.rel (0) target = $region13
  $region12: #{local_transform_forward.25} parent=0 // pred_region
    _
  $region13: #{local_transform_forward.25} parent=0 // pred_fallthru
    _
  // Predicated region
  $region14: #{local_transform_forward.25} parent=0 // pred_check
    _
  $region15: #{local_transform_forward.25} parent=0 // pred_check_branch
    %19 = sbr.rel (0) target = $region17
  $region16: #{local_transform_forward.25} parent=0 // pred_region
    _
  $region17: #{local_transform_forward.25} parent=0 // pred_fallthru
    _
  // Predicated region
  $region18: #{local_transform_forward.25} parent=0 // pred_check
    _
  $region19: #{local_transform_forward.25} parent=0 // pred_check_branch
    %21 = sbr.rel (0) target = $region21
  $region20: #{local_transform_forward.25} parent=0 // pred_region
    _
  $region21: #{local_transform_forward.25} parent=0 // pred_fallthru
    _
  // Predicated region
  $region22: #{local_transform_forward.25} parent=0 // pred_check
    _
  $region23: #{local_transform_forward.25} parent=0 // pred_check_branch
    %23 = sbr.rel (0) target = $region25
  $region24: #{local_transform_forward.25} parent=0 // pred_region
    _
  $region25: #{local_transform_forward.25} parent=0 // pred_fallthru
    _
  // Predicated region
  $region26: #{local_transform_forward.25} parent=0 // pred_check
    _
  $region27: #{local_transform_forward.25} parent=0 // pred_check_branch
    %25 = sbr.rel (0) target = $region29
  $region28: #{local_transform_forward.25} parent=0 // pred_region
    _
  $region29: #{local_transform_forward.25} parent=0 // pred_fallthru
    _
  %v26 = vld [vmem:[%s0] sm:$0xff]
  %v27 = vld [vmem:[%s0 + $0x8] sm:$0xff]
  %v28 = vld [vmem:[%s1] sm:$0xff]
  %v29 = vld [vmem:[%s1 + $0x8] sm:$0xff]
  %v30 = vld [vmem:[%s1 + $0x10] sm:$0xff]
  %v31 = vld [vmem:[%s1 + $0x18] sm:$0xff]
  %v32 = vld [vmem:[%s2] sm:$0x1]
  %v34 = vlaneseq
  %v35 = vshrl.u32 %v34, 7
  %v36 = vsub.s32 0, %v35
  %v37 = vrot.slane %v32, %v36
  %vm39 = vcmask 261120
  %v41 = vsel %vm39, %v26, 0
  %v44 = vsel %vm39, %v27, 0
  %46 = vmatprep.subr.mxu0 0.0
  %47 = vmatpush1.msra.mxu0 0.0
  %48 = vmatprep.subr.mxu0 0.0
  %49 = vmatpush1.msra.mxu0 0.0
  %50 = vmatprep.subr.mxu0 0.0
  %51 = vmatpush1.msra.mxu0 0.0
  %52 = vmatprep.subr.mxu0 0.0
  %53 = vmatpush1.msra.mxu0 0.0
  %54 = vmatprep.subr.mxu0 0.0
  %55 = vmatpush1.msra.mxu0 0.0
  %56 = vmatprep.subr.mxu0 0.0
  %57 = vmatpush1.msra.mxu0 0.0
  %58 = vmatprep.subr.mxu0 0.0
  %59 = vmatpush1.msra.mxu0 0.0
  %60 = vmatprep.subr.mxu0 0.0
  %61 = vmatpush1.msra.mxu0 0.0
  %62 = vmatprep.subr.mxu0 0.0
  %63 = vmatpush1.msra.mxu0 0.0
  %64 = vmatprep.subr.mxu0 0.0
  %65 = vmatpush1.msra.mxu0 0.0
  %66 = vmatprep.subr.mxu0 0.0
  %67 = vmatpush1.msra.mxu0 0.0
  %68 = vmatprep.subr.mxu0 0.0
  %69 = vmatpush1.msra.mxu0 0.0
  %70 = vmatprep.subr.mxu0 0.0
  %71 = vmatpush1.msra.mxu0 %v31
  %72 = vmatprep.subr.mxu0 0.0
  %73 = vmatpush1.msra.mxu0 %v30
  %74 = vmatprep.subr.mxu0 0.0
  %75 = vmatpush1.msra.mxu0 %v29
  %76 = vmatprep.subr.mxu0 0.0
  %77 = vmatpush1.msra.mxu0 %v28
  %78 = vmatprep.subr.mxu0 0.0
  %79 = vmatpush2.msra.mxu0 0.0
  %80 = vmatprep.subr.mxu0 0.0
  %81 = vmatpush2.msra.mxu0 0.0
  %82 = vmatprep.subr.mxu0 0.0
  %83 = vmatpush2.msra.mxu0 0.0
  %84 = vmatprep.subr.mxu0 0.0
  %85 = vmatpush2.msra.mxu0 0.0
  %86 = vmatprep.subr.mxu0 0.0
  %87 = vmatpush2.msra.mxu0 0.0
  %88 = vmatprep.subr.mxu0 0.0
  %89 = vmatpush2.msra.mxu0 0.0
  %90 = vmatprep.subr.mxu0 0.0
  %91 = vmatpush2.msra.mxu0 0.0
  %92 = vmatprep.subr.mxu0 0.0
  %93 = vmatpush2.msra.mxu0 0.0
  %94 = vmatprep.subr.mxu0 0.0
  %95 = vmatpush2.msra.mxu0 0.0
  %96 = vmatprep.subr.mxu0 0.0
  %97 = vmatpush2.msra.mxu0 0.0
  %98 = vmatprep.subr.mxu0 0.0
  %99 = vmatpush2.msra.mxu0 0.0
  %100 = vmatprep.subr.mxu0 0.0
  %101 = vmatpush2.msra.mxu0 0.0
  %102 = vmatprep.subr.mxu0 0.0
  %103 = vmatpush2.msra.mxu0 0.0
  %104 = vmatprep.subr.mxu0 0.0
  %105 = vmatpush2.msra.mxu0 0.0
  %106 = vmatprep.subr.mxu0 0.0
  %107 = vmatpush2.msra.mxu0 0.0
  %108 = vmatprep.subr.mxu0 0.0
  %109 = vmatpush2.msra.mxu0 0.0
  %110 = vmatprep.mubr.f32.mxu0 0.0
  %111 = vmatmul.mubr.f32.gmra.mxu0 %v41
  %v112 = vpop.f32.mrf.mxu0
  %v113 = vadd.f32 %v37, %v112
  %v114 = vpop.f32.mrf.mxu0
  %115 = vmatprep.mubr.f32.mxu0 0.0
  %116 = vmatmul.mubr.f32.gmra.mxu0 %v44
  %v117 = vpop.f32.mrf.mxu0
  %v118 = vadd.f32 %v37, %v117
  %v119 = vpop.f32.mrf.mxu0
  %120 = vdwg.mxu0
  %v121 = vmul.f32 %v113, %v113
  %v122 = vmul.f32 %v118, %v118
  %v123 = vmul.f32 %v113, %v121
  %v124 = vmul.f32 %v118, %v122
  %v125 = vmul.f32 %v123, 0.044715
  %v126 = vmul.f32 %v124, 0.044715
  %v127 = vadd.f32 %v113, %v125
  %v128 = vadd.f32 %v118, %v126
  %v129 = vmul.f32 %v127, 0.7978846
  %v130 = vmul.f32 %v128, 0.7978846
  %v131 = vtanh.pop %v129
  %v132 = vtanh.pop %v130
  %v133 = vadd.f32 %v131, 1.0
  %v134 = vadd.f32 %v132, 1.0
  %v135 = vmul.f32 %v133, 0.5
  %v136 = vmul.f32 %v134, 0.5
  %v137 = vmul.f32 %v113, %v135
  %v138 = vmul.f32 %v118, %v136
  %v139 = vld [vmem:[%s3] sm:$0xff]
  %v140 = vld [vmem:[%s3 + $0x8] sm:$0xff]
  %v141 = vld [vmem:[%s3 + $0x10] sm:$0xff]
  %v142 = vld [vmem:[%s3 + $0x18] sm:$0xff]
  %v143 = vld [vmem:[%s3 + $0x20] sm:$0xff]
  %v144 = vld [vmem:[%s3 + $0x28] sm:$0xff]
  %v145 = vld [vmem:[%s3 + $0x30] sm:$0xff]
  %v146 = vld [vmem:[%s3 + $0x38] sm:$0xff]
  %v147 = vld [vmem:[%s4] sm:$0x1]
  %v149 = vlaneseq
  %v150 = vshrl.u32 %v149, 7
  %v151 = vsub.s32 0, %v150
  %v152 = vrot.slane %v147, %v151
  %vm154 = vcmask 523264
  %v156 = vsel %vm154, %v137, 0
  %v159 = vsel %vm154, %v138, 0
  %161 = vmatprep.subr.mxu0 0.0
  %162 = vmatpush1.msra.mxu0 0.0
  %163 = vmatprep.subr.mxu0 0.0
  %164 = vmatpush1.msra.mxu0 0.0
  %165 = vmatprep.subr.mxu0 0.0
  %166 = vmatpush1.msra.mxu0 0.0
  %167 = vmatprep.subr.mxu0 0.0
  %168 = vmatpush1.msra.mxu0 0.0
  %169 = vmatprep.subr.mxu0 0.0
  %170 = vmatpush1.msra.mxu0 0.0
  %171 = vmatprep.subr.mxu0 0.0
  %172 = vmatpush1.msra.mxu0 0.0
  %173 = vmatprep.subr.mxu0 0.0
  %174 = vmatpush1.msra.mxu0 0.0
  %175 = vmatprep.subr.mxu0 0.0
  %176 = vmatpush1.msra.mxu0 0.0
  %177 = vmatprep.subr.mxu0 0.0
  %178 = vmatpush1.msra.mxu0 %v146
  %179 = vmatprep.subr.mxu0 0.0
  %180 = vmatpush1.msra.mxu0 %v145
  %181 = vmatprep.subr.mxu0 0.0
  %182 = vmatpush1.msra.mxu0 %v144
  %183 = vmatprep.subr.mxu0 0.0
  %184 = vmatpush1.msra.mxu0 %v143
  %185 = vmatprep.subr.mxu0 0.0
  %186 = vmatpush1.msra.mxu0 %v142
  %187 = vmatprep.subr.mxu0 0.0
  %188 = vmatpush1.msra.mxu0 %v141
  %189 = vmatprep.subr.mxu0 0.0
  %190 = vmatpush1.msra.mxu0 %v140
  %191 = vmatprep.subr.mxu0 0.0
  %192 = vmatpush1.msra.mxu0 %v139
  %193 = vmatprep.subr.mxu0 0.0
  %194 = vmatpush2.msra.mxu0 0.0
  %195 = vmatprep.subr.mxu0 0.0
  %196 = vmatpush2.msra.mxu0 0.0
  %197 = vmatprep.subr.mxu0 0.0
  %198 = vmatpush2.msra.mxu0 0.0
  %199 = vmatprep.subr.mxu0 0.0
  %200 = vmatpush2.msra.mxu0 0.0
  %201 = vmatprep.subr.mxu0 0.0
  %202 = vmatpush2.msra.mxu0 0.0
  %203 = vmatprep.subr.mxu0 0.0
  %204 = vmatpush2.msra.mxu0 0.0
  %205 = vmatprep.subr.mxu0 0.0
  %206 = vmatpush2.msra.mxu0 0.0
  %207 = vmatprep.subr.mxu0 0.0
  %208 = vmatpush2.msra.mxu0 0.0
  %209 = vmatprep.subr.mxu0 0.0
  %210 = vmatpush2.msra.mxu0 0.0
  %211 = vmatprep.subr.mxu0 0.0
  %212 = vmatpush2.msra.mxu0 0.0
  %213 = vmatprep.subr.mxu0 0.0
  %214 = vmatpush2.msra.mxu0 0.0
  %215 = vmatprep.subr.mxu0 0.0
  %216 = vmatpush2.msra.mxu0 0.0
  %217 = vmatprep.subr.mxu0 0.0
  %218 = vmatpush2.msra.mxu0 0.0
  %219 = vmatprep.subr.mxu0 0.0
  %220 = vmatpush2.msra.mxu0 0.0
  %221 = vmatprep.subr.mxu0 0.0
  %222 = vmatpush2.msra.mxu0 0.0
  %223 = vmatprep.subr.mxu0 0.0
  %224 = vmatpush2.msra.mxu0 0.0
  %225 = vmatprep.mubr.f32.mxu0 0.0
  %226 = vmatmul.mubr.f32.gmra.mxu0 %v156
  %v227 = vpop.f32.mrf.mxu0
  %v228 = vadd.f32 %v152, %v227
  %v229 = vpop.f32.mrf.mxu0
  %230 = vmatprep.mubr.f32.mxu0 0.0
  %231 = vmatmul.mubr.f32.gmra.mxu0 %v159
  %v232 = vpop.f32.mrf.mxu0
  %v233 = vadd.f32 %v152, %v232
  %v234 = vpop.f32.mrf.mxu0
  %235 = vdwg.mxu0
  %v236 = vadd.f32 %v26, %v228
  %v237 = vadd.f32 %v27, %v233
  %v238 = vsel %vm39, %v236, 0.0
  %239 = vadd.xlane.f32.xlu0 %v238
  %v240 = vpop.xlane.xlu0 %239
  %v241 = vsel %vm39, %v237, 0.0
  %242 = vadd.xlane.f32.xlu0 %v241
  %v243 = vpop.xlane.xlu0 %242
  %v244 = vrcp.pop 32.0
  %v245 = vmul.f32 %v240, %v244
  %v246 = vmul.f32 %v243, %v244
  %v247 = vsub.f32 %v236, %v245
  %v248 = vsub.f32 %v237, %v246
  %v249 = vmul.f32 %v247, %v247
  %v250 = vmul.f32 %v248, %v248
  %v251 = vsel %vm39, %v249, 0.0
  %252 = vadd.xlane.f32.xlu0 %v251
  %v253 = vpop.xlane.xlu0 %252
  %v254 = vsel %vm39, %v250, 0.0
  %255 = vadd.xlane.f32.xlu0 %v254
  %v256 = vpop.xlane.xlu0 %255
  %v257 = vmul.f32 %v253, %v244
  %v258 = vmul.f32 %v256, %v244
  %v259 = vadd.f32 %v257, 1e-05
  %v260 = vadd.f32 %v258, 1e-05
  %v261 = vrsqrt.pop %v259
  %v262 = vrsqrt.pop %v260
  %v263 = vmul.f32 %v247, %v261
  %v264 = vmul.f32 %v248, %v262
  %v265 = vld [vmem:[%s5] sm:$0x1]
  %v267 = vlaneseq
  %v268 = vshrl.u32 %v267, 7
  %v269 = vsub.s32 0, %v268
  %v270 = vrot.slane %v265, %v269
  %v272 = vmul.f32 %v263, %v270
  %v273 = vmul.f32 %v264, %v270
  %v274 = vld [vmem:[%s6] sm:$0x1]
  %v276 = vlaneseq
  %v277 = vshrl.u32 %v276, 7
  %v278 = vsub.s32 0, %v277
  %v279 = vrot.slane %v274, %v278
  %v281 = vadd.f32 %v272, %v279
  %v282 = vadd.f32 %v273, %v279
  %283 = vst.msk [vmem:[%s7] sm:$0xff] %vm39, %v281
  %284 = vst.msk [vmem:[%s7 + $0x8] sm:$0xff] %vm39, %v282
  // Predicated region
  $region30: #{local_transform_forward.25} parent=0 // pred_check
    _
  $region31: #{local_transform_forward.25} parent=0 // pred_check_branch
    %286 = sbr.rel (0) target = $region33
  $region32: #{local_transform_forward.25} parent=0 // pred_region
    _
  $region33: #{local_transform_forward.25} parent=0 // pred_fallthru
    _
  // Predicated region
  $region34: #{local_transform_forward.25} parent=0 // pred_check
    _
  $region35: #{local_transform_forward.25} parent=0 // pred_check_branch
    %288 = sbr.rel (0) target = $region37
  $region36: #{local_transform_forward.25} parent=0 // pred_region
    _
  $region37: #{local_transform_forward.25} parent=0 // pred_fallthru
    _

// kernel: local_transform_forward.26
$region0: #{local_transform_forward.26}
  #allocation0 [shape = 'u32[]', space=smem, size = 0x4, offset = 0x4, fixed_abs, tag = 'smem constant byte address 0x4 - core index']
  #allocation1 [shape = 'u32[144,128]{1,0:T(1,128)}', space=vmem, size = 0x12000, scoped, tag = 'internal scratch']
  %s0 = inlined_call_operand.vmem [shape: f32[8,32], index: 0, kind: input, shape index: {}]
  %s1 = inlined_call_operand.vmem [shape: f32[32,32], index: 1, kind: input, shape index: {}]
  %s2 = inlined_call_operand.vmem [shape: f32[1,32], index: 2, kind: input, shape index: {}]
  %s3 = inlined_call_operand.vmem [shape: f32[32,7], index: 3, kind: input, shape index: {}]
  %s4 = inlined_call_operand.vmem [shape: f32[1,7], index: 4, kind: input, shape index: {}]
  %s5 = inlined_call_operand.hbm [shape: f32[8,7], index: 5, kind: output, shape index: {}]
  %s6 = sld [smem:[#allocation0]]
  $region30: #{local_transform_forward.26} parent=0
    _
  %s8 = ssub.s32 1, %s6
  %s9 = scalar_select 0, %s8, %s6
  $region1: #{local_transform_forward.26} parent=0
    #allocation2 [shape = 'u8[4096]{0}', space=vmem, size = 0x1000, scoped, tag = 'output window, operand 0, single buffered']
    #allocation3 [shape = 's32[1]{0}', space=sflag, size = 0x4, scoped, tag = 'scoped memory for local_transform_forward.26']
    %10 = vsyncpa [#allocation3], 0
    // Predicated region
    $region2: #{local_transform_forward.26} parent=1 // pred_check
      _
    $region3: #{local_transform_forward.26} parent=1 // pred_check_branch
      %12 = sbr.rel (0) target = $region5
    $region4: #{local_transform_forward.26} parent=1 // pred_region
      _
    $region5: #{local_transform_forward.26} parent=1 // pred_fallthru
      _
    // Predicated region
    $region6: #{local_transform_forward.26} parent=1 // pred_check
      _
    $region7: #{local_transform_forward.26} parent=1 // pred_check_branch
      %14 = sbr.rel (0) target = $region9
    $region8: #{local_transform_forward.26} parent=1 // pred_region
      _
    $region9: #{local_transform_forward.26} parent=1 // pred_fallthru
      _
    // Predicated region
    $region10: #{local_transform_forward.26} parent=1 // pred_check
      _
    $region11: #{local_transform_forward.26} parent=1 // pred_check_branch
      %16 = sbr.rel (0) target = $region13
    $region12: #{local_transform_forward.26} parent=1 // pred_region
      _
    $region13: #{local_transform_forward.26} parent=1 // pred_fallthru
      _
    // Predicated region
    $region14: #{local_transform_forward.26} parent=1 // pred_check
      _
    $region15: #{local_transform_forward.26} parent=1 // pred_check_branch
      %18 = sbr.rel (0) target = $region17
    $region16: #{local_transform_forward.26} parent=1 // pred_region
      _
    $region17: #{local_transform_forward.26} parent=1 // pred_fallthru
      _
    // Predicated region
    $region18: #{local_transform_forward.26} parent=1 // pred_check
      _
    $region19: #{local_transform_forward.26} parent=1 // pred_check_branch
      %20 = sbr.rel (0) target = $region21
    $region20: #{local_transform_forward.26} parent=1 // pred_region
      _
    $region21: #{local_transform_forward.26} parent=1 // pred_fallthru
      _
    %v21 = vld [vmem:[%s0] sm:$0xff]
    %v22 = vld [vmem:[%s1] sm:$0xff]
    %v23 = vld [vmem:[%s1 + $0x8] sm:$0xff]
    %v24 = vld [vmem:[%s1 + $0x10] sm:$0xff]
    %v25 = vld [vmem:[%s1 + $0x18] sm:$0xff]
    %v26 = vld [vmem:[%s2] sm:$0x1]
    %v28 = vlaneseq
    %v29 = vshrl.u32 %v28, 7
    %v30 = vsub.s32 0, %v29
    %v31 = vrot.slane %v26, %v30
    %vm33 = vcmask 261120
    %v35 = vsel %vm33, %v21, 0
    %37 = vmatprep.subr.mxu0 0.0
    %38 = vmatpush1.msra.mxu0 0.0
    %39 = vmatprep.subr.mxu0 0.0
    %40 = vmatpush1.msra.mxu0 0.0
    %41 = vmatprep.subr.mxu0 0.0
    %42 = vmatpush1.msra.mxu0 0.0
    %43 = vmatprep.subr.mxu0 0.0
    %44 = vmatpush1.msra.mxu0 0.0
    %45 = vmatprep.subr.mxu0 0.0
    %46 = vmatpush1.msra.mxu0 0.0
    %47 = vmatprep.subr.mxu0 0.0
    %48 = vmatpush1.msra.mxu0 0.0
    %49 = vmatprep.subr.mxu0 0.0
    %50 = vmatpush1.msra.mxu0 0.0
    %51 = vmatprep.subr.mxu0 0.0
    %52 = vmatpush1.msra.mxu0 0.0
    %53 = vmatprep.subr.mxu0 0.0
    %54 = vmatpush1.msra.mxu0 0.0
    %55 = vmatprep.subr.mxu0 0.0
    %56 = vmatpush1.msra.mxu0 0.0
    %57 = vmatprep.subr.mxu0 0.0
    %58 = vmatpush1.msra.mxu0 0.0
    %59 = vmatprep.subr.mxu0 0.0
    %60 = vmatpush1.msra.mxu0 0.0
    %61 = vmatprep.subr.mxu0 0.0
    %62 = vmatpush1.msra.mxu0 %v25
    %63 = vmatprep.subr.mxu0 0.0
    %64 = vmatpush1.msra.mxu0 %v24
    %65 = vmatprep.subr.mxu0 0.0
    %66 = vmatpush1.msra.mxu0 %v23
    %67 = vmatprep.subr.mxu0 0.0
    %68 = vmatpush1.msra.mxu0 %v22
    %69 = vmatprep.subr.mxu0 0.0
    %70 = vmatpush2.msra.mxu0 0.0
    %71 = vmatprep.subr.mxu0 0.0
    %72 = vmatpush2.msra.mxu0 0.0
    %73 = vmatprep.subr.mxu0 0.0
    %74 = vmatpush2.msra.mxu0 0.0
    %75 = vmatprep.subr.mxu0 0.0
    %76 = vmatpush2.msra.mxu0 0.0
    %77 = vmatprep.subr.mxu0 0.0
    %78 = vmatpush2.msra.mxu0 0.0
    %79 = vmatprep.subr.mxu0 0.0
    %80 = vmatpush2.msra.mxu0 0.0
    %81 = vmatprep.subr.mxu0 0.0
    %82 = vmatpush2.msra.mxu0 0.0
    %83 = vmatprep.subr.mxu0 0.0
    %84 = vmatpush2.msra.mxu0 0.0
    %85 = vmatprep.subr.mxu0 0.0
    %86 = vmatpush2.msra.mxu0 0.0
    %87 = vmatprep.subr.mxu0 0.0
    %88 = vmatpush2.msra.mxu0 0.0
    %89 = vmatprep.subr.mxu0 0.0
    %90 = vmatpush2.msra.mxu0 0.0
    %91 = vmatprep.subr.mxu0 0.0
    %92 = vmatpush2.msra.mxu0 0.0
    %93 = vmatprep.subr.mxu0 0.0
    %94 = vmatpush2.msra.mxu0 0.0
    %95 = vmatprep.subr.mxu0 0.0
    %96 = vmatpush2.msra.mxu0 0.0
    %97 = vmatprep.subr.mxu0 0.0
    %98 = vmatpush2.msra.mxu0 0.0
    %99 = vmatprep.subr.mxu0 0.0
    %100 = vmatpush2.msra.mxu0 0.0
    %101 = vmatprep.mubr.f32.mxu0 0.0
    %102 = vmatmul.mubr.f32.gmra.mxu0 %v35
    %v103 = vpop.f32.mrf.mxu0
    %v104 = vadd.f32 %v31, %v103
    %v105 = vpop.f32.mrf.mxu0
    %106 = vdwg.mxu0
    %v107 = vmul.f32 %v104, %v104
    %v108 = vmul.f32 %v104, %v107
    %v109 = vmul.f32 %v108, 0.044715
    %v110 = vadd.f32 %v104, %v109
    %v111 = vmul.f32 %v110, 0.7978846
    %v112 = vtanh.pop %v111
    %v113 = vadd.f32 %v112, 1.0
    %v114 = vmul.f32 %v113, 0.5
    %v115 = vmul.f32 %v104, %v114
    %v116 = vld [vmem:[%s3] sm:$0xff]
    %v117 = vld [vmem:[%s3 + $0x8] sm:$0xff]
    %v118 = vld [vmem:[%s3 + $0x10] sm:$0xff]
    %v119 = vld [vmem:[%s3 + $0x18] sm:$0xff]
    %v120 = vld [vmem:[%s4] sm:$0x1]
    %v122 = vlaneseq
    %v123 = vshrl.u32 %v122, 7
    %v124 = vsub.s32 0, %v123
    %v125 = vrot.slane %v120, %v124
    %v128 = vsel %vm33, %v115, 0
    %130 = vmatprep.subr.mxu0 0.0
    %131 = vmatpush1.msra.mxu0 0.0
    %132 = vmatprep.subr.mxu0 0.0
    %133 = vmatpush1.msra.mxu0 0.0
    %134 = vmatprep.subr.mxu0 0.0
    %135 = vmatpush1.msra.mxu0 0.0
    %136 = vmatprep.subr.mxu0 0.0
    %137 = vmatpush1.msra.mxu0 0.0
    %138 = vmatprep.subr.mxu0 0.0
    %139 = vmatpush1.msra.mxu0 0.0
    %140 = vmatprep.subr.mxu0 0.0
    %141 = vmatpush1.msra.mxu0 0.0
    %142 = vmatprep.subr.mxu0 0.0
    %143 = vmatpush1.msra.mxu0 0.0
    %144 = vmatprep.subr.mxu0 0.0
    %145 = vmatpush1.msra.mxu0 0.0
    %146 = vmatprep.subr.mxu0 0.0
    %147 = vmatpush1.msra.mxu0 0.0
    %148 = vmatprep.subr.mxu0 0.0
    %149 = vmatpush1.msra.mxu0 0.0
    %150 = vmatprep.subr.mxu0 0.0
    %151 = vmatpush1.msra.mxu0 0.0
    %152 = vmatprep.subr.mxu0 0.0
    %153 = vmatpush1.msra.mxu0 0.0
    %154 = vmatprep.subr.mxu0 0.0
    %155 = vmatpush1.msra.mxu0 %v119
    %156 = vmatprep.subr.mxu0 0.0
    %157 = vmatpush1.msra.mxu0 %v118
    %158 = vmatprep.subr.mxu0 0.0
    %159 = vmatpush1.msra.mxu0 %v117
    %160 = vmatprep.subr.mxu0 0.0
    %161 = vmatpush1.msra.mxu0 %v116
    %162 = vmatprep.subr.mxu0 0.0
    %163 = vmatpush2.msra.mxu0 0.0
    %164 = vmatprep.subr.mxu0 0.0
    %165 = vmatpush2.msra.mxu0 0.0
    %166 = vmatprep.subr.mxu0 0.0
    %167 = vmatpush2.msra.mxu0 0.0
    %168 = vmatprep.subr.mxu0 0.0
    %169 = vmatpush2.msra.mxu0 0.0
    %170 = vmatprep.subr.mxu0 0.0
    %171 = vmatpush2.msra.mxu0 0.0
    %172 = vmatprep.subr.mxu0 0.0
    %173 = vmatpush2.msra.mxu0 0.0
    %174 = vmatprep.subr.mxu0 0.0
    %175 = vmatpush2.msra.mxu0 0.0
    %176 = vmatprep.subr.mxu0 0.0
    %177 = vmatpush2.msra.mxu0 0.0
    %178 = vmatprep.subr.mxu0 0.0
    %179 = vmatpush2.msra.mxu0 0.0
    %180 = vmatprep.subr.mxu0 0.0
    %181 = vmatpush2.msra.mxu0 0.0
    %182 = vmatprep.subr.mxu0 0.0
    %183 = vmatpush2.msra.mxu0 0.0
    %184 = vmatprep.subr.mxu0 0.0
    %185 = vmatpush2.msra.mxu0 0.0
    %186 = vmatprep.subr.mxu0 0.0
    %187 = vmatpush2.msra.mxu0 0.0
    %188 = vmatprep.subr.mxu0 0.0
    %189 = vmatpush2.msra.mxu0 0.0
    %190 = vmatprep.subr.mxu0 0.0
    %191 = vmatpush2.msra.mxu0 0.0
    %192 = vmatprep.subr.mxu0 0.0
    %193 = vmatpush2.msra.mxu0 0.0
    %194 = vmatprep.mubr.f32.mxu0 0.0
    %195 = vmatmul.mubr.f32.gmra.mxu0 %v128
    %v196 = vpop.f32.mrf.mxu0
    %v197 = vadd.f32 %v125, %v196
    %v198 = vpop.f32.mrf.mxu0
    %199 = vdwg.mxu0
    %vm200 = vcmask 56320
    %201 = vst.msk [vmem:[#allocation2] sm:$0xff] %vm200, %v197
    // Predicated region
    $region22: #{local_transform_forward.26} parent=1 // pred_check
      _
    $region23: #{local_transform_forward.26} parent=1 // pred_check_branch
      %203 = sbr.rel (0) target = $region25
    $region24: #{local_transform_forward.26} parent=1 // pred_region
      %s205 = ssub.s32 128, 128
      %206 = vsyncadd [#allocation3], %s205
      %s208 = sshll.u32 [#allocation2], 4
      %s209 = int_to_ptr.vmem [resolvable:$true] %s208
      %211 = dma.vmem_to_hbm [thread:$0]  %s209, 128, %s5, [#allocation3]
    $region25: #{local_transform_forward.26} parent=1 // pred_fallthru
      _
    // Predicated region
    $region26: #{local_transform_forward.26} parent=1 // pred_check
      _
    $region27: #{local_transform_forward.26} parent=1 // pred_check_branch
      %213 = sbr.rel (0) target = $region29
    $region28: #{local_transform_forward.26} parent=1 // pred_region
      %214 = dma.done [#allocation3], 128
    $region29: #{local_transform_forward.26} parent=1 // pred_fallthru
      _
    %215 = vsyncpa [#allocation3], 1

// kernel: local_transform_forward.27
$region0: #{local_transform_forward.27}
  #allocation0 [shape = 'u32[]', space=smem, size = 0x4, offset = 0x4, fixed_abs, tag = 'smem constant byte address 0x4 - core index']
  #allocation1 [shape = 'u32[144,128]{1,0:T(1,128)}', space=vmem, size = 0x12000, scoped, tag = 'internal scratch']
  %s0 = inlined_call_operand.vmem [shape: f32[8,32], index: 0, kind: input, shape index: {}]
  %s1 = inlined_call_operand.vmem [shape: f32[32,32], index: 1, kind: input, shape index: {}]
  %s2 = inlined_call_operand.vmem [shape: f32[1,32], index: 2, kind: input, shape index: {}]
  %s3 = inlined_call_operand.vmem [shape: f32[32,11], index: 3, kind: input, shape index: {}]
  %s4 = inlined_call_operand.vmem [shape: f32[1,11], index: 4, kind: input, shape index: {}]
  %s5 = inlined_call_operand.hbm [shape: f32[8,11], index: 5, kind: output, shape index: {}]
  %s6 = sld [smem:[#allocation0]]
  $region30: #{local_transform_forward.27} parent=0
    _
  %s8 = ssub.s32 1, %s6
  %s9 = scalar_select 0, %s8, %s6
  $region1: #{local_transform_forward.27} parent=0
    #allocation2 [shape = 'u8[4096]{0}', space=vmem, size = 0x1000, scoped, tag = 'output window, operand 0, single buffered']
    #allocation3 [shape = 's32[1]{0}', space=sflag, size = 0x4, scoped, tag = 'scoped memory for local_transform_forward.27']
    %10 = vsyncpa [#allocation3], 0
    // Predicated region
    $region2: #{local_transform_forward.27} parent=1 // pred_check
      _
    $region3: #{local_transform_forward.27} parent=1 // pred_check_branch
      %12 = sbr.rel (0) target = $region5
    $region4: #{local_transform_forward.27} parent=1 // pred_region
      _
    $region5: #{local_transform_forward.27} parent=1 // pred_fallthru
      _
    // Predicated region
    $region6: #{local_transform_forward.27} parent=1 // pred_check
      _
    $region7: #{local_transform_forward.27} parent=1 // pred_check_branch
      %14 = sbr.rel (0) target = $region9
    $region8: #{local_transform_forward.27} parent=1 // pred_region
      _
    $region9: #{local_transform_forward.27} parent=1 // pred_fallthru
      _
    // Predicated region
    $region10: #{local_transform_forward.27} parent=1 // pred_check
      _
    $region11: #{local_transform_forward.27} parent=1 // pred_check_branch
      %16 = sbr.rel (0) target = $region13
    $region12: #{local_transform_forward.27} parent=1 // pred_region
      _
    $region13: #{local_transform_forward.27} parent=1 // pred_fallthru
      _
    // Predicated region
    $region14: #{local_transform_forward.27} parent=1 // pred_check
      _
    $region15: #{local_transform_forward.27} parent=1 // pred_check_branch
      %18 = sbr.rel (0) target = $region17
    $region16: #{local_transform_forward.27} parent=1 // pred_region
      _
    $region17: #{local_transform_forward.27} parent=1 // pred_fallthru
      _
    // Predicated region
    $region18: #{local_transform_forward.27} parent=1 // pred_check
      _
    $region19: #{local_transform_forward.27} parent=1 // pred_check_branch
      %20 = sbr.rel (0) target = $region21
    $region20: #{local_transform_forward.27} parent=1 // pred_region
      _
    $region21: #{local_transform_forward.27} parent=1 // pred_fallthru
      _
    %v21 = vld [vmem:[%s0] sm:$0xff]
    %v22 = vld [vmem:[%s1] sm:$0xff]
    %v23 = vld [vmem:[%s1 + $0x8] sm:$0xff]
    %v24 = vld [vmem:[%s1 + $0x10] sm:$0xff]
    %v25 = vld [vmem:[%s1 + $0x18] sm:$0xff]
    %v26 = vld [vmem:[%s2] sm:$0x1]
    %v28 = vlaneseq
    %v29 = vshrl.u32 %v28, 7
    %v30 = vsub.s32 0, %v29
    %v31 = vrot.slane %v26, %v30
    %vm33 = vcmask 261120
    %v35 = vsel %vm33, %v21, 0
    %37 = vmatprep.subr.mxu0 0.0
    %38 = vmatpush1.msra.mxu0 0.0
    %39 = vmatprep.subr.mxu0 0.0
    %40 = vmatpush1.msra.mxu0 0.0
    %41 = vmatprep.subr.mxu0 0.0
    %42 = vmatpush1.msra.mxu0 0.0
    %43 = vmatprep.subr.mxu0 0.0
    %44 = vmatpush1.msra.mxu0 0.0
    %45 = vmatprep.subr.mxu0 0.0
    %46 = vmatpush1.msra.mxu0 0.0
    %47 = vmatprep.subr.mxu0 0.0
    %48 = vmatpush1.msra.mxu0 0.0
    %49 = vmatprep.subr.mxu0 0.0
    %50 = vmatpush1.msra.mxu0 0.0
    %51 = vmatprep.subr.mxu0 0.0
    %52 = vmatpush1.msra.mxu0 0.0
    %53 = vmatprep.subr.mxu0 0.0
    %54 = vmatpush1.msra.mxu0 0.0
    %55 = vmatprep.subr.mxu0 0.0
    %56 = vmatpush1.msra.mxu0 0.0
    %57 = vmatprep.subr.mxu0 0.0
    %58 = vmatpush1.msra.mxu0 0.0
    %59 = vmatprep.subr.mxu0 0.0
    %60 = vmatpush1.msra.mxu0 0.0
    %61 = vmatprep.subr.mxu0 0.0
    %62 = vmatpush1.msra.mxu0 %v25
    %63 = vmatprep.subr.mxu0 0.0
    %64 = vmatpush1.msra.mxu0 %v24
    %65 = vmatprep.subr.mxu0 0.0
    %66 = vmatpush1.msra.mxu0 %v23
    %67 = vmatprep.subr.mxu0 0.0
    %68 = vmatpush1.msra.mxu0 %v22
    %69 = vmatprep.subr.mxu0 0.0
    %70 = vmatpush2.msra.mxu0 0.0
    %71 = vmatprep.subr.mxu0 0.0
    %72 = vmatpush2.msra.mxu0 0.0
    %73 = vmatprep.subr.mxu0 0.0
    %74 = vmatpush2.msra.mxu0 0.0
    %75 = vmatprep.subr.mxu0 0.0
    %76 = vmatpush2.msra.mxu0 0.0
    %77 = vmatprep.subr.mxu0 0.0
    %78 = vmatpush2.msra.mxu0 0.0
    %79 = vmatprep.subr.mxu0 0.0
    %80 = vmatpush2.msra.mxu0 0.0
    %81 = vmatprep.subr.mxu0 0.0
    %82 = vmatpush2.msra.mxu0 0.0
    %83 = vmatprep.subr.mxu0 0.0
    %84 = vmatpush2.msra.mxu0 0.0
    %85 = vmatprep.subr.mxu0 0.0
    %86 = vmatpush2.msra.mxu0 0.0
    %87 = vmatprep.subr.mxu0 0.0
    %88 = vmatpush2.msra.mxu0 0.0
    %89 = vmatprep.subr.mxu0 0.0
    %90 = vmatpush2.msra.mxu0 0.0
    %91 = vmatprep.subr.mxu0 0.0
    %92 = vmatpush2.msra.mxu0 0.0
    %93 = vmatprep.subr.mxu0 0.0
    %94 = vmatpush2.msra.mxu0 0.0
    %95 = vmatprep.subr.mxu0 0.0
    %96 = vmatpush2.msra.mxu0 0.0
    %97 = vmatprep.subr.mxu0 0.0
    %98 = vmatpush2.msra.mxu0 0.0
    %99 = vmatprep.subr.mxu0 0.0
    %100 = vmatpush2.msra.mxu0 0.0
    %101 = vmatprep.mubr.f32.mxu0 0.0
    %102 = vmatmul.mubr.f32.gmra.mxu0 %v35
    %v103 = vpop.f32.mrf.mxu0
    %v104 = vadd.f32 %v31, %v103
    %v105 = vpop.f32.mrf.mxu0
    %106 = vdwg.mxu0
    %v107 = vmul.f32 %v104, %v104
    %v108 = vmul.f32 %v104, %v107
    %v109 = vmul.f32 %v108, 0.044715
    %v110 = vadd.f32 %v104, %v109
    %v111 = vmul.f32 %v110, 0.7978846
    %v112 = vtanh.pop %v111
    %v113 = vadd.f32 %v112, 1.0
    %v114 = vmul.f32 %v113, 0.5
    %v115 = vmul.f32 %v104, %v114
    %v116 = vld [vmem:[%s3] sm:$0xff]
    %v117 = vld [vmem:[%s3 + $0x8] sm:$0xff]
    %v118 = vld [vmem:[%s3 + $0x10] sm:$0xff]
    %v119 = vld [vmem:[%s3 + $0x18] sm:$0xff]
    %v120 = vld [vmem:[%s4] sm:$0x1]
    %v122 = vlaneseq
    %v123 = vshrl.u32 %v122, 7
    %v124 = vsub.s32 0, %v123
    %v125 = vrot.slane %v120, %v124
    %v128 = vsel %vm33, %v115, 0
    %130 = vmatprep.subr.mxu0 0.0
    %131 = vmatpush1.msra.mxu0 0.0
    %132 = vmatprep.subr.mxu0 0.0
    %133 = vmatpush1.msra.mxu0 0.0
    %134 = vmatprep.subr.mxu0 0.0
    %135 = vmatpush1.msra.mxu0 0.0
    %136 = vmatprep.subr.mxu0 0.0
    %137 = vmatpush1.msra.mxu0 0.0
    %138 = vmatprep.subr.mxu0 0.0
    %139 = vmatpush1.msra.mxu0 0.0
    %140 = vmatprep.subr.mxu0 0.0
    %141 = vmatpush1.msra.mxu0 0.0
    %142 = vmatprep.subr.mxu0 0.0
    %143 = vmatpush1.msra.mxu0 0.0
    %144 = vmatprep.subr.mxu0 0.0
    %145 = vmatpush1.msra.mxu0 0.0
    %146 = vmatprep.subr.mxu0 0.0
    %147 = vmatpush1.msra.mxu0 0.0
    %148 = vmatprep.subr.mxu0 0.0
    %149 = vmatpush1.msra.mxu0 0.0
    %150 = vmatprep.subr.mxu0 0.0
    %151 = vmatpush1.msra.mxu0 0.0
    %152 = vmatprep.subr.mxu0 0.0
    %153 = vmatpush1.msra.mxu0 0.0
    %154 = vmatprep.subr.mxu0 0.0
    %155 = vmatpush1.msra.mxu0 %v119
    %156 = vmatprep.subr.mxu0 0.0
    %157 = vmatpush1.msra.mxu0 %v118
    %158 = vmatprep.subr.mxu0 0.0
    %159 = vmatpush1.msra.mxu0 %v117
    %160 = vmatprep.subr.mxu0 0.0
    %161 = vmatpush1.msra.mxu0 %v116
    %162 = vmatprep.subr.mxu0 0.0
    %163 = vmatpush2.msra.mxu0 0.0
    %164 = vmatprep.subr.mxu0 0.0
    %165 = vmatpush2.msra.mxu0 0.0
    %166 = vmatprep.subr.mxu0 0.0
    %167 = vmatpush2.msra.mxu0 0.0
    %168 = vmatprep.subr.mxu0 0.0
    %169 = vmatpush2.msra.mxu0 0.0
    %170 = vmatprep.subr.mxu0 0.0
    %171 = vmatpush2.msra.mxu0 0.0
    %172 = vmatprep.subr.mxu0 0.0
    %173 = vmatpush2.msra.mxu0 0.0
    %174 = vmatprep.subr.mxu0 0.0
    %175 = vmatpush2.msra.mxu0 0.0
    %176 = vmatprep.subr.mxu0 0.0
    %177 = vmatpush2.msra.mxu0 0.0
    %178 = vmatprep.subr.mxu0 0.0
    %179 = vmatpush2.msra.mxu0 0.0
    %180 = vmatprep.subr.mxu0 0.0
    %181 = vmatpush2.msra.mxu0 0.0
    %182 = vmatprep.subr.mxu0 0.0
    %183 = vmatpush2.msra.mxu0 0.0
    %184 = vmatprep.subr.mxu0 0.0
    %185 = vmatpush2.msra.mxu0 0.0
    %186 = vmatprep.subr.mxu0 0.0
    %187 = vmatpush2.msra.mxu0 0.0
    %188 = vmatprep.subr.mxu0 0.0
    %189 = vmatpush2.msra.mxu0 0.0
    %190 = vmatprep.subr.mxu0 0.0
    %191 = vmatpush2.msra.mxu0 0.0
    %192 = vmatprep.subr.mxu0 0.0
    %193 = vmatpush2.msra.mxu0 0.0
    %194 = vmatprep.mubr.f32.mxu0 0.0
    %195 = vmatmul.mubr.f32.gmra.mxu0 %v128
    %v196 = vpop.f32.mrf.mxu0
    %v197 = vadd.f32 %v125, %v196
    %v198 = vpop.f32.mrf.mxu0
    %199 = vdwg.mxu0
    %vm200 = vcmask 89088
    %201 = vst.msk [vmem:[#allocation2] sm:$0xff] %vm200, %v197
    // Predicated region
    $region22: #{local_transform_forward.27} parent=1 // pred_check
      _
    $region23: #{local_transform_forward.27} parent=1 // pred_check_branch
      %203 = sbr.rel (0) target = $region25
    $region24: #{local_transform_forward.27} parent=1 // pred_region
      %s205 = ssub.s32 128, 128
      %206 = vsyncadd [#allocation3], %s205
      %s208 = sshll.u32 [#allocation2], 4
      %s209 = int_to_ptr.vmem [resolvable:$true] %s208
      %211 = dma.vmem_to_hbm [thread:$0]  %s209, 128, %s5, [#allocation3]
    $region25: #{local_transform_forward.27} parent=1 // pred_fallthru
      _
    // Predicated region
    $region26: #{local_transform_forward.27} parent=1 // pred_check
      _
    $region27: #{local_transform_forward.27} parent=1 // pred_check_branch
      %213 = sbr.rel (0) target = $region29
    $region28: #{local_transform_forward.27} parent=1 // pred_region
      %214 = dma.done [#allocation3], 128
    $region29: #{local_transform_forward.27} parent=1 // pred_fallthru
      _
    %215 = vsyncpa [#allocation3], 1

// kernel: local_transform_forward.24
$region0: #{local_transform_forward.24}
  #allocation0 [shape = 'u32[]', space=smem, size = 0x4, offset = 0x4, fixed_abs, tag = 'smem constant byte address 0x4 - core index']
  #allocation1 [shape = 'u32[144,128]{1,0:T(1,128)}', space=vmem, size = 0x12000, scoped, tag = 'internal scratch']
  %s0 = inlined_call_operand.vmem [shape: f32[16,32], index: 0, kind: input, shape index: {}]
  %s1 = inlined_call_operand.vmem [shape: f32[4,16,16], index: 1, kind: input, shape index: {}]
  %s2 = inlined_call_operand.vmem [shape: f32[1,16], index: 2, kind: input, shape index: {}]
  %s3 = inlined_call_operand.vmem [shape: f32[1,32], index: 3, kind: input, shape index: {}]
  %s4 = inlined_call_operand.vmem [shape: f32[1,32], index: 4, kind: input, shape index: {}]
  %s5 = inlined_call_operand.vmem [shape: f32[32,128], index: 5, kind: input, shape index: {}]
  %s6 = inlined_call_operand.vmem [shape: f32[1,128], index: 6, kind: input, shape index: {}]
  %s7 = inlined_call_operand.vmem [shape: f32[32,32], index: 7, kind: input, shape index: {}]
  %s8 = inlined_call_operand.vmem [shape: f32[1,32], index: 8, kind: input, shape index: {}]
  %s9 = inlined_call_operand.vmem [shape: f32[16,32], index: 9, kind: output, shape index: {0}]
  %s10 = inlined_call_operand.hbm [shape: f32[4,16,16], index: 10, kind: output, shape index: {1}]
  %11 = xla_tuple %s9, %s10
  %s12 = sld [smem:[#allocation0]]
  $region54: #{local_transform_forward.24} parent=0
    _
  %s14 = ssub.s32 1, %s12
  %s15 = scalar_select 0, %s14, %s12
  $region1: #{local_transform_forward.24} parent=0
    #allocation2 [shape = 'u8[32768]{0}', space=vmem, size = 0x8000, scoped, tag = 'output window, operand 1, single buffered']
    #allocation3 [shape = 's32[1]{0}', space=sflag, size = 0x4, scoped, tag = 'scoped memory for local_transform_forward.24']
    %16 = vsyncpa [#allocation3], 0
    // Predicated region
    $region2: #{local_transform_forward.24} parent=1 // pred_check
      _
    $region3: #{local_transform_forward.24} parent=1 // pred_check_branch
      %18 = sbr.rel (0) target = $region5
    $region4: #{local_transform_forward.24} parent=1 // pred_region
      _
    $region5: #{local_transform_forward.24} parent=1 // pred_fallthru
      _
    // Predicated region
    $region6: #{local_transform_forward.24} parent=1 // pred_check
      _
    $region7: #{local_transform_forward.24} parent=1 // pred_check_branch
      %20 = sbr.rel (0) target = $region9
    $region8: #{local_transform_forward.24} parent=1 // pred_region
      _
    $region9: #{local_transform_forward.24} parent=1 // pred_fallthru
      _
    // Predicated region
    $region10: #{local_transform_forward.24} parent=1 // pred_check
      _
    $region11: #{local_transform_forward.24} parent=1 // pred_check_branch
      %22 = sbr.rel (0) target = $region13
    $region12: #{local_transform_forward.24} parent=1 // pred_region
      _
    $region13: #{local_transform_forward.24} parent=1 // pred_fallthru
      _
    // Predicated region
    $region14: #{local_transform_forward.24} parent=1 // pred_check
      _
    $region15: #{local_transform_forward.24} parent=1 // pred_check_branch
      %24 = sbr.rel (0) target = $region17
    $region16: #{local_transform_forward.24} parent=1 // pred_region
      _
    $region17: #{local_transform_forward.24} parent=1 // pred_fallthru
      _
    // Predicated region
    $region18: #{local_transform_forward.24} parent=1 // pred_check
      _
    $region19: #{local_transform_forward.24} parent=1 // pred_check_branch
      %26 = sbr.rel (0) target = $region21
    $region20: #{local_transform_forward.24} parent=1 // pred_region
      _
    $region21: #{local_transform_forward.24} parent=1 // pred_fallthru
      _
    // Predicated region
    $region22: #{local_transform_forward.24} parent=1 // pred_check
      _
    $region23: #{local_transform_forward.24} parent=1 // pred_check_branch
      %28 = sbr.rel (0) target = $region25
    $region24: #{local_transform_forward.24} parent=1 // pred_region
      _
    $region25: #{local_transform_forward.24} parent=1 // pred_fallthru
      _
    // Predicated region
    $region26: #{local_transform_forward.24} parent=1 // pred_check
      _
    $region27: #{local_transform_forward.24} parent=1 // pred_check_branch
      %30 = sbr.rel (0) target = $region29
    $region28: #{local_transform_forward.24} parent=1 // pred_region
      _
    $region29: #{local_transform_forward.24} parent=1 // pred_fallthru
      _
    // Predicated region
    $region30: #{local_transform_forward.24} parent=1 // pred_check
      _
    $region31: #{local_transform_forward.24} parent=1 // pred_check_branch
      %32 = sbr.rel (0) target = $region33
    $region32: #{local_transform_forward.24} parent=1 // pred_region
      _
    $region33: #{local_transform_forward.24} parent=1 // pred_fallthru
      _
    // Predicated region
    $region34: #{local_transform_forward.24} parent=1 // pred_check
      _
    $region35: #{local_transform_forward.24} parent=1 // pred_check_branch
      %34 = sbr.rel (0) target = $region37
    $region36: #{local_transform_forward.24} parent=1 // pred_region
      _
    $region37: #{local_transform_forward.24} parent=1 // pred_fallthru
      _
    %v35 = vld [vmem:[%s0] sm:$0xff]
    %v36 = vld [vmem:[%s0 + $0x8] sm:$0xff]
    %vm37 = vcmask 261120
    %v38 = vsel %vm37, %v35, 0.0
    %39 = vadd.xlane.f32.xlu0 %v38
    %v40 = vpop.xlane.xlu0 %39
    %v41 = vsel %vm37, %v36, 0.0
    %42 = vadd.xlane.f32.xlu0 %v41
    %v43 = vpop.xlane.xlu0 %42
    %v44 = vrcp.pop 32.0
    %v45 = vmul.f32 %v40, %v44
    %v46 = vmul.f32 %v43, %v44
    %v47 = vsub.f32 %v35, %v45
    %v48 = vsub.f32 %v36, %v46
    %v49 = vmul.f32 %v47, %v47
    %v50 = vmul.f32 %v48, %v48
    %v51 = vsel %vm37, %v49, 0.0
    %52 = vadd.xlane.f32.xlu0 %v51
    %v53 = vpop.xlane.xlu0 %52
    %v54 = vsel %vm37, %v50, 0.0
    %55 = vadd.xlane.f32.xlu0 %v54
    %v56 = vpop.xlane.xlu0 %55
    %v57 = vmul.f32 %v53, %v44
    %v58 = vmul.f32 %v56, %v44
    %v59 = vadd.f32 %v57, 1e-05
    %v60 = vadd.f32 %v58, 1e-05
    %v61 = vrsqrt.pop %v59
    %v62 = vrsqrt.pop %v60
    %v63 = vmul.f32 %v47, %v61
    %v64 = vmul.f32 %v48, %v62
    %v65 = vld [vmem:[%s3] sm:$0x1]
    %v67 = vlaneseq
    %v68 = vshrl.u32 %v67, 7
    %v69 = vsub.s32 0, %v68
    %v70 = vrot.slane %v65, %v69
    %v72 = vmul.f32 %v63, %v70
    %v73 = vmul.f32 %v64, %v70
    %v74 = vld [vmem:[%s4] sm:$0x1]
    %v76 = vlaneseq
    %v77 = vshrl.u32 %v76, 7
    %v78 = vsub.s32 0, %v77
    %v79 = vrot.slane %v74, %v78
    %v81 = vadd.f32 %v72, %v79
    %v82 = vadd.f32 %v73, %v79
    %v83 = vld [vmem:[%s5] sm:$0xff]
    %v84 = vld [vmem:[%s5 + $0x8] sm:$0xff]
    %v85 = vld [vmem:[%s5 + $0x10] sm:$0xff]
    %v86 = vld [vmem:[%s5 + $0x18] sm:$0xff]
    %v87 = vld [vmem:[%s6] sm:$0x1]
    %v89 = vlaneseq
    %v90 = vshrl.u32 %v89, 7
    %v91 = vsub.s32 0, %v90
    %v92 = vrot.slane %v87, %v91
    %v95 = vsel %vm37, %v81, 0
    %v98 = vsel %vm37, %v82, 0
    %100 = vmatprep.subr.mxu0 0.0
    %101 = vmatpush1.msra.mxu0 0.0
    %102 = vmatprep.subr.mxu0 0.0
    %103 = vmatpush1.msra.mxu0 0.0
    %104 = vmatprep.subr.mxu0 0.0
    %105 = vmatpush1.msra.mxu0 0.0
    %106 = vmatprep.subr.mxu0 0.0
    %107 = vmatpush1.msra.mxu0 0.0
    %108 = vmatprep.subr.mxu0 0.0
    %109 = vmatpush1.msra.mxu0 0.0
    %110 = vmatprep.subr.mxu0 0.0
    %111 = vmatpush1.msra.mxu0 0.0
    %112 = vmatprep.subr.mxu0 0.0
    %113 = vmatpush1.msra.mxu0 0.0
    %114 = vmatprep.subr.mxu0 0.0
    %115 = vmatpush1.msra.mxu0 0.0
    %116 = vmatprep.subr.mxu0 0.0
    %117 = vmatpush1.msra.mxu0 0.0
    %118 = vmatprep.subr.mxu0 0.0
    %119 = vmatpush1.msra.mxu0 0.0
    %120 = vmatprep.subr.mxu0 0.0
    %121 = vmatpush1.msra.mxu0 0.0
    %122 = vmatprep.subr.mxu0 0.0
    %123 = vmatpush1.msra.mxu0 0.0
    %124 = vmatprep.subr.mxu0 0.0
    %125 = vmatpush1.msra.mxu0 %v86
    %126 = vmatprep.subr.mxu0 0.0
    %127 = vmatpush1.msra.mxu0 %v85
    %128 = vmatprep.subr.mxu0 0.0
    %129 = vmatpush1.msra.mxu0 %v84
    %130 = vmatprep.subr.mxu0 0.0
    %131 = vmatpush1.msra.mxu0 %v83
    %132 = vmatprep.subr.mxu0 0.0
    %133 = vmatpush2.msra.mxu0 0.0
    %134 = vmatprep.subr.mxu0 0.0
    %135 = vmatpush2.msra.mxu0 0.0
    %136 = vmatprep.subr.mxu0 0.0
    %137 = vmatpush2.msra.mxu0 0.0
    %138 = vmatprep.subr.mxu0 0.0
    %139 = vmatpush2.msra.mxu0 0.0
    %140 = vmatprep.subr.mxu0 0.0
    %141 = vmatpush2.msra.mxu0 0.0
    %142 = vmatprep.subr.mxu0 0.0
    %143 = vmatpush2.msra.mxu0 0.0
    %144 = vmatprep.subr.mxu0 0.0
    %145 = vmatpush2.msra.mxu0 0.0
    %146 = vmatprep.subr.mxu0 0.0
    %147 = vmatpush2.msra.mxu0 0.0
    %148 = vmatprep.subr.mxu0 0.0
    %149 = vmatpush2.msra.mxu0 0.0
    %150 = vmatprep.subr.mxu0 0.0
    %151 = vmatpush2.msra.mxu0 0.0
    %152 = vmatprep.subr.mxu0 0.0
    %153 = vmatpush2.msra.mxu0 0.0
    %154 = vmatprep.subr.mxu0 0.0
    %155 = vmatpush2.msra.mxu0 0.0
    %156 = vmatprep.subr.mxu0 0.0
    %157 = vmatpush2.msra.mxu0 0.0
    %158 = vmatprep.subr.mxu0 0.0
    %159 = vmatpush2.msra.mxu0 0.0
    %160 = vmatprep.subr.mxu0 0.0
    %161 = vmatpush2.msra.mxu0 0.0
    %162 = vmatprep.subr.mxu0 0.0
    %163 = vmatpush2.msra.mxu0 0.0
    %164 = vmatprep.mubr.f32.mxu0 0.0
    %165 = vmatmul.mubr.f32.gmra.mxu0 %v95
    %v166 = vpop.f32.mrf.mxu0
    %v167 = vadd.f32 %v92, %v166
    %v168 = vpop.f32.mrf.mxu0
    %169 = vmatprep.mubr.f32.mxu0 0.0
    %170 = vmatmul.mubr.f32.gmra.mxu0 %v98
    %v171 = vpop.f32.mrf.mxu0
    %v172 = vadd.f32 %v92, %v171
    %v173 = vpop.f32.mrf.mxu0
    %174 = vdwg.mxu0
    %v175 = vxor.u32 %v167, 2147483648
    %v176 = vxor.u32 %v172, 2147483648
    %v177 = vmul.f32 %v175, 1.442695
    %v178 = vpow.pop %v177
    %v179 = vmul.f32 %v176, 1.442695
    %v180 = vpow.pop %v179
    %v181 = vadd.f32 %v178, 1.0
    %v182 = vadd.f32 %v180, 1.0
    %v183 = vrcp.pop %v181
    %v184 = vmul.f32 1.0, %v183
    %v185 = vrcp.pop %v182
    %v186 = vmul.f32 1.0, %v185
    %189 = vrot.lane.b32.xlu0 %v167, 120
    %v190 = vpop.permute.xlu0 %189
    %191 = vrot.lane.b32.xlu0 %v172, 120
    %v192 = vpop.permute.xlu0 %191
    %193 = vrot.lane.b32.xlu0 %v167, 112
    %v194 = vpop.permute.xlu0 %193
    %195 = vrot.lane.b32.xlu0 %v172, 112
    %v196 = vpop.permute.xlu0 %195
    %197 = vrot.lane.b32.xlu0 %v167, 104
    %v198 = vpop.permute.xlu0 %197
    %199 = vrot.lane.b32.xlu0 %v172, 104
    %v200 = vpop.permute.xlu0 %199
    %201 = vrot.lane.b32.xlu0 %v167, 96
    %v202 = vpop.permute.xlu0 %201
    %203 = vrot.lane.b32.xlu0 %v172, 96
    %v204 = vpop.permute.xlu0 %203
    %vm205 = vcmask 64512
    %v206 = vsel %vm205, %v167, 0
    %v208 = vsel %vm205, %v172, 0
    %v210 = vsel %vm205, %v202, 0
    %v212 = vsel %vm205, %v204, 0
    %214 = vmatprep.subr.mxu0 0.0
    %215 = vmatpush1.xpose.msra.mxu0 0.0
    %216 = vmatprep.subr.mxu0 0.0
    %217 = vmatpush1.xpose.msra.mxu0 0.0
    %218 = vmatprep.subr.mxu0 0.0
    %219 = vmatpush1.xpose.msra.mxu0 0.0
    %220 = vmatprep.subr.mxu0 0.0
    %221 = vmatpush1.xpose.msra.mxu0 0.0
    %222 = vmatprep.subr.mxu0 0.0
    %223 = vmatpush1.xpose.msra.mxu0 0.0
    %224 = vmatprep.subr.mxu0 0.0
    %225 = vmatpush1.xpose.msra.mxu0 0.0
    %226 = vmatprep.subr.mxu0 0.0
    %227 = vmatpush1.xpose.msra.mxu0 0.0
    %228 = vmatprep.subr.mxu0 0.0
    %229 = vmatpush1.xpose.msra.mxu0 0.0
    %230 = vmatprep.subr.mxu0 0.0
    %231 = vmatpush1.xpose.msra.mxu0 0.0
    %232 = vmatprep.subr.mxu0 0.0
    %233 = vmatpush1.xpose.msra.mxu0 0.0
    %234 = vmatprep.subr.mxu0 0.0
    %235 = vmatpush1.xpose.msra.mxu0 0.0
    %236 = vmatprep.subr.mxu0 0.0
    %237 = vmatpush1.xpose.msra.mxu0 0.0
    %238 = vmatprep.subr.mxu0 0.0
    %239 = vmatpush1.xpose.msra.mxu0 0.0
    %240 = vmatprep.subr.mxu0 0.0
    %241 = vmatpush1.xpose.msra.mxu0 0.0
    %242 = vmatprep.subr.mxu0 0.0
    %243 = vmatpush1.xpose.msra.mxu0 %v212
    %244 = vmatprep.subr.mxu0 0.0
    %245 = vmatpush1.xpose.msra.mxu0 %v210
    %246 = vmatprep.subr.mxu0 0.0
    %247 = vmatpush2.xpose.msra.mxu0 0.0
    %248 = vmatprep.subr.mxu0 0.0
    %249 = vmatpush2.xpose.msra.mxu0 0.0
    %250 = vmatprep.subr.mxu0 0.0
    %251 = vmatpush2.xpose.msra.mxu0 0.0
    %252 = vmatprep.subr.mxu0 0.0
    %253 = vmatpush2.xpose.msra.mxu0 0.0
    %254 = vmatprep.subr.mxu0 0.0
    %255 = vmatpush2.xpose.msra.mxu0 0.0
    %256 = vmatprep.subr.mxu0 0.0
    %257 = vmatpush2.xpose.msra.mxu0 0.0
    %258 = vmatprep.subr.mxu0 0.0
    %259 = vmatpush2.xpose.msra.mxu0 0.0
    %260 = vmatprep.subr.mxu0 0.0
    %261 = vmatpush2.xpose.msra.mxu0 0.0
    %262 = vmatprep.subr.mxu0 0.0
    %263 = vmatpush2.xpose.msra.mxu0 0.0
    %264 = vmatprep.subr.mxu0 0.0
    %265 = vmatpush2.xpose.msra.mxu0 0.0
    %266 = vmatprep.subr.mxu0 0.0
    %267 = vmatpush2.xpose.msra.mxu0 0.0
    %268 = vmatprep.subr.mxu0 0.0
    %269 = vmatpush2.xpose.msra.mxu0 0.0
    %270 = vmatprep.subr.mxu0 0.0
    %271 = vmatpush2.xpose.msra.mxu0 0.0
    %272 = vmatprep.subr.mxu0 0.0
    %273 = vmatpush2.xpose.msra.mxu0 0.0
    %274 = vmatprep.subr.mxu0 0.0
    %275 = vmatpush2.xpose.msra.mxu0 0.0
    %276 = vmatprep.subr.mxu0 0.0
    %277 = vmatpush2.xpose.msra.mxu0 0.0
    %278 = vmatprep.mubr.f32.mxu0 0.0
    %279 = vmatmul.mubr.f32.gmra.mxu0 %v206
    %v280 = vpop.f32.mrf.mxu0
    %v281 = vadd.f32 0.0, %v280
    %v282 = vpop.f32.mrf.mxu0
    %283 = vmatprep.mubr.f32.mxu0 0.0
    %284 = vmatmul.mubr.f32.gmra.mxu0 %v208
    %v285 = vpop.f32.mrf.mxu0
    %v286 = vadd.f32 0.0, %v285
    %v287 = vpop.f32.mrf.mxu0
    %288 = vdwg.mxu0
    %289 = vrot.lane.b32.xlu0 %v190, 96
    %v290 = vpop.permute.xlu0 %289
    %291 = vrot.lane.b32.xlu0 %v192, 96
    %v292 = vpop.permute.xlu0 %291
    %v293 = vsel %vm205, %v190, 0
    %v295 = vsel %vm205, %v192, 0
    %v297 = vsel %vm205, %v290, 0
    %v299 = vsel %vm205, %v292, 0
    %301 = vmatprep.subr.mxu0 0.0
    %302 = vmatpush1.xpose.msra.mxu0 0.0
    %303 = vmatprep.subr.mxu0 0.0
    %304 = vmatpush1.xpose.msra.mxu0 0.0
    %305 = vmatprep.subr.mxu0 0.0
    %306 = vmatpush1.xpose.msra.mxu0 0.0
    %307 = vmatprep.subr.mxu0 0.0
    %308 = vmatpush1.xpose.msra.mxu0 0.0
    %309 = vmatprep.subr.mxu0 0.0
    %310 = vmatpush1.xpose.msra.mxu0 0.0
    %311 = vmatprep.subr.mxu0 0.0
    %312 = vmatpush1.xpose.msra.mxu0 0.0
    %313 = vmatprep.subr.mxu0 0.0
    %314 = vmatpush1.xpose.msra.mxu0 0.0
    %315 = vmatprep.subr.mxu0 0.0
    %316 = vmatpush1.xpose.msra.mxu0 0.0
    %317 = vmatprep.subr.mxu0 0.0
    %318 = vmatpush1.xpose.msra.mxu0 0.0
    %319 = vmatprep.subr.mxu0 0.0
    %320 = vmatpush1.xpose.msra.mxu0 0.0
    %321 = vmatprep.subr.mxu0 0.0
    %322 = vmatpush1.xpose.msra.mxu0 0.0
    %323 = vmatprep.subr.mxu0 0.0
    %324 = vmatpush1.xpose.msra.mxu0 0.0
    %325 = vmatprep.subr.mxu0 0.0
    %326 = vmatpush1.xpose.msra.mxu0 0.0
    %327 = vmatprep.subr.mxu0 0.0
    %328 = vmatpush1.xpose.msra.mxu0 0.0
    %329 = vmatprep.subr.mxu0 0.0
    %330 = vmatpush1.xpose.msra.mxu0 %v299
    %331 = vmatprep.subr.mxu0 0.0
    %332 = vmatpush1.xpose.msra.mxu0 %v297
    %333 = vmatprep.subr.mxu0 0.0
    %334 = vmatpush2.xpose.msra.mxu0 0.0
    %335 = vmatprep.subr.mxu0 0.0
    %336 = vmatpush2.xpose.msra.mxu0 0.0
    %337 = vmatprep.subr.mxu0 0.0
    %338 = vmatpush2.xpose.msra.mxu0 0.0
    %339 = vmatprep.subr.mxu0 0.0
    %340 = vmatpush2.xpose.msra.mxu0 0.0
    %341 = vmatprep.subr.mxu0 0.0
    %342 = vmatpush2.xpose.msra.mxu0 0.0
    %343 = vmatprep.subr.mxu0 0.0
    %344 = vmatpush2.xpose.msra.mxu0 0.0
    %345 = vmatprep.subr.mxu0 0.0
    %346 = vmatpush2.xpose.msra.mxu0 0.0
    %347 = vmatprep.subr.mxu0 0.0
    %348 = vmatpush2.xpose.msra.mxu0 0.0
    %349 = vmatprep.subr.mxu0 0.0
    %350 = vmatpush2.xpose.msra.mxu0 0.0
    %351 = vmatprep.subr.mxu0 0.0
    %352 = vmatpush2.xpose.msra.mxu0 0.0
    %353 = vmatprep.subr.mxu0 0.0
    %354 = vmatpush2.xpose.msra.mxu0 0.0
    %355 = vmatprep.subr.mxu0 0.0
    %356 = vmatpush2.xpose.msra.mxu0 0.0
    %357 = vmatprep.subr.mxu0 0.0
    %358 = vmatpush2.xpose.msra.mxu0 0.0
    %359 = vmatprep.subr.mxu0 0.0
    %360 = vmatpush2.xpose.msra.mxu0 0.0
    %361 = vmatprep.subr.mxu0 0.0
    %362 = vmatpush2.xpose.msra.mxu0 0.0
    %363 = vmatprep.subr.mxu0 0.0
    %364 = vmatpush2.xpose.msra.mxu0 0.0
    %365 = vmatprep.mubr.f32.mxu0 0.0
    %366 = vmatmul.mubr.f32.gmra.mxu0 %v293
    %v367 = vpop.f32.mrf.mxu0
    %v368 = vadd.f32 0.0, %v367
    %v369 = vpop.f32.mrf.mxu0
    %370 = vmatprep.mubr.f32.mxu0 0.0
    %371 = vmatmul.mubr.f32.gmra.mxu0 %v295
    %v372 = vpop.f32.mrf.mxu0
    %v373 = vadd.f32 0.0, %v372
    %v374 = vpop.f32.mrf.mxu0
    %375 = vdwg.mxu0
    %376 = vrot.lane.b32.xlu0 %v194, 96
    %v377 = vpop.permute.xlu0 %376
    %378 = vrot.lane.b32.xlu0 %v196, 96
    %v379 = vpop.permute.xlu0 %378
    %v380 = vsel %vm205, %v194, 0
    %v382 = vsel %vm205, %v196, 0
    %v384 = vsel %vm205, %v377, 0
    %v386 = vsel %vm205, %v379, 0
    %388 = vmatprep.subr.mxu0 0.0
    %389 = vmatpush1.xpose.msra.mxu0 0.0
    %390 = vmatprep.subr.mxu0 0.0
    %391 = vmatpush1.xpose.msra.mxu0 0.0
    %392 = vmatprep.subr.mxu0 0.0
    %393 = vmatpush1.xpose.msra.mxu0 0.0
    %394 = vmatprep.subr.mxu0 0.0
    %395 = vmatpush1.xpose.msra.mxu0 0.0
    %396 = vmatprep.subr.mxu0 0.0
    %397 = vmatpush1.xpose.msra.mxu0 0.0
    %398 = vmatprep.subr.mxu0 0.0
    %399 = vmatpush1.xpose.msra.mxu0 0.0
    %400 = vmatprep.subr.mxu0 0.0
    %401 = vmatpush1.xpose.msra.mxu0 0.0
    %402 = vmatprep.subr.mxu0 0.0
    %403 = vmatpush1.xpose.msra.mxu0 0.0
    %404 = vmatprep.subr.mxu0 0.0
    %405 = vmatpush1.xpose.msra.mxu0 0.0
    %406 = vmatprep.subr.mxu0 0.0
    %407 = vmatpush1.xpose.msra.mxu0 0.0
    %408 = vmatprep.subr.mxu0 0.0
    %409 = vmatpush1.xpose.msra.mxu0 0.0
    %410 = vmatprep.subr.mxu0 0.0
    %411 = vmatpush1.xpose.msra.mxu0 0.0
    %412 = vmatprep.subr.mxu0 0.0
    %413 = vmatpush1.xpose.msra.mxu0 0.0
    %414 = vmatprep.subr.mxu0 0.0
    %415 = vmatpush1.xpose.msra.mxu0 0.0
    %416 = vmatprep.subr.mxu0 0.0
    %417 = vmatpush1.xpose.msra.mxu0 %v386
    %418 = vmatprep.subr.mxu0 0.0
    %419 = vmatpush1.xpose.msra.mxu0 %v384
    %420 = vmatprep.subr.mxu0 0.0
    %421 = vmatpush2.xpose.msra.mxu0 0.0
    %422 = vmatprep.subr.mxu0 0.0
    %423 = vmatpush2.xpose.msra.mxu0 0.0
    %424 = vmatprep.subr.mxu0 0.0
    %425 = vmatpush2.xpose.msra.mxu0 0.0
    %426 = vmatprep.subr.mxu0 0.0
    %427 = vmatpush2.xpose.msra.mxu0 0.0
    %428 = vmatprep.subr.mxu0 0.0
    %429 = vmatpush2.xpose.msra.mxu0 0.0
    %430 = vmatprep.subr.mxu0 0.0
    %431 = vmatpush2.xpose.msra.mxu0 0.0
    %432 = vmatprep.subr.mxu0 0.0
    %433 = vmatpush2.xpose.msra.mxu0 0.0
    %434 = vmatprep.subr.mxu0 0.0
    %435 = vmatpush2.xpose.msra.mxu0 0.0
    %436 = vmatprep.subr.mxu0 0.0
    %437 = vmatpush2.xpose.msra.mxu0 0.0
    %438 = vmatprep.subr.mxu0 0.0
    %439 = vmatpush2.xpose.msra.mxu0 0.0
    %440 = vmatprep.subr.mxu0 0.0
    %441 = vmatpush2.xpose.msra.mxu0 0.0
    %442 = vmatprep.subr.mxu0 0.0
    %443 = vmatpush2.xpose.msra.mxu0 0.0
    %444 = vmatprep.subr.mxu0 0.0
    %445 = vmatpush2.xpose.msra.mxu0 0.0
    %446 = vmatprep.subr.mxu0 0.0
    %447 = vmatpush2.xpose.msra.mxu0 0.0
    %448 = vmatprep.subr.mxu0 0.0
    %449 = vmatpush2.xpose.msra.mxu0 0.0
    %450 = vmatprep.subr.mxu0 0.0
    %451 = vmatpush2.xpose.msra.mxu0 0.0
    %452 = vmatprep.mubr.f32.mxu0 0.0
    %453 = vmatmul.mubr.f32.gmra.mxu0 %v380
    %v454 = vpop.f32.mrf.mxu0
    %v455 = vadd.f32 0.0, %v454
    %v456 = vpop.f32.mrf.mxu0
    %457 = vmatprep.mubr.f32.mxu0 0.0
    %458 = vmatmul.mubr.f32.gmra.mxu0 %v382
    %v459 = vpop.f32.mrf.mxu0
    %v460 = vadd.f32 0.0, %v459
    %v461 = vpop.f32.mrf.mxu0
    %462 = vdwg.mxu0
    %463 = vrot.lane.b32.xlu0 %v198, 96
    %v464 = vpop.permute.xlu0 %463
    %465 = vrot.lane.b32.xlu0 %v200, 96
    %v466 = vpop.permute.xlu0 %465
    %v467 = vsel %vm205, %v198, 0
    %v469 = vsel %vm205, %v200, 0
    %v471 = vsel %vm205, %v464, 0
    %v473 = vsel %vm205, %v466, 0
    %475 = vmatprep.subr.mxu0 0.0
    %476 = vmatpush1.xpose.msra.mxu0 0.0
    %477 = vmatprep.subr.mxu0 0.0
    %478 = vmatpush1.xpose.msra.mxu0 0.0
    %479 = vmatprep.subr.mxu0 0.0
    %480 = vmatpush1.xpose.msra.mxu0 0.0
    %481 = vmatprep.subr.mxu0 0.0
    %482 = vmatpush1.xpose.msra.mxu0 0.0
    %483 = vmatprep.subr.mxu0 0.0
    %484 = vmatpush1.xpose.msra.mxu0 0.0
    %485 = vmatprep.subr.mxu0 0.0
    %486 = vmatpush1.xpose.msra.mxu0 0.0
    %487 = vmatprep.subr.mxu0 0.0
    %488 = vmatpush1.xpose.msra.mxu0 0.0
    %489 = vmatprep.subr.mxu0 0.0
    %490 = vmatpush1.xpose.msra.mxu0 0.0
    %491 = vmatprep.subr.mxu0 0.0
    %492 = vmatpush1.xpose.msra.mxu0 0.0
    %493 = vmatprep.subr.mxu0 0.0
    %494 = vmatpush1.xpose.msra.mxu0 0.0
    %495 = vmatprep.subr.mxu0 0.0
    %496 = vmatpush1.xpose.msra.mxu0 0.0
    %497 = vmatprep.subr.mxu0 0.0
    %498 = vmatpush1.xpose.msra.mxu0 0.0
    %499 = vmatprep.subr.mxu0 0.0
    %500 = vmatpush1.xpose.msra.mxu0 0.0
    %501 = vmatprep.subr.mxu0 0.0
    %502 = vmatpush1.xpose.msra.mxu0 0.0
    %503 = vmatprep.subr.mxu0 0.0
    %504 = vmatpush1.xpose.msra.mxu0 %v473
    %505 = vmatprep.subr.mxu0 0.0
    %506 = vmatpush1.xpose.msra.mxu0 %v471
    %507 = vmatprep.subr.mxu0 0.0
    %508 = vmatpush2.xpose.msra.mxu0 0.0
    %509 = vmatprep.subr.mxu0 0.0
    %510 = vmatpush2.xpose.msra.mxu0 0.0
    %511 = vmatprep.subr.mxu0 0.0
    %512 = vmatpush2.xpose.msra.mxu0 0.0
    %513 = vmatprep.subr.mxu0 0.0
    %514 = vmatpush2.xpose.msra.mxu0 0.0
    %515 = vmatprep.subr.mxu0 0.0
    %516 = vmatpush2.xpose.msra.mxu0 0.0
    %517 = vmatprep.subr.mxu0 0.0
    %518 = vmatpush2.xpose.msra.mxu0 0.0
    %519 = vmatprep.subr.mxu0 0.0
    %520 = vmatpush2.xpose.msra.mxu0 0.0
    %521 = vmatprep.subr.mxu0 0.0
    %522 = vmatpush2.xpose.msra.mxu0 0.0
    %523 = vmatprep.subr.mxu0 0.0
    %524 = vmatpush2.xpose.msra.mxu0 0.0
    %525 = vmatprep.subr.mxu0 0.0
    %526 = vmatpush2.xpose.msra.mxu0 0.0
    %527 = vmatprep.subr.mxu0 0.0
    %528 = vmatpush2.xpose.msra.mxu0 0.0
    %529 = vmatprep.subr.mxu0 0.0
    %530 = vmatpush2.xpose.msra.mxu0 0.0
    %531 = vmatprep.subr.mxu0 0.0
    %532 = vmatpush2.xpose.msra.mxu0 0.0
    %533 = vmatprep.subr.mxu0 0.0
    %534 = vmatpush2.xpose.msra.mxu0 0.0
    %535 = vmatprep.subr.mxu0 0.0
    %536 = vmatpush2.xpose.msra.mxu0 0.0
    %537 = vmatprep.subr.mxu0 0.0
    %538 = vmatpush2.xpose.msra.mxu0 0.0
    %539 = vmatprep.mubr.f32.mxu0 0.0
    %540 = vmatmul.mubr.f32.gmra.mxu0 %v467
    %v541 = vpop.f32.mrf.mxu0
    %v542 = vadd.f32 0.0, %v541
    %v543 = vpop.f32.mrf.mxu0
    %544 = vmatprep.mubr.f32.mxu0 0.0
    %545 = vmatmul.mubr.f32.gmra.mxu0 %v469
    %v546 = vpop.f32.mrf.mxu0
    %v547 = vadd.f32 0.0, %v546
    %v548 = vpop.f32.mrf.mxu0
    %549 = vdwg.mxu0
    %v550 = vmul.f32 %v281, 0.35355338
    %v551 = vmul.f32 %v286, 0.35355338
    %v552 = vmul.f32 %v368, 0.35355338
    %v553 = vmul.f32 %v373, 0.35355338
    %v554 = vmul.f32 %v455, 0.35355338
    %v555 = vmul.f32 %v460, 0.35355338
    %v556 = vmul.f32 %v542, 0.35355338
    %v557 = vmul.f32 %v547, 0.35355338
    %v558 = vld [vmem:[%s1] sm:$0xff]
    %v559 = vld [vmem:[%s1 + $0x8] sm:$0xff]
    %v560 = vld [vmem:[%s1 + $0x10] sm:$0xff]
    %v561 = vld [vmem:[%s1 + $0x18] sm:$0xff]
    %v562 = vld [vmem:[%s1 + $0x20] sm:$0xff]
    %v563 = vld [vmem:[%s1 + $0x28] sm:$0xff]
    %v564 = vld [vmem:[%s1 + $0x30] sm:$0xff]
    %v565 = vld [vmem:[%s1 + $0x38] sm:$0xff]
    %v566 = vadd.f32 %v550, %v558
    %v567 = vadd.f32 %v551, %v559
    %v568 = vadd.f32 %v552, %v560
    %v569 = vadd.f32 %v553, %v561
    %v570 = vadd.f32 %v554, %v562
    %v571 = vadd.f32 %v555, %v563
    %v572 = vadd.f32 %v556, %v564
    %v573 = vadd.f32 %v557, %v565
    %v574 = vld [vmem:[%s2] sm:$0x1]
    %vm575 = vcmp.gt.f32.partialorder %v574, 0.0
    %v576 = vsel %vm575, 1, 0
    %v577 = vlaneseq
    %v578 = vshrl.u32 %v577, 7
    %v579 = vsub.s32 0, %v578
    %v580 = vrot.slane %v576, %v579
    %vm581 = vcmp.eq.s32.totalorder %v580, 1
    %v582 = vsel %vm581, %v566, -1e+09
    %v583 = vsel %vm581, %v567, -1e+09
    %v584 = vsel %vm581, %v568, -1e+09
    %v585 = vsel %vm581, %v569, -1e+09
    %v586 = vsel %vm581, %v570, -1e+09
    %v587 = vsel %vm581, %v571, -1e+09
    %v588 = vsel %vm581, %v572, -1e+09
    %v589 = vsel %vm581, %v573, -1e+09
    %vm590 = vcmask 130048
    %v591 = vsel %vm590, %v582, -inf
    %592 = vmax.xlane.f32.xlu0 %v591
    %v593 = vpop.xlane.xlu0 %592
    %v594 = vsel %vm590, %v583, -inf
    %595 = vmax.xlane.f32.xlu0 %v594
    %v596 = vpop.xlane.xlu0 %595
    %v597 = vsel %vm590, %v584, -inf
    %598 = vmax.xlane.f32.xlu0 %v597
    %v599 = vpop.xlane.xlu0 %598
    %v600 = vsel %vm590, %v585, -inf
    %601 = vmax.xlane.f32.xlu0 %v600
    %v602 = vpop.xlane.xlu0 %601
    %v603 = vsel %vm590, %v586, -inf
    %604 = vmax.xlane.f32.xlu0 %v603
    %v605 = vpop.xlane.xlu0 %604
    %v606 = vsel %vm590, %v587, -inf
    %607 = vmax.xlane.f32.xlu0 %v606
    %v608 = vpop.xlane.xlu0 %607
    %v609 = vsel %vm590, %v588, -inf
    %610 = vmax.xlane.f32.xlu0 %v609
    %v611 = vpop.xlane.xlu0 %610
    %v612 = vsel %vm590, %v589, -inf
    %613 = vmax.xlane.f32.xlu0 %v612
    %v614 = vpop.xlane.xlu0 %613
    %v615 = vsub.f32 %v582, %v593
    %v616 = vsub.f32 %v583, %v596
    %v617 = vsub.f32 %v584, %v599
    %v618 = vsub.f32 %v585, %v602
    %v619 = vsub.f32 %v586, %v605
    %v620 = vsub.f32 %v587, %v608
    %v621 = vsub.f32 %v588, %v611
    %v622 = vsub.f32 %v589, %v614
    %v623 = vmul.f32 %v615, 1.442695
    %v624 = vpow.pop %v623
    %v625 = vmul.f32 %v616, 1.442695
    %v626 = vpow.pop %v625
    %v627 = vmul.f32 %v617, 1.442695
    %v628 = vpow.pop %v627
    %v629 = vmul.f32 %v618, 1.442695
    %v630 = vpow.pop %v629
    %v631 = vmul.f32 %v619, 1.442695
    %v632 = vpow.pop %v631
    %v633 = vmul.f32 %v620, 1.442695
    %v634 = vpow.pop %v633
    %v635 = vmul.f32 %v621, 1.442695
    %v636 = vpow.pop %v635
    %v637 = vmul.f32 %v622, 1.442695
    %v638 = vpow.pop %v637
    %v639 = vsel %vm590, %v624, 0.0
    %640 = vadd.xlane.f32.xlu0 %v639
    %v641 = vpop.xlane.xlu0 %640
    %v642 = vsel %vm590, %v626, 0.0
    %643 = vadd.xlane.f32.xlu0 %v642
    %v644 = vpop.xlane.xlu0 %643
    %v645 = vsel %vm590, %v628, 0.0
    %646 = vadd.xlane.f32.xlu0 %v645
    %v647 = vpop.xlane.xlu0 %646
    %v648 = vsel %vm590, %v630, 0.0
    %649 = vadd.xlane.f32.xlu0 %v648
    %v650 = vpop.xlane.xlu0 %649
    %v651 = vsel %vm590, %v632, 0.0
    %652 = vadd.xlane.f32.xlu0 %v651
    %v653 = vpop.xlane.xlu0 %652
    %v654 = vsel %vm590, %v634, 0.0
    %655 = vadd.xlane.f32.xlu0 %v654
    %v656 = vpop.xlane.xlu0 %655
    %v657 = vsel %vm590, %v636, 0.0
    %658 = vadd.xlane.f32.xlu0 %v657
    %v659 = vpop.xlane.xlu0 %658
    %v660 = vsel %vm590, %v638, 0.0
    %661 = vadd.xlane.f32.xlu0 %v660
    %v662 = vpop.xlane.xlu0 %661
    %v663 = vrcp.pop %v641
    %v664 = vmul.f32 %v624, %v663
    %v665 = vrcp.pop %v644
    %v666 = vmul.f32 %v626, %v665
    %v667 = vrcp.pop %v647
    %v668 = vmul.f32 %v628, %v667
    %v669 = vrcp.pop %v650
    %v670 = vmul.f32 %v630, %v669
    %v671 = vrcp.pop %v653
    %v672 = vmul.f32 %v632, %v671
    %v673 = vrcp.pop %v656
    %v674 = vmul.f32 %v634, %v673
    %v675 = vrcp.pop %v659
    %v676 = vmul.f32 %v636, %v675
    %v677 = vrcp.pop %v662
    %v678 = vmul.f32 %v638, %v677
    %679 = vst.msk [vmem:[#allocation2] sm:$0xff] %vm590, %v664
    %680 = vst.msk [vmem:[#allocation2 + $0x8] sm:$0xff] %vm590, %v666
    %681 = vst.msk [vmem:[#allocation2 + $0x10] sm:$0xff] %vm590, %v668
    %682 = vst.msk [vmem:[#allocation2 + $0x18] sm:$0xff] %vm590, %v670
    %683 = vst.msk [vmem:[#allocation2 + $0x20] sm:$0xff] %vm590, %v672
    %684 = vst.msk [vmem:[#allocation2 + $0x28] sm:$0xff] %vm590, %v674
    %685 = vst.msk [vmem:[#allocation2 + $0x30] sm:$0xff] %vm590, %v676
    %686 = vst.msk [vmem:[#allocation2 + $0x38] sm:$0xff] %vm590, %v678
    %687 = vrot.lane.b32.xlu0 %v167, 64
    %v688 = vpop.permute.xlu0 %687
    %689 = vrot.lane.b32.xlu0 %v172, 64
    %v690 = vpop.permute.xlu0 %689
    %v694 = vsel %vm590, %v664, 0
    %v697 = vsel %vm590, %v666, 0
    %699 = vmatprep.subr.mxu0 0.0
    %700 = vmatpush1.msra.mxu0 0.0
    %701 = vmatprep.subr.mxu0 0.0
    %702 = vmatpush1.msra.mxu0 0.0
    %703 = vmatprep.subr.mxu0 0.0
    %704 = vmatpush1.msra.mxu0 0.0
    %705 = vmatprep.subr.mxu0 0.0
    %706 = vmatpush1.msra.mxu0 0.0
    %707 = vmatprep.subr.mxu0 0.0
    %708 = vmatpush1.msra.mxu0 0.0
    %709 = vmatprep.subr.mxu0 0.0
    %710 = vmatpush1.msra.mxu0 0.0
    %711 = vmatprep.subr.mxu0 0.0
    %712 = vmatpush1.msra.mxu0 0.0
    %713 = vmatprep.subr.mxu0 0.0
    %714 = vmatpush1.msra.mxu0 0.0
    %715 = vmatprep.subr.mxu0 0.0
    %716 = vmatpush1.msra.mxu0 0.0
    %717 = vmatprep.subr.mxu0 0.0
    %718 = vmatpush1.msra.mxu0 0.0
    %719 = vmatprep.subr.mxu0 0.0
    %720 = vmatpush1.msra.mxu0 0.0
    %721 = vmatprep.subr.mxu0 0.0
    %722 = vmatpush1.msra.mxu0 0.0
    %723 = vmatprep.subr.mxu0 0.0
    %724 = vmatpush1.msra.mxu0 0.0
    %725 = vmatprep.subr.mxu0 0.0
    %726 = vmatpush1.msra.mxu0 0.0
    %727 = vmatprep.subr.mxu0 0.0
    %728 = vmatpush1.msra.mxu0 %v690
    %729 = vmatprep.subr.mxu0 0.0
    %730 = vmatpush1.msra.mxu0 %v688
    %731 = vmatprep.subr.mxu0 0.0
    %732 = vmatpush2.msra.mxu0 0.0
    %733 = vmatprep.subr.mxu0 0.0
    %734 = vmatpush2.msra.mxu0 0.0
    %735 = vmatprep.subr.mxu0 0.0
    %736 = vmatpush2.msra.mxu0 0.0
    %737 = vmatprep.subr.mxu0 0.0
    %738 = vmatpush2.msra.mxu0 0.0
    %739 = vmatprep.subr.mxu0 0.0
    %740 = vmatpush2.msra.mxu0 0.0
    %741 = vmatprep.subr.mxu0 0.0
    %742 = vmatpush2.msra.mxu0 0.0
    %743 = vmatprep.subr.mxu0 0.0
    %744 = vmatpush2.msra.mxu0 0.0
    %745 = vmatprep.subr.mxu0 0.0
    %746 = vmatpush2.msra.mxu0 0.0
    %747 = vmatprep.subr.mxu0 0.0
    %748 = vmatpush2.msra.mxu0 0.0
    %749 = vmatprep.subr.mxu0 0.0
    %750 = vmatpush2.msra.mxu0 0.0
    %751 = vmatprep.subr.mxu0 0.0
    %752 = vmatpush2.msra.mxu0 0.0
    %753 = vmatprep.subr.mxu0 0.0
    %754 = vmatpush2.msra.mxu0 0.0
    %755 = vmatprep.subr.mxu0 0.0
    %756 = vmatpush2.msra.mxu0 0.0
    %757 = vmatprep.subr.mxu0 0.0
    %758 = vmatpush2.msra.mxu0 0.0
    %759 = vmatprep.subr.mxu0 0.0
    %760 = vmatpush2.msra.mxu0 0.0
    %761 = vmatprep.subr.mxu0 0.0
    %762 = vmatpush2.msra.mxu0 0.0
    %763 = vmatprep.mubr.f32.mxu0 0.0
    %764 = vmatmul.mubr.f32.gmra.mxu0 %v694
    %v765 = vpop.f32.mrf.mxu0
    %v766 = vadd.f32 0.0, %v765
    %v767 = vpop.f32.mrf.mxu0
    %768 = vmatprep.mubr.f32.mxu0 0.0
    %769 = vmatmul.mubr.f32.gmra.mxu0 %v697
    %v770 = vpop.f32.mrf.mxu0
    %v771 = vadd.f32 0.0, %v770
    %v772 = vpop.f32.mrf.mxu0
    %773 = vdwg.mxu0
    %774 = vrot.lane.b32.xlu0 %v190, 64
    %v775 = vpop.permute.xlu0 %774
    %776 = vrot.lane.b32.xlu0 %v192, 64
    %v777 = vpop.permute.xlu0 %776
    %v781 = vsel %vm590, %v668, 0
    %v784 = vsel %vm590, %v670, 0
    %786 = vmatprep.subr.mxu0 0.0
    %787 = vmatpush1.msra.mxu0 0.0
    %788 = vmatprep.subr.mxu0 0.0
    %789 = vmatpush1.msra.mxu0 0.0
    %790 = vmatprep.subr.mxu0 0.0
    %791 = vmatpush1.msra.mxu0 0.0
    %792 = vmatprep.subr.mxu0 0.0
    %793 = vmatpush1.msra.mxu0 0.0
    %794 = vmatprep.subr.mxu0 0.0
    %795 = vmatpush1.msra.mxu0 0.0
    %796 = vmatprep.subr.mxu0 0.0
    %797 = vmatpush1.msra.mxu0 0.0
    %798 = vmatprep.subr.mxu0 0.0
    %799 = vmatpush1.msra.mxu0 0.0
    %800 = vmatprep.subr.mxu0 0.0
    %801 = vmatpush1.msra.mxu0 0.0
    %802 = vmatprep.subr.mxu0 0.0
    %803 = vmatpush1.msra.mxu0 0.0
    %804 = vmatprep.subr.mxu0 0.0
    %805 = vmatpush1.msra.mxu0 0.0
    %806 = vmatprep.subr.mxu0 0.0
    %807 = vmatpush1.msra.mxu0 0.0
    %808 = vmatprep.subr.mxu0 0.0
    %809 = vmatpush1.msra.mxu0 0.0
    %810 = vmatprep.subr.mxu0 0.0
    %811 = vmatpush1.msra.mxu0 0.0
    %812 = vmatprep.subr.mxu0 0.0
    %813 = vmatpush1.msra.mxu0 0.0
    %814 = vmatprep.subr.mxu0 0.0
    %815 = vmatpush1.msra.mxu0 %v777
    %816 = vmatprep.subr.mxu0 0.0
    %817 = vmatpush1.msra.mxu0 %v775
    %818 = vmatprep.subr.mxu0 0.0
    %819 = vmatpush2.msra.mxu0 0.0
    %820 = vmatprep.subr.mxu0 0.0
    %821 = vmatpush2.msra.mxu0 0.0
    %822 = vmatprep.subr.mxu0 0.0
    %823 = vmatpush2.msra.mxu0 0.0
    %824 = vmatprep.subr.mxu0 0.0
    %825 = vmatpush2.msra.mxu0 0.0
    %826 = vmatprep.subr.mxu0 0.0
    %827 = vmatpush2.msra.mxu0 0.0
    %828 = vmatprep.subr.mxu0 0.0
    %829 = vmatpush2.msra.mxu0 0.0
    %830 = vmatprep.subr.mxu0 0.0
    %831 = vmatpush2.msra.mxu0 0.0
    %832 = vmatprep.subr.mxu0 0.0
    %833 = vmatpush2.msra.mxu0 0.0
    %834 = vmatprep.subr.mxu0 0.0
    %835 = vmatpush2.msra.mxu0 0.0
    %836 = vmatprep.subr.mxu0 0.0
    %837 = vmatpush2.msra.mxu0 0.0
    %838 = vmatprep.subr.mxu0 0.0
    %839 = vmatpush2.msra.mxu0 0.0
    %840 = vmatprep.subr.mxu0 0.0
    %841 = vmatpush2.msra.mxu0 0.0
    %842 = vmatprep.subr.mxu0 0.0
    %843 = vmatpush2.msra.mxu0 0.0
    %844 = vmatprep.subr.mxu0 0.0
    %845 = vmatpush2.msra.mxu0 0.0
    %846 = vmatprep.subr.mxu0 0.0
    %847 = vmatpush2.msra.mxu0 0.0
    %848 = vmatprep.subr.mxu0 0.0
    %849 = vmatpush2.msra.mxu0 0.0
    %850 = vmatprep.mubr.f32.mxu0 0.0
    %851 = vmatmul.mubr.f32.gmra.mxu0 %v781
    %v852 = vpop.f32.mrf.mxu0
    %v853 = vadd.f32 0.0, %v852
    %v854 = vpop.f32.mrf.mxu0
    %855 = vmatprep.mubr.f32.mxu0 0.0
    %856 = vmatmul.mubr.f32.gmra.mxu0 %v784
    %v857 = vpop.f32.mrf.mxu0
    %v858 = vadd.f32 0.0, %v857
    %v859 = vpop.f32.mrf.mxu0
    %860 = vdwg.mxu0
    %861 = vrot.lane.b32.xlu0 %v194, 64
    %v862 = vpop.permute.xlu0 %861
    %863 = vrot.lane.b32.xlu0 %v196, 64
    %v864 = vpop.permute.xlu0 %863
    %v868 = vsel %vm590, %v672, 0
    %v871 = vsel %vm590, %v674, 0
    %873 = vmatprep.subr.mxu0 0.0
    %874 = vmatpush1.msra.mxu0 0.0
    %875 = vmatprep.subr.mxu0 0.0
    %876 = vmatpush1.msra.mxu0 0.0
    %877 = vmatprep.subr.mxu0 0.0
    %878 = vmatpush1.msra.mxu0 0.0
    %879 = vmatprep.subr.mxu0 0.0
    %880 = vmatpush1.msra.mxu0 0.0
    %881 = vmatprep.subr.mxu0 0.0
    %882 = vmatpush1.msra.mxu0 0.0
    %883 = vmatprep.subr.mxu0 0.0
    %884 = vmatpush1.msra.mxu0 0.0
    %885 = vmatprep.subr.mxu0 0.0
    %886 = vmatpush1.msra.mxu0 0.0
    %887 = vmatprep.subr.mxu0 0.0
    %888 = vmatpush1.msra.mxu0 0.0
    %889 = vmatprep.subr.mxu0 0.0
    %890 = vmatpush1.msra.mxu0 0.0
    %891 = vmatprep.subr.mxu0 0.0
    %892 = vmatpush1.msra.mxu0 0.0
    %893 = vmatprep.subr.mxu0 0.0
    %894 = vmatpush1.msra.mxu0 0.0
    %895 = vmatprep.subr.mxu0 0.0
    %896 = vmatpush1.msra.mxu0 0.0
    %897 = vmatprep.subr.mxu0 0.0
    %898 = vmatpush1.msra.mxu0 0.0
    %899 = vmatprep.subr.mxu0 0.0
    %900 = vmatpush1.msra.mxu0 0.0
    %901 = vmatprep.subr.mxu0 0.0
    %902 = vmatpush1.msra.mxu0 %v864
    %903 = vmatprep.subr.mxu0 0.0
    %904 = vmatpush1.msra.mxu0 %v862
    %905 = vmatprep.subr.mxu0 0.0
    %906 = vmatpush2.msra.mxu0 0.0
    %907 = vmatprep.subr.mxu0 0.0
    %908 = vmatpush2.msra.mxu0 0.0
    %909 = vmatprep.subr.mxu0 0.0
    %910 = vmatpush2.msra.mxu0 0.0
    %911 = vmatprep.subr.mxu0 0.0
    %912 = vmatpush2.msra.mxu0 0.0
    %913 = vmatprep.subr.mxu0 0.0
    %914 = vmatpush2.msra.mxu0 0.0
    %915 = vmatprep.subr.mxu0 0.0
    %916 = vmatpush2.msra.mxu0 0.0
    %917 = vmatprep.subr.mxu0 0.0
    %918 = vmatpush2.msra.mxu0 0.0
    %919 = vmatprep.subr.mxu0 0.0
    %920 = vmatpush2.msra.mxu0 0.0
    %921 = vmatprep.subr.mxu0 0.0
    %922 = vmatpush2.msra.mxu0 0.0
    %923 = vmatprep.subr.mxu0 0.0
    %924 = vmatpush2.msra.mxu0 0.0
    %925 = vmatprep.subr.mxu0 0.0
    %926 = vmatpush2.msra.mxu0 0.0
    %927 = vmatprep.subr.mxu0 0.0
    %928 = vmatpush2.msra.mxu0 0.0
    %929 = vmatprep.subr.mxu0 0.0
    %930 = vmatpush2.msra.mxu0 0.0
    %931 = vmatprep.subr.mxu0 0.0
    %932 = vmatpush2.msra.mxu0 0.0
    %933 = vmatprep.subr.mxu0 0.0
    %934 = vmatpush2.msra.mxu0 0.0
    %935 = vmatprep.subr.mxu0 0.0
    %936 = vmatpush2.msra.mxu0 0.0
    %937 = vmatprep.mubr.f32.mxu0 0.0
    %938 = vmatmul.mubr.f32.gmra.mxu0 %v868
    %v939 = vpop.f32.mrf.mxu0
    %v940 = vadd.f32 0.0, %v939
    %v941 = vpop.f32.mrf.mxu0
    %942 = vmatprep.mubr.f32.mxu0 0.0
    %943 = vmatmul.mubr.f32.gmra.mxu0 %v871
    %v944 = vpop.f32.mrf.mxu0
    %v945 = vadd.f32 0.0, %v944
    %v946 = vpop.f32.mrf.mxu0
    %947 = vdwg.mxu0
    %948 = vrot.lane.b32.xlu0 %v198, 64
    %v949 = vpop.permute.xlu0 %948
    %950 = vrot.lane.b32.xlu0 %v200, 64
    %v951 = vpop.permute.xlu0 %950
    %v955 = vsel %vm590, %v676, 0
    %v958 = vsel %vm590, %v678, 0
    %960 = vmatprep.subr.mxu0 0.0
    %961 = vmatpush1.msra.mxu0 0.0
    %962 = vmatprep.subr.mxu0 0.0
    %963 = vmatpush1.msra.mxu0 0.0
    %964 = vmatprep.subr.mxu0 0.0
    %965 = vmatpush1.msra.mxu0 0.0
    %966 = vmatprep.subr.mxu0 0.0
    %967 = vmatpush1.msra.mxu0 0.0
    %968 = vmatprep.subr.mxu0 0.0
    %969 = vmatpush1.msra.mxu0 0.0
    %970 = vmatprep.subr.mxu0 0.0
    %971 = vmatpush1.msra.mxu0 0.0
    %972 = vmatprep.subr.mxu0 0.0
    %973 = vmatpush1.msra.mxu0 0.0
    %974 = vmatprep.subr.mxu0 0.0
    %975 = vmatpush1.msra.mxu0 0.0
    %976 = vmatprep.subr.mxu0 0.0
    %977 = vmatpush1.msra.mxu0 0.0
    %978 = vmatprep.subr.mxu0 0.0
    %979 = vmatpush1.msra.mxu0 0.0
    %980 = vmatprep.subr.mxu0 0.0
    %981 = vmatpush1.msra.mxu0 0.0
    %982 = vmatprep.subr.mxu0 0.0
    %983 = vmatpush1.msra.mxu0 0.0
    %984 = vmatprep.subr.mxu0 0.0
    %985 = vmatpush1.msra.mxu0 0.0
    %986 = vmatprep.subr.mxu0 0.0
    %987 = vmatpush1.msra.mxu0 0.0
    %988 = vmatprep.subr.mxu0 0.0
    %989 = vmatpush1.msra.mxu0 %v951
    %990 = vmatprep.subr.mxu0 0.0
    %991 = vmatpush1.msra.mxu0 %v949
    %992 = vmatprep.subr.mxu0 0.0
    %993 = vmatpush2.msra.mxu0 0.0
    %994 = vmatprep.subr.mxu0 0.0
    %995 = vmatpush2.msra.mxu0 0.0
    %996 = vmatprep.subr.mxu0 0.0
    %997 = vmatpush2.msra.mxu0 0.0
    %998 = vmatprep.subr.mxu0 0.0
    %999 = vmatpush2.msra.mxu0 0.0
    %1000 = vmatprep.subr.mxu0 0.0
    %1001 = vmatpush2.msra.mxu0 0.0
    %1002 = vmatprep.subr.mxu0 0.0
    %1003 = vmatpush2.msra.mxu0 0.0
    %1004 = vmatprep.subr.mxu0 0.0
    %1005 = vmatpush2.msra.mxu0 0.0
    %1006 = vmatprep.subr.mxu0 0.0
    %1007 = vmatpush2.msra.mxu0 0.0
    %1008 = vmatprep.subr.mxu0 0.0
    %1009 = vmatpush2.msra.mxu0 0.0
    %1010 = vmatprep.subr.mxu0 0.0
    %1011 = vmatpush2.msra.mxu0 0.0
    %1012 = vmatprep.subr.mxu0 0.0
    %1013 = vmatpush2.msra.mxu0 0.0
    %1014 = vmatprep.subr.mxu0 0.0
    %1015 = vmatpush2.msra.mxu0 0.0
    %1016 = vmatprep.subr.mxu0 0.0
    %1017 = vmatpush2.msra.mxu0 0.0
    %1018 = vmatprep.subr.mxu0 0.0
    %1019 = vmatpush2.msra.mxu0 0.0
    %1020 = vmatprep.subr.mxu0 0.0
    %1021 = vmatpush2.msra.mxu0 0.0
    %1022 = vmatprep.subr.mxu0 0.0
    %1023 = vmatpush2.msra.mxu0 0.0
    %1024 = vmatprep.mubr.f32.mxu0 0.0
    %1025 = vmatmul.mubr.f32.gmra.mxu0 %v955
    %v1026 = vpop.f32.mrf.mxu0
    %v1027 = vadd.f32 0.0, %v1026
    %v1028 = vpop.f32.mrf.mxu0
    %1029 = vmatprep.mubr.f32.mxu0 0.0
    %1030 = vmatmul.mubr.f32.gmra.mxu0 %v958
    %v1031 = vpop.f32.mrf.mxu0
    %v1032 = vadd.f32 0.0, %v1031
    %v1033 = vpop.f32.mrf.mxu0
    %1034 = vdwg.mxu0
    %1037 = vrot.lane.b32.xlu0 %v853, 8
    %v1038 = vpop.permute.xlu0 %1037
    %1039 = vrot.lane.b32.xlu0 %v858, 8
    %v1040 = vpop.permute.xlu0 %1039
    %1045 = vrot.lane.b32.xlu0 %v940, 16
    %v1046 = vpop.permute.xlu0 %1045
    %1047 = vrot.lane.b32.xlu0 %v945, 16
    %v1048 = vpop.permute.xlu0 %1047
    %1053 = vrot.lane.b32.xlu0 %v1027, 24
    %v1054 = vpop.permute.xlu0 %1053
    %1055 = vrot.lane.b32.xlu0 %v1032, 24
    %v1056 = vpop.permute.xlu0 %1055
    %v1059 = vsel %vm205, %v766, %v1038
    %v1060 = vsel %vm205, %v771, %v1040
    %v1061 = vsel %vm590, %v1059, %v1046
    %v1062 = vsel %vm590, %v1060, %v1048
    %vm1063 = vcmask 195584
    %v1064 = vsel %vm1063, %v1061, %v1054
    %v1065 = vsel %vm1063, %v1062, %v1056
    %1068 = vrot.lane.b32.xlu0 %v184, 32
    %v1069 = vpop.permute.xlu0 %1068
    %1070 = vrot.lane.b32.xlu0 %v186, 32
    %v1071 = vpop.permute.xlu0 %1070
    %v1074 = vmul.f32 %v1064, %v1069
    %v1075 = vmul.f32 %v1065, %v1071
    %v1076 = vld [vmem:[%s7] sm:$0xff]
    %v1077 = vld [vmem:[%s7 + $0x8] sm:$0xff]
    %v1078 = vld [vmem:[%s7 + $0x10] sm:$0xff]
    %v1079 = vld [vmem:[%s7 + $0x18] sm:$0xff]
    %v1080 = vld [vmem:[%s8] sm:$0x1]
    %v1082 = vlaneseq
    %v1083 = vshrl.u32 %v1082, 7
    %v1084 = vsub.s32 0, %v1083
    %v1085 = vrot.slane %v1080, %v1084
    %v1088 = vsel %vm37, %v1074, 0
    %v1091 = vsel %vm37, %v1075, 0
    %1093 = vmatprep.subr.mxu0 0.0
    %1094 = vmatpush1.msra.mxu0 0.0
    %1095 = vmatprep.subr.mxu0 0.0
    %1096 = vmatpush1.msra.mxu0 0.0
    %1097 = vmatprep.subr.mxu0 0.0
    %1098 = vmatpush1.msra.mxu0 0.0
    %1099 = vmatprep.subr.mxu0 0.0
    %1100 = vmatpush1.msra.mxu0 0.0
    %1101 = vmatprep.subr.mxu0 0.0
    %1102 = vmatpush1.msra.mxu0 0.0
    %1103 = vmatprep.subr.mxu0 0.0
    %1104 = vmatpush1.msra.mxu0 0.0
    %1105 = vmatprep.subr.mxu0 0.0
    %1106 = vmatpush1.msra.mxu0 0.0
    %1107 = vmatprep.subr.mxu0 0.0
    %1108 = vmatpush1.msra.mxu0 0.0
    %1109 = vmatprep.subr.mxu0 0.0
    %1110 = vmatpush1.msra.mxu0 0.0
    %1111 = vmatprep.subr.mxu0 0.0
    %1112 = vmatpush1.msra.mxu0 0.0
    %1113 = vmatprep.subr.mxu0 0.0
    %1114 = vmatpush1.msra.mxu0 0.0
    %1115 = vmatprep.subr.mxu0 0.0
    %1116 = vmatpush1.msra.mxu0 0.0
    %1117 = vmatprep.subr.mxu0 0.0
    %1118 = vmatpush1.msra.mxu0 %v1079
    %1119 = vmatprep.subr.mxu0 0.0
    %1120 = vmatpush1.msra.mxu0 %v1078
    %1121 = vmatprep.subr.mxu0 0.0
    %1122 = vmatpush1.msra.mxu0 %v1077
    %1123 = vmatprep.subr.mxu0 0.0
    %1124 = vmatpush1.msra.mxu0 %v1076
    %1125 = vmatprep.subr.mxu0 0.0
    %1126 = vmatpush2.msra.mxu0 0.0
    %1127 = vmatprep.subr.mxu0 0.0
    %1128 = vmatpush2.msra.mxu0 0.0
    %1129 = vmatprep.subr.mxu0 0.0
    %1130 = vmatpush2.msra.mxu0 0.0
    %1131 = vmatprep.subr.mxu0 0.0
    %1132 = vmatpush2.msra.mxu0 0.0
    %1133 = vmatprep.subr.mxu0 0.0
    %1134 = vmatpush2.msra.mxu0 0.0
    %1135 = vmatprep.subr.mxu0 0.0
    %1136 = vmatpush2.msra.mxu0 0.0
    %1137 = vmatprep.subr.mxu0 0.0
    %1138 = vmatpush2.msra.mxu0 0.0
    %1139 = vmatprep.subr.mxu0 0.0
    %1140 = vmatpush2.msra.mxu0 0.0
    %1141 = vmatprep.subr.mxu0 0.0
    %1142 = vmatpush2.msra.mxu0 0.0
    %1143 = vmatprep.subr.mxu0 0.0
    %1144 = vmatpush2.msra.mxu0 0.0
    %1145 = vmatprep.subr.mxu0 0.0
    %1146 = vmatpush2.msra.mxu0 0.0
    %1147 = vmatprep.subr.mxu0 0.0
    %1148 = vmatpush2.msra.mxu0 0.0
    %1149 = vmatprep.subr.mxu0 0.0
    %1150 = vmatpush2.msra.mxu0 0.0
    %1151 = vmatprep.subr.mxu0 0.0
    %1152 = vmatpush2.msra.mxu0 0.0
    %1153 = vmatprep.subr.mxu0 0.0
    %1154 = vmatpush2.msra.mxu0 0.0
    %1155 = vmatprep.subr.mxu0 0.0
    %1156 = vmatpush2.msra.mxu0 0.0
    %1157 = vmatprep.mubr.f32.mxu0 0.0
    %1158 = vmatmul.mubr.f32.gmra.mxu0 %v1088
    %v1159 = vpop.f32.mrf.mxu0
    %v1160 = vadd.f32 %v1085, %v1159
    %v1161 = vpop.f32.mrf.mxu0
    %1162 = vmatprep.mubr.f32.mxu0 0.0
    %1163 = vmatmul.mubr.f32.gmra.mxu0 %v1091
    %v1164 = vpop.f32.mrf.mxu0
    %v1165 = vadd.f32 %v1085, %v1164
    %v1166 = vpop.f32.mrf.mxu0
    %1167 = vdwg.mxu0
    %v1168 = vadd.f32 %v35, %v1160
    %v1169 = vadd.f32 %v36, %v1165
    %1170 = vst.msk [vmem:[%s9] sm:$0xff] %vm37, %v1168
    %1171 = vst.msk [vmem:[%s9 + $0x8] sm:$0xff] %vm37, %v1169
    // Predicated region
    $region38: #{local_transform_forward.24} parent=1 // pred_check
      _
    $region39: #{local_transform_forward.24} parent=1 // pred_check_branch
      %1173 = sbr.rel (0) target = $region41
    $region40: #{local_transform_forward.24} parent=1 // pred_region
      _
    $region41: #{local_transform_forward.24} parent=1 // pred_fallthru
      _
    // Predicated region
    $region42: #{local_transform_forward.24} parent=1 // pred_check
      _
    $region43: #{local_transform_forward.24} parent=1 // pred_check_branch
      %1175 = sbr.rel (0) target = $region45
    $region44: #{local_transform_forward.24} parent=1 // pred_region
      %s1177 = ssub.s32 1024, 1024
      %1178 = vsyncadd [#allocation3], %s1177
      %s1179 = sshll.u32 [#allocation2], 4
      %s1180 = int_to_ptr.vmem [resolvable:$true] %s1179
      %1185 = dma.vmem_to_hbm [thread:$0]  %s1180, 1024, %s10, [#allocation3], 128, 128, 8
    $region45: #{local_transform_forward.24} parent=1 // pred_fallthru
      _
    // Predicated region
    $region46: #{local_transform_forward.24} parent=1 // pred_check
      _
    $region47: #{local_transform_forward.24} parent=1 // pred_check_branch
      %1187 = sbr.rel (0) target = $region49
    $region48: #{local_transform_forward.24} parent=1 // pred_region
      _
    $region49: #{local_transform_forward.24} parent=1 // pred_fallthru
      _
    // Predicated region
    $region50: #{local_transform_forward.24} parent=1 // pred_check
      _
    $region51: #{local_transform_forward.24} parent=1 // pred_check_branch
      %1189 = sbr.rel (0) target = $region53
    $region52: #{local_transform_forward.24} parent=1 // pred_region
      %1190 = dma.done [#allocation3], 1024
    $region53: #{local_transform_forward.24} parent=1 // pred_fallthru
      _
    %1191 = vsyncpa [#allocation3], 1

</llo_original>
